<compile_context>
chip_gen: v6e
topology: v6e:2x2x1
jax: 0.10.0
libtpu: 0.0.40
codegen_flags: <defaults>
</compile_context>

<pallas_src>
import functools

import jax
import jax.numpy as jnp
from jax.experimental import pallas as pl
from jax.experimental.pallas import tpu as pltpu


# ----------------------------------------------------------------------------
# Model dimensions
# ----------------------------------------------------------------------------
IN_CH = 4
STEM_CH = 8
STAGE_CH = (16, 32, 32)     # strides 2, 4, 8 relative to input
NECK_CH = 32
NUM_ANCHORS = 4
NUM_CLASSES = 2
N_OFFSETS = 8


# ----------------------------------------------------------------------------
# Pallas kernels
# ----------------------------------------------------------------------------
def _conv3x3_s1_kernel(x_ref, w_ref, b_ref, o_ref):
    """3x3 stride-1 conv + ReLU. x_ref: (1, H+2, W+2, Cin) padded, f32.
    w_ref: (9, Cin, Cout) bf16 per-tap weights.  o_ref: (1, H, W, Cout) f32."""
    _, H, W, Cout = o_ref.shape
    Cin = x_ref.shape[-1]
    acc = jnp.zeros((H * W, Cout), jnp.float32)
    for t in range(9):
        di, dj = divmod(t, 3)
        tap = x_ref[0, di:di + H, dj:dj + W, :].reshape(H * W, Cin)
        acc = acc + jnp.dot(tap.astype(jnp.bfloat16), w_ref[t],
                            preferred_element_type=jnp.float32)
    acc = jnp.maximum(acc + b_ref[...], 0.0)
    o_ref[...] = acc.reshape(1, H, W, Cout).astype(o_ref.dtype)


def _conv3x3_s2_kernel(ph_ref, w_ref, b_ref, o_ref):
    """3x3 stride-2 conv + ReLU on a phase-split padded input.
    ph_ref: (4, 1, Hp2, Wp2, Cin) f32 where phase p = pi*2+pj holds
            x_pad[2r+pi, 2c+pj].  o_ref: (1, Ho, Wo, Cout) f32."""
    _, Ho, Wo, Cout = o_ref.shape
    Cin = ph_ref.shape[-1]
    acc = jnp.zeros((Ho * Wo, Cout), jnp.float32)
    for t in range(9):
        di, dj = divmod(t, 3)
        pi, oi = di % 2, di // 2
        pj, oj = dj % 2, dj // 2
        tap = ph_ref[pi * 2 + pj, 0, oi:oi + Ho, oj:oj + Wo, :].reshape(Ho * Wo, Cin)
        acc = acc + jnp.dot(tap.astype(jnp.bfloat16), w_ref[t],
                            preferred_element_type=jnp.float32)
    acc = jnp.maximum(acc + b_ref[...], 0.0)
    o_ref[...] = acc.reshape(1, Ho, Wo, Cout).astype(o_ref.dtype)


def _neck_rpn_kernel(ncat_ref, wn_ref, bn_ref, wr_ref, br_ref, wh_ref, bh_ref,
                     feat_ref, head_ref, pad_scr):
    """Fused neck (3 laterals as one K=80 matmul) + 3x3 rpn conv + fused
    cls||reg head.  Intermediates live entirely in VMEM (pad_scr scratch)."""
    _, H, W, Kc = ncat_ref.shape
    C = wn_ref.shape[-1]
    x = ncat_ref[...].reshape(H * W, Kc).astype(jnp.bfloat16)
    feat = jnp.dot(x, wn_ref[...], preferred_element_type=jnp.float32) + bn_ref[...]
    feat_ref[...] = feat.reshape(1, H * W, C).astype(feat_ref.dtype)

    # zero-pad feat inside VMEM for the 3x3 rpn conv
    pad_scr[...] = jnp.zeros_like(pad_scr)
    pad_scr[0, 1:H + 1, 1:W + 1, :] = feat.reshape(H, W, C)

    acc = jnp.zeros((H * W, C), jnp.float32)
    for t in range(9):
        di, dj = divmod(t, 3)
        tap = pad_scr[0, di:di + H, dj:dj + W, :].reshape(H * W, C)
        acc = acc + jnp.dot(tap.astype(jnp.bfloat16), wr_ref[t],
                            preferred_element_type=jnp.float32)
    r = jnp.maximum(acc + br_ref[...], 0.0).astype(jnp.bfloat16)

    head = jnp.dot(r, wh_ref[...], preferred_element_type=jnp.float32) + bh_ref[...]
    head_ref[...] = head.reshape(1, H * W, head.shape[-1]).astype(head_ref.dtype)


def _roi_head_kernel(s_ref, f_ref, wfc_ref, bfc_ref, wh_ref, bh_ref, o_ref):
    """Fused roi head: sigmoid-score weighted pooling (denominator folded into
    the same matmul via a ones column) + FC + fused cls||reg head.
    s_ref: (1, A, HW) f32 logits (pre-transposed), f_ref: (1, HW, C+1) bf16."""
    C = wfc_ref.shape[0]
    s = s_ref[0]                                        # (A, HW) f32
    w = jax.nn.sigmoid(s).astype(jnp.bfloat16)          # sigmoid in f32, feed bf16
    num = jnp.dot(w, f_ref[0], preferred_element_type=jnp.float32)   # (A, C+1)
    pooled = num[:, :C] / (num[:, C:C + 1] + 1e-6)      # f32 division
    h = jnp.dot(pooled.astype(jnp.bfloat16), wfc_ref[...],
                preferred_element_type=jnp.float32) + bfc_ref[...]
    h = jnp.maximum(h, 0.0).astype(jnp.bfloat16)
    out = jnp.dot(h, wh_ref[...], preferred_element_type=jnp.float32) + bh_ref[...]
    o_ref[0] = out.astype(o_ref.dtype)


# ----------------------------------------------------------------------------
# pallas_call wrappers
# ----------------------------------------------------------------------------
_PAR = pltpu.CompilerParams(dimension_semantics=("parallel",))


def conv3x3(x, w_taps, bias, stride):
    """3x3 conv + ReLU.  x: (B, H, W, Cin) f32.  Padding / phase split is XLA
    data movement; the 9-tap matmul accumulation happens in-kernel (VMEM)."""
    B, H, W, Cin = x.shape
    Cout = w_taps.shape[-1]
    Ho = (H + 2 - 3) // stride + 1
    Wo = (W + 2 - 3) // stride + 1
    xp = jnp.pad(x, ((0, 0), (1, 1), (1, 1), (0, 0)))            # (B, H+2, W+2, Cin)

    if stride == 1:
        return pl.pallas_call(
            _conv3x3_s1_kernel,
            out_shape=jax.ShapeDtypeStruct((B, Ho, Wo, Cout), jnp.float32),
            grid=(B,),
            in_specs=[
                pl.BlockSpec((1, H + 2, W + 2, Cin), lambda b: (b, 0, 0, 0)),
                pl.BlockSpec((9, Cin, Cout), lambda b: (0, 0, 0)),
                pl.BlockSpec((1, Cout), lambda b: (0, 0)),
            ],
            out_specs=pl.BlockSpec((1, Ho, Wo, Cout), lambda b: (b, 0, 0, 0)),
            compiler_params=_PAR,
        )(xp, w_taps, bias)

    assert stride == 2 and H % 2 == 0 and W % 2 == 0
    Hp2, Wp2 = (H + 2) // 2, (W + 2) // 2
    # phase split: ph[pi*2+pj, b, r, c, :] = xp[b, 2r+pi, 2c+pj, :]
    ph = (xp.reshape(B, Hp2, 2, Wp2, 2, Cin)
            .transpose(2, 4, 0, 1, 3, 5)
            .reshape(4, B, Hp2, Wp2, Cin))
    return pl.pallas_call(
        _conv3x3_s2_kernel,
        out_shape=jax.ShapeDtypeStruct((B, Ho, Wo, Cout), jnp.float32),
        grid=(B,),
        in_specs=[
            pl.BlockSpec((4, 1, Hp2, Wp2, Cin), lambda b: (0, b, 0, 0, 0)),
            pl.BlockSpec((9, Cin, Cout), lambda b: (0, 0, 0)),
            pl.BlockSpec((1, Cout), lambda b: (0, 0)),
        ],
        out_specs=pl.BlockSpec((1, Ho, Wo, Cout), lambda b: (b, 0, 0, 0)),
        compiler_params=_PAR,
    )(ph, w_taps, bias)


def neck_rpn(ncat, kp):
    B, H, W, Kc = ncat.shape
    C = kp["neck_w"].shape[-1]
    Nh = kp["rpn_head_w"].shape[-1]
    feat, head = pl.pallas_call(
        _neck_rpn_kernel,
        out_shape=(jax.ShapeDtypeStruct((B, H * W, C), jnp.bfloat16),
                   jax.ShapeDtypeStruct((B, H * W, Nh), jnp.float32)),
        grid=(B,),
        in_specs=[
            pl.BlockSpec((1, H, W, Kc), lambda b: (b, 0, 0, 0)),
            pl.BlockSpec((Kc, C), lambda b: (0, 0)),
            pl.BlockSpec((1, C), lambda b: (0, 0)),
            pl.BlockSpec((9, C, C), lambda b: (0, 0, 0)),
            pl.BlockSpec((1, C), lambda b: (0, 0)),
            pl.BlockSpec((C, Nh), lambda b: (0, 0)),
            pl.BlockSpec((1, Nh), lambda b: (0, 0)),
        ],
        out_specs=(pl.BlockSpec((1, H * W, C), lambda b: (b, 0, 0)),
                   pl.BlockSpec((1, H * W, Nh), lambda b: (b, 0, 0))),
        scratch_shapes=[pltpu.VMEM((1, H + 2, W + 2, C), jnp.float32)],
        compiler_params=_PAR,
    )(ncat, kp["neck_w"], kp["neck_b"], kp["rpn_conv_w"], kp["rpn_conv_b"],
      kp["rpn_head_w"], kp["rpn_head_b"])
    return feat, head


def roi_head_call(scores_t, feats_aug, kp):
    B, A, HW = scores_t.shape
    C1 = feats_aug.shape[-1]
    C = kp["roi_fc_w"].shape[0]
    No = kp["roi_head_w"].shape[-1]
    return pl.pallas_call(
        _roi_head_kernel,
        out_shape=jax.ShapeDtypeStruct((B, A, No), jnp.float32),
        grid=(B,),
        in_specs=[
            pl.BlockSpec((1, A, HW), lambda b: (b, 0, 0)),
            pl.BlockSpec((1, HW, C1), lambda b: (b, 0, 0)),
            pl.BlockSpec((C, C), lambda b: (0, 0)),
            pl.BlockSpec((1, C), lambda b: (0, 0)),
            pl.BlockSpec((C, No), lambda b: (0, 0)),
            pl.BlockSpec((1, No), lambda b: (0, 0)),
        ],
        out_specs=pl.BlockSpec((1, A, No), lambda b: (b, 0, 0)),
        compiler_params=_PAR,
    )(scores_t, feats_aug, kp["roi_fc_w"], kp["roi_fc_b"],
      kp["roi_head_w"], kp["roi_head_b"])


# ----------------------------------------------------------------------------
# Parameter init (PyTorch-style layouts) + kernel-ready preparation
# ----------------------------------------------------------------------------
def _conv_init(key, o, i, kh, kw, scale=0.05):
    kw_, kb_ = jax.random.split(key)
    w = scale * jax.random.normal(kw_, (o, i, kh, kw), jnp.float32)
    b = scale * jax.random.normal(kb_, (o,), jnp.float32)
    return {"w": w, "b": b}


def _fc_init(key, i, o, scale=0.05):
    kw_, kb_ = jax.random.split(key)
    w = scale * jax.random.normal(kw_, (i, o), jnp.float32)
    b = scale * jax.random.normal(kb_, (o,), jnp.float32)
    return {"w": w, "b": b}


def init_params(key):
    keys = jax.random.split(key, 16)
    p = {}
    p["stem"] = _conv_init(keys[0], STEM_CH, IN_CH, 3, 3)
    p["stage1"] = _conv_init(keys[1], STAGE_CH[0], STEM_CH, 3, 3)
    p["stage2"] = _conv_init(keys[2], STAGE_CH[1], STAGE_CH[0], 3, 3)
    p["stage3"] = _conv_init(keys[3], STAGE_CH[2], STAGE_CH[1], 3, 3)
    p["lat1"] = _conv_init(keys[4], NECK_CH, STAGE_CH[0], 1, 1)
    p["lat2"] = _conv_init(keys[5], NECK_CH, STAGE_CH[1], 1, 1)
    p["lat3"] = _conv_init(keys[6], NECK_CH, STAGE_CH[2], 1, 1)
    p["rpn_conv"] = _conv_init(keys[7], NECK_CH, NECK_CH, 3, 3)
    p["rpn_cls"] = _conv_init(keys[8], NUM_ANCHORS, NECK_CH, 1, 1)
    p["rpn_reg"] = _conv_init(keys[9], NUM_ANCHORS * 4, NECK_CH, 1, 1)
    p["roi_fc"] = _fc_init(keys[10], NECK_CH, NECK_CH)
    p["roi_cls"] = _fc_init(keys[11], NECK_CH, NUM_CLASSES)
    p["roi_reg"] = _fc_init(keys[12], NECK_CH, N_OFFSETS)
    return p


def _conv_taps(cw):      # (O, I, 3, 3) -> (9, I, O) bf16 per-tap weights
    o, i = cw.shape[0], cw.shape[1]
    return jnp.transpose(cw, (2, 3, 1, 0)).reshape(9, i, o).astype(jnp.bfloat16)


def _conv1x1_mat(cw):    # (O, I, 1, 1) -> (I, O)
    o, i = cw.shape[0], cw.shape[1]
    return jnp.transpose(cw, (2, 3, 1, 0)).reshape(i, o)


def prepare_params(p):
    """One-time reshaping / fusing / bf16 casting of weights (hoisted out of
    the per-forward path)."""
    kp = {}
    for name in ("stem", "stage1", "stage2", "stage3"):
        kp[name + "_w"] = _conv_taps(p[name]["w"])
        kp[name + "_b"] = p[name]["b"].reshape(1, -1).astype(jnp.float32)
    # neck: laterals fused along K (outputs are summed -> biases add)
    kp["neck_w"] = jnp.concatenate(
        [_conv1x1_mat(p["lat1"]["w"]),
         _conv1x1_mat(p["lat2"]["w"]),
         _conv1x1_mat(p["lat3"]["w"])], axis=0).astype(jnp.bfloat16)
    kp["neck_b"] = (p["lat1"]["b"] + p["lat2"]["b"] + p["lat3"]["b"]
                    ).reshape(1, -1).astype(jnp.float32)
    # rpn
    kp["rpn_conv_w"] = _conv_taps(p["rpn_conv"]["w"])
    kp["rpn_conv_b"] = p["rpn_conv"]["b"].reshape(1, -1).astype(jnp.float32)
    kp["rpn_head_w"] = jnp.concatenate(
        [_conv1x1_mat(p["rpn_cls"]["w"]),
         _conv1x1_mat(p["rpn_reg"]["w"])], axis=1).astype(jnp.bfloat16)
    kp["rpn_head_b"] = jnp.concatenate(
        [p["rpn_cls"]["b"], p["rpn_reg"]["b"]]).reshape(1, -1).astype(jnp.float32)
    # roi
    kp["roi_fc_w"] = p["roi_fc"]["w"].astype(jnp.bfloat16)
    kp["roi_fc_b"] = p["roi_fc"]["b"].reshape(1, -1).astype(jnp.float32)
    kp["roi_head_w"] = jnp.concatenate(
        [p["roi_cls"]["w"], p["roi_reg"]["w"]], axis=1).astype(jnp.bfloat16)
    kp["roi_head_b"] = jnp.concatenate(
        [p["roi_cls"]["b"], p["roi_reg"]["b"]]).reshape(1, -1).astype(jnp.float32)
    return kp


# ----------------------------------------------------------------------------
# Forward pass
# ----------------------------------------------------------------------------
def two_stage_anchor_based_lane_detector(kp, x_nchw, training=False):
    """Forward pass matching the PyTorch module (eval path: x is the image)."""
    x = jnp.transpose(x_nchw, (0, 2, 3, 1))                       # NCHW -> NHWC

    # backbone (drop the stem stage, i.e. [1:])
    s0 = conv3x3(x, kp["stem_w"], kp["stem_b"], 1)                # (B,16,16,8)
    s1 = conv3x3(s0, kp["stage1_w"], kp["stage1_b"], 2)           # (B, 8, 8,16)
    s2 = conv3x3(s1, kp["stage2_w"], kp["stage2_b"], 2)           # (B, 4, 4,32)
    s3 = conv3x3(s2, kp["stage3_w"], kp["stage3_b"], 2)           # (B, 2, 2,32)

    # neck inputs: nearest upsample + channel concat (XLA glue; 1x1 conv
    # commutes with nearest upsample so this is exactly l1 + up(l2) + up(l3))
    B, H, W, _ = s1.shape
    s2u = jnp.repeat(jnp.repeat(s2, 2, axis=1), 2, axis=2)
    s3u = jnp.repeat(jnp.repeat(s3, 4, axis=1), 4, axis=2)
    ncat = jnp.concatenate([s1, s2u, s3u], axis=-1)               # (B,8,8,80)

    # fused neck + rpn head
    feat, head = neck_rpn(ncat, kp)                               # (B,HW,32) bf16, (B,HW,20) f32
    HW = H * W
    rpn_cls = head[..., :NUM_ANCHORS]                             # (B,HW,A)

    # fused roi head: scores pre-transposed, ones column folds the denominator
    scores_t = jnp.transpose(rpn_cls, (0, 2, 1))                  # (B,A,HW)
    ones = jnp.ones((B, HW, 1), jnp.bfloat16)
    feats_aug = jnp.concatenate([feat, ones], axis=-1)            # (B,HW,33)
    roi_out = roi_head_call(scores_t, feats_aug, kp)              # (B,A,10)

    prediction = {
        "lane_cls": roi_out[..., :NUM_CLASSES],                   # (B,A,2)
        "lane_reg": roi_out[..., NUM_CLASSES:],                   # (B,A,8)
    }
    if training:
        prediction["rpn_cls"] = rpn_cls
        prediction["rpn_reg"] = head[..., NUM_ANCHORS:].reshape(B, HW, NUM_ANCHORS, 4)
    return prediction


# ----------------------------------------------------------------------------
if __name__ == "__main__":
    key = jax.random.PRNGKey(0)
    x = jax.random.normal(key, (2, IN_CH, 16, 16), jnp.float32)   # NCHW like PyTorch
    raw_params = init_params(jax.random.PRNGKey(42))
    params = prepare_params(raw_params)

    fwd = jax.jit(functools.partial(two_stage_anchor_based_lane_detector,
                                    training=False))
    out = fwd(params, x)
    jax.block_until_ready(out)

    assert out["lane_cls"].shape == (2, NUM_ANCHORS, NUM_CLASSES)
    assert out["lane_reg"].shape == (2, NUM_ANCHORS, N_OFFSETS)
    print("KERNEL_OK")
</pallas_src>

<mosaic_0001>
module attributes {stable_mosaic.version = 11 : i64} {
  func.func @_conv3x3_s1_kernel(%arg0: i32, %arg1: memref<1x18x18x4xf32, #tpu.memory_space<vmem>>, %arg2: memref<9x4x8xbf16, #tpu.memory_space<vmem>>, %arg3: memref<1x8xf32, #tpu.memory_space<vmem>>, %arg4: memref<1x16x16x8xf32, #tpu.memory_space<vmem>>) attributes {dimension_semantics = [#tpu.dimension_semantics<parallel>], iteration_bounds = array<i64: 2>, scalar_prefetch = 0 : i64, scratch_operands = 0 : i64, tpu.core_type = #tpu.core_type<tc>, window_params = [{transform_indices = @transform_0, window_bounds = array<i64: 1, 18, 18, 4>}, {pipeline_mode = #tpu.pipeline_mode<synchronous>, transform_indices = @transform_1, window_bounds = array<i64: 9, 4, 8>}, {pipeline_mode = #tpu.pipeline_mode<synchronous>, transform_indices = @transform_2, window_bounds = array<i64: 1, 8>}, {transform_indices = @transform_3, window_bounds = array<i64: 1, 16, 16, 8>}]} {
    %cst = arith.constant 0.000000e+00 : f32
    %0 = vector.broadcast %cst : f32 to vector<256x8xf32>
    %c0 = arith.constant 0 : index
    %c0_0 = arith.constant 0 : index
    %c0_1 = arith.constant 0 : index
    %c0_2 = arith.constant 0 : index
    %1 = vector.load %arg1[%c0, %c0_0, %c0_1, %c0_2] : memref<1x18x18x4xf32, #tpu.memory_space<vmem>>, vector<1x16x16x4xf32>
    %2 = vector.shape_cast %1 : vector<1x16x16x4xf32> to vector<16x16x4xf32>
    %3 = vector.shape_cast %2 : vector<16x16x4xf32> to vector<256x4xf32>
    %4 = arith.truncf %3 : vector<256x4xf32> to vector<256x4xbf16>
    %c0_3 = arith.constant 0 : index
    %c0_4 = arith.constant 0 : index
    %c0_5 = arith.constant 0 : index
    %5 = vector.load %arg2[%c0_3, %c0_4, %c0_5] : memref<9x4x8xbf16, #tpu.memory_space<vmem>>, vector<1x4x8xbf16>
    %6 = vector.shape_cast %5 : vector<1x4x8xbf16> to vector<4x8xbf16>
    %cst_6 = arith.constant dense<0.000000e+00> : vector<256x8xf32>
    %7 = tpu.matmul %4, %6, %cst_6 {dimension_numbers = #tpu.dot_dimension_numbers<[1], [0], [0], [1], [0, 0, 1, 1], [], []>} : vector<256x4xbf16>, vector<4x8xbf16>, vector<256x8xf32> -> vector<256x8xf32>
    %8 = arith.addf %0, %7 : vector<256x8xf32>
    %c0_7 = arith.constant 0 : index
    %c0_8 = arith.constant 0 : index
    %c1 = arith.constant 1 : index
    %c0_9 = arith.constant 0 : index
    %9 = vector.load %arg1[%c0_7, %c0_8, %c1, %c0_9] : memref<1x18x18x4xf32, #tpu.memory_space<vmem>>, vector<1x16x16x4xf32>
    %10 = vector.shape_cast %9 : vector<1x16x16x4xf32> to vector<16x16x4xf32>
    %11 = vector.shape_cast %10 : vector<16x16x4xf32> to vector<256x4xf32>
    %12 = arith.truncf %11 : vector<256x4xf32> to vector<256x4xbf16>
    %c1_10 = arith.constant 1 : index
    %c0_11 = arith.constant 0 : index
    %c0_12 = arith.constant 0 : index
    %13 = vector.load %arg2[%c1_10, %c0_11, %c0_12] : memref<9x4x8xbf16, #tpu.memory_space<vmem>>, vector<1x4x8xbf16>
    %14 = vector.shape_cast %13 : vector<1x4x8xbf16> to vector<4x8xbf16>
    %cst_13 = arith.constant dense<0.000000e+00> : vector<256x8xf32>
    %15 = tpu.matmul %12, %14, %cst_13 {dimension_numbers = #tpu.dot_dimension_numbers<[1], [0], [0], [1], [0, 0, 1, 1], [], []>} : vector<256x4xbf16>, vector<4x8xbf16>, vector<256x8xf32> -> vector<256x8xf32>
    %16 = arith.addf %8, %15 : vector<256x8xf32>
    %c0_14 = arith.constant 0 : index
    %c0_15 = arith.constant 0 : index
    %c2 = arith.constant 2 : index
    %c0_16 = arith.constant 0 : index
    %17 = vector.load %arg1[%c0_14, %c0_15, %c2, %c0_16] : memref<1x18x18x4xf32, #tpu.memory_space<vmem>>, vector<1x16x16x4xf32>
    %18 = vector.shape_cast %17 : vector<1x16x16x4xf32> to vector<16x16x4xf32>
    %19 = vector.shape_cast %18 : vector<16x16x4xf32> to vector<256x4xf32>
    %20 = arith.truncf %19 : vector<256x4xf32> to vector<256x4xbf16>
    %c2_17 = arith.constant 2 : index
    %c0_18 = arith.constant 0 : index
    %c0_19 = arith.constant 0 : index
    %21 = vector.load %arg2[%c2_17, %c0_18, %c0_19] : memref<9x4x8xbf16, #tpu.memory_space<vmem>>, vector<1x4x8xbf16>
    %22 = vector.shape_cast %21 : vector<1x4x8xbf16> to vector<4x8xbf16>
    %cst_20 = arith.constant dense<0.000000e+00> : vector<256x8xf32>
    %23 = tpu.matmul %20, %22, %cst_20 {dimension_numbers = #tpu.dot_dimension_numbers<[1], [0], [0], [1], [0, 0, 1, 1], [], []>} : vector<256x4xbf16>, vector<4x8xbf16>, vector<256x8xf32> -> vector<256x8xf32>
    %24 = arith.addf %16, %23 : vector<256x8xf32>
    %c0_21 = arith.constant 0 : index
    %c1_22 = arith.constant 1 : index
    %c0_23 = arith.constant 0 : index
    %c0_24 = arith.constant 0 : index
    %25 = vector.load %arg1[%c0_21, %c1_22, %c0_23, %c0_24] : memref<1x18x18x4xf32, #tpu.memory_space<vmem>>, vector<1x16x16x4xf32>
    %26 = vector.shape_cast %25 : vector<1x16x16x4xf32> to vector<16x16x4xf32>
    %27 = vector.shape_cast %26 : vector<16x16x4xf32> to vector<256x4xf32>
    %28 = arith.truncf %27 : vector<256x4xf32> to vector<256x4xbf16>
    %c3 = arith.constant 3 : index
    %c0_25 = arith.constant 0 : index
    %c0_26 = arith.constant 0 : index
    %29 = vector.load %arg2[%c3, %c0_25, %c0_26] : memref<9x4x8xbf16, #tpu.memory_space<vmem>>, vector<1x4x8xbf16>
    %30 = vector.shape_cast %29 : vector<1x4x8xbf16> to vector<4x8xbf16>
    %cst_27 = arith.constant dense<0.000000e+00> : vector<256x8xf32>
    %31 = tpu.matmul %28, %30, %cst_27 {dimension_numbers = #tpu.dot_dimension_numbers<[1], [0], [0], [1], [0, 0, 1, 1], [], []>} : vector<256x4xbf16>, vector<4x8xbf16>, vector<256x8xf32> -> vector<256x8xf32>
    %32 = arith.addf %24, %31 : vector<256x8xf32>
    %c0_28 = arith.constant 0 : index
    %c1_29 = arith.constant 1 : index
    %c1_30 = arith.constant 1 : index
    %c0_31 = arith.constant 0 : index
    %33 = vector.load %arg1[%c0_28, %c1_29, %c1_30, %c0_31] : memref<1x18x18x4xf32, #tpu.memory_space<vmem>>, vector<1x16x16x4xf32>
    %34 = vector.shape_cast %33 : vector<1x16x16x4xf32> to vector<16x16x4xf32>
    %35 = vector.shape_cast %34 : vector<16x16x4xf32> to vector<256x4xf32>
    %36 = arith.truncf %35 : vector<256x4xf32> to vector<256x4xbf16>
    %c4 = arith.constant 4 : index
    %c0_32 = arith.constant 0 : index
    %c0_33 = arith.constant 0 : index
    %37 = vector.load %arg2[%c4, %c0_32, %c0_33] : memref<9x4x8xbf16, #tpu.memory_space<vmem>>, vector<1x4x8xbf16>
    %38 = vector.shape_cast %37 : vector<1x4x8xbf16> to vector<4x8xbf16>
    %cst_34 = arith.constant dense<0.000000e+00> : vector<256x8xf32>
    %39 = tpu.matmul %36, %38, %cst_34 {dimension_numbers = #tpu.dot_dimension_numbers<[1], [0], [0], [1], [0, 0, 1, 1], [], []>} : vector<256x4xbf16>, vector<4x8xbf16>, vector<256x8xf32> -> vector<256x8xf32>
    %40 = arith.addf %32, %39 : vector<256x8xf32>
    %c0_35 = arith.constant 0 : index
    %c1_36 = arith.constant 1 : index
    %c2_37 = arith.constant 2 : index
    %c0_38 = arith.constant 0 : index
    %41 = vector.load %arg1[%c0_35, %c1_36, %c2_37, %c0_38] : memref<1x18x18x4xf32, #tpu.memory_space<vmem>>, vector<1x16x16x4xf32>
    %42 = vector.shape_cast %41 : vector<1x16x16x4xf32> to vector<16x16x4xf32>
    %43 = vector.shape_cast %42 : vector<16x16x4xf32> to vector<256x4xf32>
    %44 = arith.truncf %43 : vector<256x4xf32> to vector<256x4xbf16>
    %c5 = arith.constant 5 : index
    %c0_39 = arith.constant 0 : index
    %c0_40 = arith.constant 0 : index
    %45 = vector.load %arg2[%c5, %c0_39, %c0_40] : memref<9x4x8xbf16, #tpu.memory_space<vmem>>, vector<1x4x8xbf16>
    %46 = vector.shape_cast %45 : vector<1x4x8xbf16> to vector<4x8xbf16>
    %cst_41 = arith.constant dense<0.000000e+00> : vector<256x8xf32>
    %47 = tpu.matmul %44, %46, %cst_41 {dimension_numbers = #tpu.dot_dimension_numbers<[1], [0], [0], [1], [0, 0, 1, 1], [], []>} : vector<256x4xbf16>, vector<4x8xbf16>, vector<256x8xf32> -> vector<256x8xf32>
    %48 = arith.addf %40, %47 : vector<256x8xf32>
    %c0_42 = arith.constant 0 : index
    %c2_43 = arith.constant 2 : index
    %c0_44 = arith.constant 0 : index
    %c0_45 = arith.constant 0 : index
    %49 = vector.load %arg1[%c0_42, %c2_43, %c0_44, %c0_45] : memref<1x18x18x4xf32, #tpu.memory_space<vmem>>, vector<1x16x16x4xf32>
    %50 = vector.shape_cast %49 : vector<1x16x16x4xf32> to vector<16x16x4xf32>
    %51 = vector.shape_cast %50 : vector<16x16x4xf32> to vector<256x4xf32>
    %52 = arith.truncf %51 : vector<256x4xf32> to vector<256x4xbf16>
    %c6 = arith.constant 6 : index
    %c0_46 = arith.constant 0 : index
    %c0_47 = arith.constant 0 : index
    %53 = vector.load %arg2[%c6, %c0_46, %c0_47] : memref<9x4x8xbf16, #tpu.memory_space<vmem>>, vector<1x4x8xbf16>
    %54 = vector.shape_cast %53 : vector<1x4x8xbf16> to vector<4x8xbf16>
    %cst_48 = arith.constant dense<0.000000e+00> : vector<256x8xf32>
    %55 = tpu.matmul %52, %54, %cst_48 {dimension_numbers = #tpu.dot_dimension_numbers<[1], [0], [0], [1], [0, 0, 1, 1], [], []>} : vector<256x4xbf16>, vector<4x8xbf16>, vector<256x8xf32> -> vector<256x8xf32>
    %56 = arith.addf %48, %55 : vector<256x8xf32>
    %c0_49 = arith.constant 0 : index
    %c2_50 = arith.constant 2 : index
    %c1_51 = arith.constant 1 : index
    %c0_52 = arith.constant 0 : index
    %57 = vector.load %arg1[%c0_49, %c2_50, %c1_51, %c0_52] : memref<1x18x18x4xf32, #tpu.memory_space<vmem>>, vector<1x16x16x4xf32>
    %58 = vector.shape_cast %57 : vector<1x16x16x4xf32> to vector<16x16x4xf32>
    %59 = vector.shape_cast %58 : vector<16x16x4xf32> to vector<256x4xf32>
    %60 = arith.truncf %59 : vector<256x4xf32> to vector<256x4xbf16>
    %c7 = arith.constant 7 : index
    %c0_53 = arith.constant 0 : index
    %c0_54 = arith.constant 0 : index
    %61 = vector.load %arg2[%c7, %c0_53, %c0_54] : memref<9x4x8xbf16, #tpu.memory_space<vmem>>, vector<1x4x8xbf16>
    %62 = vector.shape_cast %61 : vector<1x4x8xbf16> to vector<4x8xbf16>
    %cst_55 = arith.constant dense<0.000000e+00> : vector<256x8xf32>
    %63 = tpu.matmul %60, %62, %cst_55 {dimension_numbers = #tpu.dot_dimension_numbers<[1], [0], [0], [1], [0, 0, 1, 1], [], []>} : vector<256x4xbf16>, vector<4x8xbf16>, vector<256x8xf32> -> vector<256x8xf32>
    %64 = arith.addf %56, %63 : vector<256x8xf32>
    %c0_56 = arith.constant 0 : index
    %c2_57 = arith.constant 2 : index
    %c2_58 = arith.constant 2 : index
    %c0_59 = arith.constant 0 : index
    %65 = vector.load %arg1[%c0_56, %c2_57, %c2_58, %c0_59] : memref<1x18x18x4xf32, #tpu.memory_space<vmem>>, vector<1x16x16x4xf32>
    %66 = vector.shape_cast %65 : vector<1x16x16x4xf32> to vector<16x16x4xf32>
    %67 = vector.shape_cast %66 : vector<16x16x4xf32> to vector<256x4xf32>
    %68 = arith.truncf %67 : vector<256x4xf32> to vector<256x4xbf16>
    %c8 = arith.constant 8 : index
    %c0_60 = arith.constant 0 : index
    %c0_61 = arith.constant 0 : index
    %69 = vector.load %arg2[%c8, %c0_60, %c0_61] : memref<9x4x8xbf16, #tpu.memory_space<vmem>>, vector<1x4x8xbf16>
    %70 = vector.shape_cast %69 : vector<1x4x8xbf16> to vector<4x8xbf16>
    %cst_62 = arith.constant dense<0.000000e+00> : vector<256x8xf32>
    %71 = tpu.matmul %68, %70, %cst_62 {dimension_numbers = #tpu.dot_dimension_numbers<[1], [0], [0], [1], [0, 0, 1, 1], [], []>} : vector<256x4xbf16>, vector<4x8xbf16>, vector<256x8xf32> -> vector<256x8xf32>
    %72 = arith.addf %64, %71 : vector<256x8xf32>
    %c0_63 = arith.constant 0 : index
    %c0_64 = arith.constant 0 : index
    %73 = vector.load %arg3[%c0_63, %c0_64] : memref<1x8xf32, #tpu.memory_space<vmem>>, vector<1x8xf32>
    %74 = vector.broadcast %73 : vector<1x8xf32> to vector<256x8xf32>
    %75 = arith.addf %72, %74 : vector<256x8xf32>
    %cst_65 = arith.constant 0.000000e+00 : f32
    %76 = vector.broadcast %cst_65 : f32 to vector<256x8xf32>
    %77 = arith.maximumf %75, %76 : vector<256x8xf32>
    %78 = vector.shape_cast %77 : vector<256x8xf32> to vector<1x16x16x8xf32>
    %c0_66 = arith.constant 0 : index
    %c0_67 = arith.constant 0 : index
    %c0_68 = arith.constant 0 : index
    %c0_69 = arith.constant 0 : index
    %79 = vector.load %arg4[%c0_66, %c0_67, %c0_68, %c0_69] : memref<1x16x16x8xf32, #tpu.memory_space<vmem>>, vector<1x16x16x8xf32>
    tpu.vector_store %arg4[%c0_66, %c0_67, %c0_68, %c0_69], %78 {strides = array<i32>} : memref<1x16x16x8xf32, #tpu.memory_space<vmem>>, vector<1x16x16x8xf32>,
    return
  }
  func.func @transform_0(%arg0: i32) -> (i32, i32, i32, i32) {
    %c0_i32 = arith.constant 0 : i32
    %c0_i32_0 = arith.constant 0 : i32
    %c0_i32_1 = arith.constant 0 : i32
    %c0_i32_2 = arith.constant 0 : i32
    return %arg0, %c0_i32, %c0_i32_0, %c0_i32_1 : i32, i32, i32, i32
  }
  func.func @transform_1(%arg0: i32) -> (i32, i32, i32) {
    %c0_i32 = arith.constant 0 : i32
    %c0_i32_0 = arith.constant 0 : i32
    %c0_i32_1 = arith.constant 0 : i32
    %c0_i32_2 = arith.constant 0 : i32
    return %c0_i32, %c0_i32_0, %c0_i32_1 : i32, i32, i32
  }
  func.func @transform_2(%arg0: i32) -> (i32, i32) {
    %c0_i32 = arith.constant 0 : i32
    %c0_i32_0 = arith.constant 0 : i32
    %c0_i32_1 = arith.constant 0 : i32
    return %c0_i32, %c0_i32_0 : i32, i32
  }
  func.func @transform_3(%arg0: i32) -> (i32, i32, i32, i32) {
    %c0_i32 = arith.constant 0 : i32
    %c0_i32_0 = arith.constant 0 : i32
    %c0_i32_1 = arith.constant 0 : i32
    %c0_i32_2 = arith.constant 0 : i32
    return %arg0, %c0_i32, %c0_i32_0, %c0_i32_1 : i32, i32, i32, i32
  }
}

module attributes {stable_mosaic.version = 11 : i64} {
  func.func @_conv3x3_s2_kernel(%arg0: i32, %arg1: memref<4x1x9x9x8xf32, #tpu.memory_space<vmem>>, %arg2: memref<9x8x16xbf16, #tpu.memory_space<vmem>>, %arg3: memref<1x16xf32, #tpu.memory_space<vmem>>, %arg4: memref<1x8x8x16xf32, #tpu.memory_space<vmem>>) attributes {dimension_semantics = [#tpu.dimension_semantics<parallel>], iteration_bounds = array<i64: 2>, scalar_prefetch = 0 : i64, scratch_operands = 0 : i64, tpu.core_type = #tpu.core_type<tc>, window_params = [{transform_indices = @transform_0, window_bounds = array<i64: 4, 1, 9, 9, 8>}, {pipeline_mode = #tpu.pipeline_mode<synchronous>, transform_indices = @transform_1, window_bounds = array<i64: 9, 8, 16>}, {pipeline_mode = #tpu.pipeline_mode<synchronous>, transform_indices = @transform_2, window_bounds = array<i64: 1, 16>}, {transform_indices = @transform_3, window_bounds = array<i64: 1, 8, 8, 16>}]} {
    %cst = arith.constant 0.000000e+00 : f32
    %0 = vector.broadcast %cst : f32 to vector<64x16xf32>
    %c0 = arith.constant 0 : index
    %c0_0 = arith.constant 0 : index
    %c0_1 = arith.constant 0 : index
    %c0_2 = arith.constant 0 : index
    %c0_3 = arith.constant 0 : index
    %1 = vector.load %arg1[%c0, %c0_0, %c0_1, %c0_2, %c0_3] : memref<4x1x9x9x8xf32, #tpu.memory_space<vmem>>, vector<1x1x8x8x8xf32>
    %2 = vector.shape_cast %1 : vector<1x1x8x8x8xf32> to vector<8x8x8xf32>
    %3 = vector.shape_cast %2 : vector<8x8x8xf32> to vector<64x8xf32>
    %4 = arith.truncf %3 : vector<64x8xf32> to vector<64x8xbf16>
    %c0_4 = arith.constant 0 : index
    %c0_5 = arith.constant 0 : index
    %c0_6 = arith.constant 0 : index
    %5 = vector.load %arg2[%c0_4, %c0_5, %c0_6] : memref<9x8x16xbf16, #tpu.memory_space<vmem>>, vector<1x8x16xbf16>
    %6 = vector.shape_cast %5 : vector<1x8x16xbf16> to vector<8x16xbf16>
    %cst_7 = arith.constant dense<0.000000e+00> : vector<64x16xf32>
    %7 = tpu.matmul %4, %6, %cst_7 {dimension_numbers = #tpu.dot_dimension_numbers<[1], [0], [0], [1], [0, 0, 1, 1], [], []>} : vector<64x8xbf16>, vector<8x16xbf16>, vector<64x16xf32> -> vector<64x16xf32>
    %8 = arith.addf %0, %7 : vector<64x16xf32>
    %c1 = arith.constant 1 : index
    %c0_8 = arith.constant 0 : index
    %c0_9 = arith.constant 0 : index
    %c0_10 = arith.constant 0 : index
    %c0_11 = arith.constant 0 : index
    %9 = vector.load %arg1[%c1, %c0_8, %c0_9, %c0_10, %c0_11] : memref<4x1x9x9x8xf32, #tpu.memory_space<vmem>>, vector<1x1x8x8x8xf32>
    %10 = vector.shape_cast %9 : vector<1x1x8x8x8xf32> to vector<8x8x8xf32>
    %11 = vector.shape_cast %10 : vector<8x8x8xf32> to vector<64x8xf32>
    %12 = arith.truncf %11 : vector<64x8xf32> to vector<64x8xbf16>
    %c1_12 = arith.constant 1 : index
    %c0_13 = arith.constant 0 : index
    %c0_14 = arith.constant 0 : index
    %13 = vector.load %arg2[%c1_12, %c0_13, %c0_14] : memref<9x8x16xbf16, #tpu.memory_space<vmem>>, vector<1x8x16xbf16>
    %14 = vector.shape_cast %13 : vector<1x8x16xbf16> to vector<8x16xbf16>
    %cst_15 = arith.constant dense<0.000000e+00> : vector<64x16xf32>
    %15 = tpu.matmul %12, %14, %cst_15 {dimension_numbers = #tpu.dot_dimension_numbers<[1], [0], [0], [1], [0, 0, 1, 1], [], []>} : vector<64x8xbf16>, vector<8x16xbf16>, vector<64x16xf32> -> vector<64x16xf32>
    %16 = arith.addf %8, %15 : vector<64x16xf32>
    %c0_16 = arith.constant 0 : index
    %c0_17 = arith.constant 0 : index
    %c0_18 = arith.constant 0 : index
    %c1_19 = arith.constant 1 : index
    %c0_20 = arith.constant 0 : index
    %17 = vector.load %arg1[%c0_16, %c0_17, %c0_18, %c1_19, %c0_20] : memref<4x1x9x9x8xf32, #tpu.memory_space<vmem>>, vector<1x1x8x8x8xf32>
    %18 = vector.shape_cast %17 : vector<1x1x8x8x8xf32> to vector<8x8x8xf32>
    %19 = vector.shape_cast %18 : vector<8x8x8xf32> to vector<64x8xf32>
    %20 = arith.truncf %19 : vector<64x8xf32> to vector<64x8xbf16>
    %c2 = arith.constant 2 : index
    %c0_21 = arith.constant 0 : index
    %c0_22 = arith.constant 0 : index
    %21 = vector.load %arg2[%c2, %c0_21, %c0_22] : memref<9x8x16xbf16, #tpu.memory_space<vmem>>, vector<1x8x16xbf16>
    %22 = vector.shape_cast %21 : vector<1x8x16xbf16> to vector<8x16xbf16>
    %cst_23 = arith.constant dense<0.000000e+00> : vector<64x16xf32>
    %23 = tpu.matmul %20, %22, %cst_23 {dimension_numbers = #tpu.dot_dimension_numbers<[1], [0], [0], [1], [0, 0, 1, 1], [], []>} : vector<64x8xbf16>, vector<8x16xbf16>, vector<64x16xf32> -> vector<64x16xf32>
    %24 = arith.addf %16, %23 : vector<64x16xf32>
    %c2_24 = arith.constant 2 : index
    %c0_25 = arith.constant 0 : index
    %c0_26 = arith.constant 0 : index
    %c0_27 = arith.constant 0 : index
    %c0_28 = arith.constant 0 : index
    %25 = vector.load %arg1[%c2_24, %c0_25, %c0_26, %c0_27, %c0_28] : memref<4x1x9x9x8xf32, #tpu.memory_space<vmem>>, vector<1x1x8x8x8xf32>
    %26 = vector.shape_cast %25 : vector<1x1x8x8x8xf32> to vector<8x8x8xf32>
    %27 = vector.shape_cast %26 : vector<8x8x8xf32> to vector<64x8xf32>
    %28 = arith.truncf %27 : vector<64x8xf32> to vector<64x8xbf16>
    %c3 = arith.constant 3 : index
    %c0_29 = arith.constant 0 : index
    %c0_30 = arith.constant 0 : index
    %29 = vector.load %arg2[%c3, %c0_29, %c0_30] : memref<9x8x16xbf16, #tpu.memory_space<vmem>>, vector<1x8x16xbf16>
    %30 = vector.shape_cast %29 : vector<1x8x16xbf16> to vector<8x16xbf16>
    %cst_31 = arith.constant dense<0.000000e+00> : vector<64x16xf32>
    %31 = tpu.matmul %28, %30, %cst_31 {dimension_numbers = #tpu.dot_dimension_numbers<[1], [0], [0], [1], [0, 0, 1, 1], [], []>} : vector<64x8xbf16>, vector<8x16xbf16>, vector<64x16xf32> -> vector<64x16xf32>
    %32 = arith.addf %24, %31 : vector<64x16xf32>
    %c3_32 = arith.constant 3 : index
    %c0_33 = arith.constant 0 : index
    %c0_34 = arith.constant 0 : index
    %c0_35 = arith.constant 0 : index
    %c0_36 = arith.constant 0 : index
    %33 = vector.load %arg1[%c3_32, %c0_33, %c0_34, %c0_35, %c0_36] : memref<4x1x9x9x8xf32, #tpu.memory_space<vmem>>, vector<1x1x8x8x8xf32>
    %34 = vector.shape_cast %33 : vector<1x1x8x8x8xf32> to vector<8x8x8xf32>
    %35 = vector.shape_cast %34 : vector<8x8x8xf32> to vector<64x8xf32>
    %36 = arith.truncf %35 : vector<64x8xf32> to vector<64x8xbf16>
    %c4 = arith.constant 4 : index
    %c0_37 = arith.constant 0 : index
    %c0_38 = arith.constant 0 : index
    %37 = vector.load %arg2[%c4, %c0_37, %c0_38] : memref<9x8x16xbf16, #tpu.memory_space<vmem>>, vector<1x8x16xbf16>
    %38 = vector.shape_cast %37 : vector<1x8x16xbf16> to vector<8x16xbf16>
    %cst_39 = arith.constant dense<0.000000e+00> : vector<64x16xf32>
    %39 = tpu.matmul %36, %38, %cst_39 {dimension_numbers = #tpu.dot_dimension_numbers<[1], [0], [0], [1], [0, 0, 1, 1], [], []>} : vector<64x8xbf16>, vector<8x16xbf16>, vector<64x16xf32> -> vector<64x16xf32>
    %40 = arith.addf %32, %39 : vector<64x16xf32>
    %c2_40 = arith.constant 2 : index
    %c0_41 = arith.constant 0 : index
    %c0_42 = arith.constant 0 : index
    %c1_43 = arith.constant 1 : index
    %c0_44 = arith.constant 0 : index
    %41 = vector.load %arg1[%c2_40, %c0_41, %c0_42, %c1_43, %c0_44] : memref<4x1x9x9x8xf32, #tpu.memory_space<vmem>>, vector<1x1x8x8x8xf32>
    %42 = vector.shape_cast %41 : vector<1x1x8x8x8xf32> to vector<8x8x8xf32>
    %43 = vector.shape_cast %42 : vector<8x8x8xf32> to vector<64x8xf32>
    %44 = arith.truncf %43 : vector<64x8xf32> to vector<64x8xbf16>
    %c5 = arith.constant 5 : index
    %c0_45 = arith.constant 0 : index
    %c0_46 = arith.constant 0 : index
    %45 = vector.load %arg2[%c5, %c0_45, %c0_46] : memref<9x8x16xbf16, #tpu.memory_space<vmem>>, vector<1x8x16xbf16>
    %46 = vector.shape_cast %45 : vector<1x8x16xbf16> to vector<8x16xbf16>
    %cst_47 = arith.constant dense<0.000000e+00> : vector<64x16xf32>
    %47 = tpu.matmul %44, %46, %cst_47 {dimension_numbers = #tpu.dot_dimension_numbers<[1], [0], [0], [1], [0, 0, 1, 1], [], []>} : vector<64x8xbf16>, vector<8x16xbf16>, vector<64x16xf32> -> vector<64x16xf32>
    %48 = arith.addf %40, %47 : vector<64x16xf32>
    %c0_48 = arith.constant 0 : index
    %c0_49 = arith.constant 0 : index
    %c1_50 = arith.constant 1 : index
    %c0_51 = arith.constant 0 : index
    %c0_52 = arith.constant 0 : index
    %49 = vector.load %arg1[%c0_48, %c0_49, %c1_50, %c0_51, %c0_52] : memref<4x1x9x9x8xf32, #tpu.memory_space<vmem>>, vector<1x1x8x8x8xf32>
    %50 = vector.shape_cast %49 : vector<1x1x8x8x8xf32> to vector<8x8x8xf32>
    %51 = vector.shape_cast %50 : vector<8x8x8xf32> to vector<64x8xf32>
    %52 = arith.truncf %51 : vector<64x8xf32> to vector<64x8xbf16>
    %c6 = arith.constant 6 : index
    %c0_53 = arith.constant 0 : index
    %c0_54 = arith.constant 0 : index
    %53 = vector.load %arg2[%c6, %c0_53, %c0_54] : memref<9x8x16xbf16, #tpu.memory_space<vmem>>, vector<1x8x16xbf16>
    %54 = vector.shape_cast %53 : vector<1x8x16xbf16> to vector<8x16xbf16>
    %cst_55 = arith.constant dense<0.000000e+00> : vector<64x16xf32>
    %55 = tpu.matmul %52, %54, %cst_55 {dimension_numbers = #tpu.dot_dimension_numbers<[1], [0], [0], [1], [0, 0, 1, 1], [], []>} : vector<64x8xbf16>, vector<8x16xbf16>, vector<64x16xf32> -> vector<64x16xf32>
    %56 = arith.addf %48, %55 : vector<64x16xf32>
    %c1_56 = arith.constant 1 : index
    %c0_57 = arith.constant 0 : index
    %c1_58 = arith.constant 1 : index
    %c0_59 = arith.constant 0 : index
    %c0_60 = arith.constant 0 : index
    %57 = vector.load %arg1[%c1_56, %c0_57, %c1_58, %c0_59, %c0_60] : memref<4x1x9x9x8xf32, #tpu.memory_space<vmem>>, vector<1x1x8x8x8xf32>
    %58 = vector.shape_cast %57 : vector<1x1x8x8x8xf32> to vector<8x8x8xf32>
    %59 = vector.shape_cast %58 : vector<8x8x8xf32> to vector<64x8xf32>
    %60 = arith.truncf %59 : vector<64x8xf32> to vector<64x8xbf16>
    %c7 = arith.constant 7 : index
    %c0_61 = arith.constant 0 : index
    %c0_62 = arith.constant 0 : index
    %61 = vector.load %arg2[%c7, %c0_61, %c0_62] : memref<9x8x16xbf16, #tpu.memory_space<vmem>>, vector<1x8x16xbf16>
    %62 = vector.shape_cast %61 : vector<1x8x16xbf16> to vector<8x16xbf16>
    %cst_63 = arith.constant dense<0.000000e+00> : vector<64x16xf32>
    %63 = tpu.matmul %60, %62, %cst_63 {dimension_numbers = #tpu.dot_dimension_numbers<[1], [0], [0], [1], [0, 0, 1, 1], [], []>} : vector<64x8xbf16>, vector<8x16xbf16>, vector<64x16xf32> -> vector<64x16xf32>
    %64 = arith.addf %56, %63 : vector<64x16xf32>
    %c0_64 = arith.constant 0 : index
    %c0_65 = arith.constant 0 : index
    %c1_66 = arith.constant 1 : index
    %c1_67 = arith.constant 1 : index
    %c0_68 = arith.constant 0 : index
    %65 = vector.load %arg1[%c0_64, %c0_65, %c1_66, %c1_67, %c0_68] : memref<4x1x9x9x8xf32, #tpu.memory_space<vmem>>, vector<1x1x8x8x8xf32>
    %66 = vector.shape_cast %65 : vector<1x1x8x8x8xf32> to vector<8x8x8xf32>
    %67 = vector.shape_cast %66 : vector<8x8x8xf32> to vector<64x8xf32>
    %68 = arith.truncf %67 : vector<64x8xf32> to vector<64x8xbf16>
    %c8 = arith.constant 8 : index
    %c0_69 = arith.constant 0 : index
    %c0_70 = arith.constant 0 : index
    %69 = vector.load %arg2[%c8, %c0_69, %c0_70] : memref<9x8x16xbf16, #tpu.memory_space<vmem>>, vector<1x8x16xbf16>
    %70 = vector.shape_cast %69 : vector<1x8x16xbf16> to vector<8x16xbf16>
    %cst_71 = arith.constant dense<0.000000e+00> : vector<64x16xf32>
    %71 = tpu.matmul %68, %70, %cst_71 {dimension_numbers = #tpu.dot_dimension_numbers<[1], [0], [0], [1], [0, 0, 1, 1], [], []>} : vector<64x8xbf16>, vector<8x16xbf16>, vector<64x16xf32> -> vector<64x16xf32>
    %72 = arith.addf %64, %71 : vector<64x16xf32>
    %c0_72 = arith.constant 0 : index
    %c0_73 = arith.constant 0 : index
    %73 = vector.load %arg3[%c0_72, %c0_73] : memref<1x16xf32, #tpu.memory_space<vmem>>, vector<1x16xf32>
    %74 = vector.broadcast %73 : vector<1x16xf32> to vector<64x16xf32>
    %75 = arith.addf %72, %74 : vector<64x16xf32>
    %cst_74 = arith.constant 0.000000e+00 : f32
    %76 = vector.broadcast %cst_74 : f32 to vector<64x16xf32>
    %77 = arith.maximumf %75, %76 : vector<64x16xf32>
    %78 = vector.shape_cast %77 : vector<64x16xf32> to vector<1x8x8x16xf32>
    %c0_75 = arith.constant 0 : index
    %c0_76 = arith.constant 0 : index
    %c0_77 = arith.constant 0 : index
    %c0_78 = arith.constant 0 : index
    %79 = vector.load %arg4[%c0_75, %c0_76, %c0_77, %c0_78] : memref<1x8x8x16xf32, #tpu.memory_space<vmem>>, vector<1x8x8x16xf32>
    tpu.vector_store %arg4[%c0_75, %c0_76, %c0_77, %c0_78], %78 {strides = array<i32>} : memref<1x8x8x16xf32, #tpu.memory_space<vmem>>, vector<1x8x8x16xf32>,
    return
  }
  func.func @transform_0(%arg0: i32) -> (i32, i32, i32, i32, i32) {
    %c0_i32 = arith.constant 0 : i32
    %c0_i32_0 = arith.constant 0 : i32
    %c0_i32_1 = arith.constant 0 : i32
    %c0_i32_2 = arith.constant 0 : i32
    %c0_i32_3 = arith.constant 0 : i32
    return %c0_i32, %arg0, %c0_i32_0, %c0_i32_1, %c0_i32_2 : i32, i32, i32, i32, i32
  }
  func.func @transform_1(%arg0: i32) -> (i32, i32, i32) {
    %c0_i32 = arith.constant 0 : i32
    %c0_i32_0 = arith.constant 0 : i32
    %c0_i32_1 = arith.constant 0 : i32
    %c0_i32_2 = arith.constant 0 : i32
    return %c0_i32, %c0_i32_0, %c0_i32_1 : i32, i32, i32
  }
  func.func @transform_2(%arg0: i32) -> (i32, i32) {
    %c0_i32 = arith.constant 0 : i32
    %c0_i32_0 = arith.constant 0 : i32
    %c0_i32_1 = arith.constant 0 : i32
    return %c0_i32, %c0_i32_0 : i32, i32
  }
  func.func @transform_3(%arg0: i32) -> (i32, i32, i32, i32) {
    %c0_i32 = arith.constant 0 : i32
    %c0_i32_0 = arith.constant 0 : i32
    %c0_i32_1 = arith.constant 0 : i32
    %c0_i32_2 = arith.constant 0 : i32
    return %arg0, %c0_i32, %c0_i32_0, %c0_i32_1 : i32, i32, i32, i32
  }
}

module attributes {stable_mosaic.version = 11 : i64} {
  func.func @_conv3x3_s2_kernel(%arg0: i32, %arg1: memref<4x1x5x5x16xf32, #tpu.memory_space<vmem>>, %arg2: memref<9x16x32xbf16, #tpu.memory_space<vmem>>, %arg3: memref<1x32xf32, #tpu.memory_space<vmem>>, %arg4: memref<1x4x4x32xf32, #tpu.memory_space<vmem>>) attributes {dimension_semantics = [#tpu.dimension_semantics<parallel>], iteration_bounds = array<i64: 2>, scalar_prefetch = 0 : i64, scratch_operands = 0 : i64, tpu.core_type = #tpu.core_type<tc>, window_params = [{transform_indices = @transform_0, window_bounds = array<i64: 4, 1, 5, 5, 16>}, {pipeline_mode = #tpu.pipeline_mode<synchronous>, transform_indices = @transform_1, window_bounds = array<i64: 9, 16, 32>}, {pipeline_mode = #tpu.pipeline_mode<synchronous>, transform_indices = @transform_2, window_bounds = array<i64: 1, 32>}, {transform_indices = @transform_3, window_bounds = array<i64: 1, 4, 4, 32>}]} {
    %cst = arith.constant 0.000000e+00 : f32
    %0 = vector.broadcast %cst : f32 to vector<16x32xf32>
    %c0 = arith.constant 0 : index
    %c0_0 = arith.constant 0 : index
    %c0_1 = arith.constant 0 : index
    %c0_2 = arith.constant 0 : index
    %c0_3 = arith.constant 0 : index
    %1 = vector.load %arg1[%c0, %c0_0, %c0_1, %c0_2, %c0_3] : memref<4x1x5x5x16xf32, #tpu.memory_space<vmem>>, vector<1x1x4x4x16xf32>
    %2 = vector.shape_cast %1 : vector<1x1x4x4x16xf32> to vector<4x4x16xf32>
    %3 = vector.shape_cast %2 : vector<4x4x16xf32> to vector<16x16xf32>
    %4 = arith.truncf %3 : vector<16x16xf32> to vector<16x16xbf16>
    %c0_4 = arith.constant 0 : index
    %c0_5 = arith.constant 0 : index
    %c0_6 = arith.constant 0 : index
    %5 = vector.load %arg2[%c0_4, %c0_5, %c0_6] : memref<9x16x32xbf16, #tpu.memory_space<vmem>>, vector<1x16x32xbf16>
    %6 = vector.shape_cast %5 : vector<1x16x32xbf16> to vector<16x32xbf16>
    %cst_7 = arith.constant dense<0.000000e+00> : vector<16x32xf32>
    %7 = tpu.matmul %4, %6, %cst_7 {dimension_numbers = #tpu.dot_dimension_numbers<[1], [0], [0], [1], [0, 0, 1, 1], [], []>} : vector<16x16xbf16>, vector<16x32xbf16>, vector<16x32xf32> -> vector<16x32xf32>
    %8 = arith.addf %0, %7 : vector<16x32xf32>
    %c1 = arith.constant 1 : index
    %c0_8 = arith.constant 0 : index
    %c0_9 = arith.constant 0 : index
    %c0_10 = arith.constant 0 : index
    %c0_11 = arith.constant 0 : index
    %9 = vector.load %arg1[%c1, %c0_8, %c0_9, %c0_10, %c0_11] : memref<4x1x5x5x16xf32, #tpu.memory_space<vmem>>, vector<1x1x4x4x16xf32>
    %10 = vector.shape_cast %9 : vector<1x1x4x4x16xf32> to vector<4x4x16xf32>
    %11 = vector.shape_cast %10 : vector<4x4x16xf32> to vector<16x16xf32>
    %12 = arith.truncf %11 : vector<16x16xf32> to vector<16x16xbf16>
    %c1_12 = arith.constant 1 : index
    %c0_13 = arith.constant 0 : index
    %c0_14 = arith.constant 0 : index
    %13 = vector.load %arg2[%c1_12, %c0_13, %c0_14] : memref<9x16x32xbf16, #tpu.memory_space<vmem>>, vector<1x16x32xbf16>
    %14 = vector.shape_cast %13 : vector<1x16x32xbf16> to vector<16x32xbf16>
    %cst_15 = arith.constant dense<0.000000e+00> : vector<16x32xf32>
    %15 = tpu.matmul %12, %14, %cst_15 {dimension_numbers = #tpu.dot_dimension_numbers<[1], [0], [0], [1], [0, 0, 1, 1], [], []>} : vector<16x16xbf16>, vector<16x32xbf16>, vector<16x32xf32> -> vector<16x32xf32>
    %16 = arith.addf %8, %15 : vector<16x32xf32>
    %c0_16 = arith.constant 0 : index
    %c0_17 = arith.constant 0 : index
    %c0_18 = arith.constant 0 : index
    %c1_19 = arith.constant 1 : index
    %c0_20 = arith.constant 0 : index
    %17 = vector.load %arg1[%c0_16, %c0_17, %c0_18, %c1_19, %c0_20] : memref<4x1x5x5x16xf32, #tpu.memory_space<vmem>>, vector<1x1x4x4x16xf32>
    %18 = vector.shape_cast %17 : vector<1x1x4x4x16xf32> to vector<4x4x16xf32>
    %19 = vector.shape_cast %18 : vector<4x4x16xf32> to vector<16x16xf32>
    %20 = arith.truncf %19 : vector<16x16xf32> to vector<16x16xbf16>
    %c2 = arith.constant 2 : index
    %c0_21 = arith.constant 0 : index
    %c0_22 = arith.constant 0 : index
    %21 = vector.load %arg2[%c2, %c0_21, %c0_22] : memref<9x16x32xbf16, #tpu.memory_space<vmem>>, vector<1x16x32xbf16>
    %22 = vector.shape_cast %21 : vector<1x16x32xbf16> to vector<16x32xbf16>
    %cst_23 = arith.constant dense<0.000000e+00> : vector<16x32xf32>
    %23 = tpu.matmul %20, %22, %cst_23 {dimension_numbers = #tpu.dot_dimension_numbers<[1], [0], [0], [1], [0, 0, 1, 1], [], []>} : vector<16x16xbf16>, vector<16x32xbf16>, vector<16x32xf32> -> vector<16x32xf32>
    %24 = arith.addf %16, %23 : vector<16x32xf32>
    %c2_24 = arith.constant 2 : index
    %c0_25 = arith.constant 0 : index
    %c0_26 = arith.constant 0 : index
    %c0_27 = arith.constant 0 : index
    %c0_28 = arith.constant 0 : index
    %25 = vector.load %arg1[%c2_24, %c0_25, %c0_26, %c0_27, %c0_28] : memref<4x1x5x5x16xf32, #tpu.memory_space<vmem>>, vector<1x1x4x4x16xf32>
    %26 = vector.shape_cast %25 : vector<1x1x4x4x16xf32> to vector<4x4x16xf32>
    %27 = vector.shape_cast %26 : vector<4x4x16xf32> to vector<16x16xf32>
    %28 = arith.truncf %27 : vector<16x16xf32> to vector<16x16xbf16>
    %c3 = arith.constant 3 : index
    %c0_29 = arith.constant 0 : index
    %c0_30 = arith.constant 0 : index
    %29 = vector.load %arg2[%c3, %c0_29, %c0_30] : memref<9x16x32xbf16, #tpu.memory_space<vmem>>, vector<1x16x32xbf16>
    %30 = vector.shape_cast %29 : vector<1x16x32xbf16> to vector<16x32xbf16>
    %cst_31 = arith.constant dense<0.000000e+00> : vector<16x32xf32>
    %31 = tpu.matmul %28, %30, %cst_31 {dimension_numbers = #tpu.dot_dimension_numbers<[1], [0], [0], [1], [0, 0, 1, 1], [], []>} : vector<16x16xbf16>, vector<16x32xbf16>, vector<16x32xf32> -> vector<16x32xf32>
    %32 = arith.addf %24, %31 : vector<16x32xf32>
    %c3_32 = arith.constant 3 : index
    %c0_33 = arith.constant 0 : index
    %c0_34 = arith.constant 0 : index
    %c0_35 = arith.constant 0 : index
    %c0_36 = arith.constant 0 : index
    %33 = vector.load %arg1[%c3_32, %c0_33, %c0_34, %c0_35, %c0_36] : memref<4x1x5x5x16xf32, #tpu.memory_space<vmem>>, vector<1x1x4x4x16xf32>
    %34 = vector.shape_cast %33 : vector<1x1x4x4x16xf32> to vector<4x4x16xf32>
    %35 = vector.shape_cast %34 : vector<4x4x16xf32> to vector<16x16xf32>
    %36 = arith.truncf %35 : vector<16x16xf32> to vector<16x16xbf16>
    %c4 = arith.constant 4 : index
    %c0_37 = arith.constant 0 : index
    %c0_38 = arith.constant 0 : index
    %37 = vector.load %arg2[%c4, %c0_37, %c0_38] : memref<9x16x32xbf16, #tpu.memory_space<vmem>>, vector<1x16x32xbf16>
    %38 = vector.shape_cast %37 : vector<1x16x32xbf16> to vector<16x32xbf16>
    %cst_39 = arith.constant dense<0.000000e+00> : vector<16x32xf32>
    %39 = tpu.matmul %36, %38, %cst_39 {dimension_numbers = #tpu.dot_dimension_numbers<[1], [0], [0], [1], [0, 0, 1, 1], [], []>} : vector<16x16xbf16>, vector<16x32xbf16>, vector<16x32xf32> -> vector<16x32xf32>
    %40 = arith.addf %32, %39 : vector<16x32xf32>
    %c2_40 = arith.constant 2 : index
    %c0_41 = arith.constant 0 : index
    %c0_42 = arith.constant 0 : index
    %c1_43 = arith.constant 1 : index
    %c0_44 = arith.constant 0 : index
    %41 = vector.load %arg1[%c2_40, %c0_41, %c0_42, %c1_43, %c0_44] : memref<4x1x5x5x16xf32, #tpu.memory_space<vmem>>, vector<1x1x4x4x16xf32>
    %42 = vector.shape_cast %41 : vector<1x1x4x4x16xf32> to vector<4x4x16xf32>
    %43 = vector.shape_cast %42 : vector<4x4x16xf32> to vector<16x16xf32>
    %44 = arith.truncf %43 : vector<16x16xf32> to vector<16x16xbf16>
    %c5 = arith.constant 5 : index
    %c0_45 = arith.constant 0 : index
    %c0_46 = arith.constant 0 : index
    %45 = vector.load %arg2[%c5, %c0_45, %c0_46] : memref<9x16x32xbf16, #tpu.memory_space<vmem>>, vector<1x16x32xbf16>
    %46 = vector.shape_cast %45 : vector<1x16x32xbf16> to vector<16x32xbf16>
    %cst_47 = arith.constant dense<0.000000e+00> : vector<16x32xf32>
    %47 = tpu.matmul %44, %46, %cst_47 {dimension_numbers = #tpu.dot_dimension_numbers<[1], [0], [0], [1], [0, 0, 1, 1], [], []>} : vector<16x16xbf16>, vector<16x32xbf16>, vector<16x32xf32> -> vector<16x32xf32>
    %48 = arith.addf %40, %47 : vector<16x32xf32>
    %c0_48 = arith.constant 0 : index
    %c0_49 = arith.constant 0 : index
    %c1_50 = arith.constant 1 : index
    %c0_51 = arith.constant 0 : index
    %c0_52 = arith.constant 0 : index
    %49 = vector.load %arg1[%c0_48, %c0_49, %c1_50, %c0_51, %c0_52] : memref<4x1x5x5x16xf32, #tpu.memory_space<vmem>>, vector<1x1x4x4x16xf32>
    %50 = vector.shape_cast %49 : vector<1x1x4x4x16xf32> to vector<4x4x16xf32>
    %51 = vector.shape_cast %50 : vector<4x4x16xf32> to vector<16x16xf32>
    %52 = arith.truncf %51 : vector<16x16xf32> to vector<16x16xbf16>
    %c6 = arith.constant 6 : index
    %c0_53 = arith.constant 0 : index
    %c0_54 = arith.constant 0 : index
    %53 = vector.load %arg2[%c6, %c0_53, %c0_54] : memref<9x16x32xbf16, #tpu.memory_space<vmem>>, vector<1x16x32xbf16>
    %54 = vector.shape_cast %53 : vector<1x16x32xbf16> to vector<16x32xbf16>
    %cst_55 = arith.constant dense<0.000000e+00> : vector<16x32xf32>
    %55 = tpu.matmul %52, %54, %cst_55 {dimension_numbers = #tpu.dot_dimension_numbers<[1], [0], [0], [1], [0, 0, 1, 1], [], []>} : vector<16x16xbf16>, vector<16x32xbf16>, vector<16x32xf32> -> vector<16x32xf32>
    %56 = arith.addf %48, %55 : vector<16x32xf32>
    %c1_56 = arith.constant 1 : index
    %c0_57 = arith.constant 0 : index
    %c1_58 = arith.constant 1 : index
    %c0_59 = arith.constant 0 : index
    %c0_60 = arith.constant 0 : index
    %57 = vector.load %arg1[%c1_56, %c0_57, %c1_58, %c0_59, %c0_60] : memref<4x1x5x5x16xf32, #tpu.memory_space<vmem>>, vector<1x1x4x4x16xf32>
    %58 = vector.shape_cast %57 : vector<1x1x4x4x16xf32> to vector<4x4x16xf32>
    %59 = vector.shape_cast %58 : vector<4x4x16xf32> to vector<16x16xf32>
    %60 = arith.truncf %59 : vector<16x16xf32> to vector<16x16xbf16>
    %c7 = arith.constant 7 : index
    %c0_61 = arith.constant 0 : index
    %c0_62 = arith.constant 0 : index
    %61 = vector.load %arg2[%c7, %c0_61, %c0_62] : memref<9x16x32xbf16, #tpu.memory_space<vmem>>, vector<1x16x32xbf16>
    %62 = vector.shape_cast %61 : vector<1x16x32xbf16> to vector<16x32xbf16>
    %cst_63 = arith.constant dense<0.000000e+00> : vector<16x32xf32>
    %63 = tpu.matmul %60, %62, %cst_63 {dimension_numbers = #tpu.dot_dimension_numbers<[1], [0], [0], [1], [0, 0, 1, 1], [], []>} : vector<16x16xbf16>, vector<16x32xbf16>, vector<16x32xf32> -> vector<16x32xf32>
    %64 = arith.addf %56, %63 : vector<16x32xf32>
    %c0_64 = arith.constant 0 : index
    %c0_65 = arith.constant 0 : index
    %c1_66 = arith.constant 1 : index
    %c1_67 = arith.constant 1 : index
    %c0_68 = arith.constant 0 : index
    %65 = vector.load %arg1[%c0_64, %c0_65, %c1_66, %c1_67, %c0_68] : memref<4x1x5x5x16xf32, #tpu.memory_space<vmem>>, vector<1x1x4x4x16xf32>
    %66 = vector.shape_cast %65 : vector<1x1x4x4x16xf32> to vector<4x4x16xf32>
    %67 = vector.shape_cast %66 : vector<4x4x16xf32> to vector<16x16xf32>
    %68 = arith.truncf %67 : vector<16x16xf32> to vector<16x16xbf16>
    %c8 = arith.constant 8 : index
    %c0_69 = arith.constant 0 : index
    %c0_70 = arith.constant 0 : index
    %69 = vector.load %arg2[%c8, %c0_69, %c0_70] : memref<9x16x32xbf16, #tpu.memory_space<vmem>>, vector<1x16x32xbf16>
    %70 = vector.shape_cast %69 : vector<1x16x32xbf16> to vector<16x32xbf16>
    %cst_71 = arith.constant dense<0.000000e+00> : vector<16x32xf32>
    %71 = tpu.matmul %68, %70, %cst_71 {dimension_numbers = #tpu.dot_dimension_numbers<[1], [0], [0], [1], [0, 0, 1, 1], [], []>} : vector<16x16xbf16>, vector<16x32xbf16>, vector<16x32xf32> -> vector<16x32xf32>
    %72 = arith.addf %64, %71 : vector<16x32xf32>
    %c0_72 = arith.constant 0 : index
    %c0_73 = arith.constant 0 : index
    %73 = vector.load %arg3[%c0_72, %c0_73] : memref<1x32xf32, #tpu.memory_space<vmem>>, vector<1x32xf32>
    %74 = vector.broadcast %73 : vector<1x32xf32> to vector<16x32xf32>
    %75 = arith.addf %72, %74 : vector<16x32xf32>
    %cst_74 = arith.constant 0.000000e+00 : f32
    %76 = vector.broadcast %cst_74 : f32 to vector<16x32xf32>
    %77 = arith.maximumf %75, %76 : vector<16x32xf32>
    %78 = vector.shape_cast %77 : vector<16x32xf32> to vector<1x4x4x32xf32>
    %c0_75 = arith.constant 0 : index
    %c0_76 = arith.constant 0 : index
    %c0_77 = arith.constant 0 : index
    %c0_78 = arith.constant 0 : index
    %79 = vector.load %arg4[%c0_75, %c0_76, %c0_77, %c0_78] : memref<1x4x4x32xf32, #tpu.memory_space<vmem>>, vector<1x4x4x32xf32>
    tpu.vector_store %arg4[%c0_75, %c0_76, %c0_77, %c0_78], %78 {strides = array<i32>} : memref<1x4x4x32xf32, #tpu.memory_space<vmem>>, vector<1x4x4x32xf32>,
    return
  }
  func.func @transform_0(%arg0: i32) -> (i32, i32, i32, i32, i32) {
    %c0_i32 = arith.constant 0 : i32
    %c0_i32_0 = arith.constant 0 : i32
    %c0_i32_1 = arith.constant 0 : i32
    %c0_i32_2 = arith.constant 0 : i32
    %c0_i32_3 = arith.constant 0 : i32
    return %c0_i32, %arg0, %c0_i32_0, %c0_i32_1, %c0_i32_2 : i32, i32, i32, i32, i32
  }
  func.func @transform_1(%arg0: i32) -> (i32, i32, i32) {
    %c0_i32 = arith.constant 0 : i32
    %c0_i32_0 = arith.constant 0 : i32
    %c0_i32_1 = arith.constant 0 : i32
    %c0_i32_2 = arith.constant 0 : i32
    return %c0_i32, %c0_i32_0, %c0_i32_1 : i32, i32, i32
  }
  func.func @transform_2(%arg0: i32) -> (i32, i32) {
    %c0_i32 = arith.constant 0 : i32
    %c0_i32_0 = arith.constant 0 : i32
    %c0_i32_1 = arith.constant 0 : i32
    return %c0_i32, %c0_i32_0 : i32, i32
  }
  func.func @transform_3(%arg0: i32) -> (i32, i32, i32, i32) {
    %c0_i32 = arith.constant 0 : i32
    %c0_i32_0 = arith.constant 0 : i32
    %c0_i32_1 = arith.constant 0 : i32
    %c0_i32_2 = arith.constant 0 : i32
    return %arg0, %c0_i32, %c0_i32_0, %c0_i32_1 : i32, i32, i32, i32
  }
}

module attributes {stable_mosaic.version = 11 : i64} {
  func.func @_conv3x3_s2_kernel(%arg0: i32, %arg1: memref<4x1x3x3x32xf32, #tpu.memory_space<vmem>>, %arg2: memref<9x32x32xbf16, #tpu.memory_space<vmem>>, %arg3: memref<1x32xf32, #tpu.memory_space<vmem>>, %arg4: memref<1x2x2x32xf32, #tpu.memory_space<vmem>>) attributes {dimension_semantics = [#tpu.dimension_semantics<parallel>], iteration_bounds = array<i64: 2>, scalar_prefetch = 0 : i64, scratch_operands = 0 : i64, tpu.core_type = #tpu.core_type<tc>, window_params = [{transform_indices = @transform_0, window_bounds = array<i64: 4, 1, 3, 3, 32>}, {pipeline_mode = #tpu.pipeline_mode<synchronous>, transform_indices = @transform_1, window_bounds = array<i64: 9, 32, 32>}, {pipeline_mode = #tpu.pipeline_mode<synchronous>, transform_indices = @transform_2, window_bounds = array<i64: 1, 32>}, {transform_indices = @transform_3, window_bounds = array<i64: 1, 2, 2, 32>}]} {
    %cst = arith.constant 0.000000e+00 : f32
    %0 = vector.broadcast %cst : f32 to vector<4x32xf32>
    %c0 = arith.constant 0 : index
    %c0_0 = arith.constant 0 : index
    %c0_1 = arith.constant 0 : index
    %c0_2 = arith.constant 0 : index
    %c0_3 = arith.constant 0 : index
    %1 = vector.load %arg1[%c0, %c0_0, %c0_1, %c0_2, %c0_3] : memref<4x1x3x3x32xf32, #tpu.memory_space<vmem>>, vector<1x1x2x2x32xf32>
    %2 = vector.shape_cast %1 : vector<1x1x2x2x32xf32> to vector<2x2x32xf32>
    %3 = vector.shape_cast %2 : vector<2x2x32xf32> to vector<4x32xf32>
    %4 = arith.truncf %3 : vector<4x32xf32> to vector<4x32xbf16>
    %c0_4 = arith.constant 0 : index
    %c0_5 = arith.constant 0 : index
    %c0_6 = arith.constant 0 : index
    %5 = vector.load %arg2[%c0_4, %c0_5, %c0_6] : memref<9x32x32xbf16, #tpu.memory_space<vmem>>, vector<1x32x32xbf16>
    %6 = vector.shape_cast %5 : vector<1x32x32xbf16> to vector<32x32xbf16>
    %cst_7 = arith.constant dense<0.000000e+00> : vector<4x32xf32>
    %7 = tpu.matmul %4, %6, %cst_7 {dimension_numbers = #tpu.dot_dimension_numbers<[1], [0], [0], [1], [0, 0, 1, 1], [], []>} : vector<4x32xbf16>, vector<32x32xbf16>, vector<4x32xf32> -> vector<4x32xf32>
    %8 = arith.addf %0, %7 : vector<4x32xf32>
    %c1 = arith.constant 1 : index
    %c0_8 = arith.constant 0 : index
    %c0_9 = arith.constant 0 : index
    %c0_10 = arith.constant 0 : index
    %c0_11 = arith.constant 0 : index
    %9 = vector.load %arg1[%c1, %c0_8, %c0_9, %c0_10, %c0_11] : memref<4x1x3x3x32xf32, #tpu.memory_space<vmem>>, vector<1x1x2x2x32xf32>
    %10 = vector.shape_cast %9 : vector<1x1x2x2x32xf32> to vector<2x2x32xf32>
    %11 = vector.shape_cast %10 : vector<2x2x32xf32> to vector<4x32xf32>
    %12 = arith.truncf %11 : vector<4x32xf32> to vector<4x32xbf16>
    %c1_12 = arith.constant 1 : index
    %c0_13 = arith.constant 0 : index
    %c0_14 = arith.constant 0 : index
    %13 = vector.load %arg2[%c1_12, %c0_13, %c0_14] : memref<9x32x32xbf16, #tpu.memory_space<vmem>>, vector<1x32x32xbf16>
    %14 = vector.shape_cast %13 : vector<1x32x32xbf16> to vector<32x32xbf16>
    %cst_15 = arith.constant dense<0.000000e+00> : vector<4x32xf32>
    %15 = tpu.matmul %12, %14, %cst_15 {dimension_numbers = #tpu.dot_dimension_numbers<[1], [0], [0], [1], [0, 0, 1, 1], [], []>} : vector<4x32xbf16>, vector<32x32xbf16>, vector<4x32xf32> -> vector<4x32xf32>
    %16 = arith.addf %8, %15 : vector<4x32xf32>
    %c0_16 = arith.constant 0 : index
    %c0_17 = arith.constant 0 : index
    %c0_18 = arith.constant 0 : index
    %c1_19 = arith.constant 1 : index
    %c0_20 = arith.constant 0 : index
    %17 = vector.load %arg1[%c0_16, %c0_17, %c0_18, %c1_19, %c0_20] : memref<4x1x3x3x32xf32, #tpu.memory_space<vmem>>, vector<1x1x2x2x32xf32>
    %18 = vector.shape_cast %17 : vector<1x1x2x2x32xf32> to vector<2x2x32xf32>
    %19 = vector.shape_cast %18 : vector<2x2x32xf32> to vector<4x32xf32>
    %20 = arith.truncf %19 : vector<4x32xf32> to vector<4x32xbf16>
    %c2 = arith.constant 2 : index
    %c0_21 = arith.constant 0 : index
    %c0_22 = arith.constant 0 : index
    %21 = vector.load %arg2[%c2, %c0_21, %c0_22] : memref<9x32x32xbf16, #tpu.memory_space<vmem>>, vector<1x32x32xbf16>
    %22 = vector.shape_cast %21 : vector<1x32x32xbf16> to vector<32x32xbf16>
    %cst_23 = arith.constant dense<0.000000e+00> : vector<4x32xf32>
    %23 = tpu.matmul %20, %22, %cst_23 {dimension_numbers = #tpu.dot_dimension_numbers<[1], [0], [0], [1], [0, 0, 1, 1], [], []>} : vector<4x32xbf16>, vector<32x32xbf16>, vector<4x32xf32> -> vector<4x32xf32>
    %24 = arith.addf %16, %23 : vector<4x32xf32>
    %c2_24 = arith.constant 2 : index
    %c0_25 = arith.constant 0 : index
    %c0_26 = arith.constant 0 : index
    %c0_27 = arith.constant 0 : index
    %c0_28 = arith.constant 0 : index
    %25 = vector.load %arg1[%c2_24, %c0_25, %c0_26, %c0_27, %c0_28] : memref<4x1x3x3x32xf32, #tpu.memory_space<vmem>>, vector<1x1x2x2x32xf32>
    %26 = vector.shape_cast %25 : vector<1x1x2x2x32xf32> to vector<2x2x32xf32>
    %27 = vector.shape_cast %26 : vector<2x2x32xf32> to vector<4x32xf32>
    %28 = arith.truncf %27 : vector<4x32xf32> to vector<4x32xbf16>
    %c3 = arith.constant 3 : index
    %c0_29 = arith.constant 0 : index
    %c0_30 = arith.constant 0 : index
    %29 = vector.load %arg2[%c3, %c0_29, %c0_30] : memref<9x32x32xbf16, #tpu.memory_space<vmem>>, vector<1x32x32xbf16>
    %30 = vector.shape_cast %29 : vector<1x32x32xbf16> to vector<32x32xbf16>
    %cst_31 = arith.constant dense<0.000000e+00> : vector<4x32xf32>
    %31 = tpu.matmul %28, %30, %cst_31 {dimension_numbers = #tpu.dot_dimension_numbers<[1], [0], [0], [1], [0, 0, 1, 1], [], []>} : vector<4x32xbf16>, vector<32x32xbf16>, vector<4x32xf32> -> vector<4x32xf32>
    %32 = arith.addf %24, %31 : vector<4x32xf32>
    %c3_32 = arith.constant 3 : index
    %c0_33 = arith.constant 0 : index
    %c0_34 = arith.constant 0 : index
    %c0_35 = arith.constant 0 : index
    %c0_36 = arith.constant 0 : index
    %33 = vector.load %arg1[%c3_32, %c0_33, %c0_34, %c0_35, %c0_36] : memref<4x1x3x3x32xf32, #tpu.memory_space<vmem>>, vector<1x1x2x2x32xf32>
    %34 = vector.shape_cast %33 : vector<1x1x2x2x32xf32> to vector<2x2x32xf32>
    %35 = vector.shape_cast %34 : vector<2x2x32xf32> to vector<4x32xf32>
    %36 = arith.truncf %35 : vector<4x32xf32> to vector<4x32xbf16>
    %c4 = arith.constant 4 : index
    %c0_37 = arith.constant 0 : index
    %c0_38 = arith.constant 0 : index
    %37 = vector.load %arg2[%c4, %c0_37, %c0_38] : memref<9x32x32xbf16, #tpu.memory_space<vmem>>, vector<1x32x32xbf16>
    %38 = vector.shape_cast %37 : vector<1x32x32xbf16> to vector<32x32xbf16>
    %cst_39 = arith.constant dense<0.000000e+00> : vector<4x32xf32>
    %39 = tpu.matmul %36, %38, %cst_39 {dimension_numbers = #tpu.dot_dimension_numbers<[1], [0], [0], [1], [0, 0, 1, 1], [], []>} : vector<4x32xbf16>, vector<32x32xbf16>, vector<4x32xf32> -> vector<4x32xf32>
    %40 = arith.addf %32, %39 : vector<4x32xf32>
    %c2_40 = arith.constant 2 : index
    %c0_41 = arith.constant 0 : index
    %c0_42 = arith.constant 0 : index
    %c1_43 = arith.constant 1 : index
    %c0_44 = arith.constant 0 : index
    %41 = vector.load %arg1[%c2_40, %c0_41, %c0_42, %c1_43, %c0_44] : memref<4x1x3x3x32xf32, #tpu.memory_space<vmem>>, vector<1x1x2x2x32xf32>
    %42 = vector.shape_cast %41 : vector<1x1x2x2x32xf32> to vector<2x2x32xf32>
    %43 = vector.shape_cast %42 : vector<2x2x32xf32> to vector<4x32xf32>
    %44 = arith.truncf %43 : vector<4x32xf32> to vector<4x32xbf16>
    %c5 = arith.constant 5 : index
    %c0_45 = arith.constant 0 : index
    %c0_46 = arith.constant 0 : index
    %45 = vector.load %arg2[%c5, %c0_45, %c0_46] : memref<9x32x32xbf16, #tpu.memory_space<vmem>>, vector<1x32x32xbf16>
    %46 = vector.shape_cast %45 : vector<1x32x32xbf16> to vector<32x32xbf16>
    %cst_47 = arith.constant dense<0.000000e+00> : vector<4x32xf32>
    %47 = tpu.matmul %44, %46, %cst_47 {dimension_numbers = #tpu.dot_dimension_numbers<[1], [0], [0], [1], [0, 0, 1, 1], [], []>} : vector<4x32xbf16>, vector<32x32xbf16>, vector<4x32xf32> -> vector<4x32xf32>
    %48 = arith.addf %40, %47 : vector<4x32xf32>
    %c0_48 = arith.constant 0 : index
    %c0_49 = arith.constant 0 : index
    %c1_50 = arith.constant 1 : index
    %c0_51 = arith.constant 0 : index
    %c0_52 = arith.constant 0 : index
    %49 = vector.load %arg1[%c0_48, %c0_49, %c1_50, %c0_51, %c0_52] : memref<4x1x3x3x32xf32, #tpu.memory_space<vmem>>, vector<1x1x2x2x32xf32>
    %50 = vector.shape_cast %49 : vector<1x1x2x2x32xf32> to vector<2x2x32xf32>
    %51 = vector.shape_cast %50 : vector<2x2x32xf32> to vector<4x32xf32>
    %52 = arith.truncf %51 : vector<4x32xf32> to vector<4x32xbf16>
    %c6 = arith.constant 6 : index
    %c0_53 = arith.constant 0 : index
    %c0_54 = arith.constant 0 : index
    %53 = vector.load %arg2[%c6, %c0_53, %c0_54] : memref<9x32x32xbf16, #tpu.memory_space<vmem>>, vector<1x32x32xbf16>
    %54 = vector.shape_cast %53 : vector<1x32x32xbf16> to vector<32x32xbf16>
    %cst_55 = arith.constant dense<0.000000e+00> : vector<4x32xf32>
    %55 = tpu.matmul %52, %54, %cst_55 {dimension_numbers = #tpu.dot_dimension_numbers<[1], [0], [0], [1], [0, 0, 1, 1], [], []>} : vector<4x32xbf16>, vector<32x32xbf16>, vector<4x32xf32> -> vector<4x32xf32>
    %56 = arith.addf %48, %55 : vector<4x32xf32>
    %c1_56 = arith.constant 1 : index
    %c0_57 = arith.constant 0 : index
    %c1_58 = arith.constant 1 : index
    %c0_59 = arith.constant 0 : index
    %c0_60 = arith.constant 0 : index
    %57 = vector.load %arg1[%c1_56, %c0_57, %c1_58, %c0_59, %c0_60] : memref<4x1x3x3x32xf32, #tpu.memory_space<vmem>>, vector<1x1x2x2x32xf32>
    %58 = vector.shape_cast %57 : vector<1x1x2x2x32xf32> to vector<2x2x32xf32>
    %59 = vector.shape_cast %58 : vector<2x2x32xf32> to vector<4x32xf32>
    %60 = arith.truncf %59 : vector<4x32xf32> to vector<4x32xbf16>
    %c7 = arith.constant 7 : index
    %c0_61 = arith.constant 0 : index
    %c0_62 = arith.constant 0 : index
    %61 = vector.load %arg2[%c7, %c0_61, %c0_62] : memref<9x32x32xbf16, #tpu.memory_space<vmem>>, vector<1x32x32xbf16>
    %62 = vector.shape_cast %61 : vector<1x32x32xbf16> to vector<32x32xbf16>
    %cst_63 = arith.constant dense<0.000000e+00> : vector<4x32xf32>
    %63 = tpu.matmul %60, %62, %cst_63 {dimension_numbers = #tpu.dot_dimension_numbers<[1], [0], [0], [1], [0, 0, 1, 1], [], []>} : vector<4x32xbf16>, vector<32x32xbf16>, vector<4x32xf32> -> vector<4x32xf32>
    %64 = arith.addf %56, %63 : vector<4x32xf32>
    %c0_64 = arith.constant 0 : index
    %c0_65 = arith.constant 0 : index
    %c1_66 = arith.constant 1 : index
    %c1_67 = arith.constant 1 : index
    %c0_68 = arith.constant 0 : index
    %65 = vector.load %arg1[%c0_64, %c0_65, %c1_66, %c1_67, %c0_68] : memref<4x1x3x3x32xf32, #tpu.memory_space<vmem>>, vector<1x1x2x2x32xf32>
    %66 = vector.shape_cast %65 : vector<1x1x2x2x32xf32> to vector<2x2x32xf32>
    %67 = vector.shape_cast %66 : vector<2x2x32xf32> to vector<4x32xf32>
    %68 = arith.truncf %67 : vector<4x32xf32> to vector<4x32xbf16>
    %c8 = arith.constant 8 : index
    %c0_69 = arith.constant 0 : index
    %c0_70 = arith.constant 0 : index
    %69 = vector.load %arg2[%c8, %c0_69, %c0_70] : memref<9x32x32xbf16, #tpu.memory_space<vmem>>, vector<1x32x32xbf16>
    %70 = vector.shape_cast %69 : vector<1x32x32xbf16> to vector<32x32xbf16>
    %cst_71 = arith.constant dense<0.000000e+00> : vector<4x32xf32>
    %71 = tpu.matmul %68, %70, %cst_71 {dimension_numbers = #tpu.dot_dimension_numbers<[1], [0], [0], [1], [0, 0, 1, 1], [], []>} : vector<4x32xbf16>, vector<32x32xbf16>, vector<4x32xf32> -> vector<4x32xf32>
    %72 = arith.addf %64, %71 : vector<4x32xf32>
    %c0_72 = arith.constant 0 : index
    %c0_73 = arith.constant 0 : index
    %73 = vector.load %arg3[%c0_72, %c0_73] : memref<1x32xf32, #tpu.memory_space<vmem>>, vector<1x32xf32>
    %74 = vector.broadcast %73 : vector<1x32xf32> to vector<4x32xf32>
    %75 = arith.addf %72, %74 : vector<4x32xf32>
    %cst_74 = arith.constant 0.000000e+00 : f32
    %76 = vector.broadcast %cst_74 : f32 to vector<4x32xf32>
    %77 = arith.maximumf %75, %76 : vector<4x32xf32>
    %78 = vector.shape_cast %77 : vector<4x32xf32> to vector<1x2x2x32xf32>
    %c0_75 = arith.constant 0 : index
    %c0_76 = arith.constant 0 : index
    %c0_77 = arith.constant 0 : index
    %c0_78 = arith.constant 0 : index
    %79 = vector.load %arg4[%c0_75, %c0_76, %c0_77, %c0_78] : memref<1x2x2x32xf32, #tpu.memory_space<vmem>>, vector<1x2x2x32xf32>
    tpu.vector_store %arg4[%c0_75, %c0_76, %c0_77, %c0_78], %78 {strides = array<i32>} : memref<1x2x2x32xf32, #tpu.memory_space<vmem>>, vector<1x2x2x32xf32>,
    return
  }
  func.func @transform_0(%arg0: i32) -> (i32, i32, i32, i32, i32) {
    %c0_i32 = arith.constant 0 : i32
    %c0_i32_0 = arith.constant 0 : i32
    %c0_i32_1 = arith.constant 0 : i32
    %c0_i32_2 = arith.constant 0 : i32
    %c0_i32_3 = arith.constant 0 : i32
    return %c0_i32, %arg0, %c0_i32_0, %c0_i32_1, %c0_i32_2 : i32, i32, i32, i32, i32
  }
  func.func @transform_1(%arg0: i32) -> (i32, i32, i32) {
    %c0_i32 = arith.constant 0 : i32
    %c0_i32_0 = arith.constant 0 : i32
    %c0_i32_1 = arith.constant 0 : i32
    %c0_i32_2 = arith.constant 0 : i32
    return %c0_i32, %c0_i32_0, %c0_i32_1 : i32, i32, i32
  }
  func.func @transform_2(%arg0: i32) -> (i32, i32) {
    %c0_i32 = arith.constant 0 : i32
    %c0_i32_0 = arith.constant 0 : i32
    %c0_i32_1 = arith.constant 0 : i32
    return %c0_i32, %c0_i32_0 : i32, i32
  }
  func.func @transform_3(%arg0: i32) -> (i32, i32, i32, i32) {
    %c0_i32 = arith.constant 0 : i32
    %c0_i32_0 = arith.constant 0 : i32
    %c0_i32_1 = arith.constant 0 : i32
    %c0_i32_2 = arith.constant 0 : i32
    return %arg0, %c0_i32, %c0_i32_0, %c0_i32_1 : i32, i32, i32, i32
  }
}

module attributes {stable_mosaic.version = 11 : i64} {
  func.func @_neck_rpn_kernel(%arg0: i32, %arg1: memref<1x8x8x80xf32, #tpu.memory_space<vmem>>, %arg2: memref<80x32xbf16, #tpu.memory_space<vmem>>, %arg3: memref<1x32xf32, #tpu.memory_space<vmem>>, %arg4: memref<9x32x32xbf16, #tpu.memory_space<vmem>>, %arg5: memref<1x32xf32, #tpu.memory_space<vmem>>, %arg6: memref<32x20xbf16, #tpu.memory_space<vmem>>, %arg7: memref<1x20xf32, #tpu.memory_space<vmem>>, %arg8: memref<1x64x32xbf16, #tpu.memory_space<vmem>>, %arg9: memref<1x64x20xf32, #tpu.memory_space<vmem>>, %arg10: memref<1x10x10x32xf32, #tpu.memory_space<vmem>>) attributes {dimension_semantics = [#tpu.dimension_semantics<parallel>], iteration_bounds = array<i64: 2>, scalar_prefetch = 0 : i64, scratch_operands = 1 : i64, tpu.core_type = #tpu.core_type<tc>, window_params = [{transform_indices = @transform_0, window_bounds = array<i64: 1, 8, 8, 80>}, {pipeline_mode = #tpu.pipeline_mode<synchronous>, transform_indices = @transform_1, window_bounds = array<i64: 80, 32>}, {pipeline_mode = #tpu.pipeline_mode<synchronous>, transform_indices = @transform_2, window_bounds = array<i64: 1, 32>}, {pipeline_mode = #tpu.pipeline_mode<synchronous>, transform_indices = @transform_3, window_bounds = array<i64: 9, 32, 32>}, {pipeline_mode = #tpu.pipeline_mode<synchronous>, transform_indices = @transform_4, window_bounds = array<i64: 1, 32>}, {pipeline_mode = #tpu.pipeline_mode<synchronous>, transform_indices = @transform_5, window_bounds = array<i64: 32, 20>}, {pipeline_mode = #tpu.pipeline_mode<synchronous>, transform_indices = @transform_6, window_bounds = array<i64: 1, 20>}, {transform_indices = @transform_7, window_bounds = array<i64: 1, 64, 32>}, {transform_indices = @transform_8, window_bounds = array<i64: 1, 64, 20>}]} {
    %c0 = arith.constant 0 : index
    %c0_0 = arith.constant 0 : index
    %c0_1 = arith.constant 0 : index
    %c0_2 = arith.constant 0 : index
    %0 = vector.load %arg1[%c0, %c0_0, %c0_1, %c0_2] : memref<1x8x8x80xf32, #tpu.memory_space<vmem>>, vector<1x8x8x80xf32>
    %1 = vector.shape_cast %0 : vector<1x8x8x80xf32> to vector<64x80xf32>
    %2 = arith.truncf %1 : vector<64x80xf32> to vector<64x80xbf16>
    %c0_3 = arith.constant 0 : index
    %c0_4 = arith.constant 0 : index
    %3 = vector.load %arg2[%c0_3, %c0_4] : memref<80x32xbf16, #tpu.memory_space<vmem>>, vector<80x32xbf16>
    %cst = arith.constant dense<0.000000e+00> : vector<64x32xf32>
    %4 = tpu.matmul %2, %3, %cst {dimension_numbers = #tpu.dot_dimension_numbers<[1], [0], [0], [1], [0, 0, 1, 1], [], []>} : vector<64x80xbf16>, vector<80x32xbf16>, vector<64x32xf32> -> vector<64x32xf32>
    %c0_5 = arith.constant 0 : index
    %c0_6 = arith.constant 0 : index
    %5 = vector.load %arg3[%c0_5, %c0_6] : memref<1x32xf32, #tpu.memory_space<vmem>>, vector<1x32xf32>
    %6 = vector.broadcast %5 : vector<1x32xf32> to vector<64x32xf32>
    %7 = arith.addf %4, %6 : vector<64x32xf32>
    %8 = vector.shape_cast %7 : vector<64x32xf32> to vector<1x64x32xf32>
    %9 = arith.truncf %8 : vector<1x64x32xf32> to vector<1x64x32xbf16>
    %c0_7 = arith.constant 0 : index
    %c0_8 = arith.constant 0 : index
    %c0_9 = arith.constant 0 : index
    %10 = vector.load %arg8[%c0_7, %c0_8, %c0_9] : memref<1x64x32xbf16, #tpu.memory_space<vmem>>, vector<1x64x32xbf16>
    tpu.vector_store %arg8[%c0_7, %c0_8, %c0_9], %9 {strides = array<i32>} : memref<1x64x32xbf16, #tpu.memory_space<vmem>>, vector<1x64x32xbf16>,
    %cst_10 = arith.constant 0.000000e+00 : f32
    %11 = vector.broadcast %cst_10 : f32 to vector<1x10x10x32xf32>
    %c0_11 = arith.constant 0 : index
    %c0_12 = arith.constant 0 : index
    %c0_13 = arith.constant 0 : index
    %c0_14 = arith.constant 0 : index
    %12 = vector.load %arg10[%c0_11, %c0_12, %c0_13, %c0_14] : memref<1x10x10x32xf32, #tpu.memory_space<vmem>>, vector<1x10x10x32xf32>
    tpu.vector_store %arg10[%c0_11, %c0_12, %c0_13, %c0_14], %11 {strides = array<i32>} : memref<1x10x10x32xf32, #tpu.memory_space<vmem>>, vector<1x10x10x32xf32>,
    %13 = vector.shape_cast %7 : vector<64x32xf32> to vector<8x8x32xf32>
    %c0_15 = arith.constant 0 : index
    %c1 = arith.constant 1 : index
    %c1_16 = arith.constant 1 : index
    %c0_17 = arith.constant 0 : index
    %14 = vector.load %arg10[%c0_15, %c1, %c1_16, %c0_17] : memref<1x10x10x32xf32, #tpu.memory_space<vmem>>, vector<1x8x8x32xf32>
    %15 = vector.shape_cast %14 : vector<1x8x8x32xf32> to vector<8x8x32xf32>
    %16 = vector.shape_cast %13 : vector<8x8x32xf32> to vector<1x8x8x32xf32>
    tpu.vector_store %arg10[%c0_15, %c1, %c1_16, %c0_17], %16 {strides = array<i32>} : memref<1x10x10x32xf32, #tpu.memory_space<vmem>>, vector<1x8x8x32xf32>,
    %cst_18 = arith.constant 0.000000e+00 : f32
    %17 = vector.broadcast %cst_18 : f32 to vector<64x32xf32>
    %c0_19 = arith.constant 0 : index
    %c0_20 = arith.constant 0 : index
    %c0_21 = arith.constant 0 : index
    %c0_22 = arith.constant 0 : index
    %18 = vector.load %arg10[%c0_19, %c0_20, %c0_21, %c0_22] : memref<1x10x10x32xf32, #tpu.memory_space<vmem>>, vector<1x8x8x32xf32>
    %19 = vector.shape_cast %18 : vector<1x8x8x32xf32> to vector<8x8x32xf32>
    %20 = vector.shape_cast %19 : vector<8x8x32xf32> to vector<64x32xf32>
    %21 = arith.truncf %20 : vector<64x32xf32> to vector<64x32xbf16>
    %c0_23 = arith.constant 0 : index
    %c0_24 = arith.constant 0 : index
    %c0_25 = arith.constant 0 : index
    %22 = vector.load %arg4[%c0_23, %c0_24, %c0_25] : memref<9x32x32xbf16, #tpu.memory_space<vmem>>, vector<1x32x32xbf16>
    %23 = vector.shape_cast %22 : vector<1x32x32xbf16> to vector<32x32xbf16>
    %cst_26 = arith.constant dense<0.000000e+00> : vector<64x32xf32>
    %24 = tpu.matmul %21, %23, %cst_26 {dimension_numbers = #tpu.dot_dimension_numbers<[1], [0], [0], [1], [0, 0, 1, 1], [], []>} : vector<64x32xbf16>, vector<32x32xbf16>, vector<64x32xf32> -> vector<64x32xf32>
    %25 = arith.addf %17, %24 : vector<64x32xf32>
    %c0_27 = arith.constant 0 : index
    %c0_28 = arith.constant 0 : index
    %c1_29 = arith.constant 1 : index
    %c0_30 = arith.constant 0 : index
    %26 = vector.load %arg10[%c0_27, %c0_28, %c1_29, %c0_30] : memref<1x10x10x32xf32, #tpu.memory_space<vmem>>, vector<1x8x8x32xf32>
    %27 = vector.shape_cast %26 : vector<1x8x8x32xf32> to vector<8x8x32xf32>
    %28 = vector.shape_cast %27 : vector<8x8x32xf32> to vector<64x32xf32>
    %29 = arith.truncf %28 : vector<64x32xf32> to vector<64x32xbf16>
    %c1_31 = arith.constant 1 : index
    %c0_32 = arith.constant 0 : index
    %c0_33 = arith.constant 0 : index
    %30 = vector.load %arg4[%c1_31, %c0_32, %c0_33] : memref<9x32x32xbf16, #tpu.memory_space<vmem>>, vector<1x32x32xbf16>
    %31 = vector.shape_cast %30 : vector<1x32x32xbf16> to vector<32x32xbf16>
    %cst_34 = arith.constant dense<0.000000e+00> : vector<64x32xf32>
    %32 = tpu.matmul %29, %31, %cst_34 {dimension_numbers = #tpu.dot_dimension_numbers<[1], [0], [0], [1], [0, 0, 1, 1], [], []>} : vector<64x32xbf16>, vector<32x32xbf16>, vector<64x32xf32> -> vector<64x32xf32>
    %33 = arith.addf %25, %32 : vector<64x32xf32>
    %c0_35 = arith.constant 0 : index
    %c0_36 = arith.constant 0 : index
    %c2 = arith.constant 2 : index
    %c0_37 = arith.constant 0 : index
    %34 = vector.load %arg10[%c0_35, %c0_36, %c2, %c0_37] : memref<1x10x10x32xf32, #tpu.memory_space<vmem>>, vector<1x8x8x32xf32>
    %35 = vector.shape_cast %34 : vector<1x8x8x32xf32> to vector<8x8x32xf32>
    %36 = vector.shape_cast %35 : vector<8x8x32xf32> to vector<64x32xf32>
    %37 = arith.truncf %36 : vector<64x32xf32> to vector<64x32xbf16>
    %c2_38 = arith.constant 2 : index
    %c0_39 = arith.constant 0 : index
    %c0_40 = arith.constant 0 : index
    %38 = vector.load %arg4[%c2_38, %c0_39, %c0_40] : memref<9x32x32xbf16, #tpu.memory_space<vmem>>, vector<1x32x32xbf16>
    %39 = vector.shape_cast %38 : vector<1x32x32xbf16> to vector<32x32xbf16>
    %cst_41 = arith.constant dense<0.000000e+00> : vector<64x32xf32>
    %40 = tpu.matmul %37, %39, %cst_41 {dimension_numbers = #tpu.dot_dimension_numbers<[1], [0], [0], [1], [0, 0, 1, 1], [], []>} : vector<64x32xbf16>, vector<32x32xbf16>, vector<64x32xf32> -> vector<64x32xf32>
    %41 = arith.addf %33, %40 : vector<64x32xf32>
    %c0_42 = arith.constant 0 : index
    %c1_43 = arith.constant 1 : index
    %c0_44 = arith.constant 0 : index
    %c0_45 = arith.constant 0 : index
    %42 = vector.load %arg10[%c0_42, %c1_43, %c0_44, %c0_45] : memref<1x10x10x32xf32, #tpu.memory_space<vmem>>, vector<1x8x8x32xf32>
    %43 = vector.shape_cast %42 : vector<1x8x8x32xf32> to vector<8x8x32xf32>
    %44 = vector.shape_cast %43 : vector<8x8x32xf32> to vector<64x32xf32>
    %45 = arith.truncf %44 : vector<64x32xf32> to vector<64x32xbf16>
    %c3 = arith.constant 3 : index
    %c0_46 = arith.constant 0 : index
    %c0_47 = arith.constant 0 : index
    %46 = vector.load %arg4[%c3, %c0_46, %c0_47] : memref<9x32x32xbf16, #tpu.memory_space<vmem>>, vector<1x32x32xbf16>
    %47 = vector.shape_cast %46 : vector<1x32x32xbf16> to vector<32x32xbf16>
    %cst_48 = arith.constant dense<0.000000e+00> : vector<64x32xf32>
    %48 = tpu.matmul %45, %47, %cst_48 {dimension_numbers = #tpu.dot_dimension_numbers<[1], [0], [0], [1], [0, 0, 1, 1], [], []>} : vector<64x32xbf16>, vector<32x32xbf16>, vector<64x32xf32> -> vector<64x32xf32>
    %49 = arith.addf %41, %48 : vector<64x32xf32>
    %c0_49 = arith.constant 0 : index
    %c1_50 = arith.constant 1 : index
    %c1_51 = arith.constant 1 : index
    %c0_52 = arith.constant 0 : index
    %50 = vector.load %arg10[%c0_49, %c1_50, %c1_51, %c0_52] : memref<1x10x10x32xf32, #tpu.memory_space<vmem>>, vector<1x8x8x32xf32>
    %51 = vector.shape_cast %50 : vector<1x8x8x32xf32> to vector<8x8x32xf32>
    %52 = vector.shape_cast %51 : vector<8x8x32xf32> to vector<64x32xf32>
    %53 = arith.truncf %52 : vector<64x32xf32> to vector<64x32xbf16>
    %c4 = arith.constant 4 : index
    %c0_53 = arith.constant 0 : index
    %c0_54 = arith.constant 0 : index
    %54 = vector.load %arg4[%c4, %c0_53, %c0_54] : memref<9x32x32xbf16, #tpu.memory_space<vmem>>, vector<1x32x32xbf16>
    %55 = vector.shape_cast %54 : vector<1x32x32xbf16> to vector<32x32xbf16>
    %cst_55 = arith.constant dense<0.000000e+00> : vector<64x32xf32>
    %56 = tpu.matmul %53, %55, %cst_55 {dimension_numbers = #tpu.dot_dimension_numbers<[1], [0], [0], [1], [0, 0, 1, 1], [], []>} : vector<64x32xbf16>, vector<32x32xbf16>, vector<64x32xf32> -> vector<64x32xf32>
    %57 = arith.addf %49, %56 : vector<64x32xf32>
    %c0_56 = arith.constant 0 : index
    %c1_57 = arith.constant 1 : index
    %c2_58 = arith.constant 2 : index
    %c0_59 = arith.constant 0 : index
    %58 = vector.load %arg10[%c0_56, %c1_57, %c2_58, %c0_59] : memref<1x10x10x32xf32, #tpu.memory_space<vmem>>, vector<1x8x8x32xf32>
    %59 = vector.shape_cast %58 : vector<1x8x8x32xf32> to vector<8x8x32xf32>
    %60 = vector.shape_cast %59 : vector<8x8x32xf32> to vector<64x32xf32>
    %61 = arith.truncf %60 : vector<64x32xf32> to vector<64x32xbf16>
    %c5 = arith.constant 5 : index
    %c0_60 = arith.constant 0 : index
    %c0_61 = arith.constant 0 : index
    %62 = vector.load %arg4[%c5, %c0_60, %c0_61] : memref<9x32x32xbf16, #tpu.memory_space<vmem>>, vector<1x32x32xbf16>
    %63 = vector.shape_cast %62 : vector<1x32x32xbf16> to vector<32x32xbf16>
    %cst_62 = arith.constant dense<0.000000e+00> : vector<64x32xf32>
    %64 = tpu.matmul %61, %63, %cst_62 {dimension_numbers = #tpu.dot_dimension_numbers<[1], [0], [0], [1], [0, 0, 1, 1], [], []>} : vector<64x32xbf16>, vector<32x32xbf16>, vector<64x32xf32> -> vector<64x32xf32>
    %65 = arith.addf %57, %64 : vector<64x32xf32>
    %c0_63 = arith.constant 0 : index
    %c2_64 = arith.constant 2 : index
    %c0_65 = arith.constant 0 : index
    %c0_66 = arith.constant 0 : index
    %66 = vector.load %arg10[%c0_63, %c2_64, %c0_65, %c0_66] : memref<1x10x10x32xf32, #tpu.memory_space<vmem>>, vector<1x8x8x32xf32>
    %67 = vector.shape_cast %66 : vector<1x8x8x32xf32> to vector<8x8x32xf32>
    %68 = vector.shape_cast %67 : vector<8x8x32xf32> to vector<64x32xf32>
    %69 = arith.truncf %68 : vector<64x32xf32> to vector<64x32xbf16>
    %c6 = arith.constant 6 : index
    %c0_67 = arith.constant 0 : index
    %c0_68 = arith.constant 0 : index
    %70 = vector.load %arg4[%c6, %c0_67, %c0_68] : memref<9x32x32xbf16, #tpu.memory_space<vmem>>, vector<1x32x32xbf16>
    %71 = vector.shape_cast %70 : vector<1x32x32xbf16> to vector<32x32xbf16>
    %cst_69 = arith.constant dense<0.000000e+00> : vector<64x32xf32>
    %72 = tpu.matmul %69, %71, %cst_69 {dimension_numbers = #tpu.dot_dimension_numbers<[1], [0], [0], [1], [0, 0, 1, 1], [], []>} : vector<64x32xbf16>, vector<32x32xbf16>, vector<64x32xf32> -> vector<64x32xf32>
    %73 = arith.addf %65, %72 : vector<64x32xf32>
    %c0_70 = arith.constant 0 : index
    %c2_71 = arith.constant 2 : index
    %c1_72 = arith.constant 1 : index
    %c0_73 = arith.constant 0 : index
    %74 = vector.load %arg10[%c0_70, %c2_71, %c1_72, %c0_73] : memref<1x10x10x32xf32, #tpu.memory_space<vmem>>, vector<1x8x8x32xf32>
    %75 = vector.shape_cast %74 : vector<1x8x8x32xf32> to vector<8x8x32xf32>
    %76 = vector.shape_cast %75 : vector<8x8x32xf32> to vector<64x32xf32>
    %77 = arith.truncf %76 : vector<64x32xf32> to vector<64x32xbf16>
    %c7 = arith.constant 7 : index
    %c0_74 = arith.constant 0 : index
    %c0_75 = arith.constant 0 : index
    %78 = vector.load %arg4[%c7, %c0_74, %c0_75] : memref<9x32x32xbf16, #tpu.memory_space<vmem>>, vector<1x32x32xbf16>
    %79 = vector.shape_cast %78 : vector<1x32x32xbf16> to vector<32x32xbf16>
    %cst_76 = arith.constant dense<0.000000e+00> : vector<64x32xf32>
    %80 = tpu.matmul %77, %79, %cst_76 {dimension_numbers = #tpu.dot_dimension_numbers<[1], [0], [0], [1], [0, 0, 1, 1], [], []>} : vector<64x32xbf16>, vector<32x32xbf16>, vector<64x32xf32> -> vector<64x32xf32>
    %81 = arith.addf %73, %80 : vector<64x32xf32>
    %c0_77 = arith.constant 0 : index
    %c2_78 = arith.constant 2 : index
    %c2_79 = arith.constant 2 : index
    %c0_80 = arith.constant 0 : index
    %82 = vector.load %arg10[%c0_77, %c2_78, %c2_79, %c0_80] : memref<1x10x10x32xf32, #tpu.memory_space<vmem>>, vector<1x8x8x32xf32>
    %83 = vector.shape_cast %82 : vector<1x8x8x32xf32> to vector<8x8x32xf32>
    %84 = vector.shape_cast %83 : vector<8x8x32xf32> to vector<64x32xf32>
    %85 = arith.truncf %84 : vector<64x32xf32> to vector<64x32xbf16>
    %c8 = arith.constant 8 : index
    %c0_81 = arith.constant 0 : index
    %c0_82 = arith.constant 0 : index
    %86 = vector.load %arg4[%c8, %c0_81, %c0_82] : memref<9x32x32xbf16, #tpu.memory_space<vmem>>, vector<1x32x32xbf16>
    %87 = vector.shape_cast %86 : vector<1x32x32xbf16> to vector<32x32xbf16>
    %cst_83 = arith.constant dense<0.000000e+00> : vector<64x32xf32>
    %88 = tpu.matmul %85, %87, %cst_83 {dimension_numbers = #tpu.dot_dimension_numbers<[1], [0], [0], [1], [0, 0, 1, 1], [], []>} : vector<64x32xbf16>, vector<32x32xbf16>, vector<64x32xf32> -> vector<64x32xf32>
    %89 = arith.addf %81, %88 : vector<64x32xf32>
    %c0_84 = arith.constant 0 : index
    %c0_85 = arith.constant 0 : index
    %90 = vector.load %arg5[%c0_84, %c0_85] : memref<1x32xf32, #tpu.memory_space<vmem>>, vector<1x32xf32>
    %91 = vector.broadcast %90 : vector<1x32xf32> to vector<64x32xf32>
    %92 = arith.addf %89, %91 : vector<64x32xf32>
    %cst_86 = arith.constant 0.000000e+00 : f32
    %93 = vector.broadcast %cst_86 : f32 to vector<64x32xf32>
    %94 = arith.maximumf %92, %93 : vector<64x32xf32>
    %95 = arith.truncf %94 : vector<64x32xf32> to vector<64x32xbf16>
    %c0_87 = arith.constant 0 : index
    %c0_88 = arith.constant 0 : index
    %96 = vector.load %arg6[%c0_87, %c0_88] : memref<32x20xbf16, #tpu.memory_space<vmem>>, vector<32x20xbf16>
    %cst_89 = arith.constant dense<0.000000e+00> : vector<64x20xf32>
    %97 = tpu.matmul %95, %96, %cst_89 {dimension_numbers = #tpu.dot_dimension_numbers<[1], [0], [0], [1], [0, 0, 1, 1], [], []>} : vector<64x32xbf16>, vector<32x20xbf16>, vector<64x20xf32> -> vector<64x20xf32>
    %c0_90 = arith.constant 0 : index
    %c0_91 = arith.constant 0 : index
    %98 = vector.load %arg7[%c0_90, %c0_91] : memref<1x20xf32, #tpu.memory_space<vmem>>, vector<1x20xf32>
    %99 = vector.broadcast %98 : vector<1x20xf32> to vector<64x20xf32>
    %100 = arith.addf %97, %99 : vector<64x20xf32>
    %101 = vector.shape_cast %100 : vector<64x20xf32> to vector<1x64x20xf32>
    %c0_92 = arith.constant 0 : index
    %c0_93 = arith.constant 0 : index
    %c0_94 = arith.constant 0 : index
    %102 = vector.load %arg9[%c0_92, %c0_93, %c0_94] : memref<1x64x20xf32, #tpu.memory_space<vmem>>, vector<1x64x20xf32>
    tpu.vector_store %arg9[%c0_92, %c0_93, %c0_94], %101 {strides = array<i32>} : memref<1x64x20xf32, #tpu.memory_space<vmem>>, vector<1x64x20xf32>,
    return
  }
  func.func @transform_0(%arg0: i32) -> (i32, i32, i32, i32) {
    %c0_i32 = arith.constant 0 : i32
    %c0_i32_0 = arith.constant 0 : i32
    %c0_i32_1 = arith.constant 0 : i32
    %c0_i32_2 = arith.constant 0 : i32
    return %arg0, %c0_i32, %c0_i32_0, %c0_i32_1 : i32, i32, i32, i32
  }
  func.func @transform_1(%arg0: i32) -> (i32, i32) {
    %c0_i32 = arith.constant 0 : i32
    %c0_i32_0 = arith.constant 0 : i32
    %c0_i32_1 = arith.constant 0 : i32
    return %c0_i32, %c0_i32_0 : i32, i32
  }
  func.func @transform_2(%arg0: i32) -> (i32, i32) {
    %c0_i32 = arith.constant 0 : i32
    %c0_i32_0 = arith.constant 0 : i32
    %c0_i32_1 = arith.constant 0 : i32
    return %c0_i32, %c0_i32_0 : i32, i32
  }
  func.func @transform_3(%arg0: i32) -> (i32, i32, i32) {
    %c0_i32 = arith.constant 0 : i32
    %c0_i32_0 = arith.constant 0 : i32
    %c0_i32_1 = arith.constant 0 : i32
    %c0_i32_2 = arith.constant 0 : i32
    return %c0_i32, %c0_i32_0, %c0_i32_1 : i32, i32, i32
  }
  func.func @transform_4(%arg0: i32) -> (i32, i32) {
    %c0_i32 = arith.constant 0 : i32
    %c0_i32_0 = arith.constant 0 : i32
    %c0_i32_1 = arith.constant 0 : i32
    return %c0_i32, %c0_i32_0 : i32, i32
  }
  func.func @transform_5(%arg0: i32) -> (i32, i32) {
    %c0_i32 = arith.constant 0 : i32
    %c0_i32_0 = arith.constant 0 : i32
    %c0_i32_1 = arith.constant 0 : i32
    return %c0_i32, %c0_i32_0 : i32, i32
  }
  func.func @transform_6(%arg0: i32) -> (i32, i32) {
    %c0_i32 = arith.constant 0 : i32
    %c0_i32_0 = arith.constant 0 : i32
    %c0_i32_1 = arith.constant 0 : i32
    return %c0_i32, %c0_i32_0 : i32, i32
  }
  func.func @transform_7(%arg0: i32) -> (i32, i32, i32) {
    %c0_i32 = arith.constant 0 : i32
    %c0_i32_0 = arith.constant 0 : i32
    %c0_i32_1 = arith.constant 0 : i32
    return %arg0, %c0_i32, %c0_i32_0 : i32, i32, i32
  }
  func.func @transform_8(%arg0: i32) -> (i32, i32, i32) {
    %c0_i32 = arith.constant 0 : i32
    %c0_i32_0 = arith.constant 0 : i32
    %c0_i32_1 = arith.constant 0 : i32
    return %arg0, %c0_i32, %c0_i32_0 : i32, i32, i32
  }
}

module attributes {stable_mosaic.version = 11 : i64} {
  func.func @_roi_head_kernel(%arg0: i32, %arg1: memref<1x4x64xf32, #tpu.memory_space<vmem>>, %arg2: memref<1x64x33xbf16, #tpu.memory_space<vmem>>, %arg3: memref<32x32xbf16, #tpu.memory_space<vmem>>, %arg4: memref<1x32xf32, #tpu.memory_space<vmem>>, %arg5: memref<32x10xbf16, #tpu.memory_space<vmem>>, %arg6: memref<1x10xf32, #tpu.memory_space<vmem>>, %arg7: memref<1x4x10xf32, #tpu.memory_space<vmem>>) attributes {dimension_semantics = [#tpu.dimension_semantics<parallel>], iteration_bounds = array<i64: 2>, scalar_prefetch = 0 : i64, scratch_operands = 0 : i64, tpu.core_type = #tpu.core_type<tc>, window_params = [{transform_indices = @transform_0, window_bounds = array<i64: 1, 4, 64>}, {transform_indices = @transform_1, window_bounds = array<i64: 1, 64, 33>}, {pipeline_mode = #tpu.pipeline_mode<synchronous>, transform_indices = @transform_2, window_bounds = array<i64: 32, 32>}, {pipeline_mode = #tpu.pipeline_mode<synchronous>, transform_indices = @transform_3, window_bounds = array<i64: 1, 32>}, {pipeline_mode = #tpu.pipeline_mode<synchronous>, transform_indices = @transform_4, window_bounds = array<i64: 32, 10>}, {pipeline_mode = #tpu.pipeline_mode<synchronous>, transform_indices = @transform_5, window_bounds = array<i64: 1, 10>}, {transform_indices = @transform_6, window_bounds = array<i64: 1, 4, 10>}]} {
    %c0 = arith.constant 0 : index
    %c0_0 = arith.constant 0 : index
    %c0_1 = arith.constant 0 : index
    %0 = vector.load %arg1[%c0, %c0_0, %c0_1] : memref<1x4x64xf32, #tpu.memory_space<vmem>>, vector<1x4x64xf32>
    %1 = vector.shape_cast %0 : vector<1x4x64xf32> to vector<4x64xf32>
    %2 = arith.negf %1 : vector<4x64xf32>
    %3 = math.exp %2 : vector<4x64xf32>
    %cst = arith.constant 1.000000e+00 : f32
    %4 = vector.broadcast %cst : f32 to vector<4x64xf32>
    %5 = arith.addf %4, %3 : vector<4x64xf32>
    %6 = arith.divf %4, %5 : vector<4x64xf32>
    %7 = arith.truncf %6 : vector<4x64xf32> to vector<4x64xbf16>
    %c0_2 = arith.constant 0 : index
    %c0_3 = arith.constant 0 : index
    %c0_4 = arith.constant 0 : index
    %8 = vector.load %arg2[%c0_2, %c0_3, %c0_4] : memref<1x64x33xbf16, #tpu.memory_space<vmem>>, vector<1x64x33xbf16>
    %9 = vector.shape_cast %8 : vector<1x64x33xbf16> to vector<64x33xbf16>
    %cst_5 = arith.constant dense<0.000000e+00> : vector<4x33xf32>
    %10 = tpu.matmul %7, %9, %cst_5 {dimension_numbers = #tpu.dot_dimension_numbers<[1], [0], [0], [1], [0, 0, 1, 1], [], []>} : vector<4x64xbf16>, vector<64x33xbf16>, vector<4x33xf32> -> vector<4x33xf32>
    %11 = vector.extract_strided_slice %10 {offsets = [0, 0], sizes = [4, 32], strides = [1, 1]} : vector<4x33xf32> to vector<4x32xf32>
    %12 = vector.extract_strided_slice %10 {offsets = [0, 32], sizes = [4, 1], strides = [1, 1]} : vector<4x33xf32> to vector<4x1xf32>
    %cst_6 = arith.constant 9.99999997E-7 : f32
    %13 = vector.broadcast %cst_6 : f32 to vector<4x1xf32>
    %14 = arith.addf %12, %13 : vector<4x1xf32>
    %15 = vector.broadcast %14 : vector<4x1xf32> to vector<4x32xf32>
    %16 = arith.divf %11, %15 : vector<4x32xf32>
    %17 = arith.truncf %16 : vector<4x32xf32> to vector<4x32xbf16>
    %c0_7 = arith.constant 0 : index
    %c0_8 = arith.constant 0 : index
    %18 = vector.load %arg3[%c0_7, %c0_8] : memref<32x32xbf16, #tpu.memory_space<vmem>>, vector<32x32xbf16>
    %cst_9 = arith.constant dense<0.000000e+00> : vector<4x32xf32>
    %19 = tpu.matmul %17, %18, %cst_9 {dimension_numbers = #tpu.dot_dimension_numbers<[1], [0], [0], [1], [0, 0, 1, 1], [], []>} : vector<4x32xbf16>, vector<32x32xbf16>, vector<4x32xf32> -> vector<4x32xf32>
    %c0_10 = arith.constant 0 : index
    %c0_11 = arith.constant 0 : index
    %20 = vector.load %arg4[%c0_10, %c0_11] : memref<1x32xf32, #tpu.memory_space<vmem>>, vector<1x32xf32>
    %21 = vector.broadcast %20 : vector<1x32xf32> to vector<4x32xf32>
    %22 = arith.addf %19, %21 : vector<4x32xf32>
    %cst_12 = arith.constant 0.000000e+00 : f32
    %23 = vector.broadcast %cst_12 : f32 to vector<4x32xf32>
    %24 = arith.maximumf %22, %23 : vector<4x32xf32>
    %25 = arith.truncf %24 : vector<4x32xf32> to vector<4x32xbf16>
    %c0_13 = arith.constant 0 : index
    %c0_14 = arith.constant 0 : index
    %26 = vector.load %arg5[%c0_13, %c0_14] : memref<32x10xbf16, #tpu.memory_space<vmem>>, vector<32x10xbf16>
    %cst_15 = arith.constant dense<0.000000e+00> : vector<4x10xf32>
    %27 = tpu.matmul %25, %26, %cst_15 {dimension_numbers = #tpu.dot_dimension_numbers<[1], [0], [0], [1], [0, 0, 1, 1], [], []>} : vector<4x32xbf16>, vector<32x10xbf16>, vector<4x10xf32> -> vector<4x10xf32>
    %c0_16 = arith.constant 0 : index
    %c0_17 = arith.constant 0 : index
    %28 = vector.load %arg6[%c0_16, %c0_17] : memref<1x10xf32, #tpu.memory_space<vmem>>, vector<1x10xf32>
    %29 = vector.broadcast %28 : vector<1x10xf32> to vector<4x10xf32>
    %30 = arith.addf %27, %29 : vector<4x10xf32>
    %c0_18 = arith.constant 0 : index
    %c0_19 = arith.constant 0 : index
    %c0_20 = arith.constant 0 : index
    %31 = vector.load %arg7[%c0_18, %c0_19, %c0_20] : memref<1x4x10xf32, #tpu.memory_space<vmem>>, vector<1x4x10xf32>
    %32 = vector.shape_cast %31 : vector<1x4x10xf32> to vector<4x10xf32>
    %33 = vector.shape_cast %30 : vector<4x10xf32> to vector<1x4x10xf32>
    tpu.vector_store %arg7[%c0_18, %c0_19, %c0_20], %33 {strides = array<i32>} : memref<1x4x10xf32, #tpu.memory_space<vmem>>, vector<1x4x10xf32>,
    return
  }
  func.func @transform_0(%arg0: i32) -> (i32, i32, i32) {
    %c0_i32 = arith.constant 0 : i32
    %c0_i32_0 = arith.constant 0 : i32
    %c0_i32_1 = arith.constant 0 : i32
    return %arg0, %c0_i32, %c0_i32_0 : i32, i32, i32
  }
  func.func @transform_1(%arg0: i32) -> (i32, i32, i32) {
    %c0_i32 = arith.constant 0 : i32
    %c0_i32_0 = arith.constant 0 : i32
    %c0_i32_1 = arith.constant 0 : i32
    return %arg0, %c0_i32, %c0_i32_0 : i32, i32, i32
  }
  func.func @transform_2(%arg0: i32) -> (i32, i32) {
    %c0_i32 = arith.constant 0 : i32
    %c0_i32_0 = arith.constant 0 : i32
    %c0_i32_1 = arith.constant 0 : i32
    return %c0_i32, %c0_i32_0 : i32, i32
  }
  func.func @transform_3(%arg0: i32) -> (i32, i32) {
    %c0_i32 = arith.constant 0 : i32
    %c0_i32_0 = arith.constant 0 : i32
    %c0_i32_1 = arith.constant 0 : i32
    return %c0_i32, %c0_i32_0 : i32, i32
  }
  func.func @transform_4(%arg0: i32) -> (i32, i32) {
    %c0_i32 = arith.constant 0 : i32
    %c0_i32_0 = arith.constant 0 : i32
    %c0_i32_1 = arith.constant 0 : i32
    return %c0_i32, %c0_i32_0 : i32, i32
  }
  func.func @transform_5(%arg0: i32) -> (i32, i32) {
    %c0_i32 = arith.constant 0 : i32
    %c0_i32_0 = arith.constant 0 : i32
    %c0_i32_1 = arith.constant 0 : i32
    return %c0_i32, %c0_i32_0 : i32, i32
  }
  func.func @transform_6(%arg0: i32) -> (i32, i32, i32) {
    %c0_i32 = arith.constant 0 : i32
    %c0_i32_0 = arith.constant 0 : i32
    %c0_i32_1 = arith.constant 0 : i32
    return %arg0, %c0_i32, %c0_i32_0 : i32, i32, i32
  }
}

</mosaic_0001>

<llo_original>
// kernel: two_stage_anchor_based_lane_detector.7
$region0: #{two_stage_anchor_based_lane_detector.7}
  #allocation0 [shape = 'u32[]', space=smem, size = 0x4, offset = 0x4, fixed_abs, tag = 'smem constant byte address 0x4 - core index']
  #allocation1 [shape = 'u32[144,128]{1,0:T(1,128)}', space=vmem, size = 0x12000, scoped, tag = 'internal scratch']
  %s0 = inlined_call_operand.vmem [shape: f32[4,2,9,9,8], index: 0, kind: input, shape index: {}]
  %s1 = inlined_call_operand.vmem [shape: bf16[9,8,16], index: 1, kind: input, shape index: {}]
  %s2 = inlined_call_operand.vmem [shape: f32[1,16], index: 2, kind: input, shape index: {}]
  %s3 = inlined_call_operand.vmem [shape: f32[2,8,8,16], index: 3, kind: output, shape index: {}]
  %s4 = sld [smem:[#allocation0]]
  $region83: #{two_stage_anchor_based_lane_detector.7} parent=0
    _
  %s6 = ssub.s32 1, %s4
  %s7 = scalar_select 0, %s6, %s4
  $region1: #{two_stage_anchor_based_lane_detector.7} parent=0
    #allocation2 [shape = 'u8[589824]{0}', space=vmem, size = 0x90000, scoped, tag = 'input window, operand 0']
    loop: start=0, step=1, limit=4
    $region2: #{two_stage_anchor_based_lane_detector.7} parent=1 // loop_pre_header
      _
    $region3: #{two_stage_anchor_based_lane_detector.7} parent=1 // loop_header
      %s9 = sphi 0, %s13
      %p10 = scmp.ge.s32.totalorder %s9, 4
      %s19 = sphi 0, %s21
      %s22 = sphi 0, %s19
      %s23 = sphi 0, %s22
      %s39 = sphi 0, %s23
      %s43 = sphi 0, %s43
      %s45 = sphi 0, %s43
      %s46 = sphi 0, %s45
      %s60 = sphi 0, %s46
      %s64 = sphi 0, %s64
      %s66 = sphi 0, %s64
      %s67 = sphi 0, %s66
      %s81 = sphi 0, %s67
      %s87 = sphi 0, %s89
      %s90 = sphi 0, %s87
      %s91 = sphi 0, %s90
      %s107 = sphi 0, %s91
    $region4: #{two_stage_anchor_based_lane_detector.7} parent=1 // loop_header_branch
      %12 = sbr.rel (%p10) target = $region8
    $region5: #{two_stage_anchor_based_lane_detector.7} parent=1 // loop_body
      %s14 = ssub.s32 %s9, 1
      %s15 = ssub.s32 %s9, 2
      %s16 = sadd.s32 %s9, 1
      %s17 = ssub.s32 %s9, %s16
      %p18 = scmp.eq.s32.totalorder %s17, 0
      %s20 = sadd.s32 %s19, 1
      %s21 = scalar_select %p18, %s19, %s20
      %p24 = pneg %p18
      %p25 = scmp.eq.s32.totalorder %s9, 1
      %p26 = por %p24, %p25
      %p27 = scmp.ne.s32.totalorder %s19, %s22
      %p28 = scmp.eq.s32.totalorder %s9, 0
      %p29 = por %p27, %p28
      %p30 = scmp.ne.s32.totalorder %s19, %s22
      %p31 = scmp.eq.s32.totalorder %s14, 1
      %p32 = por %p30, %p31
      %p33 = scmp.ne.s32.totalorder %s22, %s23
      %p34 = scmp.eq.s32.totalorder %s14, 0
      %p35 = por %p33, %p34
      %p36 = scmp.ne.s32.totalorder %s22, %s23
      %p37 = scmp.eq.s32.totalorder %s15, 1
      %p38 = por %p36, %p37
      %p40 = scmp.ne.s32.totalorder %s23, %s39
      %p41 = scmp.eq.s32.totalorder %s15, 0
      %p42 = por %p40, %p41
      %s44 = sadd.s32 %s43, 1
      %p47 = scmp.eq.s32.totalorder %s9, 1
      %p48 = scmp.ne.s32.totalorder %s43, %s45
      %p49 = scmp.eq.s32.totalorder %s9, 0
      %p50 = por %p48, %p49
      %p51 = scmp.ne.s32.totalorder %s43, %s45
      %p52 = scmp.eq.s32.totalorder %s14, 1
      %p53 = por %p51, %p52
      %p54 = scmp.ne.s32.totalorder %s45, %s46
      %p55 = scmp.eq.s32.totalorder %s14, 0
      %p56 = por %p54, %p55
      %p57 = scmp.ne.s32.totalorder %s45, %s46
      %p58 = scmp.eq.s32.totalorder %s15, 1
      %p59 = por %p57, %p58
      %p61 = scmp.ne.s32.totalorder %s46, %s60
      %p62 = scmp.eq.s32.totalorder %s15, 0
      %p63 = por %p61, %p62
      %s65 = sadd.s32 %s64, 1
      %p68 = scmp.eq.s32.totalorder %s9, 1
      %p69 = scmp.ne.s32.totalorder %s64, %s66
      %p70 = scmp.eq.s32.totalorder %s9, 0
      %p71 = por %p69, %p70
      %p72 = scmp.ne.s32.totalorder %s64, %s66
      %p73 = scmp.eq.s32.totalorder %s14, 1
      %p74 = por %p72, %p73
      %p75 = scmp.ne.s32.totalorder %s66, %s67
      %p76 = scmp.eq.s32.totalorder %s14, 0
      %p77 = por %p75, %p76
      %p78 = scmp.ne.s32.totalorder %s66, %s67
      %p79 = scmp.eq.s32.totalorder %s15, 1
      %p80 = por %p78, %p79
      %p82 = scmp.ne.s32.totalorder %s67, %s81
      %p83 = scmp.eq.s32.totalorder %s15, 0
      %p84 = por %p82, %p83
      %s85 = ssub.s32 %s9, %s16
      %p86 = scmp.eq.s32.totalorder %s85, 0
      %s88 = sadd.s32 %s87, 1
      %s89 = scalar_select %p86, %s87, %s88
      %p92 = pneg %p86
      %p93 = scmp.eq.s32.totalorder %s9, 1
      %p94 = por %p92, %p93
      %p95 = scmp.ne.s32.totalorder %s87, %s90
      %p96 = scmp.eq.s32.totalorder %s9, 0
      %p97 = por %p95, %p96
      %p98 = scmp.ne.s32.totalorder %s87, %s90
      %p99 = scmp.eq.s32.totalorder %s14, 1
      %p100 = por %p98, %p99
      %p101 = scmp.ne.s32.totalorder %s90, %s91
      %p102 = scmp.eq.s32.totalorder %s14, 0
      %p103 = por %p101, %p102
      %p104 = scmp.ne.s32.totalorder %s90, %s91
      %p105 = scmp.eq.s32.totalorder %s15, 1
      %p106 = por %p104, %p105
      %p108 = scmp.ne.s32.totalorder %s91, %s107
      %p109 = scmp.eq.s32.totalorder %s15, 0
      %p110 = por %p108, %p109
      %p111 = scmp.le.s32.totalorder 1, %s9
      %p112 = scmp.lt.s32.totalorder %s9, 3
      %p113 = pnand %p111, %p112
      %p114 = pneg %p113
      // Predicated region
      $region9: #{two_stage_anchor_based_lane_detector.7} parent=5 // pred_check
        _
      $region10: #{two_stage_anchor_based_lane_detector.7} parent=5 // pred_check_branch
        %116 = sbr.rel (%p113) target = $region12
      $region11: #{two_stage_anchor_based_lane_detector.7} parent=5 // pred_region
        %s117 = ssub.s32 %s9, 1
        // Predicated region
        $region13: #{two_stage_anchor_based_lane_detector.7} parent=11 // pred_check
          %p118 = pneg %p56
        $region14: #{two_stage_anchor_based_lane_detector.7} parent=11 // pred_check_branch
          %120 = sbr.rel (%p118) target = $region16
        $region15: #{two_stage_anchor_based_lane_detector.7} parent=11 // pred_region
          _
        $region16: #{two_stage_anchor_based_lane_detector.7} parent=11 // pred_fallthru
          _
        // Predicated region
        $region17: #{two_stage_anchor_based_lane_detector.7} parent=11 // pred_check
          %p121 = pneg %p77
        $region18: #{two_stage_anchor_based_lane_detector.7} parent=11 // pred_check_branch
          %123 = sbr.rel (%p121) target = $region20
        $region19: #{two_stage_anchor_based_lane_detector.7} parent=11 // pred_region
          _
        $region20: #{two_stage_anchor_based_lane_detector.7} parent=11 // pred_fallthru
          _
      $region12: #{two_stage_anchor_based_lane_detector.7} parent=5 // pred_fallthru
        _
      %p124 = scmp.lt.s32.totalorder %s9, 2
      // Predicated region
      $region21: #{two_stage_anchor_based_lane_detector.7} parent=5 // pred_check
        %p125 = pneg %p124
      $region22: #{two_stage_anchor_based_lane_detector.7} parent=5 // pred_check_branch
        %127 = sbr.rel (%p125) target = $region24
      $region23: #{two_stage_anchor_based_lane_detector.7} parent=5 // pred_region
        // Predicated region
        $region25: #{two_stage_anchor_based_lane_detector.7} parent=23 // pred_check
          %p128 = pneg %p29
        $region26: #{two_stage_anchor_based_lane_detector.7} parent=23 // pred_check_branch
          %130 = sbr.rel (%p128) target = $region28
        $region27: #{two_stage_anchor_based_lane_detector.7} parent=23 // pred_region
          %s131 = sand.u32 %s19, 1
          %s132 = sand.u32 %s19, 1
          %s133 = smul.addr %s132, 576
          %s134 = scalar_lea.vmem [#allocation2], %s133
          %s135 = smul.addr %s9, 18
          %s136 = smul.addr %s135, 8
          %s137 = scalar_lea.vmem %s0, %s136
          // Predicated region
          $region29: #{two_stage_anchor_based_lane_detector.7} parent=27 // pred_check
            _
          $region30: #{two_stage_anchor_based_lane_detector.7} parent=27 // pred_check_branch
            %139 = sbr.rel (0) target = $region32
          $region31: #{two_stage_anchor_based_lane_detector.7} parent=27 // pred_region
            // Predicated region
            $region33: #{two_stage_anchor_based_lane_detector.7} parent=31 // pred_check
              _
            $region34: #{two_stage_anchor_based_lane_detector.7} parent=31 // pred_check_branch
              %141 = sbr.rel (0) target = $region36
            $region35: #{two_stage_anchor_based_lane_detector.7} parent=31 // pred_region
              // Predicated region
              $region48: #{two_stage_anchor_based_lane_detector.7} parent=35 // pred_check
                _
              $region49: #{two_stage_anchor_based_lane_detector.7} parent=35 // pred_check_branch
                %299 = sbr.rel (0) target = $region51
              $region50: #{two_stage_anchor_based_lane_detector.7} parent=35 // pred_region
                loop: start=0, step=1, limit=1
                $region52: #{two_stage_anchor_based_lane_detector.7} parent=50 // loop_pre_header
                  _
                $region53: #{two_stage_anchor_based_lane_detector.7} parent=50 // loop_header
                  %s301 = sphi 0, %s305
                  %p302 = scmp.ge.s32.totalorder %s301, 1
                  %s306 = sphi %s137, %s137
                  %s307 = sphi %s134, %s134
                $region54: #{two_stage_anchor_based_lane_detector.7} parent=50 // loop_header_branch
                  %304 = sbr.rel (%p302) target = $region58
                $region55: #{two_stage_anchor_based_lane_detector.7} parent=50 // loop_body
                  %v308 = vld [vmem:[%s306] sm:$0xff]
                  %309 = vst [vmem:[%s307] sm:$0xff] %v308
                  %v310 = vld [vmem:[%s306 + $0x8] sm:$0xff]
                  %311 = vst [vmem:[%s307 + $0x8] sm:$0xff] %v310
                  %v312 = vld [vmem:[%s306 + $0x10] sm:$0xff]
                  %313 = vst [vmem:[%s307 + $0x10] sm:$0xff] %v312
                  %v314 = vld [vmem:[%s306 + $0x18] sm:$0xff]
                  %315 = vst [vmem:[%s307 + $0x18] sm:$0xff] %v314
                  %v316 = vld [vmem:[%s306 + $0x20] sm:$0xff]
                  %317 = vst [vmem:[%s307 + $0x20] sm:$0xff] %v316
                  %v318 = vld [vmem:[%s306 + $0x28] sm:$0xff]
                  %319 = vst [vmem:[%s307 + $0x28] sm:$0xff] %v318
                  %v320 = vld [vmem:[%s306 + $0x30] sm:$0xff]
                  %321 = vst [vmem:[%s307 + $0x30] sm:$0xff] %v320
                  %v322 = vld [vmem:[%s306 + $0x38] sm:$0xff]
                  %323 = vst [vmem:[%s307 + $0x38] sm:$0xff] %v322
                  %v324 = vld [vmem:[%s306 + $0x40] sm:$0xff]
                  %325 = vst [vmem:[%s307 + $0x40] sm:$0xff] %v324
                  %v326 = vld [vmem:[%s306 + $0x48] sm:$0xff]
                  %327 = vst [vmem:[%s307 + $0x48] sm:$0xff] %v326
                  %v328 = vld [vmem:[%s306 + $0x50] sm:$0xff]
                  %329 = vst [vmem:[%s307 + $0x50] sm:$0xff] %v328
                  %v330 = vld [vmem:[%s306 + $0x58] sm:$0xff]
                  %331 = vst [vmem:[%s307 + $0x58] sm:$0xff] %v330
                  %v332 = vld [vmem:[%s306 + $0x60] sm:$0xff]
                  %333 = vst [vmem:[%s307 + $0x60] sm:$0xff] %v332
                  %v334 = vld [vmem:[%s306 + $0x68] sm:$0xff]
                  %335 = vst [vmem:[%s307 + $0x68] sm:$0xff] %v334
                  %v336 = vld [vmem:[%s306 + $0x70] sm:$0xff]
                  %337 = vst [vmem:[%s307 + $0x70] sm:$0xff] %v336
                  %v338 = vld [vmem:[%s306 + $0x78] sm:$0xff]
                  %339 = vst [vmem:[%s307 + $0x78] sm:$0xff] %v338
                  %v340 = vld [vmem:[%s306 + $0x80] sm:$0xff]
                  %341 = vst [vmem:[%s307 + $0x80] sm:$0xff] %v340
                  %v342 = vld [vmem:[%s306 + $0x88] sm:$0xff]
                  %343 = vst [vmem:[%s307 + $0x88] sm:$0xff] %v342
                  %v344 = vld [vmem:[%s306 + $0x120] sm:$0xff]
                  %345 = vst [vmem:[%s307 + $0x90] sm:$0xff] %v344
                  %v346 = vld [vmem:[%s306 + $0x128] sm:$0xff]
                  %347 = vst [vmem:[%s307 + $0x98] sm:$0xff] %v346
                  %v348 = vld [vmem:[%s306 + $0x130] sm:$0xff]
                  %349 = vst [vmem:[%s307 + $0xa0] sm:$0xff] %v348
                  %v350 = vld [vmem:[%s306 + $0x138] sm:$0xff]
                  %351 = vst [vmem:[%s307 + $0xa8] sm:$0xff] %v350
                  %v352 = vld [vmem:[%s306 + $0x140] sm:$0xff]
                  %353 = vst [vmem:[%s307 + $0xb0] sm:$0xff] %v352
                  %v354 = vld [vmem:[%s306 + $0x148] sm:$0xff]
                  %355 = vst [vmem:[%s307 + $0xb8] sm:$0xff] %v354
                  %v356 = vld [vmem:[%s306 + $0x150] sm:$0xff]
                  %357 = vst [vmem:[%s307 + $0xc0] sm:$0xff] %v356
                  %v358 = vld [vmem:[%s306 + $0x158] sm:$0xff]
                  %359 = vst [vmem:[%s307 + $0xc8] sm:$0xff] %v358
                  %v360 = vld [vmem:[%s306 + $0x160] sm:$0xff]
                  %361 = vst [vmem:[%s307 + $0xd0] sm:$0xff] %v360
                  %v362 = vld [vmem:[%s306 + $0x168] sm:$0xff]
                  %363 = vst [vmem:[%s307 + $0xd8] sm:$0xff] %v362
                  %v364 = vld [vmem:[%s306 + $0x170] sm:$0xff]
                  %365 = vst [vmem:[%s307 + $0xe0] sm:$0xff] %v364
                  %v366 = vld [vmem:[%s306 + $0x178] sm:$0xff]
                  %367 = vst [vmem:[%s307 + $0xe8] sm:$0xff] %v366
                  %v368 = vld [vmem:[%s306 + $0x180] sm:$0xff]
                  %369 = vst [vmem:[%s307 + $0xf0] sm:$0xff] %v368
                  %v370 = vld [vmem:[%s306 + $0x188] sm:$0xff]
                  %371 = vst [vmem:[%s307 + $0xf8] sm:$0xff] %v370
                  %v372 = vld [vmem:[%s306 + $0x190] sm:$0xff]
                  %373 = vst [vmem:[%s307 + $0x100] sm:$0xff] %v372
                  %v374 = vld [vmem:[%s306 + $0x198] sm:$0xff]
                  %375 = vst [vmem:[%s307 + $0x108] sm:$0xff] %v374
                  %v376 = vld [vmem:[%s306 + $0x1a0] sm:$0xff]
                  %377 = vst [vmem:[%s307 + $0x110] sm:$0xff] %v376
                  %v378 = vld [vmem:[%s306 + $0x1a8] sm:$0xff]
                  %379 = vst [vmem:[%s307 + $0x118] sm:$0xff] %v378
                  %v380 = vld [vmem:[%s306 + $0x240] sm:$0xff]
                  %381 = vst [vmem:[%s307 + $0x120] sm:$0xff] %v380
                  %v382 = vld [vmem:[%s306 + $0x248] sm:$0xff]
                  %383 = vst [vmem:[%s307 + $0x128] sm:$0xff] %v382
                  %v384 = vld [vmem:[%s306 + $0x250] sm:$0xff]
                  %385 = vst [vmem:[%s307 + $0x130] sm:$0xff] %v384
                  %v386 = vld [vmem:[%s306 + $0x258] sm:$0xff]
                  %387 = vst [vmem:[%s307 + $0x138] sm:$0xff] %v386
                  %v388 = vld [vmem:[%s306 + $0x260] sm:$0xff]
                  %389 = vst [vmem:[%s307 + $0x140] sm:$0xff] %v388
                  %v390 = vld [vmem:[%s306 + $0x268] sm:$0xff]
                  %391 = vst [vmem:[%s307 + $0x148] sm:$0xff] %v390
                  %v392 = vld [vmem:[%s306 + $0x270] sm:$0xff]
                  %393 = vst [vmem:[%s307 + $0x150] sm:$0xff] %v392
                  %v394 = vld [vmem:[%s306 + $0x278] sm:$0xff]
                  %395 = vst [vmem:[%s307 + $0x158] sm:$0xff] %v394
                  %v396 = vld [vmem:[%s306 + $0x280] sm:$0xff]
                  %397 = vst [vmem:[%s307 + $0x160] sm:$0xff] %v396
                  %v398 = vld [vmem:[%s306 + $0x288] sm:$0xff]
                  %399 = vst [vmem:[%s307 + $0x168] sm:$0xff] %v398
                  %v400 = vld [vmem:[%s306 + $0x290] sm:$0xff]
                  %401 = vst [vmem:[%s307 + $0x170] sm:$0xff] %v400
                  %v402 = vld [vmem:[%s306 + $0x298] sm:$0xff]
                  %403 = vst [vmem:[%s307 + $0x178] sm:$0xff] %v402
                  %v404 = vld [vmem:[%s306 + $0x2a0] sm:$0xff]
                  %405 = vst [vmem:[%s307 + $0x180] sm:$0xff] %v404
                  %v406 = vld [vmem:[%s306 + $0x2a8] sm:$0xff]
                  %407 = vst [vmem:[%s307 + $0x188] sm:$0xff] %v406
                  %v408 = vld [vmem:[%s306 + $0x2b0] sm:$0xff]
                  %409 = vst [vmem:[%s307 + $0x190] sm:$0xff] %v408
                  %v410 = vld [vmem:[%s306 + $0x2b8] sm:$0xff]
                  %411 = vst [vmem:[%s307 + $0x198] sm:$0xff] %v410
                  %v412 = vld [vmem:[%s306 + $0x2c0] sm:$0xff]
                  %413 = vst [vmem:[%s307 + $0x1a0] sm:$0xff] %v412
                  %v414 = vld [vmem:[%s306 + $0x2c8] sm:$0xff]
                  %415 = vst [vmem:[%s307 + $0x1a8] sm:$0xff] %v414
                  %v416 = vld [vmem:[%s306 + $0x360] sm:$0xff]
                  %417 = vst [vmem:[%s307 + $0x1b0] sm:$0xff] %v416
                  %v418 = vld [vmem:[%s306 + $0x368] sm:$0xff]
                  %419 = vst [vmem:[%s307 + $0x1b8] sm:$0xff] %v418
                  %v420 = vld [vmem:[%s306 + $0x370] sm:$0xff]
                  %421 = vst [vmem:[%s307 + $0x1c0] sm:$0xff] %v420
                  %v422 = vld [vmem:[%s306 + $0x378] sm:$0xff]
                  %423 = vst [vmem:[%s307 + $0x1c8] sm:$0xff] %v422
                  %v424 = vld [vmem:[%s306 + $0x380] sm:$0xff]
                  %425 = vst [vmem:[%s307 + $0x1d0] sm:$0xff] %v424
                  %v426 = vld [vmem:[%s306 + $0x388] sm:$0xff]
                  %427 = vst [vmem:[%s307 + $0x1d8] sm:$0xff] %v426
                  %v428 = vld [vmem:[%s306 + $0x390] sm:$0xff]
                  %429 = vst [vmem:[%s307 + $0x1e0] sm:$0xff] %v428
                  %v430 = vld [vmem:[%s306 + $0x398] sm:$0xff]
                  %431 = vst [vmem:[%s307 + $0x1e8] sm:$0xff] %v430
                  %v432 = vld [vmem:[%s306 + $0x3a0] sm:$0xff]
                  %433 = vst [vmem:[%s307 + $0x1f0] sm:$0xff] %v432
                  %v434 = vld [vmem:[%s306 + $0x3a8] sm:$0xff]
                  %435 = vst [vmem:[%s307 + $0x1f8] sm:$0xff] %v434
                  %v436 = vld [vmem:[%s306 + $0x3b0] sm:$0xff]
                  %437 = vst [vmem:[%s307 + $0x200] sm:$0xff] %v436
                  %v438 = vld [vmem:[%s306 + $0x3b8] sm:$0xff]
                  %439 = vst [vmem:[%s307 + $0x208] sm:$0xff] %v438
                  %v440 = vld [vmem:[%s306 + $0x3c0] sm:$0xff]
                  %441 = vst [vmem:[%s307 + $0x210] sm:$0xff] %v440
                  %v442 = vld [vmem:[%s306 + $0x3c8] sm:$0xff]
                  %443 = vst [vmem:[%s307 + $0x218] sm:$0xff] %v442
                  %v444 = vld [vmem:[%s306 + $0x3d0] sm:$0xff]
                  %445 = vst [vmem:[%s307 + $0x220] sm:$0xff] %v444
                  %v446 = vld [vmem:[%s306 + $0x3d8] sm:$0xff]
                  %447 = vst [vmem:[%s307 + $0x228] sm:$0xff] %v446
                  %v448 = vld [vmem:[%s306 + $0x3e0] sm:$0xff]
                  %449 = vst [vmem:[%s307 + $0x230] sm:$0xff] %v448
                  %v450 = vld [vmem:[%s306 + $0x3e8] sm:$0xff]
                  %451 = vst [vmem:[%s307 + $0x238] sm:$0xff] %v450
                $region56: #{two_stage_anchor_based_lane_detector.7} parent=50 // loop_footer
                  %s305 = sadd.s32 1, %s301
                $region57: #{two_stage_anchor_based_lane_detector.7} parent=50 // loop_footer_branch
                  %300 = sbr.rel target = $region53
                $region58: #{two_stage_anchor_based_lane_detector.7} parent=50 // loop_exit
                  _
              $region51: #{two_stage_anchor_based_lane_detector.7} parent=35 // pred_fallthru
                _
              // Predicated region
              $region59: #{two_stage_anchor_based_lane_detector.7} parent=35 // pred_check
                _
              $region60: #{two_stage_anchor_based_lane_detector.7} parent=35 // pred_check_branch
                %453 = sbr.rel target = $region62
              $region61: #{two_stage_anchor_based_lane_detector.7} parent=35 // pred_region
                _
              $region62: #{two_stage_anchor_based_lane_detector.7} parent=35 // pred_fallthru
                _
            $region36: #{two_stage_anchor_based_lane_detector.7} parent=31 // pred_fallthru
              _
            // Predicated region
            $region37: #{two_stage_anchor_based_lane_detector.7} parent=31 // pred_check
              _
            $region38: #{two_stage_anchor_based_lane_detector.7} parent=31 // pred_check_branch
              %143 = sbr.rel target = $region40
            $region39: #{two_stage_anchor_based_lane_detector.7} parent=31 // pred_region
              %s145 = ssub.s32 256, 1
              loop: start=0, step=1, limit=1
              $region41: #{two_stage_anchor_based_lane_detector.7} parent=39 // loop_pre_header
                _
              $region42: #{two_stage_anchor_based_lane_detector.7} parent=39 // loop_header
                %s147 = sphi 0, %s151
                %p148 = scmp.ge.s32.totalorder %s147, 1
                %s152 = sphi %s137, %s137
                %s153 = sphi %s134, %s134
              $region43: #{two_stage_anchor_based_lane_detector.7} parent=39 // loop_header_branch
                %150 = sbr.rel (%p148) target = $region47
              $region44: #{two_stage_anchor_based_lane_detector.7} parent=39 // loop_body
                %v154 = vld [vmem:[%s152] sm:%s145]
                %155 = vst [vmem:[%s153] sm:%s145] %v154
                %v156 = vld [vmem:[%s152 + $0x8] sm:%s145]
                %157 = vst [vmem:[%s153 + $0x8] sm:%s145] %v156
                %v158 = vld [vmem:[%s152 + $0x10] sm:%s145]
                %159 = vst [vmem:[%s153 + $0x10] sm:%s145] %v158
                %v160 = vld [vmem:[%s152 + $0x18] sm:%s145]
                %161 = vst [vmem:[%s153 + $0x18] sm:%s145] %v160
                %v162 = vld [vmem:[%s152 + $0x20] sm:%s145]
                %163 = vst [vmem:[%s153 + $0x20] sm:%s145] %v162
                %v164 = vld [vmem:[%s152 + $0x28] sm:%s145]
                %165 = vst [vmem:[%s153 + $0x28] sm:%s145] %v164
                %v166 = vld [vmem:[%s152 + $0x30] sm:%s145]
                %167 = vst [vmem:[%s153 + $0x30] sm:%s145] %v166
                %v168 = vld [vmem:[%s152 + $0x38] sm:%s145]
                %169 = vst [vmem:[%s153 + $0x38] sm:%s145] %v168
                %v170 = vld [vmem:[%s152 + $0x40] sm:%s145]
                %171 = vst [vmem:[%s153 + $0x40] sm:%s145] %v170
                %v172 = vld [vmem:[%s152 + $0x48] sm:%s145]
                %173 = vst [vmem:[%s153 + $0x48] sm:%s145] %v172
                %v174 = vld [vmem:[%s152 + $0x50] sm:%s145]
                %175 = vst [vmem:[%s153 + $0x50] sm:%s145] %v174
                %v176 = vld [vmem:[%s152 + $0x58] sm:%s145]
                %177 = vst [vmem:[%s153 + $0x58] sm:%s145] %v176
                %v178 = vld [vmem:[%s152 + $0x60] sm:%s145]
                %179 = vst [vmem:[%s153 + $0x60] sm:%s145] %v178
                %v180 = vld [vmem:[%s152 + $0x68] sm:%s145]
                %181 = vst [vmem:[%s153 + $0x68] sm:%s145] %v180
                %v182 = vld [vmem:[%s152 + $0x70] sm:%s145]
                %183 = vst [vmem:[%s153 + $0x70] sm:%s145] %v182
                %v184 = vld [vmem:[%s152 + $0x78] sm:%s145]
                %185 = vst [vmem:[%s153 + $0x78] sm:%s145] %v184
                %v186 = vld [vmem:[%s152 + $0x80] sm:%s145]
                %187 = vst [vmem:[%s153 + $0x80] sm:%s145] %v186
                %v188 = vld [vmem:[%s152 + $0x88] sm:%s145]
                %189 = vst [vmem:[%s153 + $0x88] sm:%s145] %v188
                %v190 = vld [vmem:[%s152 + $0x120] sm:%s145]
                %191 = vst [vmem:[%s153 + $0x90] sm:%s145] %v190
                %v192 = vld [vmem:[%s152 + $0x128] sm:%s145]
                %193 = vst [vmem:[%s153 + $0x98] sm:%s145] %v192
                %v194 = vld [vmem:[%s152 + $0x130] sm:%s145]
                %195 = vst [vmem:[%s153 + $0xa0] sm:%s145] %v194
                %v196 = vld [vmem:[%s152 + $0x138] sm:%s145]
                %197 = vst [vmem:[%s153 + $0xa8] sm:%s145] %v196
                %v198 = vld [vmem:[%s152 + $0x140] sm:%s145]
                %199 = vst [vmem:[%s153 + $0xb0] sm:%s145] %v198
                %v200 = vld [vmem:[%s152 + $0x148] sm:%s145]
                %201 = vst [vmem:[%s153 + $0xb8] sm:%s145] %v200
                %v202 = vld [vmem:[%s152 + $0x150] sm:%s145]
                %203 = vst [vmem:[%s153 + $0xc0] sm:%s145] %v202
                %v204 = vld [vmem:[%s152 + $0x158] sm:%s145]
                %205 = vst [vmem:[%s153 + $0xc8] sm:%s145] %v204
                %v206 = vld [vmem:[%s152 + $0x160] sm:%s145]
                %207 = vst [vmem:[%s153 + $0xd0] sm:%s145] %v206
                %v208 = vld [vmem:[%s152 + $0x168] sm:%s145]
                %209 = vst [vmem:[%s153 + $0xd8] sm:%s145] %v208
                %v210 = vld [vmem:[%s152 + $0x170] sm:%s145]
                %211 = vst [vmem:[%s153 + $0xe0] sm:%s145] %v210
                %v212 = vld [vmem:[%s152 + $0x178] sm:%s145]
                %213 = vst [vmem:[%s153 + $0xe8] sm:%s145] %v212
                %v214 = vld [vmem:[%s152 + $0x180] sm:%s145]
                %215 = vst [vmem:[%s153 + $0xf0] sm:%s145] %v214
                %v216 = vld [vmem:[%s152 + $0x188] sm:%s145]
                %217 = vst [vmem:[%s153 + $0xf8] sm:%s145] %v216
                %v218 = vld [vmem:[%s152 + $0x190] sm:%s145]
                %219 = vst [vmem:[%s153 + $0x100] sm:%s145] %v218
                %v220 = vld [vmem:[%s152 + $0x198] sm:%s145]
                %221 = vst [vmem:[%s153 + $0x108] sm:%s145] %v220
                %v222 = vld [vmem:[%s152 + $0x1a0] sm:%s145]
                %223 = vst [vmem:[%s153 + $0x110] sm:%s145] %v222
                %v224 = vld [vmem:[%s152 + $0x1a8] sm:%s145]
                %225 = vst [vmem:[%s153 + $0x118] sm:%s145] %v224
                %v226 = vld [vmem:[%s152 + $0x240] sm:%s145]
                %227 = vst [vmem:[%s153 + $0x120] sm:%s145] %v226
                %v228 = vld [vmem:[%s152 + $0x248] sm:%s145]
                %229 = vst [vmem:[%s153 + $0x128] sm:%s145] %v228
                %v230 = vld [vmem:[%s152 + $0x250] sm:%s145]
                %231 = vst [vmem:[%s153 + $0x130] sm:%s145] %v230
                %v232 = vld [vmem:[%s152 + $0x258] sm:%s145]
                %233 = vst [vmem:[%s153 + $0x138] sm:%s145] %v232
                %v234 = vld [vmem:[%s152 + $0x260] sm:%s145]
                %235 = vst [vmem:[%s153 + $0x140] sm:%s145] %v234
                %v236 = vld [vmem:[%s152 + $0x268] sm:%s145]
                %237 = vst [vmem:[%s153 + $0x148] sm:%s145] %v236
                %v238 = vld [vmem:[%s152 + $0x270] sm:%s145]
                %239 = vst [vmem:[%s153 + $0x150] sm:%s145] %v238
                %v240 = vld [vmem:[%s152 + $0x278] sm:%s145]
                %241 = vst [vmem:[%s153 + $0x158] sm:%s145] %v240
                %v242 = vld [vmem:[%s152 + $0x280] sm:%s145]
                %243 = vst [vmem:[%s153 + $0x160] sm:%s145] %v242
                %v244 = vld [vmem:[%s152 + $0x288] sm:%s145]
                %245 = vst [vmem:[%s153 + $0x168] sm:%s145] %v244
                %v246 = vld [vmem:[%s152 + $0x290] sm:%s145]
                %247 = vst [vmem:[%s153 + $0x170] sm:%s145] %v246
                %v248 = vld [vmem:[%s152 + $0x298] sm:%s145]
                %249 = vst [vmem:[%s153 + $0x178] sm:%s145] %v248
                %v250 = vld [vmem:[%s152 + $0x2a0] sm:%s145]
                %251 = vst [vmem:[%s153 + $0x180] sm:%s145] %v250
                %v252 = vld [vmem:[%s152 + $0x2a8] sm:%s145]
                %253 = vst [vmem:[%s153 + $0x188] sm:%s145] %v252
                %v254 = vld [vmem:[%s152 + $0x2b0] sm:%s145]
                %255 = vst [vmem:[%s153 + $0x190] sm:%s145] %v254
                %v256 = vld [vmem:[%s152 + $0x2b8] sm:%s145]
                %257 = vst [vmem:[%s153 + $0x198] sm:%s145] %v256
                %v258 = vld [vmem:[%s152 + $0x2c0] sm:%s145]
                %259 = vst [vmem:[%s153 + $0x1a0] sm:%s145] %v258
                %v260 = vld [vmem:[%s152 + $0x2c8] sm:%s145]
                %261 = vst [vmem:[%s153 + $0x1a8] sm:%s145] %v260
                %v262 = vld [vmem:[%s152 + $0x360] sm:%s145]
                %263 = vst [vmem:[%s153 + $0x1b0] sm:%s145] %v262
                %v264 = vld [vmem:[%s152 + $0x368] sm:%s145]
                %265 = vst [vmem:[%s153 + $0x1b8] sm:%s145] %v264
                %v266 = vld [vmem:[%s152 + $0x370] sm:%s145]
                %267 = vst [vmem:[%s153 + $0x1c0] sm:%s145] %v266
                %v268 = vld [vmem:[%s152 + $0x378] sm:%s145]
                %269 = vst [vmem:[%s153 + $0x1c8] sm:%s145] %v268
                %v270 = vld [vmem:[%s152 + $0x380] sm:%s145]
                %271 = vst [vmem:[%s153 + $0x1d0] sm:%s145] %v270
                %v272 = vld [vmem:[%s152 + $0x388] sm:%s145]
                %273 = vst [vmem:[%s153 + $0x1d8] sm:%s145] %v272
                %v274 = vld [vmem:[%s152 + $0x390] sm:%s145]
                %275 = vst [vmem:[%s153 + $0x1e0] sm:%s145] %v274
                %v276 = vld [vmem:[%s152 + $0x398] sm:%s145]
                %277 = vst [vmem:[%s153 + $0x1e8] sm:%s145] %v276
                %v278 = vld [vmem:[%s152 + $0x3a0] sm:%s145]
                %279 = vst [vmem:[%s153 + $0x1f0] sm:%s145] %v278
                %v280 = vld [vmem:[%s152 + $0x3a8] sm:%s145]
                %281 = vst [vmem:[%s153 + $0x1f8] sm:%s145] %v280
                %v282 = vld [vmem:[%s152 + $0x3b0] sm:%s145]
                %283 = vst [vmem:[%s153 + $0x200] sm:%s145] %v282
                %v284 = vld [vmem:[%s152 + $0x3b8] sm:%s145]
                %285 = vst [vmem:[%s153 + $0x208] sm:%s145] %v284
                %v286 = vld [vmem:[%s152 + $0x3c0] sm:%s145]
                %287 = vst [vmem:[%s153 + $0x210] sm:%s145] %v286
                %v288 = vld [vmem:[%s152 + $0x3c8] sm:%s145]
                %289 = vst [vmem:[%s153 + $0x218] sm:%s145] %v288
                %v290 = vld [vmem:[%s152 + $0x3d0] sm:%s145]
                %291 = vst [vmem:[%s153 + $0x220] sm:%s145] %v290
                %v292 = vld [vmem:[%s152 + $0x3d8] sm:%s145]
                %293 = vst [vmem:[%s153 + $0x228] sm:%s145] %v292
                %v294 = vld [vmem:[%s152 + $0x3e0] sm:%s145]
                %295 = vst [vmem:[%s153 + $0x230] sm:%s145] %v294
                %v296 = vld [vmem:[%s152 + $0x3e8] sm:%s145]
                %297 = vst [vmem:[%s153 + $0x238] sm:%s145] %v296
              $region45: #{two_stage_anchor_based_lane_detector.7} parent=39 // loop_footer
                %s151 = sadd.s32 1, %s147
              $region46: #{two_stage_anchor_based_lane_detector.7} parent=39 // loop_footer_branch
                %146 = sbr.rel target = $region42
              $region47: #{two_stage_anchor_based_lane_detector.7} parent=39 // loop_exit
                _
            $region40: #{two_stage_anchor_based_lane_detector.7} parent=31 // pred_fallthru
              _
          $region32: #{two_stage_anchor_based_lane_detector.7} parent=27 // pred_fallthru
            _
          %454 = vnop
        $region28: #{two_stage_anchor_based_lane_detector.7} parent=23 // pred_fallthru
          _
      $region24: #{two_stage_anchor_based_lane_detector.7} parent=5 // pred_fallthru
        _
      %p455 = scmp.le.s32.totalorder 1, %s9
      %p456 = scmp.lt.s32.totalorder %s9, 3
      %p457 = pnand %p455, %p456
      %p458 = pneg %p457
      // Predicated region
      $region63: #{two_stage_anchor_based_lane_detector.7} parent=5 // pred_check
        _
      $region64: #{two_stage_anchor_based_lane_detector.7} parent=5 // pred_check_branch
        %460 = sbr.rel (%p457) target = $region66
      $region65: #{two_stage_anchor_based_lane_detector.7} parent=5 // pred_region
        %s461 = ssub.s32 %s9, 1
        %s462 = sand.u32 %s22, 1
        %s463 = sand.u32 %s22, 1
        %s464 = smul.addr %s463, 576
        %s465 = scalar_lea.vmem [#allocation2], %s464
        // Predicated region
        $region67: #{two_stage_anchor_based_lane_detector.7} parent=65 // pred_check
          %p466 = pneg %p35
        $region68: #{two_stage_anchor_based_lane_detector.7} parent=65 // pred_check_branch
          %468 = sbr.rel (%p466) target = $region70
        $region69: #{two_stage_anchor_based_lane_detector.7} parent=65 // pred_region
          _
        $region70: #{two_stage_anchor_based_lane_detector.7} parent=65 // pred_fallthru
          _
        %s469 = sand.u32 %s22, 1
        %s470 = sand.u32 %s22, 1
        %s471 = smul.addr %s470, 576
        %s472 = scalar_lea.vmem [#allocation2], %s471
        %p473 = pneg %p35
        %p474 = pneg %p32
        %p475 = pneg %p56
        %p476 = pneg %p53
        %p477 = pneg %p77
        %p478 = pneg %p74
        %p479 = pneg %p103
        %p480 = pneg %p100
        %p481 = scmp.lt.s32.totalorder %s14, 1
        %s482 = scalar_select %p481, %s14, 1
        %s483 = smul.addr %s482, 8
        %s484 = smul.addr %s483, 8
        %s485 = scalar_lea.vmem %s3, %s484
        %p486 = scmp.lt.s32.totalorder %s14, 1
        %s487 = scalar_select %p486, %s14, 1
        %s488 = smul.addr %s487, 8
        %s489 = smul.addr %s488, 8
        %s490 = scalar_lea.vmem %s3, %s489
        %v492 = vld [vmem:[%s465] sm:$0xff]
        %v493 = vld [vmem:[%s465 + $0x10] sm:$0xff]
        %v494 = vld [vmem:[%s465 + $0x20] sm:$0xff]
        %v495 = vld [vmem:[%s465 + $0x30] sm:$0xff]
        %v496 = vld [vmem:[%s465 + $0x40] sm:$0xff]
        %v497 = vld [vmem:[%s465 + $0x50] sm:$0xff]
        %v498 = vld [vmem:[%s465 + $0x60] sm:$0xff]
        %v499 = vld [vmem:[%s465 + $0x70] sm:$0xff]
        %v500 = vpack.c.bf16 %v493, %v492
        %v501 = vpack.c.bf16 %v495, %v494
        %v502 = vpack.c.bf16 %v497, %v496
        %v503 = vpack.c.bf16 %v499, %v498
        %v504 = vld [vmem:[%s1] sm:$0xf]
        %s505 = scalar_lea.vmem %s465, 144 [#allocation2]
        %v506 = vld [vmem:[%s505] sm:$0xff]
        %v507 = vld [vmem:[%s505 + $0x10] sm:$0xff]
        %v508 = vld [vmem:[%s505 + $0x20] sm:$0xff]
        %v509 = vld [vmem:[%s505 + $0x30] sm:$0xff]
        %v510 = vld [vmem:[%s505 + $0x40] sm:$0xff]
        %v511 = vld [vmem:[%s505 + $0x50] sm:$0xff]
        %v512 = vld [vmem:[%s505 + $0x60] sm:$0xff]
        %v513 = vld [vmem:[%s505 + $0x70] sm:$0xff]
        %v514 = vpack.c.bf16 %v507, %v506
        %v515 = vpack.c.bf16 %v509, %v508
        %v516 = vpack.c.bf16 %v511, %v510
        %v517 = vpack.c.bf16 %v513, %v512
        %s518 = scalar_lea.vmem %s1, 4
        %v519 = vld [vmem:[%s518] sm:$0xf]
        %vm520 = vcmask 64512
        %v522 = vsel %vm520, %v514, 0
        %v525 = vsel %vm520, %v515, 0
        %v528 = vsel %vm520, %v516, 0
        %v531 = vsel %vm520, %v517, 0
        %vm533 = vcmask 1043456
        %v535 = vsel %vm533, %v519, 0
        %537 = vmatprep.subr.bf16.mxu0 0
        %538 = vmatpush1.bf16.msra.mxu0 0
        %539 = vmatprep.subr.bf16.mxu0 0
        %540 = vmatpush1.bf16.msra.mxu0 0
        %541 = vmatprep.subr.bf16.mxu0 0
        %542 = vmatpush1.bf16.msra.mxu0 0
        %543 = vmatprep.subr.bf16.mxu0 0
        %544 = vmatpush1.bf16.msra.mxu0 0
        %545 = vmatprep.subr.bf16.mxu0 0
        %546 = vmatpush1.bf16.msra.mxu0 0
        %547 = vmatprep.subr.bf16.mxu0 0
        %548 = vmatpush1.bf16.msra.mxu0 0
        %549 = vmatprep.subr.bf16.mxu0 0
        %550 = vmatpush1.bf16.msra.mxu0 0
        %551 = vmatprep.subr.bf16.mxu0 0
        %552 = vmatpush1.bf16.msra.mxu0 %v535
        %553 = vmatprep.subr.bf16.mxu0 0
        %554 = vmatpush2.bf16.msra.mxu0 0
        %555 = vmatprep.subr.bf16.mxu0 0
        %556 = vmatpush2.bf16.msra.mxu0 0
        %557 = vmatprep.subr.bf16.mxu0 0
        %558 = vmatpush2.bf16.msra.mxu0 0
        %559 = vmatprep.subr.bf16.mxu0 0
        %560 = vmatpush2.bf16.msra.mxu0 0
        %561 = vmatprep.subr.bf16.mxu0 0
        %562 = vmatpush2.bf16.msra.mxu0 0
        %563 = vmatprep.subr.bf16.mxu0 0
        %564 = vmatpush2.bf16.msra.mxu0 0
        %565 = vmatprep.subr.bf16.mxu0 0
        %566 = vmatpush2.bf16.msra.mxu0 0
        %567 = vmatprep.subr.bf16.mxu0 0
        %568 = vmatpush2.bf16.msra.mxu0 0
        %569 = vmatprep.mubr.bf16.mxu0 0
        %570 = vmatmul.mubr.bf16.gmra.mxu0 %v522
        %v571 = vpop.f32.mrf.mxu0
        %v572 = vadd.f32 0.0, %v571
        %v573 = vpop.f32.mrf.mxu0
        %v574 = vpop.f32.mrf.mxu0
        %v575 = vadd.f32 0.0, %v574
        %v576 = vpop.f32.mrf.mxu0
        %577 = vmatprep.mubr.bf16.mxu0 0
        %578 = vmatmul.mubr.bf16.gmra.mxu0 %v525
        %v579 = vpop.f32.mrf.mxu0
        %v580 = vadd.f32 0.0, %v579
        %v581 = vpop.f32.mrf.mxu0
        %v582 = vpop.f32.mrf.mxu0
        %v583 = vadd.f32 0.0, %v582
        %v584 = vpop.f32.mrf.mxu0
        %585 = vmatprep.mubr.bf16.mxu0 0
        %586 = vmatmul.mubr.bf16.gmra.mxu0 %v528
        %v587 = vpop.f32.mrf.mxu0
        %v588 = vadd.f32 0.0, %v587
        %v589 = vpop.f32.mrf.mxu0
        %v590 = vpop.f32.mrf.mxu0
        %v591 = vadd.f32 0.0, %v590
        %v592 = vpop.f32.mrf.mxu0
        %593 = vmatprep.mubr.bf16.mxu0 0
        %594 = vmatmul.mubr.bf16.gmra.mxu0 %v531
        %v595 = vpop.f32.mrf.mxu0
        %v596 = vadd.f32 0.0, %v595
        %v597 = vpop.f32.mrf.mxu0
        %v598 = vpop.f32.mrf.mxu0
        %v599 = vadd.f32 0.0, %v598
        %v600 = vpop.f32.mrf.mxu0
        %601 = vdwg.mxu0
        %v603 = vsel %vm520, %v500, 0
        %v606 = vsel %vm520, %v501, 0
        %v609 = vsel %vm520, %v502, 0
        %v612 = vsel %vm520, %v503, 0
        %v615 = vsel %vm533, %v504, 0
        %617 = vmatprep.subr.bf16.mxu0 0
        %618 = vmatpush1.bf16.msra.mxu0 0
        %619 = vmatprep.subr.bf16.mxu0 0
        %620 = vmatpush1.bf16.msra.mxu0 0
        %621 = vmatprep.subr.bf16.mxu0 0
        %622 = vmatpush1.bf16.msra.mxu0 0
        %623 = vmatprep.subr.bf16.mxu0 0
        %624 = vmatpush1.bf16.msra.mxu0 0
        %625 = vmatprep.subr.bf16.mxu0 0
        %626 = vmatpush1.bf16.msra.mxu0 0
        %627 = vmatprep.subr.bf16.mxu0 0
        %628 = vmatpush1.bf16.msra.mxu0 0
        %629 = vmatprep.subr.bf16.mxu0 0
        %630 = vmatpush1.bf16.msra.mxu0 0
        %631 = vmatprep.subr.bf16.mxu0 0
        %632 = vmatpush1.bf16.msra.mxu0 %v615
        %633 = vmatprep.subr.bf16.mxu0 0
        %634 = vmatpush2.bf16.msra.mxu0 0
        %635 = vmatprep.subr.bf16.mxu0 0
        %636 = vmatpush2.bf16.msra.mxu0 0
        %637 = vmatprep.subr.bf16.mxu0 0
        %638 = vmatpush2.bf16.msra.mxu0 0
        %639 = vmatprep.subr.bf16.mxu0 0
        %640 = vmatpush2.bf16.msra.mxu0 0
        %641 = vmatprep.subr.bf16.mxu0 0
        %642 = vmatpush2.bf16.msra.mxu0 0
        %643 = vmatprep.subr.bf16.mxu0 0
        %644 = vmatpush2.bf16.msra.mxu0 0
        %645 = vmatprep.subr.bf16.mxu0 0
        %646 = vmatpush2.bf16.msra.mxu0 0
        %647 = vmatprep.subr.bf16.mxu0 0
        %648 = vmatpush2.bf16.msra.mxu0 0
        %649 = vmatprep.mubr.bf16.mxu0 0
        %650 = vmatmul.mubr.bf16.gmra.mxu0 %v603
        %v651 = vpop.f32.mrf.mxu0
        %v652 = vadd.f32 %v572, %v651
        %v653 = vpop.f32.mrf.mxu0
        %v654 = vpop.f32.mrf.mxu0
        %v655 = vadd.f32 %v575, %v654
        %v656 = vpop.f32.mrf.mxu0
        %657 = vmatprep.mubr.bf16.mxu0 0
        %658 = vmatmul.mubr.bf16.gmra.mxu0 %v606
        %v659 = vpop.f32.mrf.mxu0
        %v660 = vadd.f32 %v580, %v659
        %v661 = vpop.f32.mrf.mxu0
        %v662 = vpop.f32.mrf.mxu0
        %v663 = vadd.f32 %v583, %v662
        %v664 = vpop.f32.mrf.mxu0
        %665 = vmatprep.mubr.bf16.mxu0 0
        %666 = vmatmul.mubr.bf16.gmra.mxu0 %v609
        %v667 = vpop.f32.mrf.mxu0
        %v668 = vadd.f32 %v588, %v667
        %v669 = vpop.f32.mrf.mxu0
        %v670 = vpop.f32.mrf.mxu0
        %v671 = vadd.f32 %v591, %v670
        %v672 = vpop.f32.mrf.mxu0
        %673 = vmatprep.mubr.bf16.mxu0 0
        %674 = vmatmul.mubr.bf16.gmra.mxu0 %v612
        %v675 = vpop.f32.mrf.mxu0
        %v676 = vadd.f32 %v596, %v675
        %v677 = vpop.f32.mrf.mxu0
        %v678 = vpop.f32.mrf.mxu0
        %v679 = vadd.f32 %v599, %v678
        %v680 = vpop.f32.mrf.mxu0
        %681 = vdwg.mxu0
        %v682 = vld [vmem:[%s465 + $0x1] sm:$0xff]
        %v683 = vld [vmem:[%s465 + $0x11] sm:$0xff]
        %v684 = vld [vmem:[%s465 + $0x21] sm:$0xff]
        %v685 = vld [vmem:[%s465 + $0x31] sm:$0xff]
        %v686 = vld [vmem:[%s465 + $0x41] sm:$0xff]
        %v687 = vld [vmem:[%s465 + $0x51] sm:$0xff]
        %v688 = vld [vmem:[%s465 + $0x61] sm:$0xff]
        %v689 = vld [vmem:[%s465 + $0x71] sm:$0xff]
        %v690 = vpack.c.bf16 %v683, %v682
        %v691 = vpack.c.bf16 %v685, %v684
        %v692 = vpack.c.bf16 %v687, %v686
        %v693 = vpack.c.bf16 %v689, %v688
        %s694 = scalar_lea.vmem %s1, 8
        %v695 = vld [vmem:[%s694] sm:$0xf]
        %v697 = vsel %vm520, %v690, 0
        %v700 = vsel %vm520, %v691, 0
        %v703 = vsel %vm520, %v692, 0
        %v706 = vsel %vm520, %v693, 0
        %v709 = vsel %vm533, %v695, 0
        %711 = vmatprep.subr.bf16.mxu0 0
        %712 = vmatpush1.bf16.msra.mxu0 0
        %713 = vmatprep.subr.bf16.mxu0 0
        %714 = vmatpush1.bf16.msra.mxu0 0
        %715 = vmatprep.subr.bf16.mxu0 0
        %716 = vmatpush1.bf16.msra.mxu0 0
        %717 = vmatprep.subr.bf16.mxu0 0
        %718 = vmatpush1.bf16.msra.mxu0 0
        %719 = vmatprep.subr.bf16.mxu0 0
        %720 = vmatpush1.bf16.msra.mxu0 0
        %721 = vmatprep.subr.bf16.mxu0 0
        %722 = vmatpush1.bf16.msra.mxu0 0
        %723 = vmatprep.subr.bf16.mxu0 0
        %724 = vmatpush1.bf16.msra.mxu0 0
        %725 = vmatprep.subr.bf16.mxu0 0
        %726 = vmatpush1.bf16.msra.mxu0 %v709
        %727 = vmatprep.subr.bf16.mxu0 0
        %728 = vmatpush2.bf16.msra.mxu0 0
        %729 = vmatprep.subr.bf16.mxu0 0
        %730 = vmatpush2.bf16.msra.mxu0 0
        %731 = vmatprep.subr.bf16.mxu0 0
        %732 = vmatpush2.bf16.msra.mxu0 0
        %733 = vmatprep.subr.bf16.mxu0 0
        %734 = vmatpush2.bf16.msra.mxu0 0
        %735 = vmatprep.subr.bf16.mxu0 0
        %736 = vmatpush2.bf16.msra.mxu0 0
        %737 = vmatprep.subr.bf16.mxu0 0
        %738 = vmatpush2.bf16.msra.mxu0 0
        %739 = vmatprep.subr.bf16.mxu0 0
        %740 = vmatpush2.bf16.msra.mxu0 0
        %741 = vmatprep.subr.bf16.mxu0 0
        %742 = vmatpush2.bf16.msra.mxu0 0
        %743 = vmatprep.mubr.bf16.mxu0 0
        %744 = vmatmul.mubr.bf16.gmra.mxu0 %v697
        %v745 = vpop.f32.mrf.mxu0
        %v746 = vadd.f32 0.0, %v745
        %v747 = vpop.f32.mrf.mxu0
        %v748 = vpop.f32.mrf.mxu0
        %v749 = vadd.f32 0.0, %v748
        %v750 = vpop.f32.mrf.mxu0
        %751 = vmatprep.mubr.bf16.mxu0 0
        %752 = vmatmul.mubr.bf16.gmra.mxu0 %v700
        %v753 = vpop.f32.mrf.mxu0
        %v754 = vadd.f32 0.0, %v753
        %v755 = vpop.f32.mrf.mxu0
        %v756 = vpop.f32.mrf.mxu0
        %v757 = vadd.f32 0.0, %v756
        %v758 = vpop.f32.mrf.mxu0
        %759 = vmatprep.mubr.bf16.mxu0 0
        %760 = vmatmul.mubr.bf16.gmra.mxu0 %v703
        %v761 = vpop.f32.mrf.mxu0
        %v762 = vadd.f32 0.0, %v761
        %v763 = vpop.f32.mrf.mxu0
        %v764 = vpop.f32.mrf.mxu0
        %v765 = vadd.f32 0.0, %v764
        %v766 = vpop.f32.mrf.mxu0
        %767 = vmatprep.mubr.bf16.mxu0 0
        %768 = vmatmul.mubr.bf16.gmra.mxu0 %v706
        %v769 = vpop.f32.mrf.mxu0
        %v770 = vadd.f32 0.0, %v769
        %v771 = vpop.f32.mrf.mxu0
        %v772 = vpop.f32.mrf.mxu0
        %v773 = vadd.f32 0.0, %v772
        %v774 = vpop.f32.mrf.mxu0
        %775 = vdwg.mxu0
        %v776 = vadd.f32 %v652, %v746
        %v777 = vadd.f32 %v655, %v749
        %v778 = vadd.f32 %v660, %v754
        %v779 = vadd.f32 %v663, %v757
        %v780 = vadd.f32 %v668, %v762
        %v781 = vadd.f32 %v671, %v765
        %v782 = vadd.f32 %v676, %v770
        %v783 = vadd.f32 %v679, %v773
        %s784 = scalar_lea.vmem %s465, 288 [#allocation2]
        %v785 = vld [vmem:[%s784] sm:$0xff]
        %v786 = vld [vmem:[%s784 + $0x10] sm:$0xff]
        %v787 = vld [vmem:[%s784 + $0x20] sm:$0xff]
        %v788 = vld [vmem:[%s784 + $0x30] sm:$0xff]
        %v789 = vld [vmem:[%s784 + $0x40] sm:$0xff]
        %v790 = vld [vmem:[%s784 + $0x50] sm:$0xff]
        %v791 = vld [vmem:[%s784 + $0x60] sm:$0xff]
        %v792 = vld [vmem:[%s784 + $0x70] sm:$0xff]
        %v793 = vpack.c.bf16 %v786, %v785
        %v794 = vpack.c.bf16 %v788, %v787
        %v795 = vpack.c.bf16 %v790, %v789
        %v796 = vpack.c.bf16 %v792, %v791
        %s797 = scalar_lea.vmem %s1, 12
        %v798 = vld [vmem:[%s797] sm:$0xf]
        %v800 = vsel %vm520, %v793, 0
        %v803 = vsel %vm520, %v794, 0
        %v806 = vsel %vm520, %v795, 0
        %v809 = vsel %vm520, %v796, 0
        %v812 = vsel %vm533, %v798, 0
        %814 = vmatprep.subr.bf16.mxu0 0
        %815 = vmatpush1.bf16.msra.mxu0 0
        %816 = vmatprep.subr.bf16.mxu0 0
        %817 = vmatpush1.bf16.msra.mxu0 0
        %818 = vmatprep.subr.bf16.mxu0 0
        %819 = vmatpush1.bf16.msra.mxu0 0
        %820 = vmatprep.subr.bf16.mxu0 0
        %821 = vmatpush1.bf16.msra.mxu0 0
        %822 = vmatprep.subr.bf16.mxu0 0
        %823 = vmatpush1.bf16.msra.mxu0 0
        %824 = vmatprep.subr.bf16.mxu0 0
        %825 = vmatpush1.bf16.msra.mxu0 0
        %826 = vmatprep.subr.bf16.mxu0 0
        %827 = vmatpush1.bf16.msra.mxu0 0
        %828 = vmatprep.subr.bf16.mxu0 0
        %829 = vmatpush1.bf16.msra.mxu0 %v812
        %830 = vmatprep.subr.bf16.mxu0 0
        %831 = vmatpush2.bf16.msra.mxu0 0
        %832 = vmatprep.subr.bf16.mxu0 0
        %833 = vmatpush2.bf16.msra.mxu0 0
        %834 = vmatprep.subr.bf16.mxu0 0
        %835 = vmatpush2.bf16.msra.mxu0 0
        %836 = vmatprep.subr.bf16.mxu0 0
        %837 = vmatpush2.bf16.msra.mxu0 0
        %838 = vmatprep.subr.bf16.mxu0 0
        %839 = vmatpush2.bf16.msra.mxu0 0
        %840 = vmatprep.subr.bf16.mxu0 0
        %841 = vmatpush2.bf16.msra.mxu0 0
        %842 = vmatprep.subr.bf16.mxu0 0
        %843 = vmatpush2.bf16.msra.mxu0 0
        %844 = vmatprep.subr.bf16.mxu0 0
        %845 = vmatpush2.bf16.msra.mxu0 0
        %846 = vmatprep.mubr.bf16.mxu0 0
        %847 = vmatmul.mubr.bf16.gmra.mxu0 %v800
        %v848 = vpop.f32.mrf.mxu0
        %v849 = vadd.f32 0.0, %v848
        %v850 = vpop.f32.mrf.mxu0
        %v851 = vpop.f32.mrf.mxu0
        %v852 = vadd.f32 0.0, %v851
        %v853 = vpop.f32.mrf.mxu0
        %854 = vmatprep.mubr.bf16.mxu0 0
        %855 = vmatmul.mubr.bf16.gmra.mxu0 %v803
        %v856 = vpop.f32.mrf.mxu0
        %v857 = vadd.f32 0.0, %v856
        %v858 = vpop.f32.mrf.mxu0
        %v859 = vpop.f32.mrf.mxu0
        %v860 = vadd.f32 0.0, %v859
        %v861 = vpop.f32.mrf.mxu0
        %862 = vmatprep.mubr.bf16.mxu0 0
        %863 = vmatmul.mubr.bf16.gmra.mxu0 %v806
        %v864 = vpop.f32.mrf.mxu0
        %v865 = vadd.f32 0.0, %v864
        %v866 = vpop.f32.mrf.mxu0
        %v867 = vpop.f32.mrf.mxu0
        %v868 = vadd.f32 0.0, %v867
        %v869 = vpop.f32.mrf.mxu0
        %870 = vmatprep.mubr.bf16.mxu0 0
        %871 = vmatmul.mubr.bf16.gmra.mxu0 %v809
        %v872 = vpop.f32.mrf.mxu0
        %v873 = vadd.f32 0.0, %v872
        %v874 = vpop.f32.mrf.mxu0
        %v875 = vpop.f32.mrf.mxu0
        %v876 = vadd.f32 0.0, %v875
        %v877 = vpop.f32.mrf.mxu0
        %878 = vdwg.mxu0
        %v879 = vadd.f32 %v776, %v849
        %v880 = vadd.f32 %v777, %v852
        %v881 = vadd.f32 %v778, %v857
        %v882 = vadd.f32 %v779, %v860
        %v883 = vadd.f32 %v780, %v865
        %v884 = vadd.f32 %v781, %v868
        %v885 = vadd.f32 %v782, %v873
        %v886 = vadd.f32 %v783, %v876
        %s887 = scalar_lea.vmem %s465, 432 [#allocation2]
        %v888 = vld [vmem:[%s887] sm:$0xff]
        %v889 = vld [vmem:[%s887 + $0x10] sm:$0xff]
        %v890 = vld [vmem:[%s887 + $0x20] sm:$0xff]
        %v891 = vld [vmem:[%s887 + $0x30] sm:$0xff]
        %v892 = vld [vmem:[%s887 + $0x40] sm:$0xff]
        %v893 = vld [vmem:[%s887 + $0x50] sm:$0xff]
        %v894 = vld [vmem:[%s887 + $0x60] sm:$0xff]
        %v895 = vld [vmem:[%s887 + $0x70] sm:$0xff]
        %v896 = vpack.c.bf16 %v889, %v888
        %v897 = vpack.c.bf16 %v891, %v890
        %v898 = vpack.c.bf16 %v893, %v892
        %v899 = vpack.c.bf16 %v895, %v894
        %s900 = scalar_lea.vmem %s1, 16
        %v901 = vld [vmem:[%s900] sm:$0xf]
        %v903 = vsel %vm520, %v896, 0
        %v906 = vsel %vm520, %v897, 0
        %v909 = vsel %vm520, %v898, 0
        %v912 = vsel %vm520, %v899, 0
        %v915 = vsel %vm533, %v901, 0
        %917 = vmatprep.subr.bf16.mxu0 0
        %918 = vmatpush1.bf16.msra.mxu0 0
        %919 = vmatprep.subr.bf16.mxu0 0
        %920 = vmatpush1.bf16.msra.mxu0 0
        %921 = vmatprep.subr.bf16.mxu0 0
        %922 = vmatpush1.bf16.msra.mxu0 0
        %923 = vmatprep.subr.bf16.mxu0 0
        %924 = vmatpush1.bf16.msra.mxu0 0
        %925 = vmatprep.subr.bf16.mxu0 0
        %926 = vmatpush1.bf16.msra.mxu0 0
        %927 = vmatprep.subr.bf16.mxu0 0
        %928 = vmatpush1.bf16.msra.mxu0 0
        %929 = vmatprep.subr.bf16.mxu0 0
        %930 = vmatpush1.bf16.msra.mxu0 0
        %931 = vmatprep.subr.bf16.mxu0 0
        %932 = vmatpush1.bf16.msra.mxu0 %v915
        %933 = vmatprep.subr.bf16.mxu0 0
        %934 = vmatpush2.bf16.msra.mxu0 0
        %935 = vmatprep.subr.bf16.mxu0 0
        %936 = vmatpush2.bf16.msra.mxu0 0
        %937 = vmatprep.subr.bf16.mxu0 0
        %938 = vmatpush2.bf16.msra.mxu0 0
        %939 = vmatprep.subr.bf16.mxu0 0
        %940 = vmatpush2.bf16.msra.mxu0 0
        %941 = vmatprep.subr.bf16.mxu0 0
        %942 = vmatpush2.bf16.msra.mxu0 0
        %943 = vmatprep.subr.bf16.mxu0 0
        %944 = vmatpush2.bf16.msra.mxu0 0
        %945 = vmatprep.subr.bf16.mxu0 0
        %946 = vmatpush2.bf16.msra.mxu0 0
        %947 = vmatprep.subr.bf16.mxu0 0
        %948 = vmatpush2.bf16.msra.mxu0 0
        %949 = vmatprep.mubr.bf16.mxu0 0
        %950 = vmatmul.mubr.bf16.gmra.mxu0 %v903
        %v951 = vpop.f32.mrf.mxu0
        %v952 = vadd.f32 0.0, %v951
        %v953 = vpop.f32.mrf.mxu0
        %v954 = vpop.f32.mrf.mxu0
        %v955 = vadd.f32 0.0, %v954
        %v956 = vpop.f32.mrf.mxu0
        %957 = vmatprep.mubr.bf16.mxu0 0
        %958 = vmatmul.mubr.bf16.gmra.mxu0 %v906
        %v959 = vpop.f32.mrf.mxu0
        %v960 = vadd.f32 0.0, %v959
        %v961 = vpop.f32.mrf.mxu0
        %v962 = vpop.f32.mrf.mxu0
        %v963 = vadd.f32 0.0, %v962
        %v964 = vpop.f32.mrf.mxu0
        %965 = vmatprep.mubr.bf16.mxu0 0
        %966 = vmatmul.mubr.bf16.gmra.mxu0 %v909
        %v967 = vpop.f32.mrf.mxu0
        %v968 = vadd.f32 0.0, %v967
        %v969 = vpop.f32.mrf.mxu0
        %v970 = vpop.f32.mrf.mxu0
        %v971 = vadd.f32 0.0, %v970
        %v972 = vpop.f32.mrf.mxu0
        %973 = vmatprep.mubr.bf16.mxu0 0
        %974 = vmatmul.mubr.bf16.gmra.mxu0 %v912
        %v975 = vpop.f32.mrf.mxu0
        %v976 = vadd.f32 0.0, %v975
        %v977 = vpop.f32.mrf.mxu0
        %v978 = vpop.f32.mrf.mxu0
        %v979 = vadd.f32 0.0, %v978
        %v980 = vpop.f32.mrf.mxu0
        %981 = vdwg.mxu0
        %v982 = vadd.f32 %v879, %v952
        %v983 = vadd.f32 %v880, %v955
        %v984 = vadd.f32 %v881, %v960
        %v985 = vadd.f32 %v882, %v963
        %v986 = vadd.f32 %v883, %v968
        %v987 = vadd.f32 %v884, %v971
        %v988 = vadd.f32 %v885, %v976
        %v989 = vadd.f32 %v886, %v979
        %v990 = vld [vmem:[%s784 + $0x1] sm:$0xff]
        %v991 = vld [vmem:[%s784 + $0x11] sm:$0xff]
        %v992 = vld [vmem:[%s784 + $0x21] sm:$0xff]
        %v993 = vld [vmem:[%s784 + $0x31] sm:$0xff]
        %v994 = vld [vmem:[%s784 + $0x41] sm:$0xff]
        %v995 = vld [vmem:[%s784 + $0x51] sm:$0xff]
        %v996 = vld [vmem:[%s784 + $0x61] sm:$0xff]
        %v997 = vld [vmem:[%s784 + $0x71] sm:$0xff]
        %v998 = vpack.c.bf16 %v991, %v990
        %v999 = vpack.c.bf16 %v993, %v992
        %v1000 = vpack.c.bf16 %v995, %v994
        %v1001 = vpack.c.bf16 %v997, %v996
        %s1002 = scalar_lea.vmem %s1, 20
        %v1003 = vld [vmem:[%s1002] sm:$0xf]
        %v1005 = vsel %vm520, %v998, 0
        %v1008 = vsel %vm520, %v999, 0
        %v1011 = vsel %vm520, %v1000, 0
        %v1014 = vsel %vm520, %v1001, 0
        %v1017 = vsel %vm533, %v1003, 0
        %1019 = vmatprep.subr.bf16.mxu0 0
        %1020 = vmatpush1.bf16.msra.mxu0 0
        %1021 = vmatprep.subr.bf16.mxu0 0
        %1022 = vmatpush1.bf16.msra.mxu0 0
        %1023 = vmatprep.subr.bf16.mxu0 0
        %1024 = vmatpush1.bf16.msra.mxu0 0
        %1025 = vmatprep.subr.bf16.mxu0 0
        %1026 = vmatpush1.bf16.msra.mxu0 0
        %1027 = vmatprep.subr.bf16.mxu0 0
        %1028 = vmatpush1.bf16.msra.mxu0 0
        %1029 = vmatprep.subr.bf16.mxu0 0
        %1030 = vmatpush1.bf16.msra.mxu0 0
        %1031 = vmatprep.subr.bf16.mxu0 0
        %1032 = vmatpush1.bf16.msra.mxu0 0
        %1033 = vmatprep.subr.bf16.mxu0 0
        %1034 = vmatpush1.bf16.msra.mxu0 %v1017
        %1035 = vmatprep.subr.bf16.mxu0 0
        %1036 = vmatpush2.bf16.msra.mxu0 0
        %1037 = vmatprep.subr.bf16.mxu0 0
        %1038 = vmatpush2.bf16.msra.mxu0 0
        %1039 = vmatprep.subr.bf16.mxu0 0
        %1040 = vmatpush2.bf16.msra.mxu0 0
        %1041 = vmatprep.subr.bf16.mxu0 0
        %1042 = vmatpush2.bf16.msra.mxu0 0
        %1043 = vmatprep.subr.bf16.mxu0 0
        %1044 = vmatpush2.bf16.msra.mxu0 0
        %1045 = vmatprep.subr.bf16.mxu0 0
        %1046 = vmatpush2.bf16.msra.mxu0 0
        %1047 = vmatprep.subr.bf16.mxu0 0
        %1048 = vmatpush2.bf16.msra.mxu0 0
        %1049 = vmatprep.subr.bf16.mxu0 0
        %1050 = vmatpush2.bf16.msra.mxu0 0
        %1051 = vmatprep.mubr.bf16.mxu0 0
        %1052 = vmatmul.mubr.bf16.gmra.mxu0 %v1005
        %v1053 = vpop.f32.mrf.mxu0
        %v1054 = vadd.f32 0.0, %v1053
        %v1055 = vpop.f32.mrf.mxu0
        %v1056 = vpop.f32.mrf.mxu0
        %v1057 = vadd.f32 0.0, %v1056
        %v1058 = vpop.f32.mrf.mxu0
        %1059 = vmatprep.mubr.bf16.mxu0 0
        %1060 = vmatmul.mubr.bf16.gmra.mxu0 %v1008
        %v1061 = vpop.f32.mrf.mxu0
        %v1062 = vadd.f32 0.0, %v1061
        %v1063 = vpop.f32.mrf.mxu0
        %v1064 = vpop.f32.mrf.mxu0
        %v1065 = vadd.f32 0.0, %v1064
        %v1066 = vpop.f32.mrf.mxu0
        %1067 = vmatprep.mubr.bf16.mxu0 0
        %1068 = vmatmul.mubr.bf16.gmra.mxu0 %v1011
        %v1069 = vpop.f32.mrf.mxu0
        %v1070 = vadd.f32 0.0, %v1069
        %v1071 = vpop.f32.mrf.mxu0
        %v1072 = vpop.f32.mrf.mxu0
        %v1073 = vadd.f32 0.0, %v1072
        %v1074 = vpop.f32.mrf.mxu0
        %1075 = vmatprep.mubr.bf16.mxu0 0
        %1076 = vmatmul.mubr.bf16.gmra.mxu0 %v1014
        %v1077 = vpop.f32.mrf.mxu0
        %v1078 = vadd.f32 0.0, %v1077
        %v1079 = vpop.f32.mrf.mxu0
        %v1080 = vpop.f32.mrf.mxu0
        %v1081 = vadd.f32 0.0, %v1080
        %v1082 = vpop.f32.mrf.mxu0
        %1083 = vdwg.mxu0
        %v1084 = vadd.f32 %v982, %v1054
        %v1085 = vadd.f32 %v983, %v1057
        %v1086 = vadd.f32 %v984, %v1062
        %v1087 = vadd.f32 %v985, %v1065
        %v1088 = vadd.f32 %v986, %v1070
        %v1089 = vadd.f32 %v987, %v1073
        %v1090 = vadd.f32 %v988, %v1078
        %v1091 = vadd.f32 %v989, %v1081
        %s1092 = scalar_lea.vmem %s465, 16 [#allocation2]
        %v1093 = vld [vmem:[%s1092] sm:$0xff]
        %v1094 = vld [vmem:[%s1092 + $0x10] sm:$0xff]
        %v1095 = vld [vmem:[%s1092 + $0x20] sm:$0xff]
        %v1096 = vld [vmem:[%s1092 + $0x30] sm:$0xff]
        %v1097 = vld [vmem:[%s1092 + $0x40] sm:$0xff]
        %v1098 = vld [vmem:[%s1092 + $0x50] sm:$0xff]
        %v1099 = vld [vmem:[%s1092 + $0x60] sm:$0xff]
        %v1100 = vld [vmem:[%s1092 + $0x70] sm:$0xff]
        %v1101 = vpack.c.bf16 %v1094, %v1093
        %v1102 = vpack.c.bf16 %v1096, %v1095
        %v1103 = vpack.c.bf16 %v1098, %v1097
        %v1104 = vpack.c.bf16 %v1100, %v1099
        %s1105 = scalar_lea.vmem %s1, 24
        %v1106 = vld [vmem:[%s1105] sm:$0xf]
        %v1108 = vsel %vm520, %v1101, 0
        %v1111 = vsel %vm520, %v1102, 0
        %v1114 = vsel %vm520, %v1103, 0
        %v1117 = vsel %vm520, %v1104, 0
        %v1120 = vsel %vm533, %v1106, 0
        %1122 = vmatprep.subr.bf16.mxu0 0
        %1123 = vmatpush1.bf16.msra.mxu0 0
        %1124 = vmatprep.subr.bf16.mxu0 0
        %1125 = vmatpush1.bf16.msra.mxu0 0
        %1126 = vmatprep.subr.bf16.mxu0 0
        %1127 = vmatpush1.bf16.msra.mxu0 0
        %1128 = vmatprep.subr.bf16.mxu0 0
        %1129 = vmatpush1.bf16.msra.mxu0 0
        %1130 = vmatprep.subr.bf16.mxu0 0
        %1131 = vmatpush1.bf16.msra.mxu0 0
        %1132 = vmatprep.subr.bf16.mxu0 0
        %1133 = vmatpush1.bf16.msra.mxu0 0
        %1134 = vmatprep.subr.bf16.mxu0 0
        %1135 = vmatpush1.bf16.msra.mxu0 0
        %1136 = vmatprep.subr.bf16.mxu0 0
        %1137 = vmatpush1.bf16.msra.mxu0 %v1120
        %1138 = vmatprep.subr.bf16.mxu0 0
        %1139 = vmatpush2.bf16.msra.mxu0 0
        %1140 = vmatprep.subr.bf16.mxu0 0
        %1141 = vmatpush2.bf16.msra.mxu0 0
        %1142 = vmatprep.subr.bf16.mxu0 0
        %1143 = vmatpush2.bf16.msra.mxu0 0
        %1144 = vmatprep.subr.bf16.mxu0 0
        %1145 = vmatpush2.bf16.msra.mxu0 0
        %1146 = vmatprep.subr.bf16.mxu0 0
        %1147 = vmatpush2.bf16.msra.mxu0 0
        %1148 = vmatprep.subr.bf16.mxu0 0
        %1149 = vmatpush2.bf16.msra.mxu0 0
        %1150 = vmatprep.subr.bf16.mxu0 0
        %1151 = vmatpush2.bf16.msra.mxu0 0
        %1152 = vmatprep.subr.bf16.mxu0 0
        %1153 = vmatpush2.bf16.msra.mxu0 0
        %1154 = vmatprep.mubr.bf16.mxu0 0
        %1155 = vmatmul.mubr.bf16.gmra.mxu0 %v1108
        %v1156 = vpop.f32.mrf.mxu0
        %v1157 = vadd.f32 0.0, %v1156
        %v1158 = vpop.f32.mrf.mxu0
        %v1159 = vpop.f32.mrf.mxu0
        %v1160 = vadd.f32 0.0, %v1159
        %v1161 = vpop.f32.mrf.mxu0
        %1162 = vmatprep.mubr.bf16.mxu0 0
        %1163 = vmatmul.mubr.bf16.gmra.mxu0 %v1111
        %v1164 = vpop.f32.mrf.mxu0
        %v1165 = vadd.f32 0.0, %v1164
        %v1166 = vpop.f32.mrf.mxu0
        %v1167 = vpop.f32.mrf.mxu0
        %v1168 = vadd.f32 0.0, %v1167
        %v1169 = vpop.f32.mrf.mxu0
        %1170 = vmatprep.mubr.bf16.mxu0 0
        %1171 = vmatmul.mubr.bf16.gmra.mxu0 %v1114
        %v1172 = vpop.f32.mrf.mxu0
        %v1173 = vadd.f32 0.0, %v1172
        %v1174 = vpop.f32.mrf.mxu0
        %v1175 = vpop.f32.mrf.mxu0
        %v1176 = vadd.f32 0.0, %v1175
        %v1177 = vpop.f32.mrf.mxu0
        %1178 = vmatprep.mubr.bf16.mxu0 0
        %1179 = vmatmul.mubr.bf16.gmra.mxu0 %v1117
        %v1180 = vpop.f32.mrf.mxu0
        %v1181 = vadd.f32 0.0, %v1180
        %v1182 = vpop.f32.mrf.mxu0
        %v1183 = vpop.f32.mrf.mxu0
        %v1184 = vadd.f32 0.0, %v1183
        %v1185 = vpop.f32.mrf.mxu0
        %1186 = vdwg.mxu0
        %v1187 = vadd.f32 %v1084, %v1157
        %v1188 = vadd.f32 %v1085, %v1160
        %v1189 = vadd.f32 %v1086, %v1165
        %v1190 = vadd.f32 %v1087, %v1168
        %v1191 = vadd.f32 %v1088, %v1173
        %v1192 = vadd.f32 %v1089, %v1176
        %v1193 = vadd.f32 %v1090, %v1181
        %v1194 = vadd.f32 %v1091, %v1184
        %s1195 = scalar_lea.vmem %s465, 160 [#allocation2]
        %v1196 = vld [vmem:[%s1195] sm:$0xff]
        %v1197 = vld [vmem:[%s1195 + $0x10] sm:$0xff]
        %v1198 = vld [vmem:[%s1195 + $0x20] sm:$0xff]
        %v1199 = vld [vmem:[%s1195 + $0x30] sm:$0xff]
        %v1200 = vld [vmem:[%s1195 + $0x40] sm:$0xff]
        %v1201 = vld [vmem:[%s1195 + $0x50] sm:$0xff]
        %v1202 = vld [vmem:[%s1195 + $0x60] sm:$0xff]
        %v1203 = vld [vmem:[%s1195 + $0x70] sm:$0xff]
        %v1204 = vpack.c.bf16 %v1197, %v1196
        %v1205 = vpack.c.bf16 %v1199, %v1198
        %v1206 = vpack.c.bf16 %v1201, %v1200
        %v1207 = vpack.c.bf16 %v1203, %v1202
        %s1208 = scalar_lea.vmem %s1, 28
        %v1209 = vld [vmem:[%s1208] sm:$0xf]
        %v1211 = vsel %vm520, %v1204, 0
        %v1214 = vsel %vm520, %v1205, 0
        %v1217 = vsel %vm520, %v1206, 0
        %v1220 = vsel %vm520, %v1207, 0
        %v1223 = vsel %vm533, %v1209, 0
        %1225 = vmatprep.subr.bf16.mxu0 0
        %1226 = vmatpush1.bf16.msra.mxu0 0
        %1227 = vmatprep.subr.bf16.mxu0 0
        %1228 = vmatpush1.bf16.msra.mxu0 0
        %1229 = vmatprep.subr.bf16.mxu0 0
        %1230 = vmatpush1.bf16.msra.mxu0 0
        %1231 = vmatprep.subr.bf16.mxu0 0
        %1232 = vmatpush1.bf16.msra.mxu0 0
        %1233 = vmatprep.subr.bf16.mxu0 0
        %1234 = vmatpush1.bf16.msra.mxu0 0
        %1235 = vmatprep.subr.bf16.mxu0 0
        %1236 = vmatpush1.bf16.msra.mxu0 0
        %1237 = vmatprep.subr.bf16.mxu0 0
        %1238 = vmatpush1.bf16.msra.mxu0 0
        %1239 = vmatprep.subr.bf16.mxu0 0
        %1240 = vmatpush1.bf16.msra.mxu0 %v1223
        %1241 = vmatprep.subr.bf16.mxu0 0
        %1242 = vmatpush2.bf16.msra.mxu0 0
        %1243 = vmatprep.subr.bf16.mxu0 0
        %1244 = vmatpush2.bf16.msra.mxu0 0
        %1245 = vmatprep.subr.bf16.mxu0 0
        %1246 = vmatpush2.bf16.msra.mxu0 0
        %1247 = vmatprep.subr.bf16.mxu0 0
        %1248 = vmatpush2.bf16.msra.mxu0 0
        %1249 = vmatprep.subr.bf16.mxu0 0
        %1250 = vmatpush2.bf16.msra.mxu0 0
        %1251 = vmatprep.subr.bf16.mxu0 0
        %1252 = vmatpush2.bf16.msra.mxu0 0
        %1253 = vmatprep.subr.bf16.mxu0 0
        %1254 = vmatpush2.bf16.msra.mxu0 0
        %1255 = vmatprep.subr.bf16.mxu0 0
        %1256 = vmatpush2.bf16.msra.mxu0 0
        %1257 = vmatprep.mubr.bf16.mxu0 0
        %1258 = vmatmul.mubr.bf16.gmra.mxu0 %v1211
        %v1259 = vpop.f32.mrf.mxu0
        %v1260 = vadd.f32 0.0, %v1259
        %v1261 = vpop.f32.mrf.mxu0
        %v1262 = vpop.f32.mrf.mxu0
        %v1263 = vadd.f32 0.0, %v1262
        %v1264 = vpop.f32.mrf.mxu0
        %1265 = vmatprep.mubr.bf16.mxu0 0
        %1266 = vmatmul.mubr.bf16.gmra.mxu0 %v1214
        %v1267 = vpop.f32.mrf.mxu0
        %v1268 = vadd.f32 0.0, %v1267
        %v1269 = vpop.f32.mrf.mxu0
        %v1270 = vpop.f32.mrf.mxu0
        %v1271 = vadd.f32 0.0, %v1270
        %v1272 = vpop.f32.mrf.mxu0
        %1273 = vmatprep.mubr.bf16.mxu0 0
        %1274 = vmatmul.mubr.bf16.gmra.mxu0 %v1217
        %v1275 = vpop.f32.mrf.mxu0
        %v1276 = vadd.f32 0.0, %v1275
        %v1277 = vpop.f32.mrf.mxu0
        %v1278 = vpop.f32.mrf.mxu0
        %v1279 = vadd.f32 0.0, %v1278
        %v1280 = vpop.f32.mrf.mxu0
        %1281 = vmatprep.mubr.bf16.mxu0 0
        %1282 = vmatmul.mubr.bf16.gmra.mxu0 %v1220
        %v1283 = vpop.f32.mrf.mxu0
        %v1284 = vadd.f32 0.0, %v1283
        %v1285 = vpop.f32.mrf.mxu0
        %v1286 = vpop.f32.mrf.mxu0
        %v1287 = vadd.f32 0.0, %v1286
        %v1288 = vpop.f32.mrf.mxu0
        %1289 = vdwg.mxu0
        %v1290 = vadd.f32 %v1187, %v1260
        %v1291 = vadd.f32 %v1188, %v1263
        %v1292 = vadd.f32 %v1189, %v1268
        %v1293 = vadd.f32 %v1190, %v1271
        %v1294 = vadd.f32 %v1191, %v1276
        %v1295 = vadd.f32 %v1192, %v1279
        %v1296 = vadd.f32 %v1193, %v1284
        %v1297 = vadd.f32 %v1194, %v1287
        %v1298 = vld [vmem:[%s1092 + $0x1] sm:$0xff]
        %v1299 = vld [vmem:[%s1092 + $0x11] sm:$0xff]
        %v1300 = vld [vmem:[%s1092 + $0x21] sm:$0xff]
        %v1301 = vld [vmem:[%s1092 + $0x31] sm:$0xff]
        %v1302 = vld [vmem:[%s1092 + $0x41] sm:$0xff]
        %v1303 = vld [vmem:[%s1092 + $0x51] sm:$0xff]
        %v1304 = vld [vmem:[%s1092 + $0x61] sm:$0xff]
        %v1305 = vld [vmem:[%s1092 + $0x71] sm:$0xff]
        %v1306 = vpack.c.bf16 %v1299, %v1298
        %v1307 = vpack.c.bf16 %v1301, %v1300
        %v1308 = vpack.c.bf16 %v1303, %v1302
        %v1309 = vpack.c.bf16 %v1305, %v1304
        %s1310 = scalar_lea.vmem %s1, 32
        %v1311 = vld [vmem:[%s1310] sm:$0xf]
        %v1313 = vsel %vm520, %v1306, 0
        %v1316 = vsel %vm520, %v1307, 0
        %v1319 = vsel %vm520, %v1308, 0
        %v1322 = vsel %vm520, %v1309, 0
        %v1325 = vsel %vm533, %v1311, 0
        %1327 = vmatprep.subr.bf16.mxu0 0
        %1328 = vmatpush1.bf16.msra.mxu0 0
        %1329 = vmatprep.subr.bf16.mxu0 0
        %1330 = vmatpush1.bf16.msra.mxu0 0
        %1331 = vmatprep.subr.bf16.mxu0 0
        %1332 = vmatpush1.bf16.msra.mxu0 0
        %1333 = vmatprep.subr.bf16.mxu0 0
        %1334 = vmatpush1.bf16.msra.mxu0 0
        %1335 = vmatprep.subr.bf16.mxu0 0
        %1336 = vmatpush1.bf16.msra.mxu0 0
        %1337 = vmatprep.subr.bf16.mxu0 0
        %1338 = vmatpush1.bf16.msra.mxu0 0
        %1339 = vmatprep.subr.bf16.mxu0 0
        %1340 = vmatpush1.bf16.msra.mxu0 0
        %1341 = vmatprep.subr.bf16.mxu0 0
        %1342 = vmatpush1.bf16.msra.mxu0 %v1325
        %1343 = vmatprep.subr.bf16.mxu0 0
        %1344 = vmatpush2.bf16.msra.mxu0 0
        %1345 = vmatprep.subr.bf16.mxu0 0
        %1346 = vmatpush2.bf16.msra.mxu0 0
        %1347 = vmatprep.subr.bf16.mxu0 0
        %1348 = vmatpush2.bf16.msra.mxu0 0
        %1349 = vmatprep.subr.bf16.mxu0 0
        %1350 = vmatpush2.bf16.msra.mxu0 0
        %1351 = vmatprep.subr.bf16.mxu0 0
        %1352 = vmatpush2.bf16.msra.mxu0 0
        %1353 = vmatprep.subr.bf16.mxu0 0
        %1354 = vmatpush2.bf16.msra.mxu0 0
        %1355 = vmatprep.subr.bf16.mxu0 0
        %1356 = vmatpush2.bf16.msra.mxu0 0
        %1357 = vmatprep.subr.bf16.mxu0 0
        %1358 = vmatpush2.bf16.msra.mxu0 0
        %1359 = vmatprep.mubr.bf16.mxu0 0
        %1360 = vmatmul.mubr.bf16.gmra.mxu0 %v1313
        %v1361 = vpop.f32.mrf.mxu0
        %v1362 = vadd.f32 0.0, %v1361
        %v1363 = vpop.f32.mrf.mxu0
        %v1364 = vpop.f32.mrf.mxu0
        %v1365 = vadd.f32 0.0, %v1364
        %v1366 = vpop.f32.mrf.mxu0
        %1367 = vmatprep.mubr.bf16.mxu0 0
        %1368 = vmatmul.mubr.bf16.gmra.mxu0 %v1316
        %v1369 = vpop.f32.mrf.mxu0
        %v1370 = vadd.f32 0.0, %v1369
        %v1371 = vpop.f32.mrf.mxu0
        %v1372 = vpop.f32.mrf.mxu0
        %v1373 = vadd.f32 0.0, %v1372
        %v1374 = vpop.f32.mrf.mxu0
        %1375 = vmatprep.mubr.bf16.mxu0 0
        %1376 = vmatmul.mubr.bf16.gmra.mxu0 %v1319
        %v1377 = vpop.f32.mrf.mxu0
        %v1378 = vadd.f32 0.0, %v1377
        %v1379 = vpop.f32.mrf.mxu0
        %v1380 = vpop.f32.mrf.mxu0
        %v1381 = vadd.f32 0.0, %v1380
        %v1382 = vpop.f32.mrf.mxu0
        %1383 = vmatprep.mubr.bf16.mxu0 0
        %1384 = vmatmul.mubr.bf16.gmra.mxu0 %v1322
        %v1385 = vpop.f32.mrf.mxu0
        %v1386 = vadd.f32 0.0, %v1385
        %v1387 = vpop.f32.mrf.mxu0
        %v1388 = vpop.f32.mrf.mxu0
        %v1389 = vadd.f32 0.0, %v1388
        %v1390 = vpop.f32.mrf.mxu0
        %1391 = vdwg.mxu0
        %v1392 = vadd.f32 %v1290, %v1362
        %v1393 = vadd.f32 %v1291, %v1365
        %v1394 = vadd.f32 %v1292, %v1370
        %v1395 = vadd.f32 %v1293, %v1373
        %v1396 = vadd.f32 %v1294, %v1378
        %v1397 = vadd.f32 %v1295, %v1381
        %v1398 = vadd.f32 %v1296, %v1386
        %v1399 = vadd.f32 %v1297, %v1389
        %v1400 = vld [vmem:[%s2] sm:$0x1]
        %v1402 = vlaneseq
        %v1403 = vshrl.u32 %v1402, 7
        %v1404 = vsub.s32 0, %v1403
        %v1405 = vrot.slane %v1400, %v1404
        %v1407 = vadd.f32 %v1392, %v1405
        %v1408 = vadd.f32 %v1393, %v1405
        %v1409 = vadd.f32 %v1394, %v1405
        %v1410 = vadd.f32 %v1395, %v1405
        %v1411 = vadd.f32 %v1396, %v1405
        %v1412 = vadd.f32 %v1397, %v1405
        %v1413 = vadd.f32 %v1398, %v1405
        %v1414 = vadd.f32 %v1399, %v1405
        %v1415 = vmax.f32 %v1407, 0.0
        %v1416 = vmax.f32 %v1408, 0.0
        %v1417 = vmax.f32 %v1409, 0.0
        %v1418 = vmax.f32 %v1410, 0.0
        %v1419 = vmax.f32 %v1411, 0.0
        %v1420 = vmax.f32 %v1412, 0.0
        %v1421 = vmax.f32 %v1413, 0.0
        %v1422 = vmax.f32 %v1414, 0.0
        %vm1423 = vcmask 130048
        %1424 = vst.msk [vmem:[%s490] sm:$0xff] %vm1423, %v1415
        %1425 = vst.msk [vmem:[%s490 + $0x8] sm:$0xff] %vm1423, %v1416
        %1426 = vst.msk [vmem:[%s490 + $0x10] sm:$0xff] %vm1423, %v1417
        %1427 = vst.msk [vmem:[%s490 + $0x18] sm:$0xff] %vm1423, %v1418
        %1428 = vst.msk [vmem:[%s490 + $0x20] sm:$0xff] %vm1423, %v1419
        %1429 = vst.msk [vmem:[%s490 + $0x28] sm:$0xff] %vm1423, %v1420
        %1430 = vst.msk [vmem:[%s490 + $0x30] sm:$0xff] %vm1423, %v1421
        %1431 = vst.msk [vmem:[%s490 + $0x38] sm:$0xff] %vm1423, %v1422
        %p1432 = scmp.lt.s32.totalorder %s14, 1
        %s1433 = scalar_select %p1432, %s14, 1
        %s1434 = smul.addr %s1433, 8
        %s1435 = smul.addr %s1434, 8
        %s1436 = scalar_lea.vmem %s3, %s1435
        // Predicated region
        $region71: #{two_stage_anchor_based_lane_detector.7} parent=65 // pred_check
          %p1437 = pneg %p100
        $region72: #{two_stage_anchor_based_lane_detector.7} parent=65 // pred_check_branch
          %1439 = sbr.rel (%p1437) target = $region74
        $region73: #{two_stage_anchor_based_lane_detector.7} parent=65 // pred_region
          _
        $region74: #{two_stage_anchor_based_lane_detector.7} parent=65 // pred_fallthru
          _
      $region66: #{two_stage_anchor_based_lane_detector.7} parent=5 // pred_fallthru
        _
      %p1440 = scmp.le.s32.totalorder 2, %s9
      // Predicated region
      $region75: #{two_stage_anchor_based_lane_detector.7} parent=5 // pred_check
        %p1441 = pneg %p1440
      $region76: #{two_stage_anchor_based_lane_detector.7} parent=5 // pred_check_branch
        %1443 = sbr.rel (%p1441) target = $region78
      $region77: #{two_stage_anchor_based_lane_detector.7} parent=5 // pred_region
        %s1444 = ssub.s32 %s9, 2
        // Predicated region
        $region79: #{two_stage_anchor_based_lane_detector.7} parent=77 // pred_check
          %p1445 = pneg %p106
        $region80: #{two_stage_anchor_based_lane_detector.7} parent=77 // pred_check_branch
          %1447 = sbr.rel (%p1445) target = $region82
        $region81: #{two_stage_anchor_based_lane_detector.7} parent=77 // pred_region
          %p1448 = scmp.lt.s32.totalorder %s15, 1
          %s1449 = scalar_select %p1448, %s15, 1
          %s1450 = smul.addr %s1449, 8
          %s1451 = smul.addr %s1450, 8
          %s1452 = scalar_lea.vmem %s3, %s1451
        $region82: #{two_stage_anchor_based_lane_detector.7} parent=77 // pred_fallthru
          _
      $region78: #{two_stage_anchor_based_lane_detector.7} parent=5 // pred_fallthru
        _
    $region6: #{two_stage_anchor_based_lane_detector.7} parent=1 // loop_footer
      %s13 = sadd.s32 1, %s9
    $region7: #{two_stage_anchor_based_lane_detector.7} parent=1 // loop_footer_branch
      %8 = sbr.rel target = $region3
    $region8: #{two_stage_anchor_based_lane_detector.7} parent=1 // loop_exit
      _

// kernel: two_stage_anchor_based_lane_detector.6
$region0: #{two_stage_anchor_based_lane_detector.6}
  #allocation0 [shape = 'u32[]', space=smem, size = 0x4, offset = 0x4, fixed_abs, tag = 'smem constant byte address 0x4 - core index']
  #allocation1 [shape = 'u32[144,128]{1,0:T(1,128)}', space=vmem, size = 0x12000, scoped, tag = 'internal scratch']
  %s0 = inlined_call_operand.vmem [shape: f32[2,18,18,4], index: 0, kind: input, shape index: {}]
  %s1 = inlined_call_operand.vmem [shape: bf16[9,4,8], index: 1, kind: input, shape index: {}]
  %s2 = inlined_call_operand.vmem [shape: f32[1,8], index: 2, kind: input, shape index: {}]
  %s3 = inlined_call_operand.vmem [shape: f32[2,16,16,8], index: 3, kind: output, shape index: {}]
  %s4 = sld [smem:[#allocation0]]
  $region45: #{two_stage_anchor_based_lane_detector.6} parent=0
    _
  %s6 = ssub.s32 1, %s4
  %s7 = scalar_select 0, %s6, %s4
  loop: start=0, step=1, limit=4
  $region2: #{two_stage_anchor_based_lane_detector.6} parent=0 // loop_pre_header
    _
  $region3: #{two_stage_anchor_based_lane_detector.6} parent=0 // loop_header
    %s9 = sphi 0, %s13
    %p10 = scmp.ge.s32.totalorder %s9, 4
    %s19 = sphi 0, %s21
    %s22 = sphi 0, %s19
    %s23 = sphi 0, %s22
    %s39 = sphi 0, %s23
    %s43 = sphi 0, %s43
    %s45 = sphi 0, %s43
    %s46 = sphi 0, %s45
    %s60 = sphi 0, %s46
    %s64 = sphi 0, %s64
    %s66 = sphi 0, %s64
    %s67 = sphi 0, %s66
    %s81 = sphi 0, %s67
    %s87 = sphi 0, %s89
    %s90 = sphi 0, %s87
    %s91 = sphi 0, %s90
    %s107 = sphi 0, %s91
  $region4: #{two_stage_anchor_based_lane_detector.6} parent=0 // loop_header_branch
    %12 = sbr.rel (%p10) target = $region8
  $region5: #{two_stage_anchor_based_lane_detector.6} parent=0 // loop_body
    %s14 = ssub.s32 %s9, 1
    %s15 = ssub.s32 %s9, 2
    %s16 = sadd.s32 %s9, 1
    %s17 = ssub.s32 %s9, %s16
    %p18 = scmp.eq.s32.totalorder %s17, 0
    %s20 = sadd.s32 %s19, 1
    %s21 = scalar_select %p18, %s19, %s20
    %p24 = pneg %p18
    %p25 = scmp.eq.s32.totalorder %s9, 1
    %p26 = por %p24, %p25
    %p27 = scmp.ne.s32.totalorder %s19, %s22
    %p28 = scmp.eq.s32.totalorder %s9, 0
    %p29 = por %p27, %p28
    %p30 = scmp.ne.s32.totalorder %s19, %s22
    %p31 = scmp.eq.s32.totalorder %s14, 1
    %p32 = por %p30, %p31
    %p33 = scmp.ne.s32.totalorder %s22, %s23
    %p34 = scmp.eq.s32.totalorder %s14, 0
    %p35 = por %p33, %p34
    %p36 = scmp.ne.s32.totalorder %s22, %s23
    %p37 = scmp.eq.s32.totalorder %s15, 1
    %p38 = por %p36, %p37
    %p40 = scmp.ne.s32.totalorder %s23, %s39
    %p41 = scmp.eq.s32.totalorder %s15, 0
    %p42 = por %p40, %p41
    %s44 = sadd.s32 %s43, 1
    %p47 = scmp.eq.s32.totalorder %s9, 1
    %p48 = scmp.ne.s32.totalorder %s43, %s45
    %p49 = scmp.eq.s32.totalorder %s9, 0
    %p50 = por %p48, %p49
    %p51 = scmp.ne.s32.totalorder %s43, %s45
    %p52 = scmp.eq.s32.totalorder %s14, 1
    %p53 = por %p51, %p52
    %p54 = scmp.ne.s32.totalorder %s45, %s46
    %p55 = scmp.eq.s32.totalorder %s14, 0
    %p56 = por %p54, %p55
    %p57 = scmp.ne.s32.totalorder %s45, %s46
    %p58 = scmp.eq.s32.totalorder %s15, 1
    %p59 = por %p57, %p58
    %p61 = scmp.ne.s32.totalorder %s46, %s60
    %p62 = scmp.eq.s32.totalorder %s15, 0
    %p63 = por %p61, %p62
    %s65 = sadd.s32 %s64, 1
    %p68 = scmp.eq.s32.totalorder %s9, 1
    %p69 = scmp.ne.s32.totalorder %s64, %s66
    %p70 = scmp.eq.s32.totalorder %s9, 0
    %p71 = por %p69, %p70
    %p72 = scmp.ne.s32.totalorder %s64, %s66
    %p73 = scmp.eq.s32.totalorder %s14, 1
    %p74 = por %p72, %p73
    %p75 = scmp.ne.s32.totalorder %s66, %s67
    %p76 = scmp.eq.s32.totalorder %s14, 0
    %p77 = por %p75, %p76
    %p78 = scmp.ne.s32.totalorder %s66, %s67
    %p79 = scmp.eq.s32.totalorder %s15, 1
    %p80 = por %p78, %p79
    %p82 = scmp.ne.s32.totalorder %s67, %s81
    %p83 = scmp.eq.s32.totalorder %s15, 0
    %p84 = por %p82, %p83
    %s85 = ssub.s32 %s9, %s16
    %p86 = scmp.eq.s32.totalorder %s85, 0
    %s88 = sadd.s32 %s87, 1
    %s89 = scalar_select %p86, %s87, %s88
    %p92 = pneg %p86
    %p93 = scmp.eq.s32.totalorder %s9, 1
    %p94 = por %p92, %p93
    %p95 = scmp.ne.s32.totalorder %s87, %s90
    %p96 = scmp.eq.s32.totalorder %s9, 0
    %p97 = por %p95, %p96
    %p98 = scmp.ne.s32.totalorder %s87, %s90
    %p99 = scmp.eq.s32.totalorder %s14, 1
    %p100 = por %p98, %p99
    %p101 = scmp.ne.s32.totalorder %s90, %s91
    %p102 = scmp.eq.s32.totalorder %s14, 0
    %p103 = por %p101, %p102
    %p104 = scmp.ne.s32.totalorder %s90, %s91
    %p105 = scmp.eq.s32.totalorder %s15, 1
    %p106 = por %p104, %p105
    %p108 = scmp.ne.s32.totalorder %s91, %s107
    %p109 = scmp.eq.s32.totalorder %s15, 0
    %p110 = por %p108, %p109
    %p111 = scmp.le.s32.totalorder 1, %s9
    %p112 = scmp.lt.s32.totalorder %s9, 3
    %p113 = pnand %p111, %p112
    %p114 = pneg %p113
    // Predicated region
    $region9: #{two_stage_anchor_based_lane_detector.6} parent=5 // pred_check
      _
    $region10: #{two_stage_anchor_based_lane_detector.6} parent=5 // pred_check_branch
      %116 = sbr.rel (%p113) target = $region12
    $region11: #{two_stage_anchor_based_lane_detector.6} parent=5 // pred_region
      %s117 = ssub.s32 %s9, 1
      // Predicated region
      $region13: #{two_stage_anchor_based_lane_detector.6} parent=11 // pred_check
        %p118 = pneg %p56
      $region14: #{two_stage_anchor_based_lane_detector.6} parent=11 // pred_check_branch
        %120 = sbr.rel (%p118) target = $region16
      $region15: #{two_stage_anchor_based_lane_detector.6} parent=11 // pred_region
        _
      $region16: #{two_stage_anchor_based_lane_detector.6} parent=11 // pred_fallthru
        _
      // Predicated region
      $region17: #{two_stage_anchor_based_lane_detector.6} parent=11 // pred_check
        %p121 = pneg %p77
      $region18: #{two_stage_anchor_based_lane_detector.6} parent=11 // pred_check_branch
        %123 = sbr.rel (%p121) target = $region20
      $region19: #{two_stage_anchor_based_lane_detector.6} parent=11 // pred_region
        _
      $region20: #{two_stage_anchor_based_lane_detector.6} parent=11 // pred_fallthru
        _
    $region12: #{two_stage_anchor_based_lane_detector.6} parent=5 // pred_fallthru
      _
    %p124 = scmp.lt.s32.totalorder %s9, 2
    // Predicated region
    $region21: #{two_stage_anchor_based_lane_detector.6} parent=5 // pred_check
      %p125 = pneg %p124
    $region22: #{two_stage_anchor_based_lane_detector.6} parent=5 // pred_check_branch
      %127 = sbr.rel (%p125) target = $region24
    $region23: #{two_stage_anchor_based_lane_detector.6} parent=5 // pred_region
      // Predicated region
      $region25: #{two_stage_anchor_based_lane_detector.6} parent=23 // pred_check
        %p128 = pneg %p29
      $region26: #{two_stage_anchor_based_lane_detector.6} parent=23 // pred_check_branch
        %130 = sbr.rel (%p128) target = $region28
      $region27: #{two_stage_anchor_based_lane_detector.6} parent=23 // pred_region
        %p131 = scmp.lt.s32.totalorder %s9, 1
        %s132 = scalar_select %p131, %s9, 1
        %s133 = smul.addr %s132, 54
        %s134 = smul.addr %s133, 8
        %s135 = scalar_lea.vmem %s0, %s134
      $region28: #{two_stage_anchor_based_lane_detector.6} parent=23 // pred_fallthru
        _
    $region24: #{two_stage_anchor_based_lane_detector.6} parent=5 // pred_fallthru
      _
    %p136 = scmp.le.s32.totalorder 1, %s9
    %p137 = scmp.lt.s32.totalorder %s9, 3
    %p138 = pnand %p136, %p137
    %p139 = pneg %p138
    // Predicated region
    $region29: #{two_stage_anchor_based_lane_detector.6} parent=5 // pred_check
      _
    $region30: #{two_stage_anchor_based_lane_detector.6} parent=5 // pred_check_branch
      %141 = sbr.rel (%p138) target = $region32
    $region31: #{two_stage_anchor_based_lane_detector.6} parent=5 // pred_region
      %s142 = ssub.s32 %s9, 1
      %p143 = scmp.lt.s32.totalorder %s14, 1
      %s144 = scalar_select %p143, %s14, 1
      %s145 = smul.addr %s144, 54
      %s146 = smul.addr %s145, 8
      %s147 = scalar_lea.vmem %s0, %s146
      %p148 = pneg %p35
      %p149 = pneg %p32
      %p150 = pneg %p56
      %p151 = pneg %p53
      %p152 = pneg %p77
      %p153 = pneg %p74
      %p154 = pneg %p103
      %p155 = pneg %p100
      %p156 = scmp.lt.s32.totalorder %s14, 1
      %s157 = scalar_select %p156, %s14, 1
      %s158 = smul.addr %s157, 32
      %s159 = smul.addr %s158, 8
      %s160 = scalar_lea.vmem %s3, %s159
      %p161 = scmp.lt.s32.totalorder %s14, 1
      %s162 = scalar_select %p161, %s14, 1
      %s163 = smul.addr %s162, 54
      %s164 = smul.addr %s163, 8
      %s165 = scalar_lea.vmem %s0, %s164
      %p166 = scmp.lt.s32.totalorder %s14, 1
      %s167 = scalar_select %p166, %s14, 1
      %s168 = smul.addr %s167, 32
      %s169 = smul.addr %s168, 8
      %s170 = scalar_lea.vmem %s3, %s169
      %v172 = vld [vmem:[%s165] sm:$0xff]
      %v173 = vld [vmem:[%s165 + $0x8] sm:$0xff]
      %v174 = vld [vmem:[%s165 + $0x18] sm:$0xff]
      %v175 = vld [vmem:[%s165 + $0x20] sm:$0xff]
      %v176 = vld [vmem:[%s165 + $0x30] sm:$0xff]
      %v177 = vld [vmem:[%s165 + $0x38] sm:$0xff]
      %v178 = vld [vmem:[%s165 + $0x48] sm:$0xff]
      %v179 = vld [vmem:[%s165 + $0x50] sm:$0xff]
      %v180 = vld [vmem:[%s165 + $0x60] sm:$0xff]
      %v181 = vld [vmem:[%s165 + $0x68] sm:$0xff]
      %v182 = vld [vmem:[%s165 + $0x78] sm:$0xff]
      %v183 = vld [vmem:[%s165 + $0x80] sm:$0xff]
      %v184 = vld [vmem:[%s165 + $0x90] sm:$0xff]
      %v185 = vld [vmem:[%s165 + $0x98] sm:$0xff]
      %v186 = vld [vmem:[%s165 + $0xa8] sm:$0xff]
      %v187 = vld [vmem:[%s165 + $0xb0] sm:$0xff]
      %v188 = vld [vmem:[%s165 + $0xc0] sm:$0xff]
      %v189 = vld [vmem:[%s165 + $0xc8] sm:$0xff]
      %v190 = vld [vmem:[%s165 + $0xd8] sm:$0xff]
      %v191 = vld [vmem:[%s165 + $0xe0] sm:$0xff]
      %v192 = vld [vmem:[%s165 + $0xf0] sm:$0xff]
      %v193 = vld [vmem:[%s165 + $0xf8] sm:$0xff]
      %v194 = vld [vmem:[%s165 + $0x108] sm:$0xff]
      %v195 = vld [vmem:[%s165 + $0x110] sm:$0xff]
      %v196 = vld [vmem:[%s165 + $0x120] sm:$0xff]
      %v197 = vld [vmem:[%s165 + $0x128] sm:$0xff]
      %v198 = vld [vmem:[%s165 + $0x138] sm:$0xff]
      %v199 = vld [vmem:[%s165 + $0x140] sm:$0xff]
      %v200 = vld [vmem:[%s165 + $0x150] sm:$0xff]
      %v201 = vld [vmem:[%s165 + $0x158] sm:$0xff]
      %v202 = vld [vmem:[%s165 + $0x168] sm:$0xff]
      %v203 = vld [vmem:[%s165 + $0x170] sm:$0xff]
      %v204 = vpack.c.bf16 %v173, %v172
      %v205 = vpack.c.bf16 %v175, %v174
      %v206 = vpack.c.bf16 %v177, %v176
      %v207 = vpack.c.bf16 %v179, %v178
      %v208 = vpack.c.bf16 %v181, %v180
      %v209 = vpack.c.bf16 %v183, %v182
      %v210 = vpack.c.bf16 %v185, %v184
      %v211 = vpack.c.bf16 %v187, %v186
      %v212 = vpack.c.bf16 %v189, %v188
      %v213 = vpack.c.bf16 %v191, %v190
      %v214 = vpack.c.bf16 %v193, %v192
      %v215 = vpack.c.bf16 %v195, %v194
      %v216 = vpack.c.bf16 %v197, %v196
      %v217 = vpack.c.bf16 %v199, %v198
      %v218 = vpack.c.bf16 %v201, %v200
      %v219 = vpack.c.bf16 %v203, %v202
      %v220 = vld [vmem:[%s1] sm:$0x3]
      %v221 = vld [vmem:[%s165 + $0x1] sm:$0xff]
      %v222 = vld [vmem:[%s165 + $0x9] sm:$0xff]
      %v223 = vld [vmem:[%s165 + $0x19] sm:$0xff]
      %v224 = vld [vmem:[%s165 + $0x21] sm:$0xff]
      %v225 = vld [vmem:[%s165 + $0x31] sm:$0xff]
      %v226 = vld [vmem:[%s165 + $0x39] sm:$0xff]
      %v227 = vld [vmem:[%s165 + $0x49] sm:$0xff]
      %v228 = vld [vmem:[%s165 + $0x51] sm:$0xff]
      %v229 = vld [vmem:[%s165 + $0x61] sm:$0xff]
      %v230 = vld [vmem:[%s165 + $0x69] sm:$0xff]
      %v231 = vld [vmem:[%s165 + $0x79] sm:$0xff]
      %v232 = vld [vmem:[%s165 + $0x81] sm:$0xff]
      %v233 = vld [vmem:[%s165 + $0x91] sm:$0xff]
      %v234 = vld [vmem:[%s165 + $0x99] sm:$0xff]
      %v235 = vld [vmem:[%s165 + $0xa9] sm:$0xff]
      %v236 = vld [vmem:[%s165 + $0xb1] sm:$0xff]
      %v237 = vld [vmem:[%s165 + $0xc1] sm:$0xff]
      %v238 = vld [vmem:[%s165 + $0xc9] sm:$0xff]
      %v239 = vld [vmem:[%s165 + $0xd9] sm:$0xff]
      %v240 = vld [vmem:[%s165 + $0xe1] sm:$0xff]
      %v241 = vld [vmem:[%s165 + $0xf1] sm:$0xff]
      %v242 = vld [vmem:[%s165 + $0xf9] sm:$0xff]
      %v243 = vld [vmem:[%s165 + $0x109] sm:$0xff]
      %v244 = vld [vmem:[%s165 + $0x111] sm:$0xff]
      %v245 = vld [vmem:[%s165 + $0x121] sm:$0xff]
      %v246 = vld [vmem:[%s165 + $0x129] sm:$0xff]
      %v247 = vld [vmem:[%s165 + $0x139] sm:$0xff]
      %v248 = vld [vmem:[%s165 + $0x141] sm:$0xff]
      %v249 = vld [vmem:[%s165 + $0x151] sm:$0xff]
      %v250 = vld [vmem:[%s165 + $0x159] sm:$0xff]
      %v251 = vld [vmem:[%s165 + $0x169] sm:$0xff]
      %v252 = vld [vmem:[%s165 + $0x171] sm:$0xff]
      %v253 = vpack.c.bf16 %v222, %v221
      %v254 = vpack.c.bf16 %v224, %v223
      %v255 = vpack.c.bf16 %v226, %v225
      %v256 = vpack.c.bf16 %v228, %v227
      %v257 = vpack.c.bf16 %v230, %v229
      %v258 = vpack.c.bf16 %v232, %v231
      %v259 = vpack.c.bf16 %v234, %v233
      %v260 = vpack.c.bf16 %v236, %v235
      %v261 = vpack.c.bf16 %v238, %v237
      %v262 = vpack.c.bf16 %v240, %v239
      %v263 = vpack.c.bf16 %v242, %v241
      %v264 = vpack.c.bf16 %v244, %v243
      %v265 = vpack.c.bf16 %v246, %v245
      %v266 = vpack.c.bf16 %v248, %v247
      %v267 = vpack.c.bf16 %v250, %v249
      %v268 = vpack.c.bf16 %v252, %v251
      %s269 = scalar_lea.vmem %s1, 2
      %v270 = vld [vmem:[%s269] sm:$0x3]
      %vm271 = vcmask 31744
      %v273 = vsel %vm271, %v253, 0
      %v276 = vsel %vm271, %v254, 0
      %v279 = vsel %vm271, %v255, 0
      %v282 = vsel %vm271, %v256, 0
      %v285 = vsel %vm271, %v257, 0
      %v288 = vsel %vm271, %v258, 0
      %v291 = vsel %vm271, %v259, 0
      %v294 = vsel %vm271, %v260, 0
      %v297 = vsel %vm271, %v261, 0
      %v300 = vsel %vm271, %v262, 0
      %v303 = vsel %vm271, %v263, 0
      %v306 = vsel %vm271, %v264, 0
      %v309 = vsel %vm271, %v265, 0
      %v312 = vsel %vm271, %v266, 0
      %v315 = vsel %vm271, %v267, 0
      %v318 = vsel %vm271, %v268, 0
      %vm320 = vcmask 1041408
      %v322 = vsel %vm320, %v270, 0
      %324 = vmatprep.subr.bf16.mxu0 0
      %325 = vmatpush1.bf16.msra.mxu0 0
      %326 = vmatprep.subr.bf16.mxu0 0
      %327 = vmatpush1.bf16.msra.mxu0 0
      %328 = vmatprep.subr.bf16.mxu0 0
      %329 = vmatpush1.bf16.msra.mxu0 0
      %330 = vmatprep.subr.bf16.mxu0 0
      %331 = vmatpush1.bf16.msra.mxu0 0
      %332 = vmatprep.subr.bf16.mxu0 0
      %333 = vmatpush1.bf16.msra.mxu0 0
      %334 = vmatprep.subr.bf16.mxu0 0
      %335 = vmatpush1.bf16.msra.mxu0 0
      %336 = vmatprep.subr.bf16.mxu0 0
      %337 = vmatpush1.bf16.msra.mxu0 0
      %338 = vmatprep.subr.bf16.mxu0 0
      %339 = vmatpush1.bf16.msra.mxu0 %v322
      %340 = vmatprep.subr.bf16.mxu0 0
      %341 = vmatpush2.bf16.msra.mxu0 0
      %342 = vmatprep.subr.bf16.mxu0 0
      %343 = vmatpush2.bf16.msra.mxu0 0
      %344 = vmatprep.subr.bf16.mxu0 0
      %345 = vmatpush2.bf16.msra.mxu0 0
      %346 = vmatprep.subr.bf16.mxu0 0
      %347 = vmatpush2.bf16.msra.mxu0 0
      %348 = vmatprep.subr.bf16.mxu0 0
      %349 = vmatpush2.bf16.msra.mxu0 0
      %350 = vmatprep.subr.bf16.mxu0 0
      %351 = vmatpush2.bf16.msra.mxu0 0
      %352 = vmatprep.subr.bf16.mxu0 0
      %353 = vmatpush2.bf16.msra.mxu0 0
      %354 = vmatprep.subr.bf16.mxu0 0
      %355 = vmatpush2.bf16.msra.mxu0 0
      %356 = vmatprep.mubr.bf16.mxu0 0
      %357 = vmatmul.mubr.bf16.gmra.mxu0 %v273
      %v358 = vpop.f32.mrf.mxu0
      %v359 = vadd.f32 0.0, %v358
      %v360 = vpop.f32.mrf.mxu0
      %v361 = vpop.f32.mrf.mxu0
      %v362 = vadd.f32 0.0, %v361
      %v363 = vpop.f32.mrf.mxu0
      %364 = vmatprep.mubr.bf16.mxu0 0
      %365 = vmatmul.mubr.bf16.gmra.mxu0 %v276
      %v366 = vpop.f32.mrf.mxu0
      %v367 = vadd.f32 0.0, %v366
      %v368 = vpop.f32.mrf.mxu0
      %v369 = vpop.f32.mrf.mxu0
      %v370 = vadd.f32 0.0, %v369
      %v371 = vpop.f32.mrf.mxu0
      %372 = vmatprep.mubr.bf16.mxu0 0
      %373 = vmatmul.mubr.bf16.gmra.mxu0 %v279
      %v374 = vpop.f32.mrf.mxu0
      %v375 = vadd.f32 0.0, %v374
      %v376 = vpop.f32.mrf.mxu0
      %v377 = vpop.f32.mrf.mxu0
      %v378 = vadd.f32 0.0, %v377
      %v379 = vpop.f32.mrf.mxu0
      %380 = vmatprep.mubr.bf16.mxu0 0
      %381 = vmatmul.mubr.bf16.gmra.mxu0 %v282
      %v382 = vpop.f32.mrf.mxu0
      %v383 = vadd.f32 0.0, %v382
      %v384 = vpop.f32.mrf.mxu0
      %v385 = vpop.f32.mrf.mxu0
      %v386 = vadd.f32 0.0, %v385
      %v387 = vpop.f32.mrf.mxu0
      %388 = vmatprep.mubr.bf16.mxu0 0
      %389 = vmatmul.mubr.bf16.gmra.mxu0 %v285
      %v390 = vpop.f32.mrf.mxu0
      %v391 = vadd.f32 0.0, %v390
      %v392 = vpop.f32.mrf.mxu0
      %v393 = vpop.f32.mrf.mxu0
      %v394 = vadd.f32 0.0, %v393
      %v395 = vpop.f32.mrf.mxu0
      %396 = vmatprep.mubr.bf16.mxu0 0
      %397 = vmatmul.mubr.bf16.gmra.mxu0 %v288
      %v398 = vpop.f32.mrf.mxu0
      %v399 = vadd.f32 0.0, %v398
      %v400 = vpop.f32.mrf.mxu0
      %v401 = vpop.f32.mrf.mxu0
      %v402 = vadd.f32 0.0, %v401
      %v403 = vpop.f32.mrf.mxu0
      %404 = vmatprep.mubr.bf16.mxu0 0
      %405 = vmatmul.mubr.bf16.gmra.mxu0 %v291
      %v406 = vpop.f32.mrf.mxu0
      %v407 = vadd.f32 0.0, %v406
      %v408 = vpop.f32.mrf.mxu0
      %v409 = vpop.f32.mrf.mxu0
      %v410 = vadd.f32 0.0, %v409
      %v411 = vpop.f32.mrf.mxu0
      %412 = vmatprep.mubr.bf16.mxu0 0
      %413 = vmatmul.mubr.bf16.gmra.mxu0 %v294
      %v414 = vpop.f32.mrf.mxu0
      %v415 = vadd.f32 0.0, %v414
      %v416 = vpop.f32.mrf.mxu0
      %v417 = vpop.f32.mrf.mxu0
      %v418 = vadd.f32 0.0, %v417
      %v419 = vpop.f32.mrf.mxu0
      %420 = vmatprep.mubr.bf16.mxu0 0
      %421 = vmatmul.mubr.bf16.gmra.mxu0 %v297
      %v422 = vpop.f32.mrf.mxu0
      %v423 = vadd.f32 0.0, %v422
      %v424 = vpop.f32.mrf.mxu0
      %v425 = vpop.f32.mrf.mxu0
      %v426 = vadd.f32 0.0, %v425
      %v427 = vpop.f32.mrf.mxu0
      %428 = vmatprep.mubr.bf16.mxu0 0
      %429 = vmatmul.mubr.bf16.gmra.mxu0 %v300
      %v430 = vpop.f32.mrf.mxu0
      %v431 = vadd.f32 0.0, %v430
      %v432 = vpop.f32.mrf.mxu0
      %v433 = vpop.f32.mrf.mxu0
      %v434 = vadd.f32 0.0, %v433
      %v435 = vpop.f32.mrf.mxu0
      %436 = vmatprep.mubr.bf16.mxu0 0
      %437 = vmatmul.mubr.bf16.gmra.mxu0 %v303
      %v438 = vpop.f32.mrf.mxu0
      %v439 = vadd.f32 0.0, %v438
      %v440 = vpop.f32.mrf.mxu0
      %v441 = vpop.f32.mrf.mxu0
      %v442 = vadd.f32 0.0, %v441
      %v443 = vpop.f32.mrf.mxu0
      %444 = vmatprep.mubr.bf16.mxu0 0
      %445 = vmatmul.mubr.bf16.gmra.mxu0 %v306
      %v446 = vpop.f32.mrf.mxu0
      %v447 = vadd.f32 0.0, %v446
      %v448 = vpop.f32.mrf.mxu0
      %v449 = vpop.f32.mrf.mxu0
      %v450 = vadd.f32 0.0, %v449
      %v451 = vpop.f32.mrf.mxu0
      %452 = vmatprep.mubr.bf16.mxu0 0
      %453 = vmatmul.mubr.bf16.gmra.mxu0 %v309
      %v454 = vpop.f32.mrf.mxu0
      %v455 = vadd.f32 0.0, %v454
      %v456 = vpop.f32.mrf.mxu0
      %v457 = vpop.f32.mrf.mxu0
      %v458 = vadd.f32 0.0, %v457
      %v459 = vpop.f32.mrf.mxu0
      %460 = vmatprep.mubr.bf16.mxu0 0
      %461 = vmatmul.mubr.bf16.gmra.mxu0 %v312
      %v462 = vpop.f32.mrf.mxu0
      %v463 = vadd.f32 0.0, %v462
      %v464 = vpop.f32.mrf.mxu0
      %v465 = vpop.f32.mrf.mxu0
      %v466 = vadd.f32 0.0, %v465
      %v467 = vpop.f32.mrf.mxu0
      %468 = vmatprep.mubr.bf16.mxu0 0
      %469 = vmatmul.mubr.bf16.gmra.mxu0 %v315
      %v470 = vpop.f32.mrf.mxu0
      %v471 = vadd.f32 0.0, %v470
      %v472 = vpop.f32.mrf.mxu0
      %v473 = vpop.f32.mrf.mxu0
      %v474 = vadd.f32 0.0, %v473
      %v475 = vpop.f32.mrf.mxu0
      %476 = vmatprep.mubr.bf16.mxu0 0
      %477 = vmatmul.mubr.bf16.gmra.mxu0 %v318
      %v478 = vpop.f32.mrf.mxu0
      %v479 = vadd.f32 0.0, %v478
      %v480 = vpop.f32.mrf.mxu0
      %v481 = vpop.f32.mrf.mxu0
      %v482 = vadd.f32 0.0, %v481
      %v483 = vpop.f32.mrf.mxu0
      %484 = vdwg.mxu0
      %v486 = vsel %vm271, %v204, 0
      %v489 = vsel %vm271, %v205, 0
      %v492 = vsel %vm271, %v206, 0
      %v495 = vsel %vm271, %v207, 0
      %v498 = vsel %vm271, %v208, 0
      %v501 = vsel %vm271, %v209, 0
      %v504 = vsel %vm271, %v210, 0
      %v507 = vsel %vm271, %v211, 0
      %v510 = vsel %vm271, %v212, 0
      %v513 = vsel %vm271, %v213, 0
      %v516 = vsel %vm271, %v214, 0
      %v519 = vsel %vm271, %v215, 0
      %v522 = vsel %vm271, %v216, 0
      %v525 = vsel %vm271, %v217, 0
      %v528 = vsel %vm271, %v218, 0
      %v531 = vsel %vm271, %v219, 0
      %v534 = vsel %vm320, %v220, 0
      %536 = vmatprep.subr.bf16.mxu0 0
      %537 = vmatpush1.bf16.msra.mxu0 0
      %538 = vmatprep.subr.bf16.mxu0 0
      %539 = vmatpush1.bf16.msra.mxu0 0
      %540 = vmatprep.subr.bf16.mxu0 0
      %541 = vmatpush1.bf16.msra.mxu0 0
      %542 = vmatprep.subr.bf16.mxu0 0
      %543 = vmatpush1.bf16.msra.mxu0 0
      %544 = vmatprep.subr.bf16.mxu0 0
      %545 = vmatpush1.bf16.msra.mxu0 0
      %546 = vmatprep.subr.bf16.mxu0 0
      %547 = vmatpush1.bf16.msra.mxu0 0
      %548 = vmatprep.subr.bf16.mxu0 0
      %549 = vmatpush1.bf16.msra.mxu0 0
      %550 = vmatprep.subr.bf16.mxu0 0
      %551 = vmatpush1.bf16.msra.mxu0 %v534
      %552 = vmatprep.subr.bf16.mxu0 0
      %553 = vmatpush2.bf16.msra.mxu0 0
      %554 = vmatprep.subr.bf16.mxu0 0
      %555 = vmatpush2.bf16.msra.mxu0 0
      %556 = vmatprep.subr.bf16.mxu0 0
      %557 = vmatpush2.bf16.msra.mxu0 0
      %558 = vmatprep.subr.bf16.mxu0 0
      %559 = vmatpush2.bf16.msra.mxu0 0
      %560 = vmatprep.subr.bf16.mxu0 0
      %561 = vmatpush2.bf16.msra.mxu0 0
      %562 = vmatprep.subr.bf16.mxu0 0
      %563 = vmatpush2.bf16.msra.mxu0 0
      %564 = vmatprep.subr.bf16.mxu0 0
      %565 = vmatpush2.bf16.msra.mxu0 0
      %566 = vmatprep.subr.bf16.mxu0 0
      %567 = vmatpush2.bf16.msra.mxu0 0
      %568 = vmatprep.mubr.bf16.mxu0 0
      %569 = vmatmul.mubr.bf16.gmra.mxu0 %v486
      %v570 = vpop.f32.mrf.mxu0
      %v571 = vadd.f32 %v359, %v570
      %v572 = vpop.f32.mrf.mxu0
      %v573 = vpop.f32.mrf.mxu0
      %v574 = vadd.f32 %v362, %v573
      %v575 = vpop.f32.mrf.mxu0
      %576 = vmatprep.mubr.bf16.mxu0 0
      %577 = vmatmul.mubr.bf16.gmra.mxu0 %v489
      %v578 = vpop.f32.mrf.mxu0
      %v579 = vadd.f32 %v367, %v578
      %v580 = vpop.f32.mrf.mxu0
      %v581 = vpop.f32.mrf.mxu0
      %v582 = vadd.f32 %v370, %v581
      %v583 = vpop.f32.mrf.mxu0
      %584 = vmatprep.mubr.bf16.mxu0 0
      %585 = vmatmul.mubr.bf16.gmra.mxu0 %v492
      %v586 = vpop.f32.mrf.mxu0
      %v587 = vadd.f32 %v375, %v586
      %v588 = vpop.f32.mrf.mxu0
      %v589 = vpop.f32.mrf.mxu0
      %v590 = vadd.f32 %v378, %v589
      %v591 = vpop.f32.mrf.mxu0
      %592 = vmatprep.mubr.bf16.mxu0 0
      %593 = vmatmul.mubr.bf16.gmra.mxu0 %v495
      %v594 = vpop.f32.mrf.mxu0
      %v595 = vadd.f32 %v383, %v594
      %v596 = vpop.f32.mrf.mxu0
      %v597 = vpop.f32.mrf.mxu0
      %v598 = vadd.f32 %v386, %v597
      %v599 = vpop.f32.mrf.mxu0
      %600 = vmatprep.mubr.bf16.mxu0 0
      %601 = vmatmul.mubr.bf16.gmra.mxu0 %v498
      %v602 = vpop.f32.mrf.mxu0
      %v603 = vadd.f32 %v391, %v602
      %v604 = vpop.f32.mrf.mxu0
      %v605 = vpop.f32.mrf.mxu0
      %v606 = vadd.f32 %v394, %v605
      %v607 = vpop.f32.mrf.mxu0
      %608 = vmatprep.mubr.bf16.mxu0 0
      %609 = vmatmul.mubr.bf16.gmra.mxu0 %v501
      %v610 = vpop.f32.mrf.mxu0
      %v611 = vadd.f32 %v399, %v610
      %v612 = vpop.f32.mrf.mxu0
      %v613 = vpop.f32.mrf.mxu0
      %v614 = vadd.f32 %v402, %v613
      %v615 = vpop.f32.mrf.mxu0
      %616 = vmatprep.mubr.bf16.mxu0 0
      %617 = vmatmul.mubr.bf16.gmra.mxu0 %v504
      %v618 = vpop.f32.mrf.mxu0
      %v619 = vadd.f32 %v407, %v618
      %v620 = vpop.f32.mrf.mxu0
      %v621 = vpop.f32.mrf.mxu0
      %v622 = vadd.f32 %v410, %v621
      %v623 = vpop.f32.mrf.mxu0
      %624 = vmatprep.mubr.bf16.mxu0 0
      %625 = vmatmul.mubr.bf16.gmra.mxu0 %v507
      %v626 = vpop.f32.mrf.mxu0
      %v627 = vadd.f32 %v415, %v626
      %v628 = vpop.f32.mrf.mxu0
      %v629 = vpop.f32.mrf.mxu0
      %v630 = vadd.f32 %v418, %v629
      %v631 = vpop.f32.mrf.mxu0
      %632 = vmatprep.mubr.bf16.mxu0 0
      %633 = vmatmul.mubr.bf16.gmra.mxu0 %v510
      %v634 = vpop.f32.mrf.mxu0
      %v635 = vadd.f32 %v423, %v634
      %v636 = vpop.f32.mrf.mxu0
      %v637 = vpop.f32.mrf.mxu0
      %v638 = vadd.f32 %v426, %v637
      %v639 = vpop.f32.mrf.mxu0
      %640 = vmatprep.mubr.bf16.mxu0 0
      %641 = vmatmul.mubr.bf16.gmra.mxu0 %v513
      %v642 = vpop.f32.mrf.mxu0
      %v643 = vadd.f32 %v431, %v642
      %v644 = vpop.f32.mrf.mxu0
      %v645 = vpop.f32.mrf.mxu0
      %v646 = vadd.f32 %v434, %v645
      %v647 = vpop.f32.mrf.mxu0
      %648 = vmatprep.mubr.bf16.mxu0 0
      %649 = vmatmul.mubr.bf16.gmra.mxu0 %v516
      %v650 = vpop.f32.mrf.mxu0
      %v651 = vadd.f32 %v439, %v650
      %v652 = vpop.f32.mrf.mxu0
      %v653 = vpop.f32.mrf.mxu0
      %v654 = vadd.f32 %v442, %v653
      %v655 = vpop.f32.mrf.mxu0
      %656 = vmatprep.mubr.bf16.mxu0 0
      %657 = vmatmul.mubr.bf16.gmra.mxu0 %v519
      %v658 = vpop.f32.mrf.mxu0
      %v659 = vadd.f32 %v447, %v658
      %v660 = vpop.f32.mrf.mxu0
      %v661 = vpop.f32.mrf.mxu0
      %v662 = vadd.f32 %v450, %v661
      %v663 = vpop.f32.mrf.mxu0
      %664 = vmatprep.mubr.bf16.mxu0 0
      %665 = vmatmul.mubr.bf16.gmra.mxu0 %v522
      %v666 = vpop.f32.mrf.mxu0
      %v667 = vadd.f32 %v455, %v666
      %v668 = vpop.f32.mrf.mxu0
      %v669 = vpop.f32.mrf.mxu0
      %v670 = vadd.f32 %v458, %v669
      %v671 = vpop.f32.mrf.mxu0
      %672 = vmatprep.mubr.bf16.mxu0 0
      %673 = vmatmul.mubr.bf16.gmra.mxu0 %v525
      %v674 = vpop.f32.mrf.mxu0
      %v675 = vadd.f32 %v463, %v674
      %v676 = vpop.f32.mrf.mxu0
      %v677 = vpop.f32.mrf.mxu0
      %v678 = vadd.f32 %v466, %v677
      %v679 = vpop.f32.mrf.mxu0
      %680 = vmatprep.mubr.bf16.mxu0 0
      %681 = vmatmul.mubr.bf16.gmra.mxu0 %v528
      %v682 = vpop.f32.mrf.mxu0
      %v683 = vadd.f32 %v471, %v682
      %v684 = vpop.f32.mrf.mxu0
      %v685 = vpop.f32.mrf.mxu0
      %v686 = vadd.f32 %v474, %v685
      %v687 = vpop.f32.mrf.mxu0
      %688 = vmatprep.mubr.bf16.mxu0 0
      %689 = vmatmul.mubr.bf16.gmra.mxu0 %v531
      %v690 = vpop.f32.mrf.mxu0
      %v691 = vadd.f32 %v479, %v690
      %v692 = vpop.f32.mrf.mxu0
      %v693 = vpop.f32.mrf.mxu0
      %v694 = vadd.f32 %v482, %v693
      %v695 = vpop.f32.mrf.mxu0
      %696 = vdwg.mxu0
      %v697 = vld [vmem:[%s165 + $0x2] sm:$0xff]
      %v698 = vld [vmem:[%s165 + $0xa] sm:$0xff]
      %v699 = vld [vmem:[%s165 + $0x1a] sm:$0xff]
      %v700 = vld [vmem:[%s165 + $0x22] sm:$0xff]
      %v701 = vld [vmem:[%s165 + $0x32] sm:$0xff]
      %v702 = vld [vmem:[%s165 + $0x3a] sm:$0xff]
      %v703 = vld [vmem:[%s165 + $0x4a] sm:$0xff]
      %v704 = vld [vmem:[%s165 + $0x52] sm:$0xff]
      %v705 = vld [vmem:[%s165 + $0x62] sm:$0xff]
      %v706 = vld [vmem:[%s165 + $0x6a] sm:$0xff]
      %v707 = vld [vmem:[%s165 + $0x7a] sm:$0xff]
      %v708 = vld [vmem:[%s165 + $0x82] sm:$0xff]
      %v709 = vld [vmem:[%s165 + $0x92] sm:$0xff]
      %v710 = vld [vmem:[%s165 + $0x9a] sm:$0xff]
      %v711 = vld [vmem:[%s165 + $0xaa] sm:$0xff]
      %v712 = vld [vmem:[%s165 + $0xb2] sm:$0xff]
      %v713 = vld [vmem:[%s165 + $0xc2] sm:$0xff]
      %v714 = vld [vmem:[%s165 + $0xca] sm:$0xff]
      %v715 = vld [vmem:[%s165 + $0xda] sm:$0xff]
      %v716 = vld [vmem:[%s165 + $0xe2] sm:$0xff]
      %v717 = vld [vmem:[%s165 + $0xf2] sm:$0xff]
      %v718 = vld [vmem:[%s165 + $0xfa] sm:$0xff]
      %v719 = vld [vmem:[%s165 + $0x10a] sm:$0xff]
      %v720 = vld [vmem:[%s165 + $0x112] sm:$0xff]
      %v721 = vld [vmem:[%s165 + $0x122] sm:$0xff]
      %v722 = vld [vmem:[%s165 + $0x12a] sm:$0xff]
      %v723 = vld [vmem:[%s165 + $0x13a] sm:$0xff]
      %v724 = vld [vmem:[%s165 + $0x142] sm:$0xff]
      %v725 = vld [vmem:[%s165 + $0x152] sm:$0xff]
      %v726 = vld [vmem:[%s165 + $0x15a] sm:$0xff]
      %v727 = vld [vmem:[%s165 + $0x16a] sm:$0xff]
      %v728 = vld [vmem:[%s165 + $0x172] sm:$0xff]
      %v729 = vpack.c.bf16 %v698, %v697
      %v730 = vpack.c.bf16 %v700, %v699
      %v731 = vpack.c.bf16 %v702, %v701
      %v732 = vpack.c.bf16 %v704, %v703
      %v733 = vpack.c.bf16 %v706, %v705
      %v734 = vpack.c.bf16 %v708, %v707
      %v735 = vpack.c.bf16 %v710, %v709
      %v736 = vpack.c.bf16 %v712, %v711
      %v737 = vpack.c.bf16 %v714, %v713
      %v738 = vpack.c.bf16 %v716, %v715
      %v739 = vpack.c.bf16 %v718, %v717
      %v740 = vpack.c.bf16 %v720, %v719
      %v741 = vpack.c.bf16 %v722, %v721
      %v742 = vpack.c.bf16 %v724, %v723
      %v743 = vpack.c.bf16 %v726, %v725
      %v744 = vpack.c.bf16 %v728, %v727
      %s745 = scalar_lea.vmem %s1, 4
      %v746 = vld [vmem:[%s745] sm:$0x3]
      %v748 = vsel %vm271, %v729, 0
      %v751 = vsel %vm271, %v730, 0
      %v754 = vsel %vm271, %v731, 0
      %v757 = vsel %vm271, %v732, 0
      %v760 = vsel %vm271, %v733, 0
      %v763 = vsel %vm271, %v734, 0
      %v766 = vsel %vm271, %v735, 0
      %v769 = vsel %vm271, %v736, 0
      %v772 = vsel %vm271, %v737, 0
      %v775 = vsel %vm271, %v738, 0
      %v778 = vsel %vm271, %v739, 0
      %v781 = vsel %vm271, %v740, 0
      %v784 = vsel %vm271, %v741, 0
      %v787 = vsel %vm271, %v742, 0
      %v790 = vsel %vm271, %v743, 0
      %v793 = vsel %vm271, %v744, 0
      %v796 = vsel %vm320, %v746, 0
      %798 = vmatprep.subr.bf16.mxu0 0
      %799 = vmatpush1.bf16.msra.mxu0 0
      %800 = vmatprep.subr.bf16.mxu0 0
      %801 = vmatpush1.bf16.msra.mxu0 0
      %802 = vmatprep.subr.bf16.mxu0 0
      %803 = vmatpush1.bf16.msra.mxu0 0
      %804 = vmatprep.subr.bf16.mxu0 0
      %805 = vmatpush1.bf16.msra.mxu0 0
      %806 = vmatprep.subr.bf16.mxu0 0
      %807 = vmatpush1.bf16.msra.mxu0 0
      %808 = vmatprep.subr.bf16.mxu0 0
      %809 = vmatpush1.bf16.msra.mxu0 0
      %810 = vmatprep.subr.bf16.mxu0 0
      %811 = vmatpush1.bf16.msra.mxu0 0
      %812 = vmatprep.subr.bf16.mxu0 0
      %813 = vmatpush1.bf16.msra.mxu0 %v796
      %814 = vmatprep.subr.bf16.mxu0 0
      %815 = vmatpush2.bf16.msra.mxu0 0
      %816 = vmatprep.subr.bf16.mxu0 0
      %817 = vmatpush2.bf16.msra.mxu0 0
      %818 = vmatprep.subr.bf16.mxu0 0
      %819 = vmatpush2.bf16.msra.mxu0 0
      %820 = vmatprep.subr.bf16.mxu0 0
      %821 = vmatpush2.bf16.msra.mxu0 0
      %822 = vmatprep.subr.bf16.mxu0 0
      %823 = vmatpush2.bf16.msra.mxu0 0
      %824 = vmatprep.subr.bf16.mxu0 0
      %825 = vmatpush2.bf16.msra.mxu0 0
      %826 = vmatprep.subr.bf16.mxu0 0
      %827 = vmatpush2.bf16.msra.mxu0 0
      %828 = vmatprep.subr.bf16.mxu0 0
      %829 = vmatpush2.bf16.msra.mxu0 0
      %830 = vmatprep.mubr.bf16.mxu0 0
      %831 = vmatmul.mubr.bf16.gmra.mxu0 %v748
      %v832 = vpop.f32.mrf.mxu0
      %v833 = vadd.f32 0.0, %v832
      %v834 = vpop.f32.mrf.mxu0
      %v835 = vpop.f32.mrf.mxu0
      %v836 = vadd.f32 0.0, %v835
      %v837 = vpop.f32.mrf.mxu0
      %838 = vmatprep.mubr.bf16.mxu0 0
      %839 = vmatmul.mubr.bf16.gmra.mxu0 %v751
      %v840 = vpop.f32.mrf.mxu0
      %v841 = vadd.f32 0.0, %v840
      %v842 = vpop.f32.mrf.mxu0
      %v843 = vpop.f32.mrf.mxu0
      %v844 = vadd.f32 0.0, %v843
      %v845 = vpop.f32.mrf.mxu0
      %846 = vmatprep.mubr.bf16.mxu0 0
      %847 = vmatmul.mubr.bf16.gmra.mxu0 %v754
      %v848 = vpop.f32.mrf.mxu0
      %v849 = vadd.f32 0.0, %v848
      %v850 = vpop.f32.mrf.mxu0
      %v851 = vpop.f32.mrf.mxu0
      %v852 = vadd.f32 0.0, %v851
      %v853 = vpop.f32.mrf.mxu0
      %854 = vmatprep.mubr.bf16.mxu0 0
      %855 = vmatmul.mubr.bf16.gmra.mxu0 %v757
      %v856 = vpop.f32.mrf.mxu0
      %v857 = vadd.f32 0.0, %v856
      %v858 = vpop.f32.mrf.mxu0
      %v859 = vpop.f32.mrf.mxu0
      %v860 = vadd.f32 0.0, %v859
      %v861 = vpop.f32.mrf.mxu0
      %862 = vmatprep.mubr.bf16.mxu0 0
      %863 = vmatmul.mubr.bf16.gmra.mxu0 %v760
      %v864 = vpop.f32.mrf.mxu0
      %v865 = vadd.f32 0.0, %v864
      %v866 = vpop.f32.mrf.mxu0
      %v867 = vpop.f32.mrf.mxu0
      %v868 = vadd.f32 0.0, %v867
      %v869 = vpop.f32.mrf.mxu0
      %870 = vmatprep.mubr.bf16.mxu0 0
      %871 = vmatmul.mubr.bf16.gmra.mxu0 %v763
      %v872 = vpop.f32.mrf.mxu0
      %v873 = vadd.f32 0.0, %v872
      %v874 = vpop.f32.mrf.mxu0
      %v875 = vpop.f32.mrf.mxu0
      %v876 = vadd.f32 0.0, %v875
      %v877 = vpop.f32.mrf.mxu0
      %878 = vmatprep.mubr.bf16.mxu0 0
      %879 = vmatmul.mubr.bf16.gmra.mxu0 %v766
      %v880 = vpop.f32.mrf.mxu0
      %v881 = vadd.f32 0.0, %v880
      %v882 = vpop.f32.mrf.mxu0
      %v883 = vpop.f32.mrf.mxu0
      %v884 = vadd.f32 0.0, %v883
      %v885 = vpop.f32.mrf.mxu0
      %886 = vmatprep.mubr.bf16.mxu0 0
      %887 = vmatmul.mubr.bf16.gmra.mxu0 %v769
      %v888 = vpop.f32.mrf.mxu0
      %v889 = vadd.f32 0.0, %v888
      %v890 = vpop.f32.mrf.mxu0
      %v891 = vpop.f32.mrf.mxu0
      %v892 = vadd.f32 0.0, %v891
      %v893 = vpop.f32.mrf.mxu0
      %894 = vmatprep.mubr.bf16.mxu0 0
      %895 = vmatmul.mubr.bf16.gmra.mxu0 %v772
      %v896 = vpop.f32.mrf.mxu0
      %v897 = vadd.f32 0.0, %v896
      %v898 = vpop.f32.mrf.mxu0
      %v899 = vpop.f32.mrf.mxu0
      %v900 = vadd.f32 0.0, %v899
      %v901 = vpop.f32.mrf.mxu0
      %902 = vmatprep.mubr.bf16.mxu0 0
      %903 = vmatmul.mubr.bf16.gmra.mxu0 %v775
      %v904 = vpop.f32.mrf.mxu0
      %v905 = vadd.f32 0.0, %v904
      %v906 = vpop.f32.mrf.mxu0
      %v907 = vpop.f32.mrf.mxu0
      %v908 = vadd.f32 0.0, %v907
      %v909 = vpop.f32.mrf.mxu0
      %910 = vmatprep.mubr.bf16.mxu0 0
      %911 = vmatmul.mubr.bf16.gmra.mxu0 %v778
      %v912 = vpop.f32.mrf.mxu0
      %v913 = vadd.f32 0.0, %v912
      %v914 = vpop.f32.mrf.mxu0
      %v915 = vpop.f32.mrf.mxu0
      %v916 = vadd.f32 0.0, %v915
      %v917 = vpop.f32.mrf.mxu0
      %918 = vmatprep.mubr.bf16.mxu0 0
      %919 = vmatmul.mubr.bf16.gmra.mxu0 %v781
      %v920 = vpop.f32.mrf.mxu0
      %v921 = vadd.f32 0.0, %v920
      %v922 = vpop.f32.mrf.mxu0
      %v923 = vpop.f32.mrf.mxu0
      %v924 = vadd.f32 0.0, %v923
      %v925 = vpop.f32.mrf.mxu0
      %926 = vmatprep.mubr.bf16.mxu0 0
      %927 = vmatmul.mubr.bf16.gmra.mxu0 %v784
      %v928 = vpop.f32.mrf.mxu0
      %v929 = vadd.f32 0.0, %v928
      %v930 = vpop.f32.mrf.mxu0
      %v931 = vpop.f32.mrf.mxu0
      %v932 = vadd.f32 0.0, %v931
      %v933 = vpop.f32.mrf.mxu0
      %934 = vmatprep.mubr.bf16.mxu0 0
      %935 = vmatmul.mubr.bf16.gmra.mxu0 %v787
      %v936 = vpop.f32.mrf.mxu0
      %v937 = vadd.f32 0.0, %v936
      %v938 = vpop.f32.mrf.mxu0
      %v939 = vpop.f32.mrf.mxu0
      %v940 = vadd.f32 0.0, %v939
      %v941 = vpop.f32.mrf.mxu0
      %942 = vmatprep.mubr.bf16.mxu0 0
      %943 = vmatmul.mubr.bf16.gmra.mxu0 %v790
      %v944 = vpop.f32.mrf.mxu0
      %v945 = vadd.f32 0.0, %v944
      %v946 = vpop.f32.mrf.mxu0
      %v947 = vpop.f32.mrf.mxu0
      %v948 = vadd.f32 0.0, %v947
      %v949 = vpop.f32.mrf.mxu0
      %950 = vmatprep.mubr.bf16.mxu0 0
      %951 = vmatmul.mubr.bf16.gmra.mxu0 %v793
      %v952 = vpop.f32.mrf.mxu0
      %v953 = vadd.f32 0.0, %v952
      %v954 = vpop.f32.mrf.mxu0
      %v955 = vpop.f32.mrf.mxu0
      %v956 = vadd.f32 0.0, %v955
      %v957 = vpop.f32.mrf.mxu0
      %958 = vdwg.mxu0
      %v959 = vadd.f32 %v571, %v833
      %v960 = vadd.f32 %v574, %v836
      %v961 = vadd.f32 %v579, %v841
      %v962 = vadd.f32 %v582, %v844
      %v963 = vadd.f32 %v587, %v849
      %v964 = vadd.f32 %v590, %v852
      %v965 = vadd.f32 %v595, %v857
      %v966 = vadd.f32 %v598, %v860
      %v967 = vadd.f32 %v603, %v865
      %v968 = vadd.f32 %v606, %v868
      %v969 = vadd.f32 %v611, %v873
      %v970 = vadd.f32 %v614, %v876
      %v971 = vadd.f32 %v619, %v881
      %v972 = vadd.f32 %v622, %v884
      %v973 = vadd.f32 %v627, %v889
      %v974 = vadd.f32 %v630, %v892
      %v975 = vadd.f32 %v635, %v897
      %v976 = vadd.f32 %v638, %v900
      %v977 = vadd.f32 %v643, %v905
      %v978 = vadd.f32 %v646, %v908
      %v979 = vadd.f32 %v651, %v913
      %v980 = vadd.f32 %v654, %v916
      %v981 = vadd.f32 %v659, %v921
      %v982 = vadd.f32 %v662, %v924
      %v983 = vadd.f32 %v667, %v929
      %v984 = vadd.f32 %v670, %v932
      %v985 = vadd.f32 %v675, %v937
      %v986 = vadd.f32 %v678, %v940
      %v987 = vadd.f32 %v683, %v945
      %v988 = vadd.f32 %v686, %v948
      %v989 = vadd.f32 %v691, %v953
      %v990 = vadd.f32 %v694, %v956
      %s991 = scalar_lea.vmem %s165, 24
      %v992 = vld [vmem:[%s991] sm:$0xff]
      %v993 = vld [vmem:[%s991 + $0x8] sm:$0xff]
      %v994 = vld [vmem:[%s991 + $0x18] sm:$0xff]
      %v995 = vld [vmem:[%s991 + $0x20] sm:$0xff]
      %v996 = vld [vmem:[%s991 + $0x30] sm:$0xff]
      %v997 = vld [vmem:[%s991 + $0x38] sm:$0xff]
      %v998 = vld [vmem:[%s991 + $0x48] sm:$0xff]
      %v999 = vld [vmem:[%s991 + $0x50] sm:$0xff]
      %v1000 = vld [vmem:[%s991 + $0x60] sm:$0xff]
      %v1001 = vld [vmem:[%s991 + $0x68] sm:$0xff]
      %v1002 = vld [vmem:[%s991 + $0x78] sm:$0xff]
      %v1003 = vld [vmem:[%s991 + $0x80] sm:$0xff]
      %v1004 = vld [vmem:[%s991 + $0x90] sm:$0xff]
      %v1005 = vld [vmem:[%s991 + $0x98] sm:$0xff]
      %v1006 = vld [vmem:[%s991 + $0xa8] sm:$0xff]
      %v1007 = vld [vmem:[%s991 + $0xb0] sm:$0xff]
      %v1008 = vld [vmem:[%s991 + $0xc0] sm:$0xff]
      %v1009 = vld [vmem:[%s991 + $0xc8] sm:$0xff]
      %v1010 = vld [vmem:[%s991 + $0xd8] sm:$0xff]
      %v1011 = vld [vmem:[%s991 + $0xe0] sm:$0xff]
      %v1012 = vld [vmem:[%s991 + $0xf0] sm:$0xff]
      %v1013 = vld [vmem:[%s991 + $0xf8] sm:$0xff]
      %v1014 = vld [vmem:[%s991 + $0x108] sm:$0xff]
      %v1015 = vld [vmem:[%s991 + $0x110] sm:$0xff]
      %v1016 = vld [vmem:[%s991 + $0x120] sm:$0xff]
      %v1017 = vld [vmem:[%s991 + $0x128] sm:$0xff]
      %v1018 = vld [vmem:[%s991 + $0x138] sm:$0xff]
      %v1019 = vld [vmem:[%s991 + $0x140] sm:$0xff]
      %v1020 = vld [vmem:[%s991 + $0x150] sm:$0xff]
      %v1021 = vld [vmem:[%s991 + $0x158] sm:$0xff]
      %v1022 = vld [vmem:[%s991 + $0x168] sm:$0xff]
      %v1023 = vld [vmem:[%s991 + $0x170] sm:$0xff]
      %v1024 = vpack.c.bf16 %v993, %v992
      %v1025 = vpack.c.bf16 %v995, %v994
      %v1026 = vpack.c.bf16 %v997, %v996
      %v1027 = vpack.c.bf16 %v999, %v998
      %v1028 = vpack.c.bf16 %v1001, %v1000
      %v1029 = vpack.c.bf16 %v1003, %v1002
      %v1030 = vpack.c.bf16 %v1005, %v1004
      %v1031 = vpack.c.bf16 %v1007, %v1006
      %v1032 = vpack.c.bf16 %v1009, %v1008
      %v1033 = vpack.c.bf16 %v1011, %v1010
      %v1034 = vpack.c.bf16 %v1013, %v1012
      %v1035 = vpack.c.bf16 %v1015, %v1014
      %v1036 = vpack.c.bf16 %v1017, %v1016
      %v1037 = vpack.c.bf16 %v1019, %v1018
      %v1038 = vpack.c.bf16 %v1021, %v1020
      %v1039 = vpack.c.bf16 %v1023, %v1022
      %s1040 = scalar_lea.vmem %s1, 6
      %v1041 = vld [vmem:[%s1040] sm:$0x3]
      %v1043 = vsel %vm271, %v1024, 0
      %v1046 = vsel %vm271, %v1025, 0
      %v1049 = vsel %vm271, %v1026, 0
      %v1052 = vsel %vm271, %v1027, 0
      %v1055 = vsel %vm271, %v1028, 0
      %v1058 = vsel %vm271, %v1029, 0
      %v1061 = vsel %vm271, %v1030, 0
      %v1064 = vsel %vm271, %v1031, 0
      %v1067 = vsel %vm271, %v1032, 0
      %v1070 = vsel %vm271, %v1033, 0
      %v1073 = vsel %vm271, %v1034, 0
      %v1076 = vsel %vm271, %v1035, 0
      %v1079 = vsel %vm271, %v1036, 0
      %v1082 = vsel %vm271, %v1037, 0
      %v1085 = vsel %vm271, %v1038, 0
      %v1088 = vsel %vm271, %v1039, 0
      %v1091 = vsel %vm320, %v1041, 0
      %1093 = vmatprep.subr.bf16.mxu0 0
      %1094 = vmatpush1.bf16.msra.mxu0 0
      %1095 = vmatprep.subr.bf16.mxu0 0
      %1096 = vmatpush1.bf16.msra.mxu0 0
      %1097 = vmatprep.subr.bf16.mxu0 0
      %1098 = vmatpush1.bf16.msra.mxu0 0
      %1099 = vmatprep.subr.bf16.mxu0 0
      %1100 = vmatpush1.bf16.msra.mxu0 0
      %1101 = vmatprep.subr.bf16.mxu0 0
      %1102 = vmatpush1.bf16.msra.mxu0 0
      %1103 = vmatprep.subr.bf16.mxu0 0
      %1104 = vmatpush1.bf16.msra.mxu0 0
      %1105 = vmatprep.subr.bf16.mxu0 0
      %1106 = vmatpush1.bf16.msra.mxu0 0
      %1107 = vmatprep.subr.bf16.mxu0 0
      %1108 = vmatpush1.bf16.msra.mxu0 %v1091
      %1109 = vmatprep.subr.bf16.mxu0 0
      %1110 = vmatpush2.bf16.msra.mxu0 0
      %1111 = vmatprep.subr.bf16.mxu0 0
      %1112 = vmatpush2.bf16.msra.mxu0 0
      %1113 = vmatprep.subr.bf16.mxu0 0
      %1114 = vmatpush2.bf16.msra.mxu0 0
      %1115 = vmatprep.subr.bf16.mxu0 0
      %1116 = vmatpush2.bf16.msra.mxu0 0
      %1117 = vmatprep.subr.bf16.mxu0 0
      %1118 = vmatpush2.bf16.msra.mxu0 0
      %1119 = vmatprep.subr.bf16.mxu0 0
      %1120 = vmatpush2.bf16.msra.mxu0 0
      %1121 = vmatprep.subr.bf16.mxu0 0
      %1122 = vmatpush2.bf16.msra.mxu0 0
      %1123 = vmatprep.subr.bf16.mxu0 0
      %1124 = vmatpush2.bf16.msra.mxu0 0
      %1125 = vmatprep.mubr.bf16.mxu0 0
      %1126 = vmatmul.mubr.bf16.gmra.mxu0 %v1043
      %v1127 = vpop.f32.mrf.mxu0
      %v1128 = vadd.f32 0.0, %v1127
      %v1129 = vpop.f32.mrf.mxu0
      %v1130 = vpop.f32.mrf.mxu0
      %v1131 = vadd.f32 0.0, %v1130
      %v1132 = vpop.f32.mrf.mxu0
      %1133 = vmatprep.mubr.bf16.mxu0 0
      %1134 = vmatmul.mubr.bf16.gmra.mxu0 %v1046
      %v1135 = vpop.f32.mrf.mxu0
      %v1136 = vadd.f32 0.0, %v1135
      %v1137 = vpop.f32.mrf.mxu0
      %v1138 = vpop.f32.mrf.mxu0
      %v1139 = vadd.f32 0.0, %v1138
      %v1140 = vpop.f32.mrf.mxu0
      %1141 = vmatprep.mubr.bf16.mxu0 0
      %1142 = vmatmul.mubr.bf16.gmra.mxu0 %v1049
      %v1143 = vpop.f32.mrf.mxu0
      %v1144 = vadd.f32 0.0, %v1143
      %v1145 = vpop.f32.mrf.mxu0
      %v1146 = vpop.f32.mrf.mxu0
      %v1147 = vadd.f32 0.0, %v1146
      %v1148 = vpop.f32.mrf.mxu0
      %1149 = vmatprep.mubr.bf16.mxu0 0
      %1150 = vmatmul.mubr.bf16.gmra.mxu0 %v1052
      %v1151 = vpop.f32.mrf.mxu0
      %v1152 = vadd.f32 0.0, %v1151
      %v1153 = vpop.f32.mrf.mxu0
      %v1154 = vpop.f32.mrf.mxu0
      %v1155 = vadd.f32 0.0, %v1154
      %v1156 = vpop.f32.mrf.mxu0
      %1157 = vmatprep.mubr.bf16.mxu0 0
      %1158 = vmatmul.mubr.bf16.gmra.mxu0 %v1055
      %v1159 = vpop.f32.mrf.mxu0
      %v1160 = vadd.f32 0.0, %v1159
      %v1161 = vpop.f32.mrf.mxu0
      %v1162 = vpop.f32.mrf.mxu0
      %v1163 = vadd.f32 0.0, %v1162
      %v1164 = vpop.f32.mrf.mxu0
      %1165 = vmatprep.mubr.bf16.mxu0 0
      %1166 = vmatmul.mubr.bf16.gmra.mxu0 %v1058
      %v1167 = vpop.f32.mrf.mxu0
      %v1168 = vadd.f32 0.0, %v1167
      %v1169 = vpop.f32.mrf.mxu0
      %v1170 = vpop.f32.mrf.mxu0
      %v1171 = vadd.f32 0.0, %v1170
      %v1172 = vpop.f32.mrf.mxu0
      %1173 = vmatprep.mubr.bf16.mxu0 0
      %1174 = vmatmul.mubr.bf16.gmra.mxu0 %v1061
      %v1175 = vpop.f32.mrf.mxu0
      %v1176 = vadd.f32 0.0, %v1175
      %v1177 = vpop.f32.mrf.mxu0
      %v1178 = vpop.f32.mrf.mxu0
      %v1179 = vadd.f32 0.0, %v1178
      %v1180 = vpop.f32.mrf.mxu0
      %1181 = vmatprep.mubr.bf16.mxu0 0
      %1182 = vmatmul.mubr.bf16.gmra.mxu0 %v1064
      %v1183 = vpop.f32.mrf.mxu0
      %v1184 = vadd.f32 0.0, %v1183
      %v1185 = vpop.f32.mrf.mxu0
      %v1186 = vpop.f32.mrf.mxu0
      %v1187 = vadd.f32 0.0, %v1186
      %v1188 = vpop.f32.mrf.mxu0
      %1189 = vmatprep.mubr.bf16.mxu0 0
      %1190 = vmatmul.mubr.bf16.gmra.mxu0 %v1067
      %v1191 = vpop.f32.mrf.mxu0
      %v1192 = vadd.f32 0.0, %v1191
      %v1193 = vpop.f32.mrf.mxu0
      %v1194 = vpop.f32.mrf.mxu0
      %v1195 = vadd.f32 0.0, %v1194
      %v1196 = vpop.f32.mrf.mxu0
      %1197 = vmatprep.mubr.bf16.mxu0 0
      %1198 = vmatmul.mubr.bf16.gmra.mxu0 %v1070
      %v1199 = vpop.f32.mrf.mxu0
      %v1200 = vadd.f32 0.0, %v1199
      %v1201 = vpop.f32.mrf.mxu0
      %v1202 = vpop.f32.mrf.mxu0
      %v1203 = vadd.f32 0.0, %v1202
      %v1204 = vpop.f32.mrf.mxu0
      %1205 = vmatprep.mubr.bf16.mxu0 0
      %1206 = vmatmul.mubr.bf16.gmra.mxu0 %v1073
      %v1207 = vpop.f32.mrf.mxu0
      %v1208 = vadd.f32 0.0, %v1207
      %v1209 = vpop.f32.mrf.mxu0
      %v1210 = vpop.f32.mrf.mxu0
      %v1211 = vadd.f32 0.0, %v1210
      %v1212 = vpop.f32.mrf.mxu0
      %1213 = vmatprep.mubr.bf16.mxu0 0
      %1214 = vmatmul.mubr.bf16.gmra.mxu0 %v1076
      %v1215 = vpop.f32.mrf.mxu0
      %v1216 = vadd.f32 0.0, %v1215
      %v1217 = vpop.f32.mrf.mxu0
      %v1218 = vpop.f32.mrf.mxu0
      %v1219 = vadd.f32 0.0, %v1218
      %v1220 = vpop.f32.mrf.mxu0
      %1221 = vmatprep.mubr.bf16.mxu0 0
      %1222 = vmatmul.mubr.bf16.gmra.mxu0 %v1079
      %v1223 = vpop.f32.mrf.mxu0
      %v1224 = vadd.f32 0.0, %v1223
      %v1225 = vpop.f32.mrf.mxu0
      %v1226 = vpop.f32.mrf.mxu0
      %v1227 = vadd.f32 0.0, %v1226
      %v1228 = vpop.f32.mrf.mxu0
      %1229 = vmatprep.mubr.bf16.mxu0 0
      %1230 = vmatmul.mubr.bf16.gmra.mxu0 %v1082
      %v1231 = vpop.f32.mrf.mxu0
      %v1232 = vadd.f32 0.0, %v1231
      %v1233 = vpop.f32.mrf.mxu0
      %v1234 = vpop.f32.mrf.mxu0
      %v1235 = vadd.f32 0.0, %v1234
      %v1236 = vpop.f32.mrf.mxu0
      %1237 = vmatprep.mubr.bf16.mxu0 0
      %1238 = vmatmul.mubr.bf16.gmra.mxu0 %v1085
      %v1239 = vpop.f32.mrf.mxu0
      %v1240 = vadd.f32 0.0, %v1239
      %v1241 = vpop.f32.mrf.mxu0
      %v1242 = vpop.f32.mrf.mxu0
      %v1243 = vadd.f32 0.0, %v1242
      %v1244 = vpop.f32.mrf.mxu0
      %1245 = vmatprep.mubr.bf16.mxu0 0
      %1246 = vmatmul.mubr.bf16.gmra.mxu0 %v1088
      %v1247 = vpop.f32.mrf.mxu0
      %v1248 = vadd.f32 0.0, %v1247
      %v1249 = vpop.f32.mrf.mxu0
      %v1250 = vpop.f32.mrf.mxu0
      %v1251 = vadd.f32 0.0, %v1250
      %v1252 = vpop.f32.mrf.mxu0
      %1253 = vdwg.mxu0
      %v1254 = vadd.f32 %v959, %v1128
      %v1255 = vadd.f32 %v960, %v1131
      %v1256 = vadd.f32 %v961, %v1136
      %v1257 = vadd.f32 %v962, %v1139
      %v1258 = vadd.f32 %v963, %v1144
      %v1259 = vadd.f32 %v964, %v1147
      %v1260 = vadd.f32 %v965, %v1152
      %v1261 = vadd.f32 %v966, %v1155
      %v1262 = vadd.f32 %v967, %v1160
      %v1263 = vadd.f32 %v968, %v1163
      %v1264 = vadd.f32 %v969, %v1168
      %v1265 = vadd.f32 %v970, %v1171
      %v1266 = vadd.f32 %v971, %v1176
      %v1267 = vadd.f32 %v972, %v1179
      %v1268 = vadd.f32 %v973, %v1184
      %v1269 = vadd.f32 %v974, %v1187
      %v1270 = vadd.f32 %v975, %v1192
      %v1271 = vadd.f32 %v976, %v1195
      %v1272 = vadd.f32 %v977, %v1200
      %v1273 = vadd.f32 %v978, %v1203
      %v1274 = vadd.f32 %v979, %v1208
      %v1275 = vadd.f32 %v980, %v1211
      %v1276 = vadd.f32 %v981, %v1216
      %v1277 = vadd.f32 %v982, %v1219
      %v1278 = vadd.f32 %v983, %v1224
      %v1279 = vadd.f32 %v984, %v1227
      %v1280 = vadd.f32 %v985, %v1232
      %v1281 = vadd.f32 %v986, %v1235
      %v1282 = vadd.f32 %v987, %v1240
      %v1283 = vadd.f32 %v988, %v1243
      %v1284 = vadd.f32 %v989, %v1248
      %v1285 = vadd.f32 %v990, %v1251
      %v1286 = vld [vmem:[%s991 + $0x1] sm:$0xff]
      %v1287 = vld [vmem:[%s991 + $0x9] sm:$0xff]
      %v1288 = vld [vmem:[%s991 + $0x19] sm:$0xff]
      %v1289 = vld [vmem:[%s991 + $0x21] sm:$0xff]
      %v1290 = vld [vmem:[%s991 + $0x31] sm:$0xff]
      %v1291 = vld [vmem:[%s991 + $0x39] sm:$0xff]
      %v1292 = vld [vmem:[%s991 + $0x49] sm:$0xff]
      %v1293 = vld [vmem:[%s991 + $0x51] sm:$0xff]
      %v1294 = vld [vmem:[%s991 + $0x61] sm:$0xff]
      %v1295 = vld [vmem:[%s991 + $0x69] sm:$0xff]
      %v1296 = vld [vmem:[%s991 + $0x79] sm:$0xff]
      %v1297 = vld [vmem:[%s991 + $0x81] sm:$0xff]
      %v1298 = vld [vmem:[%s991 + $0x91] sm:$0xff]
      %v1299 = vld [vmem:[%s991 + $0x99] sm:$0xff]
      %v1300 = vld [vmem:[%s991 + $0xa9] sm:$0xff]
      %v1301 = vld [vmem:[%s991 + $0xb1] sm:$0xff]
      %v1302 = vld [vmem:[%s991 + $0xc1] sm:$0xff]
      %v1303 = vld [vmem:[%s991 + $0xc9] sm:$0xff]
      %v1304 = vld [vmem:[%s991 + $0xd9] sm:$0xff]
      %v1305 = vld [vmem:[%s991 + $0xe1] sm:$0xff]
      %v1306 = vld [vmem:[%s991 + $0xf1] sm:$0xff]
      %v1307 = vld [vmem:[%s991 + $0xf9] sm:$0xff]
      %v1308 = vld [vmem:[%s991 + $0x109] sm:$0xff]
      %v1309 = vld [vmem:[%s991 + $0x111] sm:$0xff]
      %v1310 = vld [vmem:[%s991 + $0x121] sm:$0xff]
      %v1311 = vld [vmem:[%s991 + $0x129] sm:$0xff]
      %v1312 = vld [vmem:[%s991 + $0x139] sm:$0xff]
      %v1313 = vld [vmem:[%s991 + $0x141] sm:$0xff]
      %v1314 = vld [vmem:[%s991 + $0x151] sm:$0xff]
      %v1315 = vld [vmem:[%s991 + $0x159] sm:$0xff]
      %v1316 = vld [vmem:[%s991 + $0x169] sm:$0xff]
      %v1317 = vld [vmem:[%s991 + $0x171] sm:$0xff]
      %v1318 = vpack.c.bf16 %v1287, %v1286
      %v1319 = vpack.c.bf16 %v1289, %v1288
      %v1320 = vpack.c.bf16 %v1291, %v1290
      %v1321 = vpack.c.bf16 %v1293, %v1292
      %v1322 = vpack.c.bf16 %v1295, %v1294
      %v1323 = vpack.c.bf16 %v1297, %v1296
      %v1324 = vpack.c.bf16 %v1299, %v1298
      %v1325 = vpack.c.bf16 %v1301, %v1300
      %v1326 = vpack.c.bf16 %v1303, %v1302
      %v1327 = vpack.c.bf16 %v1305, %v1304
      %v1328 = vpack.c.bf16 %v1307, %v1306
      %v1329 = vpack.c.bf16 %v1309, %v1308
      %v1330 = vpack.c.bf16 %v1311, %v1310
      %v1331 = vpack.c.bf16 %v1313, %v1312
      %v1332 = vpack.c.bf16 %v1315, %v1314
      %v1333 = vpack.c.bf16 %v1317, %v1316
      %s1334 = scalar_lea.vmem %s1, 8
      %v1335 = vld [vmem:[%s1334] sm:$0x3]
      %v1337 = vsel %vm271, %v1318, 0
      %v1340 = vsel %vm271, %v1319, 0
      %v1343 = vsel %vm271, %v1320, 0
      %v1346 = vsel %vm271, %v1321, 0
      %v1349 = vsel %vm271, %v1322, 0
      %v1352 = vsel %vm271, %v1323, 0
      %v1355 = vsel %vm271, %v1324, 0
      %v1358 = vsel %vm271, %v1325, 0
      %v1361 = vsel %vm271, %v1326, 0
      %v1364 = vsel %vm271, %v1327, 0
      %v1367 = vsel %vm271, %v1328, 0
      %v1370 = vsel %vm271, %v1329, 0
      %v1373 = vsel %vm271, %v1330, 0
      %v1376 = vsel %vm271, %v1331, 0
      %v1379 = vsel %vm271, %v1332, 0
      %v1382 = vsel %vm271, %v1333, 0
      %v1385 = vsel %vm320, %v1335, 0
      %1387 = vmatprep.subr.bf16.mxu0 0
      %1388 = vmatpush1.bf16.msra.mxu0 0
      %1389 = vmatprep.subr.bf16.mxu0 0
      %1390 = vmatpush1.bf16.msra.mxu0 0
      %1391 = vmatprep.subr.bf16.mxu0 0
      %1392 = vmatpush1.bf16.msra.mxu0 0
      %1393 = vmatprep.subr.bf16.mxu0 0
      %1394 = vmatpush1.bf16.msra.mxu0 0
      %1395 = vmatprep.subr.bf16.mxu0 0
      %1396 = vmatpush1.bf16.msra.mxu0 0
      %1397 = vmatprep.subr.bf16.mxu0 0
      %1398 = vmatpush1.bf16.msra.mxu0 0
      %1399 = vmatprep.subr.bf16.mxu0 0
      %1400 = vmatpush1.bf16.msra.mxu0 0
      %1401 = vmatprep.subr.bf16.mxu0 0
      %1402 = vmatpush1.bf16.msra.mxu0 %v1385
      %1403 = vmatprep.subr.bf16.mxu0 0
      %1404 = vmatpush2.bf16.msra.mxu0 0
      %1405 = vmatprep.subr.bf16.mxu0 0
      %1406 = vmatpush2.bf16.msra.mxu0 0
      %1407 = vmatprep.subr.bf16.mxu0 0
      %1408 = vmatpush2.bf16.msra.mxu0 0
      %1409 = vmatprep.subr.bf16.mxu0 0
      %1410 = vmatpush2.bf16.msra.mxu0 0
      %1411 = vmatprep.subr.bf16.mxu0 0
      %1412 = vmatpush2.bf16.msra.mxu0 0
      %1413 = vmatprep.subr.bf16.mxu0 0
      %1414 = vmatpush2.bf16.msra.mxu0 0
      %1415 = vmatprep.subr.bf16.mxu0 0
      %1416 = vmatpush2.bf16.msra.mxu0 0
      %1417 = vmatprep.subr.bf16.mxu0 0
      %1418 = vmatpush2.bf16.msra.mxu0 0
      %1419 = vmatprep.mubr.bf16.mxu0 0
      %1420 = vmatmul.mubr.bf16.gmra.mxu0 %v1337
      %v1421 = vpop.f32.mrf.mxu0
      %v1422 = vadd.f32 0.0, %v1421
      %v1423 = vpop.f32.mrf.mxu0
      %v1424 = vpop.f32.mrf.mxu0
      %v1425 = vadd.f32 0.0, %v1424
      %v1426 = vpop.f32.mrf.mxu0
      %1427 = vmatprep.mubr.bf16.mxu0 0
      %1428 = vmatmul.mubr.bf16.gmra.mxu0 %v1340
      %v1429 = vpop.f32.mrf.mxu0
      %v1430 = vadd.f32 0.0, %v1429
      %v1431 = vpop.f32.mrf.mxu0
      %v1432 = vpop.f32.mrf.mxu0
      %v1433 = vadd.f32 0.0, %v1432
      %v1434 = vpop.f32.mrf.mxu0
      %1435 = vmatprep.mubr.bf16.mxu0 0
      %1436 = vmatmul.mubr.bf16.gmra.mxu0 %v1343
      %v1437 = vpop.f32.mrf.mxu0
      %v1438 = vadd.f32 0.0, %v1437
      %v1439 = vpop.f32.mrf.mxu0
      %v1440 = vpop.f32.mrf.mxu0
      %v1441 = vadd.f32 0.0, %v1440
      %v1442 = vpop.f32.mrf.mxu0
      %1443 = vmatprep.mubr.bf16.mxu0 0
      %1444 = vmatmul.mubr.bf16.gmra.mxu0 %v1346
      %v1445 = vpop.f32.mrf.mxu0
      %v1446 = vadd.f32 0.0, %v1445
      %v1447 = vpop.f32.mrf.mxu0
      %v1448 = vpop.f32.mrf.mxu0
      %v1449 = vadd.f32 0.0, %v1448
      %v1450 = vpop.f32.mrf.mxu0
      %1451 = vmatprep.mubr.bf16.mxu0 0
      %1452 = vmatmul.mubr.bf16.gmra.mxu0 %v1349
      %v1453 = vpop.f32.mrf.mxu0
      %v1454 = vadd.f32 0.0, %v1453
      %v1455 = vpop.f32.mrf.mxu0
      %v1456 = vpop.f32.mrf.mxu0
      %v1457 = vadd.f32 0.0, %v1456
      %v1458 = vpop.f32.mrf.mxu0
      %1459 = vmatprep.mubr.bf16.mxu0 0
      %1460 = vmatmul.mubr.bf16.gmra.mxu0 %v1352
      %v1461 = vpop.f32.mrf.mxu0
      %v1462 = vadd.f32 0.0, %v1461
      %v1463 = vpop.f32.mrf.mxu0
      %v1464 = vpop.f32.mrf.mxu0
      %v1465 = vadd.f32 0.0, %v1464
      %v1466 = vpop.f32.mrf.mxu0
      %1467 = vmatprep.mubr.bf16.mxu0 0
      %1468 = vmatmul.mubr.bf16.gmra.mxu0 %v1355
      %v1469 = vpop.f32.mrf.mxu0
      %v1470 = vadd.f32 0.0, %v1469
      %v1471 = vpop.f32.mrf.mxu0
      %v1472 = vpop.f32.mrf.mxu0
      %v1473 = vadd.f32 0.0, %v1472
      %v1474 = vpop.f32.mrf.mxu0
      %1475 = vmatprep.mubr.bf16.mxu0 0
      %1476 = vmatmul.mubr.bf16.gmra.mxu0 %v1358
      %v1477 = vpop.f32.mrf.mxu0
      %v1478 = vadd.f32 0.0, %v1477
      %v1479 = vpop.f32.mrf.mxu0
      %v1480 = vpop.f32.mrf.mxu0
      %v1481 = vadd.f32 0.0, %v1480
      %v1482 = vpop.f32.mrf.mxu0
      %1483 = vmatprep.mubr.bf16.mxu0 0
      %1484 = vmatmul.mubr.bf16.gmra.mxu0 %v1361
      %v1485 = vpop.f32.mrf.mxu0
      %v1486 = vadd.f32 0.0, %v1485
      %v1487 = vpop.f32.mrf.mxu0
      %v1488 = vpop.f32.mrf.mxu0
      %v1489 = vadd.f32 0.0, %v1488
      %v1490 = vpop.f32.mrf.mxu0
      %1491 = vmatprep.mubr.bf16.mxu0 0
      %1492 = vmatmul.mubr.bf16.gmra.mxu0 %v1364
      %v1493 = vpop.f32.mrf.mxu0
      %v1494 = vadd.f32 0.0, %v1493
      %v1495 = vpop.f32.mrf.mxu0
      %v1496 = vpop.f32.mrf.mxu0
      %v1497 = vadd.f32 0.0, %v1496
      %v1498 = vpop.f32.mrf.mxu0
      %1499 = vmatprep.mubr.bf16.mxu0 0
      %1500 = vmatmul.mubr.bf16.gmra.mxu0 %v1367
      %v1501 = vpop.f32.mrf.mxu0
      %v1502 = vadd.f32 0.0, %v1501
      %v1503 = vpop.f32.mrf.mxu0
      %v1504 = vpop.f32.mrf.mxu0
      %v1505 = vadd.f32 0.0, %v1504
      %v1506 = vpop.f32.mrf.mxu0
      %1507 = vmatprep.mubr.bf16.mxu0 0
      %1508 = vmatmul.mubr.bf16.gmra.mxu0 %v1370
      %v1509 = vpop.f32.mrf.mxu0
      %v1510 = vadd.f32 0.0, %v1509
      %v1511 = vpop.f32.mrf.mxu0
      %v1512 = vpop.f32.mrf.mxu0
      %v1513 = vadd.f32 0.0, %v1512
      %v1514 = vpop.f32.mrf.mxu0
      %1515 = vmatprep.mubr.bf16.mxu0 0
      %1516 = vmatmul.mubr.bf16.gmra.mxu0 %v1373
      %v1517 = vpop.f32.mrf.mxu0
      %v1518 = vadd.f32 0.0, %v1517
      %v1519 = vpop.f32.mrf.mxu0
      %v1520 = vpop.f32.mrf.mxu0
      %v1521 = vadd.f32 0.0, %v1520
      %v1522 = vpop.f32.mrf.mxu0
      %1523 = vmatprep.mubr.bf16.mxu0 0
      %1524 = vmatmul.mubr.bf16.gmra.mxu0 %v1376
      %v1525 = vpop.f32.mrf.mxu0
      %v1526 = vadd.f32 0.0, %v1525
      %v1527 = vpop.f32.mrf.mxu0
      %v1528 = vpop.f32.mrf.mxu0
      %v1529 = vadd.f32 0.0, %v1528
      %v1530 = vpop.f32.mrf.mxu0
      %1531 = vmatprep.mubr.bf16.mxu0 0
      %1532 = vmatmul.mubr.bf16.gmra.mxu0 %v1379
      %v1533 = vpop.f32.mrf.mxu0
      %v1534 = vadd.f32 0.0, %v1533
      %v1535 = vpop.f32.mrf.mxu0
      %v1536 = vpop.f32.mrf.mxu0
      %v1537 = vadd.f32 0.0, %v1536
      %v1538 = vpop.f32.mrf.mxu0
      %1539 = vmatprep.mubr.bf16.mxu0 0
      %1540 = vmatmul.mubr.bf16.gmra.mxu0 %v1382
      %v1541 = vpop.f32.mrf.mxu0
      %v1542 = vadd.f32 0.0, %v1541
      %v1543 = vpop.f32.mrf.mxu0
      %v1544 = vpop.f32.mrf.mxu0
      %v1545 = vadd.f32 0.0, %v1544
      %v1546 = vpop.f32.mrf.mxu0
      %1547 = vdwg.mxu0
      %v1548 = vadd.f32 %v1254, %v1422
      %v1549 = vadd.f32 %v1255, %v1425
      %v1550 = vadd.f32 %v1256, %v1430
      %v1551 = vadd.f32 %v1257, %v1433
      %v1552 = vadd.f32 %v1258, %v1438
      %v1553 = vadd.f32 %v1259, %v1441
      %v1554 = vadd.f32 %v1260, %v1446
      %v1555 = vadd.f32 %v1261, %v1449
      %v1556 = vadd.f32 %v1262, %v1454
      %v1557 = vadd.f32 %v1263, %v1457
      %v1558 = vadd.f32 %v1264, %v1462
      %v1559 = vadd.f32 %v1265, %v1465
      %v1560 = vadd.f32 %v1266, %v1470
      %v1561 = vadd.f32 %v1267, %v1473
      %v1562 = vadd.f32 %v1268, %v1478
      %v1563 = vadd.f32 %v1269, %v1481
      %v1564 = vadd.f32 %v1270, %v1486
      %v1565 = vadd.f32 %v1271, %v1489
      %v1566 = vadd.f32 %v1272, %v1494
      %v1567 = vadd.f32 %v1273, %v1497
      %v1568 = vadd.f32 %v1274, %v1502
      %v1569 = vadd.f32 %v1275, %v1505
      %v1570 = vadd.f32 %v1276, %v1510
      %v1571 = vadd.f32 %v1277, %v1513
      %v1572 = vadd.f32 %v1278, %v1518
      %v1573 = vadd.f32 %v1279, %v1521
      %v1574 = vadd.f32 %v1280, %v1526
      %v1575 = vadd.f32 %v1281, %v1529
      %v1576 = vadd.f32 %v1282, %v1534
      %v1577 = vadd.f32 %v1283, %v1537
      %v1578 = vadd.f32 %v1284, %v1542
      %v1579 = vadd.f32 %v1285, %v1545
      %v1580 = vld [vmem:[%s991 + $0x2] sm:$0xff]
      %v1581 = vld [vmem:[%s991 + $0xa] sm:$0xff]
      %v1582 = vld [vmem:[%s991 + $0x1a] sm:$0xff]
      %v1583 = vld [vmem:[%s991 + $0x22] sm:$0xff]
      %v1584 = vld [vmem:[%s991 + $0x32] sm:$0xff]
      %v1585 = vld [vmem:[%s991 + $0x3a] sm:$0xff]
      %v1586 = vld [vmem:[%s991 + $0x4a] sm:$0xff]
      %v1587 = vld [vmem:[%s991 + $0x52] sm:$0xff]
      %v1588 = vld [vmem:[%s991 + $0x62] sm:$0xff]
      %v1589 = vld [vmem:[%s991 + $0x6a] sm:$0xff]
      %v1590 = vld [vmem:[%s991 + $0x7a] sm:$0xff]
      %v1591 = vld [vmem:[%s991 + $0x82] sm:$0xff]
      %v1592 = vld [vmem:[%s991 + $0x92] sm:$0xff]
      %v1593 = vld [vmem:[%s991 + $0x9a] sm:$0xff]
      %v1594 = vld [vmem:[%s991 + $0xaa] sm:$0xff]
      %v1595 = vld [vmem:[%s991 + $0xb2] sm:$0xff]
      %v1596 = vld [vmem:[%s991 + $0xc2] sm:$0xff]
      %v1597 = vld [vmem:[%s991 + $0xca] sm:$0xff]
      %v1598 = vld [vmem:[%s991 + $0xda] sm:$0xff]
      %v1599 = vld [vmem:[%s991 + $0xe2] sm:$0xff]
      %v1600 = vld [vmem:[%s991 + $0xf2] sm:$0xff]
      %v1601 = vld [vmem:[%s991 + $0xfa] sm:$0xff]
      %v1602 = vld [vmem:[%s991 + $0x10a] sm:$0xff]
      %v1603 = vld [vmem:[%s991 + $0x112] sm:$0xff]
      %v1604 = vld [vmem:[%s991 + $0x122] sm:$0xff]
      %v1605 = vld [vmem:[%s991 + $0x12a] sm:$0xff]
      %v1606 = vld [vmem:[%s991 + $0x13a] sm:$0xff]
      %v1607 = vld [vmem:[%s991 + $0x142] sm:$0xff]
      %v1608 = vld [vmem:[%s991 + $0x152] sm:$0xff]
      %v1609 = vld [vmem:[%s991 + $0x15a] sm:$0xff]
      %v1610 = vld [vmem:[%s991 + $0x16a] sm:$0xff]
      %v1611 = vld [vmem:[%s991 + $0x172] sm:$0xff]
      %v1612 = vpack.c.bf16 %v1581, %v1580
      %v1613 = vpack.c.bf16 %v1583, %v1582
      %v1614 = vpack.c.bf16 %v1585, %v1584
      %v1615 = vpack.c.bf16 %v1587, %v1586
      %v1616 = vpack.c.bf16 %v1589, %v1588
      %v1617 = vpack.c.bf16 %v1591, %v1590
      %v1618 = vpack.c.bf16 %v1593, %v1592
      %v1619 = vpack.c.bf16 %v1595, %v1594
      %v1620 = vpack.c.bf16 %v1597, %v1596
      %v1621 = vpack.c.bf16 %v1599, %v1598
      %v1622 = vpack.c.bf16 %v1601, %v1600
      %v1623 = vpack.c.bf16 %v1603, %v1602
      %v1624 = vpack.c.bf16 %v1605, %v1604
      %v1625 = vpack.c.bf16 %v1607, %v1606
      %v1626 = vpack.c.bf16 %v1609, %v1608
      %v1627 = vpack.c.bf16 %v1611, %v1610
      %s1628 = scalar_lea.vmem %s1, 10
      %v1629 = vld [vmem:[%s1628] sm:$0x3]
      %v1631 = vsel %vm271, %v1612, 0
      %v1634 = vsel %vm271, %v1613, 0
      %v1637 = vsel %vm271, %v1614, 0
      %v1640 = vsel %vm271, %v1615, 0
      %v1643 = vsel %vm271, %v1616, 0
      %v1646 = vsel %vm271, %v1617, 0
      %v1649 = vsel %vm271, %v1618, 0
      %v1652 = vsel %vm271, %v1619, 0
      %v1655 = vsel %vm271, %v1620, 0
      %v1658 = vsel %vm271, %v1621, 0
      %v1661 = vsel %vm271, %v1622, 0
      %v1664 = vsel %vm271, %v1623, 0
      %v1667 = vsel %vm271, %v1624, 0
      %v1670 = vsel %vm271, %v1625, 0
      %v1673 = vsel %vm271, %v1626, 0
      %v1676 = vsel %vm271, %v1627, 0
      %v1679 = vsel %vm320, %v1629, 0
      %1681 = vmatprep.subr.bf16.mxu0 0
      %1682 = vmatpush1.bf16.msra.mxu0 0
      %1683 = vmatprep.subr.bf16.mxu0 0
      %1684 = vmatpush1.bf16.msra.mxu0 0
      %1685 = vmatprep.subr.bf16.mxu0 0
      %1686 = vmatpush1.bf16.msra.mxu0 0
      %1687 = vmatprep.subr.bf16.mxu0 0
      %1688 = vmatpush1.bf16.msra.mxu0 0
      %1689 = vmatprep.subr.bf16.mxu0 0
      %1690 = vmatpush1.bf16.msra.mxu0 0
      %1691 = vmatprep.subr.bf16.mxu0 0
      %1692 = vmatpush1.bf16.msra.mxu0 0
      %1693 = vmatprep.subr.bf16.mxu0 0
      %1694 = vmatpush1.bf16.msra.mxu0 0
      %1695 = vmatprep.subr.bf16.mxu0 0
      %1696 = vmatpush1.bf16.msra.mxu0 %v1679
      %1697 = vmatprep.subr.bf16.mxu0 0
      %1698 = vmatpush2.bf16.msra.mxu0 0
      %1699 = vmatprep.subr.bf16.mxu0 0
      %1700 = vmatpush2.bf16.msra.mxu0 0
      %1701 = vmatprep.subr.bf16.mxu0 0
      %1702 = vmatpush2.bf16.msra.mxu0 0
      %1703 = vmatprep.subr.bf16.mxu0 0
      %1704 = vmatpush2.bf16.msra.mxu0 0
      %1705 = vmatprep.subr.bf16.mxu0 0
      %1706 = vmatpush2.bf16.msra.mxu0 0
      %1707 = vmatprep.subr.bf16.mxu0 0
      %1708 = vmatpush2.bf16.msra.mxu0 0
      %1709 = vmatprep.subr.bf16.mxu0 0
      %1710 = vmatpush2.bf16.msra.mxu0 0
      %1711 = vmatprep.subr.bf16.mxu0 0
      %1712 = vmatpush2.bf16.msra.mxu0 0
      %1713 = vmatprep.mubr.bf16.mxu0 0
      %1714 = vmatmul.mubr.bf16.gmra.mxu0 %v1631
      %v1715 = vpop.f32.mrf.mxu0
      %v1716 = vadd.f32 0.0, %v1715
      %v1717 = vpop.f32.mrf.mxu0
      %v1718 = vpop.f32.mrf.mxu0
      %v1719 = vadd.f32 0.0, %v1718
      %v1720 = vpop.f32.mrf.mxu0
      %1721 = vmatprep.mubr.bf16.mxu0 0
      %1722 = vmatmul.mubr.bf16.gmra.mxu0 %v1634
      %v1723 = vpop.f32.mrf.mxu0
      %v1724 = vadd.f32 0.0, %v1723
      %v1725 = vpop.f32.mrf.mxu0
      %v1726 = vpop.f32.mrf.mxu0
      %v1727 = vadd.f32 0.0, %v1726
      %v1728 = vpop.f32.mrf.mxu0
      %1729 = vmatprep.mubr.bf16.mxu0 0
      %1730 = vmatmul.mubr.bf16.gmra.mxu0 %v1637
      %v1731 = vpop.f32.mrf.mxu0
      %v1732 = vadd.f32 0.0, %v1731
      %v1733 = vpop.f32.mrf.mxu0
      %v1734 = vpop.f32.mrf.mxu0
      %v1735 = vadd.f32 0.0, %v1734
      %v1736 = vpop.f32.mrf.mxu0
      %1737 = vmatprep.mubr.bf16.mxu0 0
      %1738 = vmatmul.mubr.bf16.gmra.mxu0 %v1640
      %v1739 = vpop.f32.mrf.mxu0
      %v1740 = vadd.f32 0.0, %v1739
      %v1741 = vpop.f32.mrf.mxu0
      %v1742 = vpop.f32.mrf.mxu0
      %v1743 = vadd.f32 0.0, %v1742
      %v1744 = vpop.f32.mrf.mxu0
      %1745 = vmatprep.mubr.bf16.mxu0 0
      %1746 = vmatmul.mubr.bf16.gmra.mxu0 %v1643
      %v1747 = vpop.f32.mrf.mxu0
      %v1748 = vadd.f32 0.0, %v1747
      %v1749 = vpop.f32.mrf.mxu0
      %v1750 = vpop.f32.mrf.mxu0
      %v1751 = vadd.f32 0.0, %v1750
      %v1752 = vpop.f32.mrf.mxu0
      %1753 = vmatprep.mubr.bf16.mxu0 0
      %1754 = vmatmul.mubr.bf16.gmra.mxu0 %v1646
      %v1755 = vpop.f32.mrf.mxu0
      %v1756 = vadd.f32 0.0, %v1755
      %v1757 = vpop.f32.mrf.mxu0
      %v1758 = vpop.f32.mrf.mxu0
      %v1759 = vadd.f32 0.0, %v1758
      %v1760 = vpop.f32.mrf.mxu0
      %1761 = vmatprep.mubr.bf16.mxu0 0
      %1762 = vmatmul.mubr.bf16.gmra.mxu0 %v1649
      %v1763 = vpop.f32.mrf.mxu0
      %v1764 = vadd.f32 0.0, %v1763
      %v1765 = vpop.f32.mrf.mxu0
      %v1766 = vpop.f32.mrf.mxu0
      %v1767 = vadd.f32 0.0, %v1766
      %v1768 = vpop.f32.mrf.mxu0
      %1769 = vmatprep.mubr.bf16.mxu0 0
      %1770 = vmatmul.mubr.bf16.gmra.mxu0 %v1652
      %v1771 = vpop.f32.mrf.mxu0
      %v1772 = vadd.f32 0.0, %v1771
      %v1773 = vpop.f32.mrf.mxu0
      %v1774 = vpop.f32.mrf.mxu0
      %v1775 = vadd.f32 0.0, %v1774
      %v1776 = vpop.f32.mrf.mxu0
      %1777 = vmatprep.mubr.bf16.mxu0 0
      %1778 = vmatmul.mubr.bf16.gmra.mxu0 %v1655
      %v1779 = vpop.f32.mrf.mxu0
      %v1780 = vadd.f32 0.0, %v1779
      %v1781 = vpop.f32.mrf.mxu0
      %v1782 = vpop.f32.mrf.mxu0
      %v1783 = vadd.f32 0.0, %v1782
      %v1784 = vpop.f32.mrf.mxu0
      %1785 = vmatprep.mubr.bf16.mxu0 0
      %1786 = vmatmul.mubr.bf16.gmra.mxu0 %v1658
      %v1787 = vpop.f32.mrf.mxu0
      %v1788 = vadd.f32 0.0, %v1787
      %v1789 = vpop.f32.mrf.mxu0
      %v1790 = vpop.f32.mrf.mxu0
      %v1791 = vadd.f32 0.0, %v1790
      %v1792 = vpop.f32.mrf.mxu0
      %1793 = vmatprep.mubr.bf16.mxu0 0
      %1794 = vmatmul.mubr.bf16.gmra.mxu0 %v1661
      %v1795 = vpop.f32.mrf.mxu0
      %v1796 = vadd.f32 0.0, %v1795
      %v1797 = vpop.f32.mrf.mxu0
      %v1798 = vpop.f32.mrf.mxu0
      %v1799 = vadd.f32 0.0, %v1798
      %v1800 = vpop.f32.mrf.mxu0
      %1801 = vmatprep.mubr.bf16.mxu0 0
      %1802 = vmatmul.mubr.bf16.gmra.mxu0 %v1664
      %v1803 = vpop.f32.mrf.mxu0
      %v1804 = vadd.f32 0.0, %v1803
      %v1805 = vpop.f32.mrf.mxu0
      %v1806 = vpop.f32.mrf.mxu0
      %v1807 = vadd.f32 0.0, %v1806
      %v1808 = vpop.f32.mrf.mxu0
      %1809 = vmatprep.mubr.bf16.mxu0 0
      %1810 = vmatmul.mubr.bf16.gmra.mxu0 %v1667
      %v1811 = vpop.f32.mrf.mxu0
      %v1812 = vadd.f32 0.0, %v1811
      %v1813 = vpop.f32.mrf.mxu0
      %v1814 = vpop.f32.mrf.mxu0
      %v1815 = vadd.f32 0.0, %v1814
      %v1816 = vpop.f32.mrf.mxu0
      %1817 = vmatprep.mubr.bf16.mxu0 0
      %1818 = vmatmul.mubr.bf16.gmra.mxu0 %v1670
      %v1819 = vpop.f32.mrf.mxu0
      %v1820 = vadd.f32 0.0, %v1819
      %v1821 = vpop.f32.mrf.mxu0
      %v1822 = vpop.f32.mrf.mxu0
      %v1823 = vadd.f32 0.0, %v1822
      %v1824 = vpop.f32.mrf.mxu0
      %1825 = vmatprep.mubr.bf16.mxu0 0
      %1826 = vmatmul.mubr.bf16.gmra.mxu0 %v1673
      %v1827 = vpop.f32.mrf.mxu0
      %v1828 = vadd.f32 0.0, %v1827
      %v1829 = vpop.f32.mrf.mxu0
      %v1830 = vpop.f32.mrf.mxu0
      %v1831 = vadd.f32 0.0, %v1830
      %v1832 = vpop.f32.mrf.mxu0
      %1833 = vmatprep.mubr.bf16.mxu0 0
      %1834 = vmatmul.mubr.bf16.gmra.mxu0 %v1676
      %v1835 = vpop.f32.mrf.mxu0
      %v1836 = vadd.f32 0.0, %v1835
      %v1837 = vpop.f32.mrf.mxu0
      %v1838 = vpop.f32.mrf.mxu0
      %v1839 = vadd.f32 0.0, %v1838
      %v1840 = vpop.f32.mrf.mxu0
      %1841 = vdwg.mxu0
      %v1842 = vadd.f32 %v1548, %v1716
      %v1843 = vadd.f32 %v1549, %v1719
      %v1844 = vadd.f32 %v1550, %v1724
      %v1845 = vadd.f32 %v1551, %v1727
      %v1846 = vadd.f32 %v1552, %v1732
      %v1847 = vadd.f32 %v1553, %v1735
      %v1848 = vadd.f32 %v1554, %v1740
      %v1849 = vadd.f32 %v1555, %v1743
      %v1850 = vadd.f32 %v1556, %v1748
      %v1851 = vadd.f32 %v1557, %v1751
      %v1852 = vadd.f32 %v1558, %v1756
      %v1853 = vadd.f32 %v1559, %v1759
      %v1854 = vadd.f32 %v1560, %v1764
      %v1855 = vadd.f32 %v1561, %v1767
      %v1856 = vadd.f32 %v1562, %v1772
      %v1857 = vadd.f32 %v1563, %v1775
      %v1858 = vadd.f32 %v1564, %v1780
      %v1859 = vadd.f32 %v1565, %v1783
      %v1860 = vadd.f32 %v1566, %v1788
      %v1861 = vadd.f32 %v1567, %v1791
      %v1862 = vadd.f32 %v1568, %v1796
      %v1863 = vadd.f32 %v1569, %v1799
      %v1864 = vadd.f32 %v1570, %v1804
      %v1865 = vadd.f32 %v1571, %v1807
      %v1866 = vadd.f32 %v1572, %v1812
      %v1867 = vadd.f32 %v1573, %v1815
      %v1868 = vadd.f32 %v1574, %v1820
      %v1869 = vadd.f32 %v1575, %v1823
      %v1870 = vadd.f32 %v1576, %v1828
      %v1871 = vadd.f32 %v1577, %v1831
      %v1872 = vadd.f32 %v1578, %v1836
      %v1873 = vadd.f32 %v1579, %v1839
      %s1874 = scalar_lea.vmem %s165, 48
      %v1875 = vld [vmem:[%s1874] sm:$0xff]
      %v1876 = vld [vmem:[%s1874 + $0x8] sm:$0xff]
      %v1877 = vld [vmem:[%s1874 + $0x18] sm:$0xff]
      %v1878 = vld [vmem:[%s1874 + $0x20] sm:$0xff]
      %v1879 = vld [vmem:[%s1874 + $0x30] sm:$0xff]
      %v1880 = vld [vmem:[%s1874 + $0x38] sm:$0xff]
      %v1881 = vld [vmem:[%s1874 + $0x48] sm:$0xff]
      %v1882 = vld [vmem:[%s1874 + $0x50] sm:$0xff]
      %v1883 = vld [vmem:[%s1874 + $0x60] sm:$0xff]
      %v1884 = vld [vmem:[%s1874 + $0x68] sm:$0xff]
      %v1885 = vld [vmem:[%s1874 + $0x78] sm:$0xff]
      %v1886 = vld [vmem:[%s1874 + $0x80] sm:$0xff]
      %v1887 = vld [vmem:[%s1874 + $0x90] sm:$0xff]
      %v1888 = vld [vmem:[%s1874 + $0x98] sm:$0xff]
      %v1889 = vld [vmem:[%s1874 + $0xa8] sm:$0xff]
      %v1890 = vld [vmem:[%s1874 + $0xb0] sm:$0xff]
      %v1891 = vld [vmem:[%s1874 + $0xc0] sm:$0xff]
      %v1892 = vld [vmem:[%s1874 + $0xc8] sm:$0xff]
      %v1893 = vld [vmem:[%s1874 + $0xd8] sm:$0xff]
      %v1894 = vld [vmem:[%s1874 + $0xe0] sm:$0xff]
      %v1895 = vld [vmem:[%s1874 + $0xf0] sm:$0xff]
      %v1896 = vld [vmem:[%s1874 + $0xf8] sm:$0xff]
      %v1897 = vld [vmem:[%s1874 + $0x108] sm:$0xff]
      %v1898 = vld [vmem:[%s1874 + $0x110] sm:$0xff]
      %v1899 = vld [vmem:[%s1874 + $0x120] sm:$0xff]
      %v1900 = vld [vmem:[%s1874 + $0x128] sm:$0xff]
      %v1901 = vld [vmem:[%s1874 + $0x138] sm:$0xff]
      %v1902 = vld [vmem:[%s1874 + $0x140] sm:$0xff]
      %v1903 = vld [vmem:[%s1874 + $0x150] sm:$0xff]
      %v1904 = vld [vmem:[%s1874 + $0x158] sm:$0xff]
      %v1905 = vld [vmem:[%s1874 + $0x168] sm:$0xff]
      %v1906 = vld [vmem:[%s1874 + $0x170] sm:$0xff]
      %v1907 = vpack.c.bf16 %v1876, %v1875
      %v1908 = vpack.c.bf16 %v1878, %v1877
      %v1909 = vpack.c.bf16 %v1880, %v1879
      %v1910 = vpack.c.bf16 %v1882, %v1881
      %v1911 = vpack.c.bf16 %v1884, %v1883
      %v1912 = vpack.c.bf16 %v1886, %v1885
      %v1913 = vpack.c.bf16 %v1888, %v1887
      %v1914 = vpack.c.bf16 %v1890, %v1889
      %v1915 = vpack.c.bf16 %v1892, %v1891
      %v1916 = vpack.c.bf16 %v1894, %v1893
      %v1917 = vpack.c.bf16 %v1896, %v1895
      %v1918 = vpack.c.bf16 %v1898, %v1897
      %v1919 = vpack.c.bf16 %v1900, %v1899
      %v1920 = vpack.c.bf16 %v1902, %v1901
      %v1921 = vpack.c.bf16 %v1904, %v1903
      %v1922 = vpack.c.bf16 %v1906, %v1905
      %s1923 = scalar_lea.vmem %s1, 12
      %v1924 = vld [vmem:[%s1923] sm:$0x3]
      %v1926 = vsel %vm271, %v1907, 0
      %v1929 = vsel %vm271, %v1908, 0
      %v1932 = vsel %vm271, %v1909, 0
      %v1935 = vsel %vm271, %v1910, 0
      %v1938 = vsel %vm271, %v1911, 0
      %v1941 = vsel %vm271, %v1912, 0
      %v1944 = vsel %vm271, %v1913, 0
      %v1947 = vsel %vm271, %v1914, 0
      %v1950 = vsel %vm271, %v1915, 0
      %v1953 = vsel %vm271, %v1916, 0
      %v1956 = vsel %vm271, %v1917, 0
      %v1959 = vsel %vm271, %v1918, 0
      %v1962 = vsel %vm271, %v1919, 0
      %v1965 = vsel %vm271, %v1920, 0
      %v1968 = vsel %vm271, %v1921, 0
      %v1971 = vsel %vm271, %v1922, 0
      %v1974 = vsel %vm320, %v1924, 0
      %1976 = vmatprep.subr.bf16.mxu0 0
      %1977 = vmatpush1.bf16.msra.mxu0 0
      %1978 = vmatprep.subr.bf16.mxu0 0
      %1979 = vmatpush1.bf16.msra.mxu0 0
      %1980 = vmatprep.subr.bf16.mxu0 0
      %1981 = vmatpush1.bf16.msra.mxu0 0
      %1982 = vmatprep.subr.bf16.mxu0 0
      %1983 = vmatpush1.bf16.msra.mxu0 0
      %1984 = vmatprep.subr.bf16.mxu0 0
      %1985 = vmatpush1.bf16.msra.mxu0 0
      %1986 = vmatprep.subr.bf16.mxu0 0
      %1987 = vmatpush1.bf16.msra.mxu0 0
      %1988 = vmatprep.subr.bf16.mxu0 0
      %1989 = vmatpush1.bf16.msra.mxu0 0
      %1990 = vmatprep.subr.bf16.mxu0 0
      %1991 = vmatpush1.bf16.msra.mxu0 %v1974
      %1992 = vmatprep.subr.bf16.mxu0 0
      %1993 = vmatpush2.bf16.msra.mxu0 0
      %1994 = vmatprep.subr.bf16.mxu0 0
      %1995 = vmatpush2.bf16.msra.mxu0 0
      %1996 = vmatprep.subr.bf16.mxu0 0
      %1997 = vmatpush2.bf16.msra.mxu0 0
      %1998 = vmatprep.subr.bf16.mxu0 0
      %1999 = vmatpush2.bf16.msra.mxu0 0
      %2000 = vmatprep.subr.bf16.mxu0 0
      %2001 = vmatpush2.bf16.msra.mxu0 0
      %2002 = vmatprep.subr.bf16.mxu0 0
      %2003 = vmatpush2.bf16.msra.mxu0 0
      %2004 = vmatprep.subr.bf16.mxu0 0
      %2005 = vmatpush2.bf16.msra.mxu0 0
      %2006 = vmatprep.subr.bf16.mxu0 0
      %2007 = vmatpush2.bf16.msra.mxu0 0
      %2008 = vmatprep.mubr.bf16.mxu0 0
      %2009 = vmatmul.mubr.bf16.gmra.mxu0 %v1926
      %v2010 = vpop.f32.mrf.mxu0
      %v2011 = vadd.f32 0.0, %v2010
      %v2012 = vpop.f32.mrf.mxu0
      %v2013 = vpop.f32.mrf.mxu0
      %v2014 = vadd.f32 0.0, %v2013
      %v2015 = vpop.f32.mrf.mxu0
      %2016 = vmatprep.mubr.bf16.mxu0 0
      %2017 = vmatmul.mubr.bf16.gmra.mxu0 %v1929
      %v2018 = vpop.f32.mrf.mxu0
      %v2019 = vadd.f32 0.0, %v2018
      %v2020 = vpop.f32.mrf.mxu0
      %v2021 = vpop.f32.mrf.mxu0
      %v2022 = vadd.f32 0.0, %v2021
      %v2023 = vpop.f32.mrf.mxu0
      %2024 = vmatprep.mubr.bf16.mxu0 0
      %2025 = vmatmul.mubr.bf16.gmra.mxu0 %v1932
      %v2026 = vpop.f32.mrf.mxu0
      %v2027 = vadd.f32 0.0, %v2026
      %v2028 = vpop.f32.mrf.mxu0
      %v2029 = vpop.f32.mrf.mxu0
      %v2030 = vadd.f32 0.0, %v2029
      %v2031 = vpop.f32.mrf.mxu0
      %2032 = vmatprep.mubr.bf16.mxu0 0
      %2033 = vmatmul.mubr.bf16.gmra.mxu0 %v1935
      %v2034 = vpop.f32.mrf.mxu0
      %v2035 = vadd.f32 0.0, %v2034
      %v2036 = vpop.f32.mrf.mxu0
      %v2037 = vpop.f32.mrf.mxu0
      %v2038 = vadd.f32 0.0, %v2037
      %v2039 = vpop.f32.mrf.mxu0
      %2040 = vmatprep.mubr.bf16.mxu0 0
      %2041 = vmatmul.mubr.bf16.gmra.mxu0 %v1938
      %v2042 = vpop.f32.mrf.mxu0
      %v2043 = vadd.f32 0.0, %v2042
      %v2044 = vpop.f32.mrf.mxu0
      %v2045 = vpop.f32.mrf.mxu0
      %v2046 = vadd.f32 0.0, %v2045
      %v2047 = vpop.f32.mrf.mxu0
      %2048 = vmatprep.mubr.bf16.mxu0 0
      %2049 = vmatmul.mubr.bf16.gmra.mxu0 %v1941
      %v2050 = vpop.f32.mrf.mxu0
      %v2051 = vadd.f32 0.0, %v2050
      %v2052 = vpop.f32.mrf.mxu0
      %v2053 = vpop.f32.mrf.mxu0
      %v2054 = vadd.f32 0.0, %v2053
      %v2055 = vpop.f32.mrf.mxu0
      %2056 = vmatprep.mubr.bf16.mxu0 0
      %2057 = vmatmul.mubr.bf16.gmra.mxu0 %v1944
      %v2058 = vpop.f32.mrf.mxu0
      %v2059 = vadd.f32 0.0, %v2058
      %v2060 = vpop.f32.mrf.mxu0
      %v2061 = vpop.f32.mrf.mxu0
      %v2062 = vadd.f32 0.0, %v2061
      %v2063 = vpop.f32.mrf.mxu0
      %2064 = vmatprep.mubr.bf16.mxu0 0
      %2065 = vmatmul.mubr.bf16.gmra.mxu0 %v1947
      %v2066 = vpop.f32.mrf.mxu0
      %v2067 = vadd.f32 0.0, %v2066
      %v2068 = vpop.f32.mrf.mxu0
      %v2069 = vpop.f32.mrf.mxu0
      %v2070 = vadd.f32 0.0, %v2069
      %v2071 = vpop.f32.mrf.mxu0
      %2072 = vmatprep.mubr.bf16.mxu0 0
      %2073 = vmatmul.mubr.bf16.gmra.mxu0 %v1950
      %v2074 = vpop.f32.mrf.mxu0
      %v2075 = vadd.f32 0.0, %v2074
      %v2076 = vpop.f32.mrf.mxu0
      %v2077 = vpop.f32.mrf.mxu0
      %v2078 = vadd.f32 0.0, %v2077
      %v2079 = vpop.f32.mrf.mxu0
      %2080 = vmatprep.mubr.bf16.mxu0 0
      %2081 = vmatmul.mubr.bf16.gmra.mxu0 %v1953
      %v2082 = vpop.f32.mrf.mxu0
      %v2083 = vadd.f32 0.0, %v2082
      %v2084 = vpop.f32.mrf.mxu0
      %v2085 = vpop.f32.mrf.mxu0
      %v2086 = vadd.f32 0.0, %v2085
      %v2087 = vpop.f32.mrf.mxu0
      %2088 = vmatprep.mubr.bf16.mxu0 0
      %2089 = vmatmul.mubr.bf16.gmra.mxu0 %v1956
      %v2090 = vpop.f32.mrf.mxu0
      %v2091 = vadd.f32 0.0, %v2090
      %v2092 = vpop.f32.mrf.mxu0
      %v2093 = vpop.f32.mrf.mxu0
      %v2094 = vadd.f32 0.0, %v2093
      %v2095 = vpop.f32.mrf.mxu0
      %2096 = vmatprep.mubr.bf16.mxu0 0
      %2097 = vmatmul.mubr.bf16.gmra.mxu0 %v1959
      %v2098 = vpop.f32.mrf.mxu0
      %v2099 = vadd.f32 0.0, %v2098
      %v2100 = vpop.f32.mrf.mxu0
      %v2101 = vpop.f32.mrf.mxu0
      %v2102 = vadd.f32 0.0, %v2101
      %v2103 = vpop.f32.mrf.mxu0
      %2104 = vmatprep.mubr.bf16.mxu0 0
      %2105 = vmatmul.mubr.bf16.gmra.mxu0 %v1962
      %v2106 = vpop.f32.mrf.mxu0
      %v2107 = vadd.f32 0.0, %v2106
      %v2108 = vpop.f32.mrf.mxu0
      %v2109 = vpop.f32.mrf.mxu0
      %v2110 = vadd.f32 0.0, %v2109
      %v2111 = vpop.f32.mrf.mxu0
      %2112 = vmatprep.mubr.bf16.mxu0 0
      %2113 = vmatmul.mubr.bf16.gmra.mxu0 %v1965
      %v2114 = vpop.f32.mrf.mxu0
      %v2115 = vadd.f32 0.0, %v2114
      %v2116 = vpop.f32.mrf.mxu0
      %v2117 = vpop.f32.mrf.mxu0
      %v2118 = vadd.f32 0.0, %v2117
      %v2119 = vpop.f32.mrf.mxu0
      %2120 = vmatprep.mubr.bf16.mxu0 0
      %2121 = vmatmul.mubr.bf16.gmra.mxu0 %v1968
      %v2122 = vpop.f32.mrf.mxu0
      %v2123 = vadd.f32 0.0, %v2122
      %v2124 = vpop.f32.mrf.mxu0
      %v2125 = vpop.f32.mrf.mxu0
      %v2126 = vadd.f32 0.0, %v2125
      %v2127 = vpop.f32.mrf.mxu0
      %2128 = vmatprep.mubr.bf16.mxu0 0
      %2129 = vmatmul.mubr.bf16.gmra.mxu0 %v1971
      %v2130 = vpop.f32.mrf.mxu0
      %v2131 = vadd.f32 0.0, %v2130
      %v2132 = vpop.f32.mrf.mxu0
      %v2133 = vpop.f32.mrf.mxu0
      %v2134 = vadd.f32 0.0, %v2133
      %v2135 = vpop.f32.mrf.mxu0
      %2136 = vdwg.mxu0
      %v2137 = vadd.f32 %v1842, %v2011
      %v2138 = vadd.f32 %v1843, %v2014
      %v2139 = vadd.f32 %v1844, %v2019
      %v2140 = vadd.f32 %v1845, %v2022
      %v2141 = vadd.f32 %v1846, %v2027
      %v2142 = vadd.f32 %v1847, %v2030
      %v2143 = vadd.f32 %v1848, %v2035
      %v2144 = vadd.f32 %v1849, %v2038
      %v2145 = vadd.f32 %v1850, %v2043
      %v2146 = vadd.f32 %v1851, %v2046
      %v2147 = vadd.f32 %v1852, %v2051
      %v2148 = vadd.f32 %v1853, %v2054
      %v2149 = vadd.f32 %v1854, %v2059
      %v2150 = vadd.f32 %v1855, %v2062
      %v2151 = vadd.f32 %v1856, %v2067
      %v2152 = vadd.f32 %v1857, %v2070
      %v2153 = vadd.f32 %v1858, %v2075
      %v2154 = vadd.f32 %v1859, %v2078
      %v2155 = vadd.f32 %v1860, %v2083
      %v2156 = vadd.f32 %v1861, %v2086
      %v2157 = vadd.f32 %v1862, %v2091
      %v2158 = vadd.f32 %v1863, %v2094
      %v2159 = vadd.f32 %v1864, %v2099
      %v2160 = vadd.f32 %v1865, %v2102
      %v2161 = vadd.f32 %v1866, %v2107
      %v2162 = vadd.f32 %v1867, %v2110
      %v2163 = vadd.f32 %v1868, %v2115
      %v2164 = vadd.f32 %v1869, %v2118
      %v2165 = vadd.f32 %v1870, %v2123
      %v2166 = vadd.f32 %v1871, %v2126
      %v2167 = vadd.f32 %v1872, %v2131
      %v2168 = vadd.f32 %v1873, %v2134
      %v2169 = vld [vmem:[%s1874 + $0x1] sm:$0xff]
      %v2170 = vld [vmem:[%s1874 + $0x9] sm:$0xff]
      %v2171 = vld [vmem:[%s1874 + $0x19] sm:$0xff]
      %v2172 = vld [vmem:[%s1874 + $0x21] sm:$0xff]
      %v2173 = vld [vmem:[%s1874 + $0x31] sm:$0xff]
      %v2174 = vld [vmem:[%s1874 + $0x39] sm:$0xff]
      %v2175 = vld [vmem:[%s1874 + $0x49] sm:$0xff]
      %v2176 = vld [vmem:[%s1874 + $0x51] sm:$0xff]
      %v2177 = vld [vmem:[%s1874 + $0x61] sm:$0xff]
      %v2178 = vld [vmem:[%s1874 + $0x69] sm:$0xff]
      %v2179 = vld [vmem:[%s1874 + $0x79] sm:$0xff]
      %v2180 = vld [vmem:[%s1874 + $0x81] sm:$0xff]
      %v2181 = vld [vmem:[%s1874 + $0x91] sm:$0xff]
      %v2182 = vld [vmem:[%s1874 + $0x99] sm:$0xff]
      %v2183 = vld [vmem:[%s1874 + $0xa9] sm:$0xff]
      %v2184 = vld [vmem:[%s1874 + $0xb1] sm:$0xff]
      %v2185 = vld [vmem:[%s1874 + $0xc1] sm:$0xff]
      %v2186 = vld [vmem:[%s1874 + $0xc9] sm:$0xff]
      %v2187 = vld [vmem:[%s1874 + $0xd9] sm:$0xff]
      %v2188 = vld [vmem:[%s1874 + $0xe1] sm:$0xff]
      %v2189 = vld [vmem:[%s1874 + $0xf1] sm:$0xff]
      %v2190 = vld [vmem:[%s1874 + $0xf9] sm:$0xff]
      %v2191 = vld [vmem:[%s1874 + $0x109] sm:$0xff]
      %v2192 = vld [vmem:[%s1874 + $0x111] sm:$0xff]
      %v2193 = vld [vmem:[%s1874 + $0x121] sm:$0xff]
      %v2194 = vld [vmem:[%s1874 + $0x129] sm:$0xff]
      %v2195 = vld [vmem:[%s1874 + $0x139] sm:$0xff]
      %v2196 = vld [vmem:[%s1874 + $0x141] sm:$0xff]
      %v2197 = vld [vmem:[%s1874 + $0x151] sm:$0xff]
      %v2198 = vld [vmem:[%s1874 + $0x159] sm:$0xff]
      %v2199 = vld [vmem:[%s1874 + $0x169] sm:$0xff]
      %v2200 = vld [vmem:[%s1874 + $0x171] sm:$0xff]
      %v2201 = vpack.c.bf16 %v2170, %v2169
      %v2202 = vpack.c.bf16 %v2172, %v2171
      %v2203 = vpack.c.bf16 %v2174, %v2173
      %v2204 = vpack.c.bf16 %v2176, %v2175
      %v2205 = vpack.c.bf16 %v2178, %v2177
      %v2206 = vpack.c.bf16 %v2180, %v2179
      %v2207 = vpack.c.bf16 %v2182, %v2181
      %v2208 = vpack.c.bf16 %v2184, %v2183
      %v2209 = vpack.c.bf16 %v2186, %v2185
      %v2210 = vpack.c.bf16 %v2188, %v2187
      %v2211 = vpack.c.bf16 %v2190, %v2189
      %v2212 = vpack.c.bf16 %v2192, %v2191
      %v2213 = vpack.c.bf16 %v2194, %v2193
      %v2214 = vpack.c.bf16 %v2196, %v2195
      %v2215 = vpack.c.bf16 %v2198, %v2197
      %v2216 = vpack.c.bf16 %v2200, %v2199
      %s2217 = scalar_lea.vmem %s1, 14
      %v2218 = vld [vmem:[%s2217] sm:$0x3]
      %v2220 = vsel %vm271, %v2201, 0
      %v2223 = vsel %vm271, %v2202, 0
      %v2226 = vsel %vm271, %v2203, 0
      %v2229 = vsel %vm271, %v2204, 0
      %v2232 = vsel %vm271, %v2205, 0
      %v2235 = vsel %vm271, %v2206, 0
      %v2238 = vsel %vm271, %v2207, 0
      %v2241 = vsel %vm271, %v2208, 0
      %v2244 = vsel %vm271, %v2209, 0
      %v2247 = vsel %vm271, %v2210, 0
      %v2250 = vsel %vm271, %v2211, 0
      %v2253 = vsel %vm271, %v2212, 0
      %v2256 = vsel %vm271, %v2213, 0
      %v2259 = vsel %vm271, %v2214, 0
      %v2262 = vsel %vm271, %v2215, 0
      %v2265 = vsel %vm271, %v2216, 0
      %v2268 = vsel %vm320, %v2218, 0
      %2270 = vmatprep.subr.bf16.mxu0 0
      %2271 = vmatpush1.bf16.msra.mxu0 0
      %2272 = vmatprep.subr.bf16.mxu0 0
      %2273 = vmatpush1.bf16.msra.mxu0 0
      %2274 = vmatprep.subr.bf16.mxu0 0
      %2275 = vmatpush1.bf16.msra.mxu0 0
      %2276 = vmatprep.subr.bf16.mxu0 0
      %2277 = vmatpush1.bf16.msra.mxu0 0
      %2278 = vmatprep.subr.bf16.mxu0 0
      %2279 = vmatpush1.bf16.msra.mxu0 0
      %2280 = vmatprep.subr.bf16.mxu0 0
      %2281 = vmatpush1.bf16.msra.mxu0 0
      %2282 = vmatprep.subr.bf16.mxu0 0
      %2283 = vmatpush1.bf16.msra.mxu0 0
      %2284 = vmatprep.subr.bf16.mxu0 0
      %2285 = vmatpush1.bf16.msra.mxu0 %v2268
      %2286 = vmatprep.subr.bf16.mxu0 0
      %2287 = vmatpush2.bf16.msra.mxu0 0
      %2288 = vmatprep.subr.bf16.mxu0 0
      %2289 = vmatpush2.bf16.msra.mxu0 0
      %2290 = vmatprep.subr.bf16.mxu0 0
      %2291 = vmatpush2.bf16.msra.mxu0 0
      %2292 = vmatprep.subr.bf16.mxu0 0
      %2293 = vmatpush2.bf16.msra.mxu0 0
      %2294 = vmatprep.subr.bf16.mxu0 0
      %2295 = vmatpush2.bf16.msra.mxu0 0
      %2296 = vmatprep.subr.bf16.mxu0 0
      %2297 = vmatpush2.bf16.msra.mxu0 0
      %2298 = vmatprep.subr.bf16.mxu0 0
      %2299 = vmatpush2.bf16.msra.mxu0 0
      %2300 = vmatprep.subr.bf16.mxu0 0
      %2301 = vmatpush2.bf16.msra.mxu0 0
      %2302 = vmatprep.mubr.bf16.mxu0 0
      %2303 = vmatmul.mubr.bf16.gmra.mxu0 %v2220
      %v2304 = vpop.f32.mrf.mxu0
      %v2305 = vadd.f32 0.0, %v2304
      %v2306 = vpop.f32.mrf.mxu0
      %v2307 = vpop.f32.mrf.mxu0
      %v2308 = vadd.f32 0.0, %v2307
      %v2309 = vpop.f32.mrf.mxu0
      %2310 = vmatprep.mubr.bf16.mxu0 0
      %2311 = vmatmul.mubr.bf16.gmra.mxu0 %v2223
      %v2312 = vpop.f32.mrf.mxu0
      %v2313 = vadd.f32 0.0, %v2312
      %v2314 = vpop.f32.mrf.mxu0
      %v2315 = vpop.f32.mrf.mxu0
      %v2316 = vadd.f32 0.0, %v2315
      %v2317 = vpop.f32.mrf.mxu0
      %2318 = vmatprep.mubr.bf16.mxu0 0
      %2319 = vmatmul.mubr.bf16.gmra.mxu0 %v2226
      %v2320 = vpop.f32.mrf.mxu0
      %v2321 = vadd.f32 0.0, %v2320
      %v2322 = vpop.f32.mrf.mxu0
      %v2323 = vpop.f32.mrf.mxu0
      %v2324 = vadd.f32 0.0, %v2323
      %v2325 = vpop.f32.mrf.mxu0
      %2326 = vmatprep.mubr.bf16.mxu0 0
      %2327 = vmatmul.mubr.bf16.gmra.mxu0 %v2229
      %v2328 = vpop.f32.mrf.mxu0
      %v2329 = vadd.f32 0.0, %v2328
      %v2330 = vpop.f32.mrf.mxu0
      %v2331 = vpop.f32.mrf.mxu0
      %v2332 = vadd.f32 0.0, %v2331
      %v2333 = vpop.f32.mrf.mxu0
      %2334 = vmatprep.mubr.bf16.mxu0 0
      %2335 = vmatmul.mubr.bf16.gmra.mxu0 %v2232
      %v2336 = vpop.f32.mrf.mxu0
      %v2337 = vadd.f32 0.0, %v2336
      %v2338 = vpop.f32.mrf.mxu0
      %v2339 = vpop.f32.mrf.mxu0
      %v2340 = vadd.f32 0.0, %v2339
      %v2341 = vpop.f32.mrf.mxu0
      %2342 = vmatprep.mubr.bf16.mxu0 0
      %2343 = vmatmul.mubr.bf16.gmra.mxu0 %v2235
      %v2344 = vpop.f32.mrf.mxu0
      %v2345 = vadd.f32 0.0, %v2344
      %v2346 = vpop.f32.mrf.mxu0
      %v2347 = vpop.f32.mrf.mxu0
      %v2348 = vadd.f32 0.0, %v2347
      %v2349 = vpop.f32.mrf.mxu0
      %2350 = vmatprep.mubr.bf16.mxu0 0
      %2351 = vmatmul.mubr.bf16.gmra.mxu0 %v2238
      %v2352 = vpop.f32.mrf.mxu0
      %v2353 = vadd.f32 0.0, %v2352
      %v2354 = vpop.f32.mrf.mxu0
      %v2355 = vpop.f32.mrf.mxu0
      %v2356 = vadd.f32 0.0, %v2355
      %v2357 = vpop.f32.mrf.mxu0
      %2358 = vmatprep.mubr.bf16.mxu0 0
      %2359 = vmatmul.mubr.bf16.gmra.mxu0 %v2241
      %v2360 = vpop.f32.mrf.mxu0
      %v2361 = vadd.f32 0.0, %v2360
      %v2362 = vpop.f32.mrf.mxu0
      %v2363 = vpop.f32.mrf.mxu0
      %v2364 = vadd.f32 0.0, %v2363
      %v2365 = vpop.f32.mrf.mxu0
      %2366 = vmatprep.mubr.bf16.mxu0 0
      %2367 = vmatmul.mubr.bf16.gmra.mxu0 %v2244
      %v2368 = vpop.f32.mrf.mxu0
      %v2369 = vadd.f32 0.0, %v2368
      %v2370 = vpop.f32.mrf.mxu0
      %v2371 = vpop.f32.mrf.mxu0
      %v2372 = vadd.f32 0.0, %v2371
      %v2373 = vpop.f32.mrf.mxu0
      %2374 = vmatprep.mubr.bf16.mxu0 0
      %2375 = vmatmul.mubr.bf16.gmra.mxu0 %v2247
      %v2376 = vpop.f32.mrf.mxu0
      %v2377 = vadd.f32 0.0, %v2376
      %v2378 = vpop.f32.mrf.mxu0
      %v2379 = vpop.f32.mrf.mxu0
      %v2380 = vadd.f32 0.0, %v2379
      %v2381 = vpop.f32.mrf.mxu0
      %2382 = vmatprep.mubr.bf16.mxu0 0
      %2383 = vmatmul.mubr.bf16.gmra.mxu0 %v2250
      %v2384 = vpop.f32.mrf.mxu0
      %v2385 = vadd.f32 0.0, %v2384
      %v2386 = vpop.f32.mrf.mxu0
      %v2387 = vpop.f32.mrf.mxu0
      %v2388 = vadd.f32 0.0, %v2387
      %v2389 = vpop.f32.mrf.mxu0
      %2390 = vmatprep.mubr.bf16.mxu0 0
      %2391 = vmatmul.mubr.bf16.gmra.mxu0 %v2253
      %v2392 = vpop.f32.mrf.mxu0
      %v2393 = vadd.f32 0.0, %v2392
      %v2394 = vpop.f32.mrf.mxu0
      %v2395 = vpop.f32.mrf.mxu0
      %v2396 = vadd.f32 0.0, %v2395
      %v2397 = vpop.f32.mrf.mxu0
      %2398 = vmatprep.mubr.bf16.mxu0 0
      %2399 = vmatmul.mubr.bf16.gmra.mxu0 %v2256
      %v2400 = vpop.f32.mrf.mxu0
      %v2401 = vadd.f32 0.0, %v2400
      %v2402 = vpop.f32.mrf.mxu0
      %v2403 = vpop.f32.mrf.mxu0
      %v2404 = vadd.f32 0.0, %v2403
      %v2405 = vpop.f32.mrf.mxu0
      %2406 = vmatprep.mubr.bf16.mxu0 0
      %2407 = vmatmul.mubr.bf16.gmra.mxu0 %v2259
      %v2408 = vpop.f32.mrf.mxu0
      %v2409 = vadd.f32 0.0, %v2408
      %v2410 = vpop.f32.mrf.mxu0
      %v2411 = vpop.f32.mrf.mxu0
      %v2412 = vadd.f32 0.0, %v2411
      %v2413 = vpop.f32.mrf.mxu0
      %2414 = vmatprep.mubr.bf16.mxu0 0
      %2415 = vmatmul.mubr.bf16.gmra.mxu0 %v2262
      %v2416 = vpop.f32.mrf.mxu0
      %v2417 = vadd.f32 0.0, %v2416
      %v2418 = vpop.f32.mrf.mxu0
      %v2419 = vpop.f32.mrf.mxu0
      %v2420 = vadd.f32 0.0, %v2419
      %v2421 = vpop.f32.mrf.mxu0
      %2422 = vmatprep.mubr.bf16.mxu0 0
      %2423 = vmatmul.mubr.bf16.gmra.mxu0 %v2265
      %v2424 = vpop.f32.mrf.mxu0
      %v2425 = vadd.f32 0.0, %v2424
      %v2426 = vpop.f32.mrf.mxu0
      %v2427 = vpop.f32.mrf.mxu0
      %v2428 = vadd.f32 0.0, %v2427
      %v2429 = vpop.f32.mrf.mxu0
      %2430 = vdwg.mxu0
      %v2431 = vadd.f32 %v2137, %v2305
      %v2432 = vadd.f32 %v2138, %v2308
      %v2433 = vadd.f32 %v2139, %v2313
      %v2434 = vadd.f32 %v2140, %v2316
      %v2435 = vadd.f32 %v2141, %v2321
      %v2436 = vadd.f32 %v2142, %v2324
      %v2437 = vadd.f32 %v2143, %v2329
      %v2438 = vadd.f32 %v2144, %v2332
      %v2439 = vadd.f32 %v2145, %v2337
      %v2440 = vadd.f32 %v2146, %v2340
      %v2441 = vadd.f32 %v2147, %v2345
      %v2442 = vadd.f32 %v2148, %v2348
      %v2443 = vadd.f32 %v2149, %v2353
      %v2444 = vadd.f32 %v2150, %v2356
      %v2445 = vadd.f32 %v2151, %v2361
      %v2446 = vadd.f32 %v2152, %v2364
      %v2447 = vadd.f32 %v2153, %v2369
      %v2448 = vadd.f32 %v2154, %v2372
      %v2449 = vadd.f32 %v2155, %v2377
      %v2450 = vadd.f32 %v2156, %v2380
      %v2451 = vadd.f32 %v2157, %v2385
      %v2452 = vadd.f32 %v2158, %v2388
      %v2453 = vadd.f32 %v2159, %v2393
      %v2454 = vadd.f32 %v2160, %v2396
      %v2455 = vadd.f32 %v2161, %v2401
      %v2456 = vadd.f32 %v2162, %v2404
      %v2457 = vadd.f32 %v2163, %v2409
      %v2458 = vadd.f32 %v2164, %v2412
      %v2459 = vadd.f32 %v2165, %v2417
      %v2460 = vadd.f32 %v2166, %v2420
      %v2461 = vadd.f32 %v2167, %v2425
      %v2462 = vadd.f32 %v2168, %v2428
      %v2463 = vld [vmem:[%s1874 + $0x2] sm:$0xff]
      %v2464 = vld [vmem:[%s1874 + $0xa] sm:$0xff]
      %v2465 = vld [vmem:[%s1874 + $0x1a] sm:$0xff]
      %v2466 = vld [vmem:[%s1874 + $0x22] sm:$0xff]
      %v2467 = vld [vmem:[%s1874 + $0x32] sm:$0xff]
      %v2468 = vld [vmem:[%s1874 + $0x3a] sm:$0xff]
      %v2469 = vld [vmem:[%s1874 + $0x4a] sm:$0xff]
      %v2470 = vld [vmem:[%s1874 + $0x52] sm:$0xff]
      %v2471 = vld [vmem:[%s1874 + $0x62] sm:$0xff]
      %v2472 = vld [vmem:[%s1874 + $0x6a] sm:$0xff]
      %v2473 = vld [vmem:[%s1874 + $0x7a] sm:$0xff]
      %v2474 = vld [vmem:[%s1874 + $0x82] sm:$0xff]
      %v2475 = vld [vmem:[%s1874 + $0x92] sm:$0xff]
      %v2476 = vld [vmem:[%s1874 + $0x9a] sm:$0xff]
      %v2477 = vld [vmem:[%s1874 + $0xaa] sm:$0xff]
      %v2478 = vld [vmem:[%s1874 + $0xb2] sm:$0xff]
      %v2479 = vld [vmem:[%s1874 + $0xc2] sm:$0xff]
      %v2480 = vld [vmem:[%s1874 + $0xca] sm:$0xff]
      %v2481 = vld [vmem:[%s1874 + $0xda] sm:$0xff]
      %v2482 = vld [vmem:[%s1874 + $0xe2] sm:$0xff]
      %v2483 = vld [vmem:[%s1874 + $0xf2] sm:$0xff]
      %v2484 = vld [vmem:[%s1874 + $0xfa] sm:$0xff]
      %v2485 = vld [vmem:[%s1874 + $0x10a] sm:$0xff]
      %v2486 = vld [vmem:[%s1874 + $0x112] sm:$0xff]
      %v2487 = vld [vmem:[%s1874 + $0x122] sm:$0xff]
      %v2488 = vld [vmem:[%s1874 + $0x12a] sm:$0xff]
      %v2489 = vld [vmem:[%s1874 + $0x13a] sm:$0xff]
      %v2490 = vld [vmem:[%s1874 + $0x142] sm:$0xff]
      %v2491 = vld [vmem:[%s1874 + $0x152] sm:$0xff]
      %v2492 = vld [vmem:[%s1874 + $0x15a] sm:$0xff]
      %v2493 = vld [vmem:[%s1874 + $0x16a] sm:$0xff]
      %v2494 = vld [vmem:[%s1874 + $0x172] sm:$0xff]
      %v2495 = vpack.c.bf16 %v2464, %v2463
      %v2496 = vpack.c.bf16 %v2466, %v2465
      %v2497 = vpack.c.bf16 %v2468, %v2467
      %v2498 = vpack.c.bf16 %v2470, %v2469
      %v2499 = vpack.c.bf16 %v2472, %v2471
      %v2500 = vpack.c.bf16 %v2474, %v2473
      %v2501 = vpack.c.bf16 %v2476, %v2475
      %v2502 = vpack.c.bf16 %v2478, %v2477
      %v2503 = vpack.c.bf16 %v2480, %v2479
      %v2504 = vpack.c.bf16 %v2482, %v2481
      %v2505 = vpack.c.bf16 %v2484, %v2483
      %v2506 = vpack.c.bf16 %v2486, %v2485
      %v2507 = vpack.c.bf16 %v2488, %v2487
      %v2508 = vpack.c.bf16 %v2490, %v2489
      %v2509 = vpack.c.bf16 %v2492, %v2491
      %v2510 = vpack.c.bf16 %v2494, %v2493
      %s2511 = scalar_lea.vmem %s1, 16
      %v2512 = vld [vmem:[%s2511] sm:$0x3]
      %v2514 = vsel %vm271, %v2495, 0
      %v2517 = vsel %vm271, %v2496, 0
      %v2520 = vsel %vm271, %v2497, 0
      %v2523 = vsel %vm271, %v2498, 0
      %v2526 = vsel %vm271, %v2499, 0
      %v2529 = vsel %vm271, %v2500, 0
      %v2532 = vsel %vm271, %v2501, 0
      %v2535 = vsel %vm271, %v2502, 0
      %v2538 = vsel %vm271, %v2503, 0
      %v2541 = vsel %vm271, %v2504, 0
      %v2544 = vsel %vm271, %v2505, 0
      %v2547 = vsel %vm271, %v2506, 0
      %v2550 = vsel %vm271, %v2507, 0
      %v2553 = vsel %vm271, %v2508, 0
      %v2556 = vsel %vm271, %v2509, 0
      %v2559 = vsel %vm271, %v2510, 0
      %v2562 = vsel %vm320, %v2512, 0
      %2564 = vmatprep.subr.bf16.mxu0 0
      %2565 = vmatpush1.bf16.msra.mxu0 0
      %2566 = vmatprep.subr.bf16.mxu0 0
      %2567 = vmatpush1.bf16.msra.mxu0 0
      %2568 = vmatprep.subr.bf16.mxu0 0
      %2569 = vmatpush1.bf16.msra.mxu0 0
      %2570 = vmatprep.subr.bf16.mxu0 0
      %2571 = vmatpush1.bf16.msra.mxu0 0
      %2572 = vmatprep.subr.bf16.mxu0 0
      %2573 = vmatpush1.bf16.msra.mxu0 0
      %2574 = vmatprep.subr.bf16.mxu0 0
      %2575 = vmatpush1.bf16.msra.mxu0 0
      %2576 = vmatprep.subr.bf16.mxu0 0
      %2577 = vmatpush1.bf16.msra.mxu0 0
      %2578 = vmatprep.subr.bf16.mxu0 0
      %2579 = vmatpush1.bf16.msra.mxu0 %v2562
      %2580 = vmatprep.subr.bf16.mxu0 0
      %2581 = vmatpush2.bf16.msra.mxu0 0
      %2582 = vmatprep.subr.bf16.mxu0 0
      %2583 = vmatpush2.bf16.msra.mxu0 0
      %2584 = vmatprep.subr.bf16.mxu0 0
      %2585 = vmatpush2.bf16.msra.mxu0 0
      %2586 = vmatprep.subr.bf16.mxu0 0
      %2587 = vmatpush2.bf16.msra.mxu0 0
      %2588 = vmatprep.subr.bf16.mxu0 0
      %2589 = vmatpush2.bf16.msra.mxu0 0
      %2590 = vmatprep.subr.bf16.mxu0 0
      %2591 = vmatpush2.bf16.msra.mxu0 0
      %2592 = vmatprep.subr.bf16.mxu0 0
      %2593 = vmatpush2.bf16.msra.mxu0 0
      %2594 = vmatprep.subr.bf16.mxu0 0
      %2595 = vmatpush2.bf16.msra.mxu0 0
      %2596 = vmatprep.mubr.bf16.mxu0 0
      %2597 = vmatmul.mubr.bf16.gmra.mxu0 %v2514
      %v2598 = vpop.f32.mrf.mxu0
      %v2599 = vadd.f32 0.0, %v2598
      %v2600 = vpop.f32.mrf.mxu0
      %v2601 = vpop.f32.mrf.mxu0
      %v2602 = vadd.f32 0.0, %v2601
      %v2603 = vpop.f32.mrf.mxu0
      %2604 = vmatprep.mubr.bf16.mxu0 0
      %2605 = vmatmul.mubr.bf16.gmra.mxu0 %v2517
      %v2606 = vpop.f32.mrf.mxu0
      %v2607 = vadd.f32 0.0, %v2606
      %v2608 = vpop.f32.mrf.mxu0
      %v2609 = vpop.f32.mrf.mxu0
      %v2610 = vadd.f32 0.0, %v2609
      %v2611 = vpop.f32.mrf.mxu0
      %2612 = vmatprep.mubr.bf16.mxu0 0
      %2613 = vmatmul.mubr.bf16.gmra.mxu0 %v2520
      %v2614 = vpop.f32.mrf.mxu0
      %v2615 = vadd.f32 0.0, %v2614
      %v2616 = vpop.f32.mrf.mxu0
      %v2617 = vpop.f32.mrf.mxu0
      %v2618 = vadd.f32 0.0, %v2617
      %v2619 = vpop.f32.mrf.mxu0
      %2620 = vmatprep.mubr.bf16.mxu0 0
      %2621 = vmatmul.mubr.bf16.gmra.mxu0 %v2523
      %v2622 = vpop.f32.mrf.mxu0
      %v2623 = vadd.f32 0.0, %v2622
      %v2624 = vpop.f32.mrf.mxu0
      %v2625 = vpop.f32.mrf.mxu0
      %v2626 = vadd.f32 0.0, %v2625
      %v2627 = vpop.f32.mrf.mxu0
      %2628 = vmatprep.mubr.bf16.mxu0 0
      %2629 = vmatmul.mubr.bf16.gmra.mxu0 %v2526
      %v2630 = vpop.f32.mrf.mxu0
      %v2631 = vadd.f32 0.0, %v2630
      %v2632 = vpop.f32.mrf.mxu0
      %v2633 = vpop.f32.mrf.mxu0
      %v2634 = vadd.f32 0.0, %v2633
      %v2635 = vpop.f32.mrf.mxu0
      %2636 = vmatprep.mubr.bf16.mxu0 0
      %2637 = vmatmul.mubr.bf16.gmra.mxu0 %v2529
      %v2638 = vpop.f32.mrf.mxu0
      %v2639 = vadd.f32 0.0, %v2638
      %v2640 = vpop.f32.mrf.mxu0
      %v2641 = vpop.f32.mrf.mxu0
      %v2642 = vadd.f32 0.0, %v2641
      %v2643 = vpop.f32.mrf.mxu0
      %2644 = vmatprep.mubr.bf16.mxu0 0
      %2645 = vmatmul.mubr.bf16.gmra.mxu0 %v2532
      %v2646 = vpop.f32.mrf.mxu0
      %v2647 = vadd.f32 0.0, %v2646
      %v2648 = vpop.f32.mrf.mxu0
      %v2649 = vpop.f32.mrf.mxu0
      %v2650 = vadd.f32 0.0, %v2649
      %v2651 = vpop.f32.mrf.mxu0
      %2652 = vmatprep.mubr.bf16.mxu0 0
      %2653 = vmatmul.mubr.bf16.gmra.mxu0 %v2535
      %v2654 = vpop.f32.mrf.mxu0
      %v2655 = vadd.f32 0.0, %v2654
      %v2656 = vpop.f32.mrf.mxu0
      %v2657 = vpop.f32.mrf.mxu0
      %v2658 = vadd.f32 0.0, %v2657
      %v2659 = vpop.f32.mrf.mxu0
      %2660 = vmatprep.mubr.bf16.mxu0 0
      %2661 = vmatmul.mubr.bf16.gmra.mxu0 %v2538
      %v2662 = vpop.f32.mrf.mxu0
      %v2663 = vadd.f32 0.0, %v2662
      %v2664 = vpop.f32.mrf.mxu0
      %v2665 = vpop.f32.mrf.mxu0
      %v2666 = vadd.f32 0.0, %v2665
      %v2667 = vpop.f32.mrf.mxu0
      %2668 = vmatprep.mubr.bf16.mxu0 0
      %2669 = vmatmul.mubr.bf16.gmra.mxu0 %v2541
      %v2670 = vpop.f32.mrf.mxu0
      %v2671 = vadd.f32 0.0, %v2670
      %v2672 = vpop.f32.mrf.mxu0
      %v2673 = vpop.f32.mrf.mxu0
      %v2674 = vadd.f32 0.0, %v2673
      %v2675 = vpop.f32.mrf.mxu0
      %2676 = vmatprep.mubr.bf16.mxu0 0
      %2677 = vmatmul.mubr.bf16.gmra.mxu0 %v2544
      %v2678 = vpop.f32.mrf.mxu0
      %v2679 = vadd.f32 0.0, %v2678
      %v2680 = vpop.f32.mrf.mxu0
      %v2681 = vpop.f32.mrf.mxu0
      %v2682 = vadd.f32 0.0, %v2681
      %v2683 = vpop.f32.mrf.mxu0
      %2684 = vmatprep.mubr.bf16.mxu0 0
      %2685 = vmatmul.mubr.bf16.gmra.mxu0 %v2547
      %v2686 = vpop.f32.mrf.mxu0
      %v2687 = vadd.f32 0.0, %v2686
      %v2688 = vpop.f32.mrf.mxu0
      %v2689 = vpop.f32.mrf.mxu0
      %v2690 = vadd.f32 0.0, %v2689
      %v2691 = vpop.f32.mrf.mxu0
      %2692 = vmatprep.mubr.bf16.mxu0 0
      %2693 = vmatmul.mubr.bf16.gmra.mxu0 %v2550
      %v2694 = vpop.f32.mrf.mxu0
      %v2695 = vadd.f32 0.0, %v2694
      %v2696 = vpop.f32.mrf.mxu0
      %v2697 = vpop.f32.mrf.mxu0
      %v2698 = vadd.f32 0.0, %v2697
      %v2699 = vpop.f32.mrf.mxu0
      %2700 = vmatprep.mubr.bf16.mxu0 0
      %2701 = vmatmul.mubr.bf16.gmra.mxu0 %v2553
      %v2702 = vpop.f32.mrf.mxu0
      %v2703 = vadd.f32 0.0, %v2702
      %v2704 = vpop.f32.mrf.mxu0
      %v2705 = vpop.f32.mrf.mxu0
      %v2706 = vadd.f32 0.0, %v2705
      %v2707 = vpop.f32.mrf.mxu0
      %2708 = vmatprep.mubr.bf16.mxu0 0
      %2709 = vmatmul.mubr.bf16.gmra.mxu0 %v2556
      %v2710 = vpop.f32.mrf.mxu0
      %v2711 = vadd.f32 0.0, %v2710
      %v2712 = vpop.f32.mrf.mxu0
      %v2713 = vpop.f32.mrf.mxu0
      %v2714 = vadd.f32 0.0, %v2713
      %v2715 = vpop.f32.mrf.mxu0
      %2716 = vmatprep.mubr.bf16.mxu0 0
      %2717 = vmatmul.mubr.bf16.gmra.mxu0 %v2559
      %v2718 = vpop.f32.mrf.mxu0
      %v2719 = vadd.f32 0.0, %v2718
      %v2720 = vpop.f32.mrf.mxu0
      %v2721 = vpop.f32.mrf.mxu0
      %v2722 = vadd.f32 0.0, %v2721
      %v2723 = vpop.f32.mrf.mxu0
      %2724 = vdwg.mxu0
      %v2725 = vadd.f32 %v2431, %v2599
      %v2726 = vadd.f32 %v2432, %v2602
      %v2727 = vadd.f32 %v2433, %v2607
      %v2728 = vadd.f32 %v2434, %v2610
      %v2729 = vadd.f32 %v2435, %v2615
      %v2730 = vadd.f32 %v2436, %v2618
      %v2731 = vadd.f32 %v2437, %v2623
      %v2732 = vadd.f32 %v2438, %v2626
      %v2733 = vadd.f32 %v2439, %v2631
      %v2734 = vadd.f32 %v2440, %v2634
      %v2735 = vadd.f32 %v2441, %v2639
      %v2736 = vadd.f32 %v2442, %v2642
      %v2737 = vadd.f32 %v2443, %v2647
      %v2738 = vadd.f32 %v2444, %v2650
      %v2739 = vadd.f32 %v2445, %v2655
      %v2740 = vadd.f32 %v2446, %v2658
      %v2741 = vadd.f32 %v2447, %v2663
      %v2742 = vadd.f32 %v2448, %v2666
      %v2743 = vadd.f32 %v2449, %v2671
      %v2744 = vadd.f32 %v2450, %v2674
      %v2745 = vadd.f32 %v2451, %v2679
      %v2746 = vadd.f32 %v2452, %v2682
      %v2747 = vadd.f32 %v2453, %v2687
      %v2748 = vadd.f32 %v2454, %v2690
      %v2749 = vadd.f32 %v2455, %v2695
      %v2750 = vadd.f32 %v2456, %v2698
      %v2751 = vadd.f32 %v2457, %v2703
      %v2752 = vadd.f32 %v2458, %v2706
      %v2753 = vadd.f32 %v2459, %v2711
      %v2754 = vadd.f32 %v2460, %v2714
      %v2755 = vadd.f32 %v2461, %v2719
      %v2756 = vadd.f32 %v2462, %v2722
      %v2757 = vld [vmem:[%s2] sm:$0x1]
      %v2759 = vlaneseq
      %v2760 = vshrl.u32 %v2759, 7
      %v2761 = vsub.s32 0, %v2760
      %v2762 = vrot.slane %v2757, %v2761
      %v2764 = vadd.f32 %v2725, %v2762
      %v2765 = vadd.f32 %v2726, %v2762
      %v2766 = vadd.f32 %v2727, %v2762
      %v2767 = vadd.f32 %v2728, %v2762
      %v2768 = vadd.f32 %v2729, %v2762
      %v2769 = vadd.f32 %v2730, %v2762
      %v2770 = vadd.f32 %v2731, %v2762
      %v2771 = vadd.f32 %v2732, %v2762
      %v2772 = vadd.f32 %v2733, %v2762
      %v2773 = vadd.f32 %v2734, %v2762
      %v2774 = vadd.f32 %v2735, %v2762
      %v2775 = vadd.f32 %v2736, %v2762
      %v2776 = vadd.f32 %v2737, %v2762
      %v2777 = vadd.f32 %v2738, %v2762
      %v2778 = vadd.f32 %v2739, %v2762
      %v2779 = vadd.f32 %v2740, %v2762
      %v2780 = vadd.f32 %v2741, %v2762
      %v2781 = vadd.f32 %v2742, %v2762
      %v2782 = vadd.f32 %v2743, %v2762
      %v2783 = vadd.f32 %v2744, %v2762
      %v2784 = vadd.f32 %v2745, %v2762
      %v2785 = vadd.f32 %v2746, %v2762
      %v2786 = vadd.f32 %v2747, %v2762
      %v2787 = vadd.f32 %v2748, %v2762
      %v2788 = vadd.f32 %v2749, %v2762
      %v2789 = vadd.f32 %v2750, %v2762
      %v2790 = vadd.f32 %v2751, %v2762
      %v2791 = vadd.f32 %v2752, %v2762
      %v2792 = vadd.f32 %v2753, %v2762
      %v2793 = vadd.f32 %v2754, %v2762
      %v2794 = vadd.f32 %v2755, %v2762
      %v2795 = vadd.f32 %v2756, %v2762
      %v2796 = vmax.f32 %v2764, 0.0
      %v2797 = vmax.f32 %v2765, 0.0
      %v2798 = vmax.f32 %v2766, 0.0
      %v2799 = vmax.f32 %v2767, 0.0
      %v2800 = vmax.f32 %v2768, 0.0
      %v2801 = vmax.f32 %v2769, 0.0
      %v2802 = vmax.f32 %v2770, 0.0
      %v2803 = vmax.f32 %v2771, 0.0
      %v2804 = vmax.f32 %v2772, 0.0
      %v2805 = vmax.f32 %v2773, 0.0
      %v2806 = vmax.f32 %v2774, 0.0
      %v2807 = vmax.f32 %v2775, 0.0
      %v2808 = vmax.f32 %v2776, 0.0
      %v2809 = vmax.f32 %v2777, 0.0
      %v2810 = vmax.f32 %v2778, 0.0
      %v2811 = vmax.f32 %v2779, 0.0
      %v2812 = vmax.f32 %v2780, 0.0
      %v2813 = vmax.f32 %v2781, 0.0
      %v2814 = vmax.f32 %v2782, 0.0
      %v2815 = vmax.f32 %v2783, 0.0
      %v2816 = vmax.f32 %v2784, 0.0
      %v2817 = vmax.f32 %v2785, 0.0
      %v2818 = vmax.f32 %v2786, 0.0
      %v2819 = vmax.f32 %v2787, 0.0
      %v2820 = vmax.f32 %v2788, 0.0
      %v2821 = vmax.f32 %v2789, 0.0
      %v2822 = vmax.f32 %v2790, 0.0
      %v2823 = vmax.f32 %v2791, 0.0
      %v2824 = vmax.f32 %v2792, 0.0
      %v2825 = vmax.f32 %v2793, 0.0
      %v2826 = vmax.f32 %v2794, 0.0
      %v2827 = vmax.f32 %v2795, 0.0
      %vm2828 = vcmask 64512
      %2829 = vst.msk [vmem:[%s170] sm:$0xff] %vm2828, %v2796
      %2830 = vst.msk [vmem:[%s170 + $0x8] sm:$0xff] %vm2828, %v2797
      %2831 = vst.msk [vmem:[%s170 + $0x10] sm:$0xff] %vm2828, %v2798
      %2832 = vst.msk [vmem:[%s170 + $0x18] sm:$0xff] %vm2828, %v2799
      %2833 = vst.msk [vmem:[%s170 + $0x20] sm:$0xff] %vm2828, %v2800
      %2834 = vst.msk [vmem:[%s170 + $0x28] sm:$0xff] %vm2828, %v2801
      %2835 = vst.msk [vmem:[%s170 + $0x30] sm:$0xff] %vm2828, %v2802
      %2836 = vst.msk [vmem:[%s170 + $0x38] sm:$0xff] %vm2828, %v2803
      %2837 = vst.msk [vmem:[%s170 + $0x40] sm:$0xff] %vm2828, %v2804
      %2838 = vst.msk [vmem:[%s170 + $0x48] sm:$0xff] %vm2828, %v2805
      %2839 = vst.msk [vmem:[%s170 + $0x50] sm:$0xff] %vm2828, %v2806
      %2840 = vst.msk [vmem:[%s170 + $0x58] sm:$0xff] %vm2828, %v2807
      %2841 = vst.msk [vmem:[%s170 + $0x60] sm:$0xff] %vm2828, %v2808
      %2842 = vst.msk [vmem:[%s170 + $0x68] sm:$0xff] %vm2828, %v2809
      %2843 = vst.msk [vmem:[%s170 + $0x70] sm:$0xff] %vm2828, %v2810
      %2844 = vst.msk [vmem:[%s170 + $0x78] sm:$0xff] %vm2828, %v2811
      %2845 = vst.msk [vmem:[%s170 + $0x80] sm:$0xff] %vm2828, %v2812
      %2846 = vst.msk [vmem:[%s170 + $0x88] sm:$0xff] %vm2828, %v2813
      %2847 = vst.msk [vmem:[%s170 + $0x90] sm:$0xff] %vm2828, %v2814
      %2848 = vst.msk [vmem:[%s170 + $0x98] sm:$0xff] %vm2828, %v2815
      %2849 = vst.msk [vmem:[%s170 + $0xa0] sm:$0xff] %vm2828, %v2816
      %2850 = vst.msk [vmem:[%s170 + $0xa8] sm:$0xff] %vm2828, %v2817
      %2851 = vst.msk [vmem:[%s170 + $0xb0] sm:$0xff] %vm2828, %v2818
      %2852 = vst.msk [vmem:[%s170 + $0xb8] sm:$0xff] %vm2828, %v2819
      %2853 = vst.msk [vmem:[%s170 + $0xc0] sm:$0xff] %vm2828, %v2820
      %2854 = vst.msk [vmem:[%s170 + $0xc8] sm:$0xff] %vm2828, %v2821
      %2855 = vst.msk [vmem:[%s170 + $0xd0] sm:$0xff] %vm2828, %v2822
      %2856 = vst.msk [vmem:[%s170 + $0xd8] sm:$0xff] %vm2828, %v2823
      %2857 = vst.msk [vmem:[%s170 + $0xe0] sm:$0xff] %vm2828, %v2824
      %2858 = vst.msk [vmem:[%s170 + $0xe8] sm:$0xff] %vm2828, %v2825
      %2859 = vst.msk [vmem:[%s170 + $0xf0] sm:$0xff] %vm2828, %v2826
      %2860 = vst.msk [vmem:[%s170 + $0xf8] sm:$0xff] %vm2828, %v2827
      %p2861 = scmp.lt.s32.totalorder %s14, 1
      %s2862 = scalar_select %p2861, %s14, 1
      %s2863 = smul.addr %s2862, 32
      %s2864 = smul.addr %s2863, 8
      %s2865 = scalar_lea.vmem %s3, %s2864
      // Predicated region
      $region33: #{two_stage_anchor_based_lane_detector.6} parent=31 // pred_check
        %p2866 = pneg %p100
      $region34: #{two_stage_anchor_based_lane_detector.6} parent=31 // pred_check_branch
        %2868 = sbr.rel (%p2866) target = $region36
      $region35: #{two_stage_anchor_based_lane_detector.6} parent=31 // pred_region
        _
      $region36: #{two_stage_anchor_based_lane_detector.6} parent=31 // pred_fallthru
        _
    $region32: #{two_stage_anchor_based_lane_detector.6} parent=5 // pred_fallthru
      _
    %p2869 = scmp.le.s32.totalorder 2, %s9
    // Predicated region
    $region37: #{two_stage_anchor_based_lane_detector.6} parent=5 // pred_check
      %p2870 = pneg %p2869
    $region38: #{two_stage_anchor_based_lane_detector.6} parent=5 // pred_check_branch
      %2872 = sbr.rel (%p2870) target = $region40
    $region39: #{two_stage_anchor_based_lane_detector.6} parent=5 // pred_region
      %s2873 = ssub.s32 %s9, 2
      // Predicated region
      $region41: #{two_stage_anchor_based_lane_detector.6} parent=39 // pred_check
        %p2874 = pneg %p106
      $region42: #{two_stage_anchor_based_lane_detector.6} parent=39 // pred_check_branch
        %2876 = sbr.rel (%p2874) target = $region44
      $region43: #{two_stage_anchor_based_lane_detector.6} parent=39 // pred_region
        %p2877 = scmp.lt.s32.totalorder %s15, 1
        %s2878 = scalar_select %p2877, %s15, 1
        %s2879 = smul.addr %s2878, 32
        %s2880 = smul.addr %s2879, 8
        %s2881 = scalar_lea.vmem %s3, %s2880
      $region44: #{two_stage_anchor_based_lane_detector.6} parent=39 // pred_fallthru
        _
    $region40: #{two_stage_anchor_based_lane_detector.6} parent=5 // pred_fallthru
      _
  $region6: #{two_stage_anchor_based_lane_detector.6} parent=0 // loop_footer
    %s13 = sadd.s32 1, %s9
  $region7: #{two_stage_anchor_based_lane_detector.6} parent=0 // loop_footer_branch
    %8 = sbr.rel target = $region3
  $region8: #{two_stage_anchor_based_lane_detector.6} parent=0 // loop_exit
    _

// kernel: two_stage_anchor_based_lane_detector.8
$region0: #{two_stage_anchor_based_lane_detector.8}
  #allocation0 [shape = 'u32[]', space=smem, size = 0x4, offset = 0x4, fixed_abs, tag = 'smem constant byte address 0x4 - core index']
  #allocation1 [shape = 'u32[144,128]{1,0:T(1,128)}', space=vmem, size = 0x12000, scoped, tag = 'internal scratch']
  %s0 = inlined_call_operand.vmem [shape: f32[4,2,5,5,16], index: 0, kind: input, shape index: {}]
  %s1 = inlined_call_operand.vmem [shape: bf16[9,16,32], index: 1, kind: input, shape index: {}]
  %s2 = inlined_call_operand.vmem [shape: f32[1,32], index: 2, kind: input, shape index: {}]
  %s3 = inlined_call_operand.vmem [shape: f32[2,4,4,32], index: 3, kind: output, shape index: {}]
  %s4 = sld [smem:[#allocation0]]
  $region83: #{two_stage_anchor_based_lane_detector.8} parent=0
    _
  %s6 = ssub.s32 1, %s4
  %s7 = scalar_select 0, %s6, %s4
  $region1: #{two_stage_anchor_based_lane_detector.8} parent=0
    #allocation2 [shape = 'u8[163840]{0}', space=vmem, size = 0x28000, scoped, tag = 'input window, operand 0']
    loop: start=0, step=1, limit=4
    $region2: #{two_stage_anchor_based_lane_detector.8} parent=1 // loop_pre_header
      _
    $region3: #{two_stage_anchor_based_lane_detector.8} parent=1 // loop_header
      %s9 = sphi 0, %s13
      %p10 = scmp.ge.s32.totalorder %s9, 4
      %s19 = sphi 0, %s21
      %s22 = sphi 0, %s19
      %s23 = sphi 0, %s22
      %s39 = sphi 0, %s23
      %s43 = sphi 0, %s43
      %s45 = sphi 0, %s43
      %s46 = sphi 0, %s45
      %s60 = sphi 0, %s46
      %s64 = sphi 0, %s64
      %s66 = sphi 0, %s64
      %s67 = sphi 0, %s66
      %s81 = sphi 0, %s67
      %s87 = sphi 0, %s89
      %s90 = sphi 0, %s87
      %s91 = sphi 0, %s90
      %s107 = sphi 0, %s91
    $region4: #{two_stage_anchor_based_lane_detector.8} parent=1 // loop_header_branch
      %12 = sbr.rel (%p10) target = $region8
    $region5: #{two_stage_anchor_based_lane_detector.8} parent=1 // loop_body
      %s14 = ssub.s32 %s9, 1
      %s15 = ssub.s32 %s9, 2
      %s16 = sadd.s32 %s9, 1
      %s17 = ssub.s32 %s9, %s16
      %p18 = scmp.eq.s32.totalorder %s17, 0
      %s20 = sadd.s32 %s19, 1
      %s21 = scalar_select %p18, %s19, %s20
      %p24 = pneg %p18
      %p25 = scmp.eq.s32.totalorder %s9, 1
      %p26 = por %p24, %p25
      %p27 = scmp.ne.s32.totalorder %s19, %s22
      %p28 = scmp.eq.s32.totalorder %s9, 0
      %p29 = por %p27, %p28
      %p30 = scmp.ne.s32.totalorder %s19, %s22
      %p31 = scmp.eq.s32.totalorder %s14, 1
      %p32 = por %p30, %p31
      %p33 = scmp.ne.s32.totalorder %s22, %s23
      %p34 = scmp.eq.s32.totalorder %s14, 0
      %p35 = por %p33, %p34
      %p36 = scmp.ne.s32.totalorder %s22, %s23
      %p37 = scmp.eq.s32.totalorder %s15, 1
      %p38 = por %p36, %p37
      %p40 = scmp.ne.s32.totalorder %s23, %s39
      %p41 = scmp.eq.s32.totalorder %s15, 0
      %p42 = por %p40, %p41
      %s44 = sadd.s32 %s43, 1
      %p47 = scmp.eq.s32.totalorder %s9, 1
      %p48 = scmp.ne.s32.totalorder %s43, %s45
      %p49 = scmp.eq.s32.totalorder %s9, 0
      %p50 = por %p48, %p49
      %p51 = scmp.ne.s32.totalorder %s43, %s45
      %p52 = scmp.eq.s32.totalorder %s14, 1
      %p53 = por %p51, %p52
      %p54 = scmp.ne.s32.totalorder %s45, %s46
      %p55 = scmp.eq.s32.totalorder %s14, 0
      %p56 = por %p54, %p55
      %p57 = scmp.ne.s32.totalorder %s45, %s46
      %p58 = scmp.eq.s32.totalorder %s15, 1
      %p59 = por %p57, %p58
      %p61 = scmp.ne.s32.totalorder %s46, %s60
      %p62 = scmp.eq.s32.totalorder %s15, 0
      %p63 = por %p61, %p62
      %s65 = sadd.s32 %s64, 1
      %p68 = scmp.eq.s32.totalorder %s9, 1
      %p69 = scmp.ne.s32.totalorder %s64, %s66
      %p70 = scmp.eq.s32.totalorder %s9, 0
      %p71 = por %p69, %p70
      %p72 = scmp.ne.s32.totalorder %s64, %s66
      %p73 = scmp.eq.s32.totalorder %s14, 1
      %p74 = por %p72, %p73
      %p75 = scmp.ne.s32.totalorder %s66, %s67
      %p76 = scmp.eq.s32.totalorder %s14, 0
      %p77 = por %p75, %p76
      %p78 = scmp.ne.s32.totalorder %s66, %s67
      %p79 = scmp.eq.s32.totalorder %s15, 1
      %p80 = por %p78, %p79
      %p82 = scmp.ne.s32.totalorder %s67, %s81
      %p83 = scmp.eq.s32.totalorder %s15, 0
      %p84 = por %p82, %p83
      %s85 = ssub.s32 %s9, %s16
      %p86 = scmp.eq.s32.totalorder %s85, 0
      %s88 = sadd.s32 %s87, 1
      %s89 = scalar_select %p86, %s87, %s88
      %p92 = pneg %p86
      %p93 = scmp.eq.s32.totalorder %s9, 1
      %p94 = por %p92, %p93
      %p95 = scmp.ne.s32.totalorder %s87, %s90
      %p96 = scmp.eq.s32.totalorder %s9, 0
      %p97 = por %p95, %p96
      %p98 = scmp.ne.s32.totalorder %s87, %s90
      %p99 = scmp.eq.s32.totalorder %s14, 1
      %p100 = por %p98, %p99
      %p101 = scmp.ne.s32.totalorder %s90, %s91
      %p102 = scmp.eq.s32.totalorder %s14, 0
      %p103 = por %p101, %p102
      %p104 = scmp.ne.s32.totalorder %s90, %s91
      %p105 = scmp.eq.s32.totalorder %s15, 1
      %p106 = por %p104, %p105
      %p108 = scmp.ne.s32.totalorder %s91, %s107
      %p109 = scmp.eq.s32.totalorder %s15, 0
      %p110 = por %p108, %p109
      %p111 = scmp.le.s32.totalorder 1, %s9
      %p112 = scmp.lt.s32.totalorder %s9, 3
      %p113 = pnand %p111, %p112
      %p114 = pneg %p113
      // Predicated region
      $region9: #{two_stage_anchor_based_lane_detector.8} parent=5 // pred_check
        _
      $region10: #{two_stage_anchor_based_lane_detector.8} parent=5 // pred_check_branch
        %116 = sbr.rel (%p113) target = $region12
      $region11: #{two_stage_anchor_based_lane_detector.8} parent=5 // pred_region
        %s117 = ssub.s32 %s9, 1
        // Predicated region
        $region13: #{two_stage_anchor_based_lane_detector.8} parent=11 // pred_check
          %p118 = pneg %p56
        $region14: #{two_stage_anchor_based_lane_detector.8} parent=11 // pred_check_branch
          %120 = sbr.rel (%p118) target = $region16
        $region15: #{two_stage_anchor_based_lane_detector.8} parent=11 // pred_region
          _
        $region16: #{two_stage_anchor_based_lane_detector.8} parent=11 // pred_fallthru
          _
        // Predicated region
        $region17: #{two_stage_anchor_based_lane_detector.8} parent=11 // pred_check
          %p121 = pneg %p77
        $region18: #{two_stage_anchor_based_lane_detector.8} parent=11 // pred_check_branch
          %123 = sbr.rel (%p121) target = $region20
        $region19: #{two_stage_anchor_based_lane_detector.8} parent=11 // pred_region
          _
        $region20: #{two_stage_anchor_based_lane_detector.8} parent=11 // pred_fallthru
          _
      $region12: #{two_stage_anchor_based_lane_detector.8} parent=5 // pred_fallthru
        _
      %p124 = scmp.lt.s32.totalorder %s9, 2
      // Predicated region
      $region21: #{two_stage_anchor_based_lane_detector.8} parent=5 // pred_check
        %p125 = pneg %p124
      $region22: #{two_stage_anchor_based_lane_detector.8} parent=5 // pred_check_branch
        %127 = sbr.rel (%p125) target = $region24
      $region23: #{two_stage_anchor_based_lane_detector.8} parent=5 // pred_region
        // Predicated region
        $region25: #{two_stage_anchor_based_lane_detector.8} parent=23 // pred_check
          %p128 = pneg %p29
        $region26: #{two_stage_anchor_based_lane_detector.8} parent=23 // pred_check_branch
          %130 = sbr.rel (%p128) target = $region28
        $region27: #{two_stage_anchor_based_lane_detector.8} parent=23 // pred_region
          %s131 = sand.u32 %s19, 1
          %s132 = sand.u32 %s19, 1
          %s133 = smul.addr %s132, 160
          %s134 = scalar_lea.vmem [#allocation2], %s133
          %s135 = smul.addr %s9, 5
          %s136 = smul.addr %s135, 8
          %s137 = scalar_lea.vmem %s0, %s136
          // Predicated region
          $region29: #{two_stage_anchor_based_lane_detector.8} parent=27 // pred_check
            _
          $region30: #{two_stage_anchor_based_lane_detector.8} parent=27 // pred_check_branch
            %139 = sbr.rel (0) target = $region32
          $region31: #{two_stage_anchor_based_lane_detector.8} parent=27 // pred_region
            // Predicated region
            $region33: #{two_stage_anchor_based_lane_detector.8} parent=31 // pred_check
              _
            $region34: #{two_stage_anchor_based_lane_detector.8} parent=31 // pred_check_branch
              %141 = sbr.rel (0) target = $region36
            $region35: #{two_stage_anchor_based_lane_detector.8} parent=31 // pred_region
              // Predicated region
              $region48: #{two_stage_anchor_based_lane_detector.8} parent=35 // pred_check
                _
              $region49: #{two_stage_anchor_based_lane_detector.8} parent=35 // pred_check_branch
                %195 = sbr.rel (0) target = $region51
              $region50: #{two_stage_anchor_based_lane_detector.8} parent=35 // pred_region
                loop: start=0, step=1, limit=1
                $region52: #{two_stage_anchor_based_lane_detector.8} parent=50 // loop_pre_header
                  _
                $region53: #{two_stage_anchor_based_lane_detector.8} parent=50 // loop_header
                  %s197 = sphi 0, %s201
                  %p198 = scmp.ge.s32.totalorder %s197, 1
                  %s202 = sphi %s137, %s137
                  %s203 = sphi %s134, %s134
                $region54: #{two_stage_anchor_based_lane_detector.8} parent=50 // loop_header_branch
                  %200 = sbr.rel (%p198) target = $region58
                $region55: #{two_stage_anchor_based_lane_detector.8} parent=50 // loop_body
                  %v204 = vld [vmem:[%s202] sm:$0xff]
                  %205 = vst [vmem:[%s203] sm:$0xff] %v204
                  %v206 = vld [vmem:[%s202 + $0x8] sm:$0xff]
                  %207 = vst [vmem:[%s203 + $0x8] sm:$0xff] %v206
                  %v208 = vld [vmem:[%s202 + $0x10] sm:$0xff]
                  %209 = vst [vmem:[%s203 + $0x10] sm:$0xff] %v208
                  %v210 = vld [vmem:[%s202 + $0x18] sm:$0xff]
                  %211 = vst [vmem:[%s203 + $0x18] sm:$0xff] %v210
                  %v212 = vld [vmem:[%s202 + $0x20] sm:$0xff]
                  %213 = vst [vmem:[%s203 + $0x20] sm:$0xff] %v212
                  %v214 = vld [vmem:[%s202 + $0x50] sm:$0xff]
                  %215 = vst [vmem:[%s203 + $0x28] sm:$0xff] %v214
                  %v216 = vld [vmem:[%s202 + $0x58] sm:$0xff]
                  %217 = vst [vmem:[%s203 + $0x30] sm:$0xff] %v216
                  %v218 = vld [vmem:[%s202 + $0x60] sm:$0xff]
                  %219 = vst [vmem:[%s203 + $0x38] sm:$0xff] %v218
                  %v220 = vld [vmem:[%s202 + $0x68] sm:$0xff]
                  %221 = vst [vmem:[%s203 + $0x40] sm:$0xff] %v220
                  %v222 = vld [vmem:[%s202 + $0x70] sm:$0xff]
                  %223 = vst [vmem:[%s203 + $0x48] sm:$0xff] %v222
                  %v224 = vld [vmem:[%s202 + $0xa0] sm:$0xff]
                  %225 = vst [vmem:[%s203 + $0x50] sm:$0xff] %v224
                  %v226 = vld [vmem:[%s202 + $0xa8] sm:$0xff]
                  %227 = vst [vmem:[%s203 + $0x58] sm:$0xff] %v226
                  %v228 = vld [vmem:[%s202 + $0xb0] sm:$0xff]
                  %229 = vst [vmem:[%s203 + $0x60] sm:$0xff] %v228
                  %v230 = vld [vmem:[%s202 + $0xb8] sm:$0xff]
                  %231 = vst [vmem:[%s203 + $0x68] sm:$0xff] %v230
                  %v232 = vld [vmem:[%s202 + $0xc0] sm:$0xff]
                  %233 = vst [vmem:[%s203 + $0x70] sm:$0xff] %v232
                  %v234 = vld [vmem:[%s202 + $0xf0] sm:$0xff]
                  %235 = vst [vmem:[%s203 + $0x78] sm:$0xff] %v234
                  %v236 = vld [vmem:[%s202 + $0xf8] sm:$0xff]
                  %237 = vst [vmem:[%s203 + $0x80] sm:$0xff] %v236
                  %v238 = vld [vmem:[%s202 + $0x100] sm:$0xff]
                  %239 = vst [vmem:[%s203 + $0x88] sm:$0xff] %v238
                  %v240 = vld [vmem:[%s202 + $0x108] sm:$0xff]
                  %241 = vst [vmem:[%s203 + $0x90] sm:$0xff] %v240
                  %v242 = vld [vmem:[%s202 + $0x110] sm:$0xff]
                  %243 = vst [vmem:[%s203 + $0x98] sm:$0xff] %v242
                $region56: #{two_stage_anchor_based_lane_detector.8} parent=50 // loop_footer
                  %s201 = sadd.s32 1, %s197
                $region57: #{two_stage_anchor_based_lane_detector.8} parent=50 // loop_footer_branch
                  %196 = sbr.rel target = $region53
                $region58: #{two_stage_anchor_based_lane_detector.8} parent=50 // loop_exit
                  _
              $region51: #{two_stage_anchor_based_lane_detector.8} parent=35 // pred_fallthru
                _
              // Predicated region
              $region59: #{two_stage_anchor_based_lane_detector.8} parent=35 // pred_check
                _
              $region60: #{two_stage_anchor_based_lane_detector.8} parent=35 // pred_check_branch
                %245 = sbr.rel target = $region62
              $region61: #{two_stage_anchor_based_lane_detector.8} parent=35 // pred_region
                _
              $region62: #{two_stage_anchor_based_lane_detector.8} parent=35 // pred_fallthru
                _
            $region36: #{two_stage_anchor_based_lane_detector.8} parent=31 // pred_fallthru
              _
            // Predicated region
            $region37: #{two_stage_anchor_based_lane_detector.8} parent=31 // pred_check
              _
            $region38: #{two_stage_anchor_based_lane_detector.8} parent=31 // pred_check_branch
              %143 = sbr.rel target = $region40
            $region39: #{two_stage_anchor_based_lane_detector.8} parent=31 // pred_region
              %s145 = ssub.s32 256, 1
              loop: start=0, step=1, limit=1
              $region41: #{two_stage_anchor_based_lane_detector.8} parent=39 // loop_pre_header
                _
              $region42: #{two_stage_anchor_based_lane_detector.8} parent=39 // loop_header
                %s147 = sphi 0, %s151
                %p148 = scmp.ge.s32.totalorder %s147, 1
                %s152 = sphi %s137, %s137
                %s153 = sphi %s134, %s134
              $region43: #{two_stage_anchor_based_lane_detector.8} parent=39 // loop_header_branch
                %150 = sbr.rel (%p148) target = $region47
              $region44: #{two_stage_anchor_based_lane_detector.8} parent=39 // loop_body
                %v154 = vld [vmem:[%s152] sm:%s145]
                %155 = vst [vmem:[%s153] sm:%s145] %v154
                %v156 = vld [vmem:[%s152 + $0x8] sm:%s145]
                %157 = vst [vmem:[%s153 + $0x8] sm:%s145] %v156
                %v158 = vld [vmem:[%s152 + $0x10] sm:%s145]
                %159 = vst [vmem:[%s153 + $0x10] sm:%s145] %v158
                %v160 = vld [vmem:[%s152 + $0x18] sm:%s145]
                %161 = vst [vmem:[%s153 + $0x18] sm:%s145] %v160
                %v162 = vld [vmem:[%s152 + $0x20] sm:%s145]
                %163 = vst [vmem:[%s153 + $0x20] sm:%s145] %v162
                %v164 = vld [vmem:[%s152 + $0x50] sm:%s145]
                %165 = vst [vmem:[%s153 + $0x28] sm:%s145] %v164
                %v166 = vld [vmem:[%s152 + $0x58] sm:%s145]
                %167 = vst [vmem:[%s153 + $0x30] sm:%s145] %v166
                %v168 = vld [vmem:[%s152 + $0x60] sm:%s145]
                %169 = vst [vmem:[%s153 + $0x38] sm:%s145] %v168
                %v170 = vld [vmem:[%s152 + $0x68] sm:%s145]
                %171 = vst [vmem:[%s153 + $0x40] sm:%s145] %v170
                %v172 = vld [vmem:[%s152 + $0x70] sm:%s145]
                %173 = vst [vmem:[%s153 + $0x48] sm:%s145] %v172
                %v174 = vld [vmem:[%s152 + $0xa0] sm:%s145]
                %175 = vst [vmem:[%s153 + $0x50] sm:%s145] %v174
                %v176 = vld [vmem:[%s152 + $0xa8] sm:%s145]
                %177 = vst [vmem:[%s153 + $0x58] sm:%s145] %v176
                %v178 = vld [vmem:[%s152 + $0xb0] sm:%s145]
                %179 = vst [vmem:[%s153 + $0x60] sm:%s145] %v178
                %v180 = vld [vmem:[%s152 + $0xb8] sm:%s145]
                %181 = vst [vmem:[%s153 + $0x68] sm:%s145] %v180
                %v182 = vld [vmem:[%s152 + $0xc0] sm:%s145]
                %183 = vst [vmem:[%s153 + $0x70] sm:%s145] %v182
                %v184 = vld [vmem:[%s152 + $0xf0] sm:%s145]
                %185 = vst [vmem:[%s153 + $0x78] sm:%s145] %v184
                %v186 = vld [vmem:[%s152 + $0xf8] sm:%s145]
                %187 = vst [vmem:[%s153 + $0x80] sm:%s145] %v186
                %v188 = vld [vmem:[%s152 + $0x100] sm:%s145]
                %189 = vst [vmem:[%s153 + $0x88] sm:%s145] %v188
                %v190 = vld [vmem:[%s152 + $0x108] sm:%s145]
                %191 = vst [vmem:[%s153 + $0x90] sm:%s145] %v190
                %v192 = vld [vmem:[%s152 + $0x110] sm:%s145]
                %193 = vst [vmem:[%s153 + $0x98] sm:%s145] %v192
              $region45: #{two_stage_anchor_based_lane_detector.8} parent=39 // loop_footer
                %s151 = sadd.s32 1, %s147
              $region46: #{two_stage_anchor_based_lane_detector.8} parent=39 // loop_footer_branch
                %146 = sbr.rel target = $region42
              $region47: #{two_stage_anchor_based_lane_detector.8} parent=39 // loop_exit
                _
            $region40: #{two_stage_anchor_based_lane_detector.8} parent=31 // pred_fallthru
              _
          $region32: #{two_stage_anchor_based_lane_detector.8} parent=27 // pred_fallthru
            _
          %246 = vnop
        $region28: #{two_stage_anchor_based_lane_detector.8} parent=23 // pred_fallthru
          _
      $region24: #{two_stage_anchor_based_lane_detector.8} parent=5 // pred_fallthru
        _
      %p247 = scmp.le.s32.totalorder 1, %s9
      %p248 = scmp.lt.s32.totalorder %s9, 3
      %p249 = pnand %p247, %p248
      %p250 = pneg %p249
      // Predicated region
      $region63: #{two_stage_anchor_based_lane_detector.8} parent=5 // pred_check
        _
      $region64: #{two_stage_anchor_based_lane_detector.8} parent=5 // pred_check_branch
        %252 = sbr.rel (%p249) target = $region66
      $region65: #{two_stage_anchor_based_lane_detector.8} parent=5 // pred_region
        %s253 = ssub.s32 %s9, 1
        %s254 = sand.u32 %s22, 1
        %s255 = sand.u32 %s22, 1
        %s256 = smul.addr %s255, 160
        %s257 = scalar_lea.vmem [#allocation2], %s256
        // Predicated region
        $region67: #{two_stage_anchor_based_lane_detector.8} parent=65 // pred_check
          %p258 = pneg %p35
        $region68: #{two_stage_anchor_based_lane_detector.8} parent=65 // pred_check_branch
          %260 = sbr.rel (%p258) target = $region70
        $region69: #{two_stage_anchor_based_lane_detector.8} parent=65 // pred_region
          _
        $region70: #{two_stage_anchor_based_lane_detector.8} parent=65 // pred_fallthru
          _
        %s261 = sand.u32 %s22, 1
        %s262 = sand.u32 %s22, 1
        %s263 = smul.addr %s262, 160
        %s264 = scalar_lea.vmem [#allocation2], %s263
        %p265 = pneg %p35
        %p266 = pneg %p32
        %p267 = pneg %p56
        %p268 = pneg %p53
        %p269 = pneg %p77
        %p270 = pneg %p74
        %p271 = pneg %p103
        %p272 = pneg %p100
        %p273 = scmp.lt.s32.totalorder %s14, 1
        %s274 = scalar_select %p273, %s14, 1
        %s275 = smul.addr %s274, 4
        %s276 = smul.addr %s275, 4
        %s277 = scalar_lea.vmem %s3, %s276
        %p278 = scmp.lt.s32.totalorder %s14, 1
        %s279 = scalar_select %p278, %s14, 1
        %s280 = smul.addr %s279, 4
        %s281 = smul.addr %s280, 4
        %s282 = scalar_lea.vmem %s3, %s281
        %v284 = vld [vmem:[%s257] sm:$0xf]
        %v285 = vld [vmem:[%s257 + $0x8] sm:$0xf]
        %v286 = vld [vmem:[%s257 + $0x10] sm:$0xf]
        %v287 = vld [vmem:[%s257 + $0x18] sm:$0xf]
        %v292 = vcombine.low %v284, %v285
        %v293 = vcombine.low %v286, %v287
        %v296 = vpack.c.bf16 %v293, %v292
        %v297 = vld [vmem:[%s1] sm:$0xf]
        %v298 = vld [vmem:[%s1 + $0x4] sm:$0xf]
        %s299 = scalar_lea.vmem %s257, 40 [#allocation2]
        %v300 = vld [vmem:[%s299] sm:$0xf]
        %v301 = vld [vmem:[%s299 + $0x8] sm:$0xf]
        %v302 = vld [vmem:[%s299 + $0x10] sm:$0xf]
        %v303 = vld [vmem:[%s299 + $0x18] sm:$0xf]
        %v308 = vcombine.low %v300, %v301
        %v309 = vcombine.low %v302, %v303
        %v312 = vpack.c.bf16 %v309, %v308
        %s313 = scalar_lea.vmem %s1, 8
        %v314 = vld [vmem:[%s313] sm:$0xf]
        %v315 = vld [vmem:[%s313 + $0x4] sm:$0xf]
        %v318 = vunpack.c.l.b16 %v314
        %v319 = vunpack.c.l.b16 %v315
        %v320 = vpack.c.b16 %v319, %v318
        %vm322 = vcmask 130048
        %v324 = vsel %vm322, %v312, 0
        %326 = vmatprep.subr.bf16.mxu0 0
        %327 = vmatpush1.bf16.msra.mxu0 0
        %328 = vmatprep.subr.bf16.mxu0 0
        %329 = vmatpush1.bf16.msra.mxu0 0
        %330 = vmatprep.subr.bf16.mxu0 0
        %331 = vmatpush1.bf16.msra.mxu0 0
        %332 = vmatprep.subr.bf16.mxu0 0
        %333 = vmatpush1.bf16.msra.mxu0 0
        %334 = vmatprep.subr.bf16.mxu0 0
        %335 = vmatpush1.bf16.msra.mxu0 0
        %336 = vmatprep.subr.bf16.mxu0 0
        %337 = vmatpush1.bf16.msra.mxu0 0
        %338 = vmatprep.subr.bf16.mxu0 0
        %339 = vmatpush1.bf16.msra.mxu0 0
        %340 = vmatprep.subr.bf16.mxu0 0
        %341 = vmatpush1.bf16.msra.mxu0 %v320
        %342 = vmatprep.subr.bf16.mxu0 0
        %343 = vmatpush2.bf16.msra.mxu0 0
        %344 = vmatprep.subr.bf16.mxu0 0
        %345 = vmatpush2.bf16.msra.mxu0 0
        %346 = vmatprep.subr.bf16.mxu0 0
        %347 = vmatpush2.bf16.msra.mxu0 0
        %348 = vmatprep.subr.bf16.mxu0 0
        %349 = vmatpush2.bf16.msra.mxu0 0
        %350 = vmatprep.subr.bf16.mxu0 0
        %351 = vmatpush2.bf16.msra.mxu0 0
        %352 = vmatprep.subr.bf16.mxu0 0
        %353 = vmatpush2.bf16.msra.mxu0 0
        %354 = vmatprep.subr.bf16.mxu0 0
        %355 = vmatpush2.bf16.msra.mxu0 0
        %356 = vmatprep.subr.bf16.mxu0 0
        %357 = vmatpush2.bf16.msra.mxu0 0
        %358 = vmatprep.mubr.bf16.mxu0 0
        %359 = vmatmul.mubr.bf16.gmra.mxu0 %v324
        %v360 = vpop.f32.mrf.mxu0
        %v361 = vadd.f32 0.0, %v360
        %v362 = vpop.f32.mrf.mxu0
        %v363 = vpop.f32.mrf.mxu0
        %v364 = vadd.f32 0.0, %v363
        %v365 = vpop.f32.mrf.mxu0
        %366 = vdwg.mxu0
        %v369 = vunpack.c.l.b16 %v297
        %v370 = vunpack.c.l.b16 %v298
        %v371 = vpack.c.b16 %v370, %v369
        %v374 = vsel %vm322, %v296, 0
        %376 = vmatprep.subr.bf16.mxu0 0
        %377 = vmatpush1.bf16.msra.mxu0 0
        %378 = vmatprep.subr.bf16.mxu0 0
        %379 = vmatpush1.bf16.msra.mxu0 0
        %380 = vmatprep.subr.bf16.mxu0 0
        %381 = vmatpush1.bf16.msra.mxu0 0
        %382 = vmatprep.subr.bf16.mxu0 0
        %383 = vmatpush1.bf16.msra.mxu0 0
        %384 = vmatprep.subr.bf16.mxu0 0
        %385 = vmatpush1.bf16.msra.mxu0 0
        %386 = vmatprep.subr.bf16.mxu0 0
        %387 = vmatpush1.bf16.msra.mxu0 0
        %388 = vmatprep.subr.bf16.mxu0 0
        %389 = vmatpush1.bf16.msra.mxu0 0
        %390 = vmatprep.subr.bf16.mxu0 0
        %391 = vmatpush1.bf16.msra.mxu0 %v371
        %392 = vmatprep.subr.bf16.mxu0 0
        %393 = vmatpush2.bf16.msra.mxu0 0
        %394 = vmatprep.subr.bf16.mxu0 0
        %395 = vmatpush2.bf16.msra.mxu0 0
        %396 = vmatprep.subr.bf16.mxu0 0
        %397 = vmatpush2.bf16.msra.mxu0 0
        %398 = vmatprep.subr.bf16.mxu0 0
        %399 = vmatpush2.bf16.msra.mxu0 0
        %400 = vmatprep.subr.bf16.mxu0 0
        %401 = vmatpush2.bf16.msra.mxu0 0
        %402 = vmatprep.subr.bf16.mxu0 0
        %403 = vmatpush2.bf16.msra.mxu0 0
        %404 = vmatprep.subr.bf16.mxu0 0
        %405 = vmatpush2.bf16.msra.mxu0 0
        %406 = vmatprep.subr.bf16.mxu0 0
        %407 = vmatpush2.bf16.msra.mxu0 0
        %408 = vmatprep.mubr.bf16.mxu0 0
        %409 = vmatmul.mubr.bf16.gmra.mxu0 %v374
        %v410 = vpop.f32.mrf.mxu0
        %v411 = vadd.f32 %v361, %v410
        %v412 = vpop.f32.mrf.mxu0
        %v413 = vpop.f32.mrf.mxu0
        %v414 = vadd.f32 %v364, %v413
        %v415 = vpop.f32.mrf.mxu0
        %416 = vdwg.mxu0
        %v417 = vld [vmem:[%s257 + $0x1] sm:$0xf]
        %v418 = vld [vmem:[%s257 + $0x9] sm:$0xf]
        %v419 = vld [vmem:[%s257 + $0x11] sm:$0xf]
        %v420 = vld [vmem:[%s257 + $0x19] sm:$0xf]
        %v425 = vcombine.low %v417, %v418
        %v426 = vcombine.low %v419, %v420
        %v429 = vpack.c.bf16 %v426, %v425
        %s430 = scalar_lea.vmem %s1, 16
        %v431 = vld [vmem:[%s430] sm:$0xf]
        %v432 = vld [vmem:[%s430 + $0x4] sm:$0xf]
        %v435 = vunpack.c.l.b16 %v431
        %v436 = vunpack.c.l.b16 %v432
        %v437 = vpack.c.b16 %v436, %v435
        %v440 = vsel %vm322, %v429, 0
        %442 = vmatprep.subr.bf16.mxu0 0
        %443 = vmatpush1.bf16.msra.mxu0 0
        %444 = vmatprep.subr.bf16.mxu0 0
        %445 = vmatpush1.bf16.msra.mxu0 0
        %446 = vmatprep.subr.bf16.mxu0 0
        %447 = vmatpush1.bf16.msra.mxu0 0
        %448 = vmatprep.subr.bf16.mxu0 0
        %449 = vmatpush1.bf16.msra.mxu0 0
        %450 = vmatprep.subr.bf16.mxu0 0
        %451 = vmatpush1.bf16.msra.mxu0 0
        %452 = vmatprep.subr.bf16.mxu0 0
        %453 = vmatpush1.bf16.msra.mxu0 0
        %454 = vmatprep.subr.bf16.mxu0 0
        %455 = vmatpush1.bf16.msra.mxu0 0
        %456 = vmatprep.subr.bf16.mxu0 0
        %457 = vmatpush1.bf16.msra.mxu0 %v437
        %458 = vmatprep.subr.bf16.mxu0 0
        %459 = vmatpush2.bf16.msra.mxu0 0
        %460 = vmatprep.subr.bf16.mxu0 0
        %461 = vmatpush2.bf16.msra.mxu0 0
        %462 = vmatprep.subr.bf16.mxu0 0
        %463 = vmatpush2.bf16.msra.mxu0 0
        %464 = vmatprep.subr.bf16.mxu0 0
        %465 = vmatpush2.bf16.msra.mxu0 0
        %466 = vmatprep.subr.bf16.mxu0 0
        %467 = vmatpush2.bf16.msra.mxu0 0
        %468 = vmatprep.subr.bf16.mxu0 0
        %469 = vmatpush2.bf16.msra.mxu0 0
        %470 = vmatprep.subr.bf16.mxu0 0
        %471 = vmatpush2.bf16.msra.mxu0 0
        %472 = vmatprep.subr.bf16.mxu0 0
        %473 = vmatpush2.bf16.msra.mxu0 0
        %474 = vmatprep.mubr.bf16.mxu0 0
        %475 = vmatmul.mubr.bf16.gmra.mxu0 %v440
        %v476 = vpop.f32.mrf.mxu0
        %v477 = vadd.f32 0.0, %v476
        %v478 = vpop.f32.mrf.mxu0
        %v479 = vpop.f32.mrf.mxu0
        %v480 = vadd.f32 0.0, %v479
        %v481 = vpop.f32.mrf.mxu0
        %482 = vdwg.mxu0
        %v483 = vadd.f32 %v411, %v477
        %v484 = vadd.f32 %v414, %v480
        %s485 = scalar_lea.vmem %s257, 80 [#allocation2]
        %v486 = vld [vmem:[%s485] sm:$0xf]
        %v487 = vld [vmem:[%s485 + $0x8] sm:$0xf]
        %v488 = vld [vmem:[%s485 + $0x10] sm:$0xf]
        %v489 = vld [vmem:[%s485 + $0x18] sm:$0xf]
        %v494 = vcombine.low %v486, %v487
        %v495 = vcombine.low %v488, %v489
        %v498 = vpack.c.bf16 %v495, %v494
        %s499 = scalar_lea.vmem %s1, 24
        %v500 = vld [vmem:[%s499] sm:$0xf]
        %v501 = vld [vmem:[%s499 + $0x4] sm:$0xf]
        %v504 = vunpack.c.l.b16 %v500
        %v505 = vunpack.c.l.b16 %v501
        %v506 = vpack.c.b16 %v505, %v504
        %v509 = vsel %vm322, %v498, 0
        %511 = vmatprep.subr.bf16.mxu0 0
        %512 = vmatpush1.bf16.msra.mxu0 0
        %513 = vmatprep.subr.bf16.mxu0 0
        %514 = vmatpush1.bf16.msra.mxu0 0
        %515 = vmatprep.subr.bf16.mxu0 0
        %516 = vmatpush1.bf16.msra.mxu0 0
        %517 = vmatprep.subr.bf16.mxu0 0
        %518 = vmatpush1.bf16.msra.mxu0 0
        %519 = vmatprep.subr.bf16.mxu0 0
        %520 = vmatpush1.bf16.msra.mxu0 0
        %521 = vmatprep.subr.bf16.mxu0 0
        %522 = vmatpush1.bf16.msra.mxu0 0
        %523 = vmatprep.subr.bf16.mxu0 0
        %524 = vmatpush1.bf16.msra.mxu0 0
        %525 = vmatprep.subr.bf16.mxu0 0
        %526 = vmatpush1.bf16.msra.mxu0 %v506
        %527 = vmatprep.subr.bf16.mxu0 0
        %528 = vmatpush2.bf16.msra.mxu0 0
        %529 = vmatprep.subr.bf16.mxu0 0
        %530 = vmatpush2.bf16.msra.mxu0 0
        %531 = vmatprep.subr.bf16.mxu0 0
        %532 = vmatpush2.bf16.msra.mxu0 0
        %533 = vmatprep.subr.bf16.mxu0 0
        %534 = vmatpush2.bf16.msra.mxu0 0
        %535 = vmatprep.subr.bf16.mxu0 0
        %536 = vmatpush2.bf16.msra.mxu0 0
        %537 = vmatprep.subr.bf16.mxu0 0
        %538 = vmatpush2.bf16.msra.mxu0 0
        %539 = vmatprep.subr.bf16.mxu0 0
        %540 = vmatpush2.bf16.msra.mxu0 0
        %541 = vmatprep.subr.bf16.mxu0 0
        %542 = vmatpush2.bf16.msra.mxu0 0
        %543 = vmatprep.mubr.bf16.mxu0 0
        %544 = vmatmul.mubr.bf16.gmra.mxu0 %v509
        %v545 = vpop.f32.mrf.mxu0
        %v546 = vadd.f32 0.0, %v545
        %v547 = vpop.f32.mrf.mxu0
        %v548 = vpop.f32.mrf.mxu0
        %v549 = vadd.f32 0.0, %v548
        %v550 = vpop.f32.mrf.mxu0
        %551 = vdwg.mxu0
        %v552 = vadd.f32 %v483, %v546
        %v553 = vadd.f32 %v484, %v549
        %s554 = scalar_lea.vmem %s257, 120 [#allocation2]
        %v555 = vld [vmem:[%s554] sm:$0xf]
        %v556 = vld [vmem:[%s554 + $0x8] sm:$0xf]
        %v557 = vld [vmem:[%s554 + $0x10] sm:$0xf]
        %v558 = vld [vmem:[%s554 + $0x18] sm:$0xf]
        %v563 = vcombine.low %v555, %v556
        %v564 = vcombine.low %v557, %v558
        %v567 = vpack.c.bf16 %v564, %v563
        %s568 = scalar_lea.vmem %s1, 32
        %v569 = vld [vmem:[%s568] sm:$0xf]
        %v570 = vld [vmem:[%s568 + $0x4] sm:$0xf]
        %v573 = vunpack.c.l.b16 %v569
        %v574 = vunpack.c.l.b16 %v570
        %v575 = vpack.c.b16 %v574, %v573
        %v578 = vsel %vm322, %v567, 0
        %580 = vmatprep.subr.bf16.mxu0 0
        %581 = vmatpush1.bf16.msra.mxu0 0
        %582 = vmatprep.subr.bf16.mxu0 0
        %583 = vmatpush1.bf16.msra.mxu0 0
        %584 = vmatprep.subr.bf16.mxu0 0
        %585 = vmatpush1.bf16.msra.mxu0 0
        %586 = vmatprep.subr.bf16.mxu0 0
        %587 = vmatpush1.bf16.msra.mxu0 0
        %588 = vmatprep.subr.bf16.mxu0 0
        %589 = vmatpush1.bf16.msra.mxu0 0
        %590 = vmatprep.subr.bf16.mxu0 0
        %591 = vmatpush1.bf16.msra.mxu0 0
        %592 = vmatprep.subr.bf16.mxu0 0
        %593 = vmatpush1.bf16.msra.mxu0 0
        %594 = vmatprep.subr.bf16.mxu0 0
        %595 = vmatpush1.bf16.msra.mxu0 %v575
        %596 = vmatprep.subr.bf16.mxu0 0
        %597 = vmatpush2.bf16.msra.mxu0 0
        %598 = vmatprep.subr.bf16.mxu0 0
        %599 = vmatpush2.bf16.msra.mxu0 0
        %600 = vmatprep.subr.bf16.mxu0 0
        %601 = vmatpush2.bf16.msra.mxu0 0
        %602 = vmatprep.subr.bf16.mxu0 0
        %603 = vmatpush2.bf16.msra.mxu0 0
        %604 = vmatprep.subr.bf16.mxu0 0
        %605 = vmatpush2.bf16.msra.mxu0 0
        %606 = vmatprep.subr.bf16.mxu0 0
        %607 = vmatpush2.bf16.msra.mxu0 0
        %608 = vmatprep.subr.bf16.mxu0 0
        %609 = vmatpush2.bf16.msra.mxu0 0
        %610 = vmatprep.subr.bf16.mxu0 0
        %611 = vmatpush2.bf16.msra.mxu0 0
        %612 = vmatprep.mubr.bf16.mxu0 0
        %613 = vmatmul.mubr.bf16.gmra.mxu0 %v578
        %v614 = vpop.f32.mrf.mxu0
        %v615 = vadd.f32 0.0, %v614
        %v616 = vpop.f32.mrf.mxu0
        %v617 = vpop.f32.mrf.mxu0
        %v618 = vadd.f32 0.0, %v617
        %v619 = vpop.f32.mrf.mxu0
        %620 = vdwg.mxu0
        %v621 = vadd.f32 %v552, %v615
        %v622 = vadd.f32 %v553, %v618
        %v623 = vld [vmem:[%s485 + $0x1] sm:$0xf]
        %v624 = vld [vmem:[%s485 + $0x9] sm:$0xf]
        %v625 = vld [vmem:[%s485 + $0x11] sm:$0xf]
        %v626 = vld [vmem:[%s485 + $0x19] sm:$0xf]
        %v631 = vcombine.low %v623, %v624
        %v632 = vcombine.low %v625, %v626
        %v635 = vpack.c.bf16 %v632, %v631
        %s636 = scalar_lea.vmem %s1, 40
        %v637 = vld [vmem:[%s636] sm:$0xf]
        %v638 = vld [vmem:[%s636 + $0x4] sm:$0xf]
        %v641 = vunpack.c.l.b16 %v637
        %v642 = vunpack.c.l.b16 %v638
        %v643 = vpack.c.b16 %v642, %v641
        %v646 = vsel %vm322, %v635, 0
        %648 = vmatprep.subr.bf16.mxu0 0
        %649 = vmatpush1.bf16.msra.mxu0 0
        %650 = vmatprep.subr.bf16.mxu0 0
        %651 = vmatpush1.bf16.msra.mxu0 0
        %652 = vmatprep.subr.bf16.mxu0 0
        %653 = vmatpush1.bf16.msra.mxu0 0
        %654 = vmatprep.subr.bf16.mxu0 0
        %655 = vmatpush1.bf16.msra.mxu0 0
        %656 = vmatprep.subr.bf16.mxu0 0
        %657 = vmatpush1.bf16.msra.mxu0 0
        %658 = vmatprep.subr.bf16.mxu0 0
        %659 = vmatpush1.bf16.msra.mxu0 0
        %660 = vmatprep.subr.bf16.mxu0 0
        %661 = vmatpush1.bf16.msra.mxu0 0
        %662 = vmatprep.subr.bf16.mxu0 0
        %663 = vmatpush1.bf16.msra.mxu0 %v643
        %664 = vmatprep.subr.bf16.mxu0 0
        %665 = vmatpush2.bf16.msra.mxu0 0
        %666 = vmatprep.subr.bf16.mxu0 0
        %667 = vmatpush2.bf16.msra.mxu0 0
        %668 = vmatprep.subr.bf16.mxu0 0
        %669 = vmatpush2.bf16.msra.mxu0 0
        %670 = vmatprep.subr.bf16.mxu0 0
        %671 = vmatpush2.bf16.msra.mxu0 0
        %672 = vmatprep.subr.bf16.mxu0 0
        %673 = vmatpush2.bf16.msra.mxu0 0
        %674 = vmatprep.subr.bf16.mxu0 0
        %675 = vmatpush2.bf16.msra.mxu0 0
        %676 = vmatprep.subr.bf16.mxu0 0
        %677 = vmatpush2.bf16.msra.mxu0 0
        %678 = vmatprep.subr.bf16.mxu0 0
        %679 = vmatpush2.bf16.msra.mxu0 0
        %680 = vmatprep.mubr.bf16.mxu0 0
        %681 = vmatmul.mubr.bf16.gmra.mxu0 %v646
        %v682 = vpop.f32.mrf.mxu0
        %v683 = vadd.f32 0.0, %v682
        %v684 = vpop.f32.mrf.mxu0
        %v685 = vpop.f32.mrf.mxu0
        %v686 = vadd.f32 0.0, %v685
        %v687 = vpop.f32.mrf.mxu0
        %688 = vdwg.mxu0
        %v689 = vadd.f32 %v621, %v683
        %v690 = vadd.f32 %v622, %v686
        %s691 = scalar_lea.vmem %s257, 8 [#allocation2]
        %v692 = vld [vmem:[%s691] sm:$0xf]
        %v693 = vld [vmem:[%s691 + $0x8] sm:$0xf]
        %v694 = vld [vmem:[%s691 + $0x10] sm:$0xf]
        %v695 = vld [vmem:[%s691 + $0x18] sm:$0xf]
        %v700 = vcombine.low %v692, %v693
        %v701 = vcombine.low %v694, %v695
        %v704 = vpack.c.bf16 %v701, %v700
        %s705 = scalar_lea.vmem %s1, 48
        %v706 = vld [vmem:[%s705] sm:$0xf]
        %v707 = vld [vmem:[%s705 + $0x4] sm:$0xf]
        %v710 = vunpack.c.l.b16 %v706
        %v711 = vunpack.c.l.b16 %v707
        %v712 = vpack.c.b16 %v711, %v710
        %v715 = vsel %vm322, %v704, 0
        %717 = vmatprep.subr.bf16.mxu0 0
        %718 = vmatpush1.bf16.msra.mxu0 0
        %719 = vmatprep.subr.bf16.mxu0 0
        %720 = vmatpush1.bf16.msra.mxu0 0
        %721 = vmatprep.subr.bf16.mxu0 0
        %722 = vmatpush1.bf16.msra.mxu0 0
        %723 = vmatprep.subr.bf16.mxu0 0
        %724 = vmatpush1.bf16.msra.mxu0 0
        %725 = vmatprep.subr.bf16.mxu0 0
        %726 = vmatpush1.bf16.msra.mxu0 0
        %727 = vmatprep.subr.bf16.mxu0 0
        %728 = vmatpush1.bf16.msra.mxu0 0
        %729 = vmatprep.subr.bf16.mxu0 0
        %730 = vmatpush1.bf16.msra.mxu0 0
        %731 = vmatprep.subr.bf16.mxu0 0
        %732 = vmatpush1.bf16.msra.mxu0 %v712
        %733 = vmatprep.subr.bf16.mxu0 0
        %734 = vmatpush2.bf16.msra.mxu0 0
        %735 = vmatprep.subr.bf16.mxu0 0
        %736 = vmatpush2.bf16.msra.mxu0 0
        %737 = vmatprep.subr.bf16.mxu0 0
        %738 = vmatpush2.bf16.msra.mxu0 0
        %739 = vmatprep.subr.bf16.mxu0 0
        %740 = vmatpush2.bf16.msra.mxu0 0
        %741 = vmatprep.subr.bf16.mxu0 0
        %742 = vmatpush2.bf16.msra.mxu0 0
        %743 = vmatprep.subr.bf16.mxu0 0
        %744 = vmatpush2.bf16.msra.mxu0 0
        %745 = vmatprep.subr.bf16.mxu0 0
        %746 = vmatpush2.bf16.msra.mxu0 0
        %747 = vmatprep.subr.bf16.mxu0 0
        %748 = vmatpush2.bf16.msra.mxu0 0
        %749 = vmatprep.mubr.bf16.mxu0 0
        %750 = vmatmul.mubr.bf16.gmra.mxu0 %v715
        %v751 = vpop.f32.mrf.mxu0
        %v752 = vadd.f32 0.0, %v751
        %v753 = vpop.f32.mrf.mxu0
        %v754 = vpop.f32.mrf.mxu0
        %v755 = vadd.f32 0.0, %v754
        %v756 = vpop.f32.mrf.mxu0
        %757 = vdwg.mxu0
        %v758 = vadd.f32 %v689, %v752
        %v759 = vadd.f32 %v690, %v755
        %s760 = scalar_lea.vmem %s257, 48 [#allocation2]
        %v761 = vld [vmem:[%s760] sm:$0xf]
        %v762 = vld [vmem:[%s760 + $0x8] sm:$0xf]
        %v763 = vld [vmem:[%s760 + $0x10] sm:$0xf]
        %v764 = vld [vmem:[%s760 + $0x18] sm:$0xf]
        %v769 = vcombine.low %v761, %v762
        %v770 = vcombine.low %v763, %v764
        %v773 = vpack.c.bf16 %v770, %v769
        %s774 = scalar_lea.vmem %s1, 56
        %v775 = vld [vmem:[%s774] sm:$0xf]
        %v776 = vld [vmem:[%s774 + $0x4] sm:$0xf]
        %v779 = vunpack.c.l.b16 %v775
        %v780 = vunpack.c.l.b16 %v776
        %v781 = vpack.c.b16 %v780, %v779
        %v784 = vsel %vm322, %v773, 0
        %786 = vmatprep.subr.bf16.mxu0 0
        %787 = vmatpush1.bf16.msra.mxu0 0
        %788 = vmatprep.subr.bf16.mxu0 0
        %789 = vmatpush1.bf16.msra.mxu0 0
        %790 = vmatprep.subr.bf16.mxu0 0
        %791 = vmatpush1.bf16.msra.mxu0 0
        %792 = vmatprep.subr.bf16.mxu0 0
        %793 = vmatpush1.bf16.msra.mxu0 0
        %794 = vmatprep.subr.bf16.mxu0 0
        %795 = vmatpush1.bf16.msra.mxu0 0
        %796 = vmatprep.subr.bf16.mxu0 0
        %797 = vmatpush1.bf16.msra.mxu0 0
        %798 = vmatprep.subr.bf16.mxu0 0
        %799 = vmatpush1.bf16.msra.mxu0 0
        %800 = vmatprep.subr.bf16.mxu0 0
        %801 = vmatpush1.bf16.msra.mxu0 %v781
        %802 = vmatprep.subr.bf16.mxu0 0
        %803 = vmatpush2.bf16.msra.mxu0 0
        %804 = vmatprep.subr.bf16.mxu0 0
        %805 = vmatpush2.bf16.msra.mxu0 0
        %806 = vmatprep.subr.bf16.mxu0 0
        %807 = vmatpush2.bf16.msra.mxu0 0
        %808 = vmatprep.subr.bf16.mxu0 0
        %809 = vmatpush2.bf16.msra.mxu0 0
        %810 = vmatprep.subr.bf16.mxu0 0
        %811 = vmatpush2.bf16.msra.mxu0 0
        %812 = vmatprep.subr.bf16.mxu0 0
        %813 = vmatpush2.bf16.msra.mxu0 0
        %814 = vmatprep.subr.bf16.mxu0 0
        %815 = vmatpush2.bf16.msra.mxu0 0
        %816 = vmatprep.subr.bf16.mxu0 0
        %817 = vmatpush2.bf16.msra.mxu0 0
        %818 = vmatprep.mubr.bf16.mxu0 0
        %819 = vmatmul.mubr.bf16.gmra.mxu0 %v784
        %v820 = vpop.f32.mrf.mxu0
        %v821 = vadd.f32 0.0, %v820
        %v822 = vpop.f32.mrf.mxu0
        %v823 = vpop.f32.mrf.mxu0
        %v824 = vadd.f32 0.0, %v823
        %v825 = vpop.f32.mrf.mxu0
        %826 = vdwg.mxu0
        %v827 = vadd.f32 %v758, %v821
        %v828 = vadd.f32 %v759, %v824
        %v829 = vld [vmem:[%s691 + $0x1] sm:$0xf]
        %v830 = vld [vmem:[%s691 + $0x9] sm:$0xf]
        %v831 = vld [vmem:[%s691 + $0x11] sm:$0xf]
        %v832 = vld [vmem:[%s691 + $0x19] sm:$0xf]
        %v837 = vcombine.low %v829, %v830
        %v838 = vcombine.low %v831, %v832
        %v841 = vpack.c.bf16 %v838, %v837
        %s842 = scalar_lea.vmem %s1, 64
        %v843 = vld [vmem:[%s842] sm:$0xf]
        %v844 = vld [vmem:[%s842 + $0x4] sm:$0xf]
        %v847 = vunpack.c.l.b16 %v843
        %v848 = vunpack.c.l.b16 %v844
        %v849 = vpack.c.b16 %v848, %v847
        %v852 = vsel %vm322, %v841, 0
        %854 = vmatprep.subr.bf16.mxu0 0
        %855 = vmatpush1.bf16.msra.mxu0 0
        %856 = vmatprep.subr.bf16.mxu0 0
        %857 = vmatpush1.bf16.msra.mxu0 0
        %858 = vmatprep.subr.bf16.mxu0 0
        %859 = vmatpush1.bf16.msra.mxu0 0
        %860 = vmatprep.subr.bf16.mxu0 0
        %861 = vmatpush1.bf16.msra.mxu0 0
        %862 = vmatprep.subr.bf16.mxu0 0
        %863 = vmatpush1.bf16.msra.mxu0 0
        %864 = vmatprep.subr.bf16.mxu0 0
        %865 = vmatpush1.bf16.msra.mxu0 0
        %866 = vmatprep.subr.bf16.mxu0 0
        %867 = vmatpush1.bf16.msra.mxu0 0
        %868 = vmatprep.subr.bf16.mxu0 0
        %869 = vmatpush1.bf16.msra.mxu0 %v849
        %870 = vmatprep.subr.bf16.mxu0 0
        %871 = vmatpush2.bf16.msra.mxu0 0
        %872 = vmatprep.subr.bf16.mxu0 0
        %873 = vmatpush2.bf16.msra.mxu0 0
        %874 = vmatprep.subr.bf16.mxu0 0
        %875 = vmatpush2.bf16.msra.mxu0 0
        %876 = vmatprep.subr.bf16.mxu0 0
        %877 = vmatpush2.bf16.msra.mxu0 0
        %878 = vmatprep.subr.bf16.mxu0 0
        %879 = vmatpush2.bf16.msra.mxu0 0
        %880 = vmatprep.subr.bf16.mxu0 0
        %881 = vmatpush2.bf16.msra.mxu0 0
        %882 = vmatprep.subr.bf16.mxu0 0
        %883 = vmatpush2.bf16.msra.mxu0 0
        %884 = vmatprep.subr.bf16.mxu0 0
        %885 = vmatpush2.bf16.msra.mxu0 0
        %886 = vmatprep.mubr.bf16.mxu0 0
        %887 = vmatmul.mubr.bf16.gmra.mxu0 %v852
        %v888 = vpop.f32.mrf.mxu0
        %v889 = vadd.f32 0.0, %v888
        %v890 = vpop.f32.mrf.mxu0
        %v891 = vpop.f32.mrf.mxu0
        %v892 = vadd.f32 0.0, %v891
        %v893 = vpop.f32.mrf.mxu0
        %894 = vdwg.mxu0
        %v895 = vadd.f32 %v827, %v889
        %v896 = vadd.f32 %v828, %v892
        %v897 = vld [vmem:[%s2] sm:$0x1]
        %v899 = vlaneseq
        %v900 = vshrl.u32 %v899, 7
        %v901 = vsub.s32 0, %v900
        %v902 = vrot.slane %v897, %v901
        %v904 = vadd.f32 %v895, %v902
        %v905 = vadd.f32 %v896, %v902
        %v906 = vmax.f32 %v904, 0.0
        %v907 = vmax.f32 %v905, 0.0
        %v910 = vcombine.high %v906, %v906
        %v911 = vcombine.high %v907, %v907
        %vm914 = vcmask 257024
        %915 = vst.msk [vmem:[%s282] sm:$0xf] %vm914, %v906
        %916 = vst.msk [vmem:[%s282 + $0x4] sm:$0xf] %vm914, %v910
        %917 = vst.msk [vmem:[%s282 + $0x8] sm:$0xf] %vm914, %v907
        %918 = vst.msk [vmem:[%s282 + $0xc] sm:$0xf] %vm914, %v911
        %p919 = scmp.lt.s32.totalorder %s14, 1
        %s920 = scalar_select %p919, %s14, 1
        %s921 = smul.addr %s920, 4
        %s922 = smul.addr %s921, 4
        %s923 = scalar_lea.vmem %s3, %s922
        // Predicated region
        $region71: #{two_stage_anchor_based_lane_detector.8} parent=65 // pred_check
          %p924 = pneg %p100
        $region72: #{two_stage_anchor_based_lane_detector.8} parent=65 // pred_check_branch
          %926 = sbr.rel (%p924) target = $region74
        $region73: #{two_stage_anchor_based_lane_detector.8} parent=65 // pred_region
          _
        $region74: #{two_stage_anchor_based_lane_detector.8} parent=65 // pred_fallthru
          _
      $region66: #{two_stage_anchor_based_lane_detector.8} parent=5 // pred_fallthru
        _
      %p927 = scmp.le.s32.totalorder 2, %s9
      // Predicated region
      $region75: #{two_stage_anchor_based_lane_detector.8} parent=5 // pred_check
        %p928 = pneg %p927
      $region76: #{two_stage_anchor_based_lane_detector.8} parent=5 // pred_check_branch
        %930 = sbr.rel (%p928) target = $region78
      $region77: #{two_stage_anchor_based_lane_detector.8} parent=5 // pred_region
        %s931 = ssub.s32 %s9, 2
        // Predicated region
        $region79: #{two_stage_anchor_based_lane_detector.8} parent=77 // pred_check
          %p932 = pneg %p106
        $region80: #{two_stage_anchor_based_lane_detector.8} parent=77 // pred_check_branch
          %934 = sbr.rel (%p932) target = $region82
        $region81: #{two_stage_anchor_based_lane_detector.8} parent=77 // pred_region
          %p935 = scmp.lt.s32.totalorder %s15, 1
          %s936 = scalar_select %p935, %s15, 1
          %s937 = smul.addr %s936, 4
          %s938 = smul.addr %s937, 4
          %s939 = scalar_lea.vmem %s3, %s938
        $region82: #{two_stage_anchor_based_lane_detector.8} parent=77 // pred_fallthru
          _
      $region78: #{two_stage_anchor_based_lane_detector.8} parent=5 // pred_fallthru
        _
    $region6: #{two_stage_anchor_based_lane_detector.8} parent=1 // loop_footer
      %s13 = sadd.s32 1, %s9
    $region7: #{two_stage_anchor_based_lane_detector.8} parent=1 // loop_footer_branch
      %8 = sbr.rel target = $region3
    $region8: #{two_stage_anchor_based_lane_detector.8} parent=1 // loop_exit
      _

// kernel: two_stage_anchor_based_lane_detector.9
$region0: #{two_stage_anchor_based_lane_detector.9}
  #allocation0 [shape = 'u32[]', space=smem, size = 0x4, offset = 0x4, fixed_abs, tag = 'smem constant byte address 0x4 - core index']
  #allocation1 [shape = 'u32[144,128]{1,0:T(1,128)}', space=vmem, size = 0x12000, scoped, tag = 'internal scratch']
  %s0 = inlined_call_operand.vmem [shape: f32[4,2,3,3,32], index: 0, kind: input, shape index: {}]
  %s1 = inlined_call_operand.vmem [shape: bf16[9,32,32], index: 1, kind: input, shape index: {}]
  %s2 = inlined_call_operand.vmem [shape: f32[1,32], index: 2, kind: input, shape index: {}]
  %s3 = inlined_call_operand.vmem [shape: f32[2,2,2,32], index: 3, kind: output, shape index: {}]
  %s4 = sld [smem:[#allocation0]]
  $region86: #{two_stage_anchor_based_lane_detector.9} parent=0
    _
  %s6 = ssub.s32 1, %s4
  %s7 = scalar_select 0, %s6, %s4
  $region1: #{two_stage_anchor_based_lane_detector.9} parent=0
    #allocation2 [shape = 'u8[49152]{0}', space=vmem, size = 0xc000, scoped, tag = 'input window, operand 0']
    loop: start=0, step=1, limit=4
    $region2: #{two_stage_anchor_based_lane_detector.9} parent=1 // loop_pre_header
      _
    $region3: #{two_stage_anchor_based_lane_detector.9} parent=1 // loop_header
      %s9 = sphi 0, %s13
      %p10 = scmp.ge.s32.totalorder %s9, 4
      %s19 = sphi 0, %s21
      %s22 = sphi 0, %s19
      %s23 = sphi 0, %s22
      %s39 = sphi 0, %s23
      %s43 = sphi 0, %s43
      %s45 = sphi 0, %s43
      %s46 = sphi 0, %s45
      %s60 = sphi 0, %s46
      %s64 = sphi 0, %s64
      %s66 = sphi 0, %s64
      %s67 = sphi 0, %s66
      %s81 = sphi 0, %s67
      %s87 = sphi 0, %s89
      %s90 = sphi 0, %s87
      %s91 = sphi 0, %s90
      %s107 = sphi 0, %s91
    $region4: #{two_stage_anchor_based_lane_detector.9} parent=1 // loop_header_branch
      %12 = sbr.rel (%p10) target = $region8
    $region5: #{two_stage_anchor_based_lane_detector.9} parent=1 // loop_body
      %s14 = ssub.s32 %s9, 1
      %s15 = ssub.s32 %s9, 2
      %s16 = sadd.s32 %s9, 1
      %s17 = ssub.s32 %s9, %s16
      %p18 = scmp.eq.s32.totalorder %s17, 0
      %s20 = sadd.s32 %s19, 1
      %s21 = scalar_select %p18, %s19, %s20
      %p24 = pneg %p18
      %p25 = scmp.eq.s32.totalorder %s9, 1
      %p26 = por %p24, %p25
      %p27 = scmp.ne.s32.totalorder %s19, %s22
      %p28 = scmp.eq.s32.totalorder %s9, 0
      %p29 = por %p27, %p28
      %p30 = scmp.ne.s32.totalorder %s19, %s22
      %p31 = scmp.eq.s32.totalorder %s14, 1
      %p32 = por %p30, %p31
      %p33 = scmp.ne.s32.totalorder %s22, %s23
      %p34 = scmp.eq.s32.totalorder %s14, 0
      %p35 = por %p33, %p34
      %p36 = scmp.ne.s32.totalorder %s22, %s23
      %p37 = scmp.eq.s32.totalorder %s15, 1
      %p38 = por %p36, %p37
      %p40 = scmp.ne.s32.totalorder %s23, %s39
      %p41 = scmp.eq.s32.totalorder %s15, 0
      %p42 = por %p40, %p41
      %s44 = sadd.s32 %s43, 1
      %p47 = scmp.eq.s32.totalorder %s9, 1
      %p48 = scmp.ne.s32.totalorder %s43, %s45
      %p49 = scmp.eq.s32.totalorder %s9, 0
      %p50 = por %p48, %p49
      %p51 = scmp.ne.s32.totalorder %s43, %s45
      %p52 = scmp.eq.s32.totalorder %s14, 1
      %p53 = por %p51, %p52
      %p54 = scmp.ne.s32.totalorder %s45, %s46
      %p55 = scmp.eq.s32.totalorder %s14, 0
      %p56 = por %p54, %p55
      %p57 = scmp.ne.s32.totalorder %s45, %s46
      %p58 = scmp.eq.s32.totalorder %s15, 1
      %p59 = por %p57, %p58
      %p61 = scmp.ne.s32.totalorder %s46, %s60
      %p62 = scmp.eq.s32.totalorder %s15, 0
      %p63 = por %p61, %p62
      %s65 = sadd.s32 %s64, 1
      %p68 = scmp.eq.s32.totalorder %s9, 1
      %p69 = scmp.ne.s32.totalorder %s64, %s66
      %p70 = scmp.eq.s32.totalorder %s9, 0
      %p71 = por %p69, %p70
      %p72 = scmp.ne.s32.totalorder %s64, %s66
      %p73 = scmp.eq.s32.totalorder %s14, 1
      %p74 = por %p72, %p73
      %p75 = scmp.ne.s32.totalorder %s66, %s67
      %p76 = scmp.eq.s32.totalorder %s14, 0
      %p77 = por %p75, %p76
      %p78 = scmp.ne.s32.totalorder %s66, %s67
      %p79 = scmp.eq.s32.totalorder %s15, 1
      %p80 = por %p78, %p79
      %p82 = scmp.ne.s32.totalorder %s67, %s81
      %p83 = scmp.eq.s32.totalorder %s15, 0
      %p84 = por %p82, %p83
      %s85 = ssub.s32 %s9, %s16
      %p86 = scmp.eq.s32.totalorder %s85, 0
      %s88 = sadd.s32 %s87, 1
      %s89 = scalar_select %p86, %s87, %s88
      %p92 = pneg %p86
      %p93 = scmp.eq.s32.totalorder %s9, 1
      %p94 = por %p92, %p93
      %p95 = scmp.ne.s32.totalorder %s87, %s90
      %p96 = scmp.eq.s32.totalorder %s9, 0
      %p97 = por %p95, %p96
      %p98 = scmp.ne.s32.totalorder %s87, %s90
      %p99 = scmp.eq.s32.totalorder %s14, 1
      %p100 = por %p98, %p99
      %p101 = scmp.ne.s32.totalorder %s90, %s91
      %p102 = scmp.eq.s32.totalorder %s14, 0
      %p103 = por %p101, %p102
      %p104 = scmp.ne.s32.totalorder %s90, %s91
      %p105 = scmp.eq.s32.totalorder %s15, 1
      %p106 = por %p104, %p105
      %p108 = scmp.ne.s32.totalorder %s91, %s107
      %p109 = scmp.eq.s32.totalorder %s15, 0
      %p110 = por %p108, %p109
      %p111 = scmp.le.s32.totalorder 1, %s9
      %p112 = scmp.lt.s32.totalorder %s9, 3
      %p113 = pnand %p111, %p112
      %p114 = pneg %p113
      // Predicated region
      $region9: #{two_stage_anchor_based_lane_detector.9} parent=5 // pred_check
        _
      $region10: #{two_stage_anchor_based_lane_detector.9} parent=5 // pred_check_branch
        %116 = sbr.rel (%p113) target = $region12
      $region11: #{two_stage_anchor_based_lane_detector.9} parent=5 // pred_region
        %s117 = ssub.s32 %s9, 1
        // Predicated region
        $region13: #{two_stage_anchor_based_lane_detector.9} parent=11 // pred_check
          %p118 = pneg %p56
        $region14: #{two_stage_anchor_based_lane_detector.9} parent=11 // pred_check_branch
          %120 = sbr.rel (%p118) target = $region16
        $region15: #{two_stage_anchor_based_lane_detector.9} parent=11 // pred_region
          _
        $region16: #{two_stage_anchor_based_lane_detector.9} parent=11 // pred_fallthru
          _
        // Predicated region
        $region17: #{two_stage_anchor_based_lane_detector.9} parent=11 // pred_check
          %p121 = pneg %p77
        $region18: #{two_stage_anchor_based_lane_detector.9} parent=11 // pred_check_branch
          %123 = sbr.rel (%p121) target = $region20
        $region19: #{two_stage_anchor_based_lane_detector.9} parent=11 // pred_region
          _
        $region20: #{two_stage_anchor_based_lane_detector.9} parent=11 // pred_fallthru
          _
      $region12: #{two_stage_anchor_based_lane_detector.9} parent=5 // pred_fallthru
        _
      %p124 = scmp.lt.s32.totalorder %s9, 2
      // Predicated region
      $region21: #{two_stage_anchor_based_lane_detector.9} parent=5 // pred_check
        %p125 = pneg %p124
      $region22: #{two_stage_anchor_based_lane_detector.9} parent=5 // pred_check_branch
        %127 = sbr.rel (%p125) target = $region24
      $region23: #{two_stage_anchor_based_lane_detector.9} parent=5 // pred_region
        // Predicated region
        $region25: #{two_stage_anchor_based_lane_detector.9} parent=23 // pred_check
          %p128 = pneg %p29
        $region26: #{two_stage_anchor_based_lane_detector.9} parent=23 // pred_check_branch
          %130 = sbr.rel (%p128) target = $region28
        $region27: #{two_stage_anchor_based_lane_detector.9} parent=23 // pred_region
          %s131 = sand.u32 %s19, 1
          %s132 = sand.u32 %s19, 1
          %s133 = smul.addr %s132, 48
          %s134 = scalar_lea.vmem [#allocation2], %s133
          %s135 = smul.addr %s9, 3
          %s136 = smul.addr %s135, 4
          %s137 = scalar_lea.vmem %s0, %s136
          // Predicated region
          $region29: #{two_stage_anchor_based_lane_detector.9} parent=27 // pred_check
            _
          $region30: #{two_stage_anchor_based_lane_detector.9} parent=27 // pred_check_branch
            %139 = sbr.rel (0) target = $region32
          $region31: #{two_stage_anchor_based_lane_detector.9} parent=27 // pred_region
            // Predicated region
            $region33: #{two_stage_anchor_based_lane_detector.9} parent=31 // pred_check
              _
            $region34: #{two_stage_anchor_based_lane_detector.9} parent=31 // pred_check_branch
              %141 = sbr.rel target = $region36
            $region35: #{two_stage_anchor_based_lane_detector.9} parent=31 // pred_region
              // Predicated region
              $region48: #{two_stage_anchor_based_lane_detector.9} parent=35 // pred_check
                _
              $region49: #{two_stage_anchor_based_lane_detector.9} parent=35 // pred_check_branch
                %179 = sbr.rel (0) target = $region51
              $region50: #{two_stage_anchor_based_lane_detector.9} parent=35 // pred_region
                loop: start=0, step=1, limit=1
                $region52: #{two_stage_anchor_based_lane_detector.9} parent=50 // loop_pre_header
                  _
                $region53: #{two_stage_anchor_based_lane_detector.9} parent=50 // loop_header
                  %s181 = sphi 0, %s185
                  %p182 = scmp.ge.s32.totalorder %s181, 1
                  %s186 = sphi %s137, %s137
                  %s187 = sphi %s134, %s134
                $region54: #{two_stage_anchor_based_lane_detector.9} parent=50 // loop_header_branch
                  %184 = sbr.rel (%p182) target = $region58
                $region55: #{two_stage_anchor_based_lane_detector.9} parent=50 // loop_body
                  _
                $region56: #{two_stage_anchor_based_lane_detector.9} parent=50 // loop_footer
                  %s185 = sadd.s32 1, %s181
                $region57: #{two_stage_anchor_based_lane_detector.9} parent=50 // loop_footer_branch
                  %180 = sbr.rel target = $region53
                $region58: #{two_stage_anchor_based_lane_detector.9} parent=50 // loop_exit
                  _
                %s189 = ssub.s32 16, 1
                loop: start=0, step=1, limit=1
                $region59: #{two_stage_anchor_based_lane_detector.9} parent=50 // loop_pre_header
                  _
                $region60: #{two_stage_anchor_based_lane_detector.9} parent=50 // loop_header
                  %s191 = sphi 0, %s195
                  %p192 = scmp.ge.s32.totalorder %s191, 1
                  %s196 = sphi %s137, %s137
                  %s197 = sphi %s134, %s134
                $region61: #{two_stage_anchor_based_lane_detector.9} parent=50 // loop_header_branch
                  %194 = sbr.rel (%p192) target = $region65
                $region62: #{two_stage_anchor_based_lane_detector.9} parent=50 // loop_body
                  %v198 = vld [vmem:[%s196] sm:%s189]
                  %199 = vst [vmem:[%s197] sm:%s189] %v198
                  %v200 = vld [vmem:[%s196 + $0x4] sm:%s189]
                  %201 = vst [vmem:[%s197 + $0x4] sm:%s189] %v200
                  %v202 = vld [vmem:[%s196 + $0x8] sm:%s189]
                  %203 = vst [vmem:[%s197 + $0x8] sm:%s189] %v202
                  %v204 = vld [vmem:[%s196 + $0x18] sm:%s189]
                  %205 = vst [vmem:[%s197 + $0xc] sm:%s189] %v204
                  %v206 = vld [vmem:[%s196 + $0x1c] sm:%s189]
                  %207 = vst [vmem:[%s197 + $0x10] sm:%s189] %v206
                  %v208 = vld [vmem:[%s196 + $0x20] sm:%s189]
                  %209 = vst [vmem:[%s197 + $0x14] sm:%s189] %v208
                  %v210 = vld [vmem:[%s196 + $0x30] sm:%s189]
                  %211 = vst [vmem:[%s197 + $0x18] sm:%s189] %v210
                  %v212 = vld [vmem:[%s196 + $0x34] sm:%s189]
                  %213 = vst [vmem:[%s197 + $0x1c] sm:%s189] %v212
                  %v214 = vld [vmem:[%s196 + $0x38] sm:%s189]
                  %215 = vst [vmem:[%s197 + $0x20] sm:%s189] %v214
                  %v216 = vld [vmem:[%s196 + $0x48] sm:%s189]
                  %217 = vst [vmem:[%s197 + $0x24] sm:%s189] %v216
                  %v218 = vld [vmem:[%s196 + $0x4c] sm:%s189]
                  %219 = vst [vmem:[%s197 + $0x28] sm:%s189] %v218
                  %v220 = vld [vmem:[%s196 + $0x50] sm:%s189]
                  %221 = vst [vmem:[%s197 + $0x2c] sm:%s189] %v220
                $region63: #{two_stage_anchor_based_lane_detector.9} parent=50 // loop_footer
                  %s195 = sadd.s32 1, %s191
                $region64: #{two_stage_anchor_based_lane_detector.9} parent=50 // loop_footer_branch
                  %190 = sbr.rel target = $region60
                $region65: #{two_stage_anchor_based_lane_detector.9} parent=50 // loop_exit
                  _
              $region51: #{two_stage_anchor_based_lane_detector.9} parent=35 // pred_fallthru
                _
            $region36: #{two_stage_anchor_based_lane_detector.9} parent=31 // pred_fallthru
              _
            // Predicated region
            $region37: #{two_stage_anchor_based_lane_detector.9} parent=31 // pred_check
              _
            $region38: #{two_stage_anchor_based_lane_detector.9} parent=31 // pred_check_branch
              %143 = sbr.rel (0) target = $region40
            $region39: #{two_stage_anchor_based_lane_detector.9} parent=31 // pred_region
              %s145 = ssub.s32 16, 1
              loop: start=0, step=1, limit=1
              $region41: #{two_stage_anchor_based_lane_detector.9} parent=39 // loop_pre_header
                _
              $region42: #{two_stage_anchor_based_lane_detector.9} parent=39 // loop_header
                %s147 = sphi 0, %s151
                %p148 = scmp.ge.s32.totalorder %s147, 1
                %s152 = sphi %s137, %s137
                %s153 = sphi %s134, %s134
              $region43: #{two_stage_anchor_based_lane_detector.9} parent=39 // loop_header_branch
                %150 = sbr.rel (%p148) target = $region47
              $region44: #{two_stage_anchor_based_lane_detector.9} parent=39 // loop_body
                %v154 = vld [vmem:[%s152] sm:%s145]
                %155 = vst [vmem:[%s153] sm:%s145] %v154
                %v156 = vld [vmem:[%s152 + $0x4] sm:%s145]
                %157 = vst [vmem:[%s153 + $0x4] sm:%s145] %v156
                %v158 = vld [vmem:[%s152 + $0x8] sm:%s145]
                %159 = vst [vmem:[%s153 + $0x8] sm:%s145] %v158
                %v160 = vld [vmem:[%s152 + $0x18] sm:%s145]
                %161 = vst [vmem:[%s153 + $0xc] sm:%s145] %v160
                %v162 = vld [vmem:[%s152 + $0x1c] sm:%s145]
                %163 = vst [vmem:[%s153 + $0x10] sm:%s145] %v162
                %v164 = vld [vmem:[%s152 + $0x20] sm:%s145]
                %165 = vst [vmem:[%s153 + $0x14] sm:%s145] %v164
                %v166 = vld [vmem:[%s152 + $0x30] sm:%s145]
                %167 = vst [vmem:[%s153 + $0x18] sm:%s145] %v166
                %v168 = vld [vmem:[%s152 + $0x34] sm:%s145]
                %169 = vst [vmem:[%s153 + $0x1c] sm:%s145] %v168
                %v170 = vld [vmem:[%s152 + $0x38] sm:%s145]
                %171 = vst [vmem:[%s153 + $0x20] sm:%s145] %v170
                %v172 = vld [vmem:[%s152 + $0x48] sm:%s145]
                %173 = vst [vmem:[%s153 + $0x24] sm:%s145] %v172
                %v174 = vld [vmem:[%s152 + $0x4c] sm:%s145]
                %175 = vst [vmem:[%s153 + $0x28] sm:%s145] %v174
                %v176 = vld [vmem:[%s152 + $0x50] sm:%s145]
                %177 = vst [vmem:[%s153 + $0x2c] sm:%s145] %v176
              $region45: #{two_stage_anchor_based_lane_detector.9} parent=39 // loop_footer
                %s151 = sadd.s32 1, %s147
              $region46: #{two_stage_anchor_based_lane_detector.9} parent=39 // loop_footer_branch
                %146 = sbr.rel target = $region42
              $region47: #{two_stage_anchor_based_lane_detector.9} parent=39 // loop_exit
                _
            $region40: #{two_stage_anchor_based_lane_detector.9} parent=31 // pred_fallthru
              _
          $region32: #{two_stage_anchor_based_lane_detector.9} parent=27 // pred_fallthru
            _
          %222 = vnop
        $region28: #{two_stage_anchor_based_lane_detector.9} parent=23 // pred_fallthru
          _
      $region24: #{two_stage_anchor_based_lane_detector.9} parent=5 // pred_fallthru
        _
      %p223 = scmp.le.s32.totalorder 1, %s9
      %p224 = scmp.lt.s32.totalorder %s9, 3
      %p225 = pnand %p223, %p224
      %p226 = pneg %p225
      // Predicated region
      $region66: #{two_stage_anchor_based_lane_detector.9} parent=5 // pred_check
        _
      $region67: #{two_stage_anchor_based_lane_detector.9} parent=5 // pred_check_branch
        %228 = sbr.rel (%p225) target = $region69
      $region68: #{two_stage_anchor_based_lane_detector.9} parent=5 // pred_region
        %s229 = ssub.s32 %s9, 1
        %s230 = sand.u32 %s22, 1
        %s231 = sand.u32 %s22, 1
        %s232 = smul.addr %s231, 48
        %s233 = scalar_lea.vmem [#allocation2], %s232
        // Predicated region
        $region70: #{two_stage_anchor_based_lane_detector.9} parent=68 // pred_check
          %p234 = pneg %p35
        $region71: #{two_stage_anchor_based_lane_detector.9} parent=68 // pred_check_branch
          %236 = sbr.rel (%p234) target = $region73
        $region72: #{two_stage_anchor_based_lane_detector.9} parent=68 // pred_region
          _
        $region73: #{two_stage_anchor_based_lane_detector.9} parent=68 // pred_fallthru
          _
        %s237 = sand.u32 %s22, 1
        %s238 = sand.u32 %s22, 1
        %s239 = smul.addr %s238, 48
        %s240 = scalar_lea.vmem [#allocation2], %s239
        %p241 = pneg %p35
        %p242 = pneg %p32
        %p243 = pneg %p56
        %p244 = pneg %p53
        %p245 = pneg %p77
        %p246 = pneg %p74
        %p247 = pneg %p103
        %p248 = pneg %p100
        %p249 = scmp.lt.s32.totalorder %s14, 1
        %s250 = scalar_select %p249, %s14, 1
        %s251 = smul.addr %s250, 2
        %s252 = smul.addr %s251, 2
        %s253 = scalar_lea.vmem %s3, %s252
        %p254 = scmp.lt.s32.totalorder %s14, 1
        %s255 = scalar_select %p254, %s14, 1
        %s256 = smul.addr %s255, 2
        %s257 = smul.addr %s256, 2
        %s258 = scalar_lea.vmem %s3, %s257
        %v260 = vld [vmem:[%s233] sm:$0x3]
        %v261 = vld [vmem:[%s233 + $0x4] sm:$0x3]
        %v264 = vcombine.low %v260, %v261
        %v266 = vunpack.c.l.s4 1983009808
        %v267 = vunpack.c.0.s8 %v266
        %v268 = vlaneseq
        %v269 = vshrl.u32 %v268, 7
        %v270 = vsub.s32 %v267, %v269
        %v271 = vrot.slane %v264, %v270
        %v273 = vpack.c.bf16 %v271, %v271
        %v274 = vld [vmem:[%s1] sm:$0xf]
        %v275 = vld [vmem:[%s1 + $0x4] sm:$0xf]
        %v276 = vld [vmem:[%s1 + $0x8] sm:$0xf]
        %v277 = vld [vmem:[%s1 + $0xc] sm:$0xf]
        %s278 = scalar_lea.vmem %s233, 12 [#allocation2]
        %v279 = vld [vmem:[%s278] sm:$0x3]
        %v280 = vld [vmem:[%s278 + $0x4] sm:$0x3]
        %v283 = vcombine.low %v279, %v280
        %v285 = vunpack.c.l.s4 1983009808
        %v286 = vunpack.c.0.s8 %v285
        %v287 = vlaneseq
        %v288 = vshrl.u32 %v287, 7
        %v289 = vsub.s32 %v286, %v288
        %v290 = vrot.slane %v283, %v289
        %v292 = vpack.c.bf16 %v290, %v290
        %s293 = scalar_lea.vmem %s1, 16
        %v294 = vld [vmem:[%s293] sm:$0xf]
        %v295 = vld [vmem:[%s293 + $0x4] sm:$0xf]
        %v296 = vld [vmem:[%s293 + $0x8] sm:$0xf]
        %v297 = vld [vmem:[%s293 + $0xc] sm:$0xf]
        %v302 = vunpack.c.l.b16 %v294
        %v303 = vunpack.c.l.b16 %v295
        %v304 = vunpack.c.l.b16 %v296
        %v305 = vunpack.c.l.b16 %v297
        %v306 = vpack.c.b16 %v303, %v302
        %v307 = vpack.c.b16 %v305, %v304
        %vm310 = vcmask 261120
        %v312 = vsel %vm310, %v292, 0
        %314 = vmatprep.subr.bf16.mxu0 0
        %315 = vmatpush1.bf16.msra.mxu0 0
        %316 = vmatprep.subr.bf16.mxu0 0
        %317 = vmatpush1.bf16.msra.mxu0 0
        %318 = vmatprep.subr.bf16.mxu0 0
        %319 = vmatpush1.bf16.msra.mxu0 0
        %320 = vmatprep.subr.bf16.mxu0 0
        %321 = vmatpush1.bf16.msra.mxu0 0
        %322 = vmatprep.subr.bf16.mxu0 0
        %323 = vmatpush1.bf16.msra.mxu0 0
        %324 = vmatprep.subr.bf16.mxu0 0
        %325 = vmatpush1.bf16.msra.mxu0 0
        %326 = vmatprep.subr.bf16.mxu0 0
        %327 = vmatpush1.bf16.msra.mxu0 %v307
        %328 = vmatprep.subr.bf16.mxu0 0
        %329 = vmatpush1.bf16.msra.mxu0 %v306
        %330 = vmatprep.subr.bf16.mxu0 0
        %331 = vmatpush2.bf16.msra.mxu0 0
        %332 = vmatprep.subr.bf16.mxu0 0
        %333 = vmatpush2.bf16.msra.mxu0 0
        %334 = vmatprep.subr.bf16.mxu0 0
        %335 = vmatpush2.bf16.msra.mxu0 0
        %336 = vmatprep.subr.bf16.mxu0 0
        %337 = vmatpush2.bf16.msra.mxu0 0
        %338 = vmatprep.subr.bf16.mxu0 0
        %339 = vmatpush2.bf16.msra.mxu0 0
        %340 = vmatprep.subr.bf16.mxu0 0
        %341 = vmatpush2.bf16.msra.mxu0 0
        %342 = vmatprep.subr.bf16.mxu0 0
        %343 = vmatpush2.bf16.msra.mxu0 0
        %344 = vmatprep.subr.bf16.mxu0 0
        %345 = vmatpush2.bf16.msra.mxu0 0
        %346 = vmatprep.mubr.bf16.mxu0 0
        %347 = vmatmul.mubr.bf16.gmra.mxu0 %v312
        %v348 = vpop.f32.mrf.mxu0
        %v349 = vadd.f32 0.0, %v348
        %v350 = vpop.f32.mrf.mxu0
        %v351 = vpop.f32.mrf.mxu0
        %v352 = vpop.f32.mrf.mxu0
        %353 = vdwg.mxu0
        %v358 = vunpack.c.l.b16 %v274
        %v359 = vunpack.c.l.b16 %v275
        %v360 = vunpack.c.l.b16 %v276
        %v361 = vunpack.c.l.b16 %v277
        %v362 = vpack.c.b16 %v359, %v358
        %v363 = vpack.c.b16 %v361, %v360
        %v367 = vsel %vm310, %v273, 0
        %369 = vmatprep.subr.bf16.mxu0 0
        %370 = vmatpush1.bf16.msra.mxu0 0
        %371 = vmatprep.subr.bf16.mxu0 0
        %372 = vmatpush1.bf16.msra.mxu0 0
        %373 = vmatprep.subr.bf16.mxu0 0
        %374 = vmatpush1.bf16.msra.mxu0 0
        %375 = vmatprep.subr.bf16.mxu0 0
        %376 = vmatpush1.bf16.msra.mxu0 0
        %377 = vmatprep.subr.bf16.mxu0 0
        %378 = vmatpush1.bf16.msra.mxu0 0
        %379 = vmatprep.subr.bf16.mxu0 0
        %380 = vmatpush1.bf16.msra.mxu0 0
        %381 = vmatprep.subr.bf16.mxu0 0
        %382 = vmatpush1.bf16.msra.mxu0 %v363
        %383 = vmatprep.subr.bf16.mxu0 0
        %384 = vmatpush1.bf16.msra.mxu0 %v362
        %385 = vmatprep.subr.bf16.mxu0 0
        %386 = vmatpush2.bf16.msra.mxu0 0
        %387 = vmatprep.subr.bf16.mxu0 0
        %388 = vmatpush2.bf16.msra.mxu0 0
        %389 = vmatprep.subr.bf16.mxu0 0
        %390 = vmatpush2.bf16.msra.mxu0 0
        %391 = vmatprep.subr.bf16.mxu0 0
        %392 = vmatpush2.bf16.msra.mxu0 0
        %393 = vmatprep.subr.bf16.mxu0 0
        %394 = vmatpush2.bf16.msra.mxu0 0
        %395 = vmatprep.subr.bf16.mxu0 0
        %396 = vmatpush2.bf16.msra.mxu0 0
        %397 = vmatprep.subr.bf16.mxu0 0
        %398 = vmatpush2.bf16.msra.mxu0 0
        %399 = vmatprep.subr.bf16.mxu0 0
        %400 = vmatpush2.bf16.msra.mxu0 0
        %401 = vmatprep.mubr.bf16.mxu0 0
        %402 = vmatmul.mubr.bf16.gmra.mxu0 %v367
        %v403 = vpop.f32.mrf.mxu0
        %v404 = vadd.f32 %v349, %v403
        %v405 = vpop.f32.mrf.mxu0
        %v406 = vpop.f32.mrf.mxu0
        %v407 = vpop.f32.mrf.mxu0
        %408 = vdwg.mxu0
        %v409 = vld [vmem:[%s233 + $0x1] sm:$0x3]
        %v410 = vld [vmem:[%s233 + $0x5] sm:$0x3]
        %v413 = vcombine.low %v409, %v410
        %v415 = vunpack.c.l.s4 1983009808
        %v416 = vunpack.c.0.s8 %v415
        %v417 = vlaneseq
        %v418 = vshrl.u32 %v417, 7
        %v419 = vsub.s32 %v416, %v418
        %v420 = vrot.slane %v413, %v419
        %v422 = vpack.c.bf16 %v420, %v420
        %s423 = scalar_lea.vmem %s1, 32
        %v424 = vld [vmem:[%s423] sm:$0xf]
        %v425 = vld [vmem:[%s423 + $0x4] sm:$0xf]
        %v426 = vld [vmem:[%s423 + $0x8] sm:$0xf]
        %v427 = vld [vmem:[%s423 + $0xc] sm:$0xf]
        %v432 = vunpack.c.l.b16 %v424
        %v433 = vunpack.c.l.b16 %v425
        %v434 = vunpack.c.l.b16 %v426
        %v435 = vunpack.c.l.b16 %v427
        %v436 = vpack.c.b16 %v433, %v432
        %v437 = vpack.c.b16 %v435, %v434
        %v441 = vsel %vm310, %v422, 0
        %443 = vmatprep.subr.bf16.mxu0 0
        %444 = vmatpush1.bf16.msra.mxu0 0
        %445 = vmatprep.subr.bf16.mxu0 0
        %446 = vmatpush1.bf16.msra.mxu0 0
        %447 = vmatprep.subr.bf16.mxu0 0
        %448 = vmatpush1.bf16.msra.mxu0 0
        %449 = vmatprep.subr.bf16.mxu0 0
        %450 = vmatpush1.bf16.msra.mxu0 0
        %451 = vmatprep.subr.bf16.mxu0 0
        %452 = vmatpush1.bf16.msra.mxu0 0
        %453 = vmatprep.subr.bf16.mxu0 0
        %454 = vmatpush1.bf16.msra.mxu0 0
        %455 = vmatprep.subr.bf16.mxu0 0
        %456 = vmatpush1.bf16.msra.mxu0 %v437
        %457 = vmatprep.subr.bf16.mxu0 0
        %458 = vmatpush1.bf16.msra.mxu0 %v436
        %459 = vmatprep.subr.bf16.mxu0 0
        %460 = vmatpush2.bf16.msra.mxu0 0
        %461 = vmatprep.subr.bf16.mxu0 0
        %462 = vmatpush2.bf16.msra.mxu0 0
        %463 = vmatprep.subr.bf16.mxu0 0
        %464 = vmatpush2.bf16.msra.mxu0 0
        %465 = vmatprep.subr.bf16.mxu0 0
        %466 = vmatpush2.bf16.msra.mxu0 0
        %467 = vmatprep.subr.bf16.mxu0 0
        %468 = vmatpush2.bf16.msra.mxu0 0
        %469 = vmatprep.subr.bf16.mxu0 0
        %470 = vmatpush2.bf16.msra.mxu0 0
        %471 = vmatprep.subr.bf16.mxu0 0
        %472 = vmatpush2.bf16.msra.mxu0 0
        %473 = vmatprep.subr.bf16.mxu0 0
        %474 = vmatpush2.bf16.msra.mxu0 0
        %475 = vmatprep.mubr.bf16.mxu0 0
        %476 = vmatmul.mubr.bf16.gmra.mxu0 %v441
        %v477 = vpop.f32.mrf.mxu0
        %v478 = vadd.f32 0.0, %v477
        %v479 = vpop.f32.mrf.mxu0
        %v480 = vpop.f32.mrf.mxu0
        %v481 = vpop.f32.mrf.mxu0
        %482 = vdwg.mxu0
        %v483 = vadd.f32 %v404, %v478
        %s484 = scalar_lea.vmem %s233, 24 [#allocation2]
        %v485 = vld [vmem:[%s484] sm:$0x3]
        %v486 = vld [vmem:[%s484 + $0x4] sm:$0x3]
        %v489 = vcombine.low %v485, %v486
        %v491 = vunpack.c.l.s4 1983009808
        %v492 = vunpack.c.0.s8 %v491
        %v493 = vlaneseq
        %v494 = vshrl.u32 %v493, 7
        %v495 = vsub.s32 %v492, %v494
        %v496 = vrot.slane %v489, %v495
        %v498 = vpack.c.bf16 %v496, %v496
        %s499 = scalar_lea.vmem %s1, 48
        %v500 = vld [vmem:[%s499] sm:$0xf]
        %v501 = vld [vmem:[%s499 + $0x4] sm:$0xf]
        %v502 = vld [vmem:[%s499 + $0x8] sm:$0xf]
        %v503 = vld [vmem:[%s499 + $0xc] sm:$0xf]
        %v508 = vunpack.c.l.b16 %v500
        %v509 = vunpack.c.l.b16 %v501
        %v510 = vunpack.c.l.b16 %v502
        %v511 = vunpack.c.l.b16 %v503
        %v512 = vpack.c.b16 %v509, %v508
        %v513 = vpack.c.b16 %v511, %v510
        %v517 = vsel %vm310, %v498, 0
        %519 = vmatprep.subr.bf16.mxu0 0
        %520 = vmatpush1.bf16.msra.mxu0 0
        %521 = vmatprep.subr.bf16.mxu0 0
        %522 = vmatpush1.bf16.msra.mxu0 0
        %523 = vmatprep.subr.bf16.mxu0 0
        %524 = vmatpush1.bf16.msra.mxu0 0
        %525 = vmatprep.subr.bf16.mxu0 0
        %526 = vmatpush1.bf16.msra.mxu0 0
        %527 = vmatprep.subr.bf16.mxu0 0
        %528 = vmatpush1.bf16.msra.mxu0 0
        %529 = vmatprep.subr.bf16.mxu0 0
        %530 = vmatpush1.bf16.msra.mxu0 0
        %531 = vmatprep.subr.bf16.mxu0 0
        %532 = vmatpush1.bf16.msra.mxu0 %v513
        %533 = vmatprep.subr.bf16.mxu0 0
        %534 = vmatpush1.bf16.msra.mxu0 %v512
        %535 = vmatprep.subr.bf16.mxu0 0
        %536 = vmatpush2.bf16.msra.mxu0 0
        %537 = vmatprep.subr.bf16.mxu0 0
        %538 = vmatpush2.bf16.msra.mxu0 0
        %539 = vmatprep.subr.bf16.mxu0 0
        %540 = vmatpush2.bf16.msra.mxu0 0
        %541 = vmatprep.subr.bf16.mxu0 0
        %542 = vmatpush2.bf16.msra.mxu0 0
        %543 = vmatprep.subr.bf16.mxu0 0
        %544 = vmatpush2.bf16.msra.mxu0 0
        %545 = vmatprep.subr.bf16.mxu0 0
        %546 = vmatpush2.bf16.msra.mxu0 0
        %547 = vmatprep.subr.bf16.mxu0 0
        %548 = vmatpush2.bf16.msra.mxu0 0
        %549 = vmatprep.subr.bf16.mxu0 0
        %550 = vmatpush2.bf16.msra.mxu0 0
        %551 = vmatprep.mubr.bf16.mxu0 0
        %552 = vmatmul.mubr.bf16.gmra.mxu0 %v517
        %v553 = vpop.f32.mrf.mxu0
        %v554 = vadd.f32 0.0, %v553
        %v555 = vpop.f32.mrf.mxu0
        %v556 = vpop.f32.mrf.mxu0
        %v557 = vpop.f32.mrf.mxu0
        %558 = vdwg.mxu0
        %v559 = vadd.f32 %v483, %v554
        %s560 = scalar_lea.vmem %s233, 36 [#allocation2]
        %v561 = vld [vmem:[%s560] sm:$0x3]
        %v562 = vld [vmem:[%s560 + $0x4] sm:$0x3]
        %v565 = vcombine.low %v561, %v562
        %v567 = vunpack.c.l.s4 1983009808
        %v568 = vunpack.c.0.s8 %v567
        %v569 = vlaneseq
        %v570 = vshrl.u32 %v569, 7
        %v571 = vsub.s32 %v568, %v570
        %v572 = vrot.slane %v565, %v571
        %v574 = vpack.c.bf16 %v572, %v572
        %s575 = scalar_lea.vmem %s1, 64
        %v576 = vld [vmem:[%s575] sm:$0xf]
        %v577 = vld [vmem:[%s575 + $0x4] sm:$0xf]
        %v578 = vld [vmem:[%s575 + $0x8] sm:$0xf]
        %v579 = vld [vmem:[%s575 + $0xc] sm:$0xf]
        %v584 = vunpack.c.l.b16 %v576
        %v585 = vunpack.c.l.b16 %v577
        %v586 = vunpack.c.l.b16 %v578
        %v587 = vunpack.c.l.b16 %v579
        %v588 = vpack.c.b16 %v585, %v584
        %v589 = vpack.c.b16 %v587, %v586
        %v593 = vsel %vm310, %v574, 0
        %595 = vmatprep.subr.bf16.mxu0 0
        %596 = vmatpush1.bf16.msra.mxu0 0
        %597 = vmatprep.subr.bf16.mxu0 0
        %598 = vmatpush1.bf16.msra.mxu0 0
        %599 = vmatprep.subr.bf16.mxu0 0
        %600 = vmatpush1.bf16.msra.mxu0 0
        %601 = vmatprep.subr.bf16.mxu0 0
        %602 = vmatpush1.bf16.msra.mxu0 0
        %603 = vmatprep.subr.bf16.mxu0 0
        %604 = vmatpush1.bf16.msra.mxu0 0
        %605 = vmatprep.subr.bf16.mxu0 0
        %606 = vmatpush1.bf16.msra.mxu0 0
        %607 = vmatprep.subr.bf16.mxu0 0
        %608 = vmatpush1.bf16.msra.mxu0 %v589
        %609 = vmatprep.subr.bf16.mxu0 0
        %610 = vmatpush1.bf16.msra.mxu0 %v588
        %611 = vmatprep.subr.bf16.mxu0 0
        %612 = vmatpush2.bf16.msra.mxu0 0
        %613 = vmatprep.subr.bf16.mxu0 0
        %614 = vmatpush2.bf16.msra.mxu0 0
        %615 = vmatprep.subr.bf16.mxu0 0
        %616 = vmatpush2.bf16.msra.mxu0 0
        %617 = vmatprep.subr.bf16.mxu0 0
        %618 = vmatpush2.bf16.msra.mxu0 0
        %619 = vmatprep.subr.bf16.mxu0 0
        %620 = vmatpush2.bf16.msra.mxu0 0
        %621 = vmatprep.subr.bf16.mxu0 0
        %622 = vmatpush2.bf16.msra.mxu0 0
        %623 = vmatprep.subr.bf16.mxu0 0
        %624 = vmatpush2.bf16.msra.mxu0 0
        %625 = vmatprep.subr.bf16.mxu0 0
        %626 = vmatpush2.bf16.msra.mxu0 0
        %627 = vmatprep.mubr.bf16.mxu0 0
        %628 = vmatmul.mubr.bf16.gmra.mxu0 %v593
        %v629 = vpop.f32.mrf.mxu0
        %v630 = vadd.f32 0.0, %v629
        %v631 = vpop.f32.mrf.mxu0
        %v632 = vpop.f32.mrf.mxu0
        %v633 = vpop.f32.mrf.mxu0
        %634 = vdwg.mxu0
        %v635 = vadd.f32 %v559, %v630
        %v636 = vld [vmem:[%s484 + $0x1] sm:$0x3]
        %v637 = vld [vmem:[%s484 + $0x5] sm:$0x3]
        %v640 = vcombine.low %v636, %v637
        %v642 = vunpack.c.l.s4 1983009808
        %v643 = vunpack.c.0.s8 %v642
        %v644 = vlaneseq
        %v645 = vshrl.u32 %v644, 7
        %v646 = vsub.s32 %v643, %v645
        %v647 = vrot.slane %v640, %v646
        %v649 = vpack.c.bf16 %v647, %v647
        %s650 = scalar_lea.vmem %s1, 80
        %v651 = vld [vmem:[%s650] sm:$0xf]
        %v652 = vld [vmem:[%s650 + $0x4] sm:$0xf]
        %v653 = vld [vmem:[%s650 + $0x8] sm:$0xf]
        %v654 = vld [vmem:[%s650 + $0xc] sm:$0xf]
        %v659 = vunpack.c.l.b16 %v651
        %v660 = vunpack.c.l.b16 %v652
        %v661 = vunpack.c.l.b16 %v653
        %v662 = vunpack.c.l.b16 %v654
        %v663 = vpack.c.b16 %v660, %v659
        %v664 = vpack.c.b16 %v662, %v661
        %v668 = vsel %vm310, %v649, 0
        %670 = vmatprep.subr.bf16.mxu0 0
        %671 = vmatpush1.bf16.msra.mxu0 0
        %672 = vmatprep.subr.bf16.mxu0 0
        %673 = vmatpush1.bf16.msra.mxu0 0
        %674 = vmatprep.subr.bf16.mxu0 0
        %675 = vmatpush1.bf16.msra.mxu0 0
        %676 = vmatprep.subr.bf16.mxu0 0
        %677 = vmatpush1.bf16.msra.mxu0 0
        %678 = vmatprep.subr.bf16.mxu0 0
        %679 = vmatpush1.bf16.msra.mxu0 0
        %680 = vmatprep.subr.bf16.mxu0 0
        %681 = vmatpush1.bf16.msra.mxu0 0
        %682 = vmatprep.subr.bf16.mxu0 0
        %683 = vmatpush1.bf16.msra.mxu0 %v664
        %684 = vmatprep.subr.bf16.mxu0 0
        %685 = vmatpush1.bf16.msra.mxu0 %v663
        %686 = vmatprep.subr.bf16.mxu0 0
        %687 = vmatpush2.bf16.msra.mxu0 0
        %688 = vmatprep.subr.bf16.mxu0 0
        %689 = vmatpush2.bf16.msra.mxu0 0
        %690 = vmatprep.subr.bf16.mxu0 0
        %691 = vmatpush2.bf16.msra.mxu0 0
        %692 = vmatprep.subr.bf16.mxu0 0
        %693 = vmatpush2.bf16.msra.mxu0 0
        %694 = vmatprep.subr.bf16.mxu0 0
        %695 = vmatpush2.bf16.msra.mxu0 0
        %696 = vmatprep.subr.bf16.mxu0 0
        %697 = vmatpush2.bf16.msra.mxu0 0
        %698 = vmatprep.subr.bf16.mxu0 0
        %699 = vmatpush2.bf16.msra.mxu0 0
        %700 = vmatprep.subr.bf16.mxu0 0
        %701 = vmatpush2.bf16.msra.mxu0 0
        %702 = vmatprep.mubr.bf16.mxu0 0
        %703 = vmatmul.mubr.bf16.gmra.mxu0 %v668
        %v704 = vpop.f32.mrf.mxu0
        %v705 = vadd.f32 0.0, %v704
        %v706 = vpop.f32.mrf.mxu0
        %v707 = vpop.f32.mrf.mxu0
        %v708 = vpop.f32.mrf.mxu0
        %709 = vdwg.mxu0
        %v710 = vadd.f32 %v635, %v705
        %s711 = scalar_lea.vmem %s233, 4 [#allocation2]
        %v712 = vld [vmem:[%s711] sm:$0x3]
        %v713 = vld [vmem:[%s711 + $0x4] sm:$0x3]
        %v716 = vcombine.low %v712, %v713
        %v718 = vunpack.c.l.s4 1983009808
        %v719 = vunpack.c.0.s8 %v718
        %v720 = vlaneseq
        %v721 = vshrl.u32 %v720, 7
        %v722 = vsub.s32 %v719, %v721
        %v723 = vrot.slane %v716, %v722
        %v725 = vpack.c.bf16 %v723, %v723
        %s726 = scalar_lea.vmem %s1, 96
        %v727 = vld [vmem:[%s726] sm:$0xf]
        %v728 = vld [vmem:[%s726 + $0x4] sm:$0xf]
        %v729 = vld [vmem:[%s726 + $0x8] sm:$0xf]
        %v730 = vld [vmem:[%s726 + $0xc] sm:$0xf]
        %v735 = vunpack.c.l.b16 %v727
        %v736 = vunpack.c.l.b16 %v728
        %v737 = vunpack.c.l.b16 %v729
        %v738 = vunpack.c.l.b16 %v730
        %v739 = vpack.c.b16 %v736, %v735
        %v740 = vpack.c.b16 %v738, %v737
        %v744 = vsel %vm310, %v725, 0
        %746 = vmatprep.subr.bf16.mxu0 0
        %747 = vmatpush1.bf16.msra.mxu0 0
        %748 = vmatprep.subr.bf16.mxu0 0
        %749 = vmatpush1.bf16.msra.mxu0 0
        %750 = vmatprep.subr.bf16.mxu0 0
        %751 = vmatpush1.bf16.msra.mxu0 0
        %752 = vmatprep.subr.bf16.mxu0 0
        %753 = vmatpush1.bf16.msra.mxu0 0
        %754 = vmatprep.subr.bf16.mxu0 0
        %755 = vmatpush1.bf16.msra.mxu0 0
        %756 = vmatprep.subr.bf16.mxu0 0
        %757 = vmatpush1.bf16.msra.mxu0 0
        %758 = vmatprep.subr.bf16.mxu0 0
        %759 = vmatpush1.bf16.msra.mxu0 %v740
        %760 = vmatprep.subr.bf16.mxu0 0
        %761 = vmatpush1.bf16.msra.mxu0 %v739
        %762 = vmatprep.subr.bf16.mxu0 0
        %763 = vmatpush2.bf16.msra.mxu0 0
        %764 = vmatprep.subr.bf16.mxu0 0
        %765 = vmatpush2.bf16.msra.mxu0 0
        %766 = vmatprep.subr.bf16.mxu0 0
        %767 = vmatpush2.bf16.msra.mxu0 0
        %768 = vmatprep.subr.bf16.mxu0 0
        %769 = vmatpush2.bf16.msra.mxu0 0
        %770 = vmatprep.subr.bf16.mxu0 0
        %771 = vmatpush2.bf16.msra.mxu0 0
        %772 = vmatprep.subr.bf16.mxu0 0
        %773 = vmatpush2.bf16.msra.mxu0 0
        %774 = vmatprep.subr.bf16.mxu0 0
        %775 = vmatpush2.bf16.msra.mxu0 0
        %776 = vmatprep.subr.bf16.mxu0 0
        %777 = vmatpush2.bf16.msra.mxu0 0
        %778 = vmatprep.mubr.bf16.mxu0 0
        %779 = vmatmul.mubr.bf16.gmra.mxu0 %v744
        %v780 = vpop.f32.mrf.mxu0
        %v781 = vadd.f32 0.0, %v780
        %v782 = vpop.f32.mrf.mxu0
        %v783 = vpop.f32.mrf.mxu0
        %v784 = vpop.f32.mrf.mxu0
        %785 = vdwg.mxu0
        %v786 = vadd.f32 %v710, %v781
        %s787 = scalar_lea.vmem %s233, 16 [#allocation2]
        %v788 = vld [vmem:[%s787] sm:$0x3]
        %v789 = vld [vmem:[%s787 + $0x4] sm:$0x3]
        %v792 = vcombine.low %v788, %v789
        %v794 = vunpack.c.l.s4 1983009808
        %v795 = vunpack.c.0.s8 %v794
        %v796 = vlaneseq
        %v797 = vshrl.u32 %v796, 7
        %v798 = vsub.s32 %v795, %v797
        %v799 = vrot.slane %v792, %v798
        %v801 = vpack.c.bf16 %v799, %v799
        %s802 = scalar_lea.vmem %s1, 112
        %v803 = vld [vmem:[%s802] sm:$0xf]
        %v804 = vld [vmem:[%s802 + $0x4] sm:$0xf]
        %v805 = vld [vmem:[%s802 + $0x8] sm:$0xf]
        %v806 = vld [vmem:[%s802 + $0xc] sm:$0xf]
        %v811 = vunpack.c.l.b16 %v803
        %v812 = vunpack.c.l.b16 %v804
        %v813 = vunpack.c.l.b16 %v805
        %v814 = vunpack.c.l.b16 %v806
        %v815 = vpack.c.b16 %v812, %v811
        %v816 = vpack.c.b16 %v814, %v813
        %v820 = vsel %vm310, %v801, 0
        %822 = vmatprep.subr.bf16.mxu0 0
        %823 = vmatpush1.bf16.msra.mxu0 0
        %824 = vmatprep.subr.bf16.mxu0 0
        %825 = vmatpush1.bf16.msra.mxu0 0
        %826 = vmatprep.subr.bf16.mxu0 0
        %827 = vmatpush1.bf16.msra.mxu0 0
        %828 = vmatprep.subr.bf16.mxu0 0
        %829 = vmatpush1.bf16.msra.mxu0 0
        %830 = vmatprep.subr.bf16.mxu0 0
        %831 = vmatpush1.bf16.msra.mxu0 0
        %832 = vmatprep.subr.bf16.mxu0 0
        %833 = vmatpush1.bf16.msra.mxu0 0
        %834 = vmatprep.subr.bf16.mxu0 0
        %835 = vmatpush1.bf16.msra.mxu0 %v816
        %836 = vmatprep.subr.bf16.mxu0 0
        %837 = vmatpush1.bf16.msra.mxu0 %v815
        %838 = vmatprep.subr.bf16.mxu0 0
        %839 = vmatpush2.bf16.msra.mxu0 0
        %840 = vmatprep.subr.bf16.mxu0 0
        %841 = vmatpush2.bf16.msra.mxu0 0
        %842 = vmatprep.subr.bf16.mxu0 0
        %843 = vmatpush2.bf16.msra.mxu0 0
        %844 = vmatprep.subr.bf16.mxu0 0
        %845 = vmatpush2.bf16.msra.mxu0 0
        %846 = vmatprep.subr.bf16.mxu0 0
        %847 = vmatpush2.bf16.msra.mxu0 0
        %848 = vmatprep.subr.bf16.mxu0 0
        %849 = vmatpush2.bf16.msra.mxu0 0
        %850 = vmatprep.subr.bf16.mxu0 0
        %851 = vmatpush2.bf16.msra.mxu0 0
        %852 = vmatprep.subr.bf16.mxu0 0
        %853 = vmatpush2.bf16.msra.mxu0 0
        %854 = vmatprep.mubr.bf16.mxu0 0
        %855 = vmatmul.mubr.bf16.gmra.mxu0 %v820
        %v856 = vpop.f32.mrf.mxu0
        %v857 = vadd.f32 0.0, %v856
        %v858 = vpop.f32.mrf.mxu0
        %v859 = vpop.f32.mrf.mxu0
        %v860 = vpop.f32.mrf.mxu0
        %861 = vdwg.mxu0
        %v862 = vadd.f32 %v786, %v857
        %v863 = vld [vmem:[%s711 + $0x1] sm:$0x3]
        %v864 = vld [vmem:[%s711 + $0x5] sm:$0x3]
        %v867 = vcombine.low %v863, %v864
        %v869 = vunpack.c.l.s4 1983009808
        %v870 = vunpack.c.0.s8 %v869
        %v871 = vlaneseq
        %v872 = vshrl.u32 %v871, 7
        %v873 = vsub.s32 %v870, %v872
        %v874 = vrot.slane %v867, %v873
        %v876 = vpack.c.bf16 %v874, %v874
        %s877 = scalar_lea.vmem %s1, 128
        %v878 = vld [vmem:[%s877] sm:$0xf]
        %v879 = vld [vmem:[%s877 + $0x4] sm:$0xf]
        %v880 = vld [vmem:[%s877 + $0x8] sm:$0xf]
        %v881 = vld [vmem:[%s877 + $0xc] sm:$0xf]
        %v886 = vunpack.c.l.b16 %v878
        %v887 = vunpack.c.l.b16 %v879
        %v888 = vunpack.c.l.b16 %v880
        %v889 = vunpack.c.l.b16 %v881
        %v890 = vpack.c.b16 %v887, %v886
        %v891 = vpack.c.b16 %v889, %v888
        %v895 = vsel %vm310, %v876, 0
        %897 = vmatprep.subr.bf16.mxu0 0
        %898 = vmatpush1.bf16.msra.mxu0 0
        %899 = vmatprep.subr.bf16.mxu0 0
        %900 = vmatpush1.bf16.msra.mxu0 0
        %901 = vmatprep.subr.bf16.mxu0 0
        %902 = vmatpush1.bf16.msra.mxu0 0
        %903 = vmatprep.subr.bf16.mxu0 0
        %904 = vmatpush1.bf16.msra.mxu0 0
        %905 = vmatprep.subr.bf16.mxu0 0
        %906 = vmatpush1.bf16.msra.mxu0 0
        %907 = vmatprep.subr.bf16.mxu0 0
        %908 = vmatpush1.bf16.msra.mxu0 0
        %909 = vmatprep.subr.bf16.mxu0 0
        %910 = vmatpush1.bf16.msra.mxu0 %v891
        %911 = vmatprep.subr.bf16.mxu0 0
        %912 = vmatpush1.bf16.msra.mxu0 %v890
        %913 = vmatprep.subr.bf16.mxu0 0
        %914 = vmatpush2.bf16.msra.mxu0 0
        %915 = vmatprep.subr.bf16.mxu0 0
        %916 = vmatpush2.bf16.msra.mxu0 0
        %917 = vmatprep.subr.bf16.mxu0 0
        %918 = vmatpush2.bf16.msra.mxu0 0
        %919 = vmatprep.subr.bf16.mxu0 0
        %920 = vmatpush2.bf16.msra.mxu0 0
        %921 = vmatprep.subr.bf16.mxu0 0
        %922 = vmatpush2.bf16.msra.mxu0 0
        %923 = vmatprep.subr.bf16.mxu0 0
        %924 = vmatpush2.bf16.msra.mxu0 0
        %925 = vmatprep.subr.bf16.mxu0 0
        %926 = vmatpush2.bf16.msra.mxu0 0
        %927 = vmatprep.subr.bf16.mxu0 0
        %928 = vmatpush2.bf16.msra.mxu0 0
        %929 = vmatprep.mubr.bf16.mxu0 0
        %930 = vmatmul.mubr.bf16.gmra.mxu0 %v895
        %v931 = vpop.f32.mrf.mxu0
        %v932 = vadd.f32 0.0, %v931
        %v933 = vpop.f32.mrf.mxu0
        %v934 = vpop.f32.mrf.mxu0
        %v935 = vpop.f32.mrf.mxu0
        %936 = vdwg.mxu0
        %v937 = vadd.f32 %v862, %v932
        %v938 = vld [vmem:[%s2] sm:$0x1]
        %v940 = vlaneseq
        %v941 = vshrl.u32 %v940, 7
        %v942 = vsub.s32 0, %v941
        %v943 = vrot.slane %v938, %v942
        %v945 = vadd.f32 %v937, %v943
        %v946 = vmax.f32 %v945, 0.0
        %v949 = vunpack.c.l.s4 1983009808
        %v950 = vunpack.c.0.s8 %v949
        %v951 = vlaneseq
        %v952 = vshrl.u32 %v951, 7
        %v953 = vsub.s32 %v950, %v952
        %v954 = vrot.slane %v946, %v953
        %v955 = vcombine.high %v954, %v954
        %vm958 = vcmask 254976
        %959 = vst.msk [vmem:[%s258] sm:$0x3] %vm958, %v954
        %960 = vst.msk [vmem:[%s258 + $0x2] sm:$0x3] %vm958, %v955
        %p961 = scmp.lt.s32.totalorder %s14, 1
        %s962 = scalar_select %p961, %s14, 1
        %s963 = smul.addr %s962, 2
        %s964 = smul.addr %s963, 2
        %s965 = scalar_lea.vmem %s3, %s964
        // Predicated region
        $region74: #{two_stage_anchor_based_lane_detector.9} parent=68 // pred_check
          %p966 = pneg %p100
        $region75: #{two_stage_anchor_based_lane_detector.9} parent=68 // pred_check_branch
          %968 = sbr.rel (%p966) target = $region77
        $region76: #{two_stage_anchor_based_lane_detector.9} parent=68 // pred_region
          _
        $region77: #{two_stage_anchor_based_lane_detector.9} parent=68 // pred_fallthru
          _
      $region69: #{two_stage_anchor_based_lane_detector.9} parent=5 // pred_fallthru
        _
      %p969 = scmp.le.s32.totalorder 2, %s9
      // Predicated region
      $region78: #{two_stage_anchor_based_lane_detector.9} parent=5 // pred_check
        %p970 = pneg %p969
      $region79: #{two_stage_anchor_based_lane_detector.9} parent=5 // pred_check_branch
        %972 = sbr.rel (%p970) target = $region81
      $region80: #{two_stage_anchor_based_lane_detector.9} parent=5 // pred_region
        %s973 = ssub.s32 %s9, 2
        // Predicated region
        $region82: #{two_stage_anchor_based_lane_detector.9} parent=80 // pred_check
          %p974 = pneg %p106
        $region83: #{two_stage_anchor_based_lane_detector.9} parent=80 // pred_check_branch
          %976 = sbr.rel (%p974) target = $region85
        $region84: #{two_stage_anchor_based_lane_detector.9} parent=80 // pred_region
          %p977 = scmp.lt.s32.totalorder %s15, 1
          %s978 = scalar_select %p977, %s15, 1
          %s979 = smul.addr %s978, 2
          %s980 = smul.addr %s979, 2
          %s981 = scalar_lea.vmem %s3, %s980
        $region85: #{two_stage_anchor_based_lane_detector.9} parent=80 // pred_fallthru
          _
      $region81: #{two_stage_anchor_based_lane_detector.9} parent=5 // pred_fallthru
        _
    $region6: #{two_stage_anchor_based_lane_detector.9} parent=1 // loop_footer
      %s13 = sadd.s32 1, %s9
    $region7: #{two_stage_anchor_based_lane_detector.9} parent=1 // loop_footer_branch
      %8 = sbr.rel target = $region3
    $region8: #{two_stage_anchor_based_lane_detector.9} parent=1 // loop_exit
      _

// kernel: two_stage_anchor_based_lane_detector.11
$region0: #{two_stage_anchor_based_lane_detector.11}
  #allocation0 [shape = 'u32[]', space=smem, size = 0x4, offset = 0x4, fixed_abs, tag = 'smem constant byte address 0x4 - core index']
  #allocation1 [shape = 'u32[144,128]{1,0:T(1,128)}', space=vmem, size = 0x12000, scoped, tag = 'internal scratch']
  %s0 = inlined_call_operand.vmem [shape: f32[2,4,64], index: 0, kind: input, shape index: {}]
  %s1 = inlined_call_operand.vmem [shape: bf16[2,64,33], index: 1, kind: input, shape index: {}]
  %s2 = inlined_call_operand.vmem [shape: bf16[32,32], index: 2, kind: input, shape index: {}]
  %s3 = inlined_call_operand.vmem [shape: f32[1,32], index: 3, kind: input, shape index: {}]
  %s4 = inlined_call_operand.vmem [shape: bf16[32,10], index: 4, kind: input, shape index: {}]
  %s5 = inlined_call_operand.vmem [shape: f32[1,10], index: 5, kind: input, shape index: {}]
  %s6 = inlined_call_operand.vmem [shape: f32[2,4,10], index: 6, kind: output, shape index: {}]
  %s7 = sld [smem:[#allocation0]]
  $region57: #{two_stage_anchor_based_lane_detector.11} parent=0
    _
  %s9 = ssub.s32 1, %s7
  %s10 = scalar_select 0, %s9, %s7
  loop: start=0, step=1, limit=4
  $region2: #{two_stage_anchor_based_lane_detector.11} parent=0 // loop_pre_header
    _
  $region3: #{two_stage_anchor_based_lane_detector.11} parent=0 // loop_header
    %s12 = sphi 0, %s16
    %p13 = scmp.ge.s32.totalorder %s12, 4
    %s22 = sphi 0, %s24
    %s25 = sphi 0, %s22
    %s26 = sphi 0, %s25
    %s42 = sphi 0, %s26
    %s48 = sphi 0, %s50
    %s51 = sphi 0, %s48
    %s52 = sphi 0, %s51
    %s68 = sphi 0, %s52
    %s72 = sphi 0, %s72
    %s74 = sphi 0, %s72
    %s75 = sphi 0, %s74
    %s89 = sphi 0, %s75
    %s93 = sphi 0, %s93
    %s95 = sphi 0, %s93
    %s96 = sphi 0, %s95
    %s110 = sphi 0, %s96
    %s114 = sphi 0, %s114
    %s116 = sphi 0, %s114
    %s117 = sphi 0, %s116
    %s131 = sphi 0, %s117
    %s135 = sphi 0, %s135
    %s137 = sphi 0, %s135
    %s138 = sphi 0, %s137
    %s152 = sphi 0, %s138
    %s158 = sphi 0, %s160
    %s161 = sphi 0, %s158
    %s162 = sphi 0, %s161
    %s178 = sphi 0, %s162
  $region4: #{two_stage_anchor_based_lane_detector.11} parent=0 // loop_header_branch
    %15 = sbr.rel (%p13) target = $region8
  $region5: #{two_stage_anchor_based_lane_detector.11} parent=0 // loop_body
    %s17 = ssub.s32 %s12, 1
    %s18 = ssub.s32 %s12, 2
    %s19 = sadd.s32 %s12, 1
    %s20 = ssub.s32 %s12, %s19
    %p21 = scmp.eq.s32.totalorder %s20, 0
    %s23 = sadd.s32 %s22, 1
    %s24 = scalar_select %p21, %s22, %s23
    %p27 = pneg %p21
    %p28 = scmp.eq.s32.totalorder %s12, 1
    %p29 = por %p27, %p28
    %p30 = scmp.ne.s32.totalorder %s22, %s25
    %p31 = scmp.eq.s32.totalorder %s12, 0
    %p32 = por %p30, %p31
    %p33 = scmp.ne.s32.totalorder %s22, %s25
    %p34 = scmp.eq.s32.totalorder %s17, 1
    %p35 = por %p33, %p34
    %p36 = scmp.ne.s32.totalorder %s25, %s26
    %p37 = scmp.eq.s32.totalorder %s17, 0
    %p38 = por %p36, %p37
    %p39 = scmp.ne.s32.totalorder %s25, %s26
    %p40 = scmp.eq.s32.totalorder %s18, 1
    %p41 = por %p39, %p40
    %p43 = scmp.ne.s32.totalorder %s26, %s42
    %p44 = scmp.eq.s32.totalorder %s18, 0
    %p45 = por %p43, %p44
    %s46 = ssub.s32 %s12, %s19
    %p47 = scmp.eq.s32.totalorder %s46, 0
    %s49 = sadd.s32 %s48, 1
    %s50 = scalar_select %p47, %s48, %s49
    %p53 = pneg %p47
    %p54 = scmp.eq.s32.totalorder %s12, 1
    %p55 = por %p53, %p54
    %p56 = scmp.ne.s32.totalorder %s48, %s51
    %p57 = scmp.eq.s32.totalorder %s12, 0
    %p58 = por %p56, %p57
    %p59 = scmp.ne.s32.totalorder %s48, %s51
    %p60 = scmp.eq.s32.totalorder %s17, 1
    %p61 = por %p59, %p60
    %p62 = scmp.ne.s32.totalorder %s51, %s52
    %p63 = scmp.eq.s32.totalorder %s17, 0
    %p64 = por %p62, %p63
    %p65 = scmp.ne.s32.totalorder %s51, %s52
    %p66 = scmp.eq.s32.totalorder %s18, 1
    %p67 = por %p65, %p66
    %p69 = scmp.ne.s32.totalorder %s52, %s68
    %p70 = scmp.eq.s32.totalorder %s18, 0
    %p71 = por %p69, %p70
    %s73 = sadd.s32 %s72, 1
    %p76 = scmp.eq.s32.totalorder %s12, 1
    %p77 = scmp.ne.s32.totalorder %s72, %s74
    %p78 = scmp.eq.s32.totalorder %s12, 0
    %p79 = por %p77, %p78
    %p80 = scmp.ne.s32.totalorder %s72, %s74
    %p81 = scmp.eq.s32.totalorder %s17, 1
    %p82 = por %p80, %p81
    %p83 = scmp.ne.s32.totalorder %s74, %s75
    %p84 = scmp.eq.s32.totalorder %s17, 0
    %p85 = por %p83, %p84
    %p86 = scmp.ne.s32.totalorder %s74, %s75
    %p87 = scmp.eq.s32.totalorder %s18, 1
    %p88 = por %p86, %p87
    %p90 = scmp.ne.s32.totalorder %s75, %s89
    %p91 = scmp.eq.s32.totalorder %s18, 0
    %p92 = por %p90, %p91
    %s94 = sadd.s32 %s93, 1
    %p97 = scmp.eq.s32.totalorder %s12, 1
    %p98 = scmp.ne.s32.totalorder %s93, %s95
    %p99 = scmp.eq.s32.totalorder %s12, 0
    %p100 = por %p98, %p99
    %p101 = scmp.ne.s32.totalorder %s93, %s95
    %p102 = scmp.eq.s32.totalorder %s17, 1
    %p103 = por %p101, %p102
    %p104 = scmp.ne.s32.totalorder %s95, %s96
    %p105 = scmp.eq.s32.totalorder %s17, 0
    %p106 = por %p104, %p105
    %p107 = scmp.ne.s32.totalorder %s95, %s96
    %p108 = scmp.eq.s32.totalorder %s18, 1
    %p109 = por %p107, %p108
    %p111 = scmp.ne.s32.totalorder %s96, %s110
    %p112 = scmp.eq.s32.totalorder %s18, 0
    %p113 = por %p111, %p112
    %s115 = sadd.s32 %s114, 1
    %p118 = scmp.eq.s32.totalorder %s12, 1
    %p119 = scmp.ne.s32.totalorder %s114, %s116
    %p120 = scmp.eq.s32.totalorder %s12, 0
    %p121 = por %p119, %p120
    %p122 = scmp.ne.s32.totalorder %s114, %s116
    %p123 = scmp.eq.s32.totalorder %s17, 1
    %p124 = por %p122, %p123
    %p125 = scmp.ne.s32.totalorder %s116, %s117
    %p126 = scmp.eq.s32.totalorder %s17, 0
    %p127 = por %p125, %p126
    %p128 = scmp.ne.s32.totalorder %s116, %s117
    %p129 = scmp.eq.s32.totalorder %s18, 1
    %p130 = por %p128, %p129
    %p132 = scmp.ne.s32.totalorder %s117, %s131
    %p133 = scmp.eq.s32.totalorder %s18, 0
    %p134 = por %p132, %p133
    %s136 = sadd.s32 %s135, 1
    %p139 = scmp.eq.s32.totalorder %s12, 1
    %p140 = scmp.ne.s32.totalorder %s135, %s137
    %p141 = scmp.eq.s32.totalorder %s12, 0
    %p142 = por %p140, %p141
    %p143 = scmp.ne.s32.totalorder %s135, %s137
    %p144 = scmp.eq.s32.totalorder %s17, 1
    %p145 = por %p143, %p144
    %p146 = scmp.ne.s32.totalorder %s137, %s138
    %p147 = scmp.eq.s32.totalorder %s17, 0
    %p148 = por %p146, %p147
    %p149 = scmp.ne.s32.totalorder %s137, %s138
    %p150 = scmp.eq.s32.totalorder %s18, 1
    %p151 = por %p149, %p150
    %p153 = scmp.ne.s32.totalorder %s138, %s152
    %p154 = scmp.eq.s32.totalorder %s18, 0
    %p155 = por %p153, %p154
    %s156 = ssub.s32 %s12, %s19
    %p157 = scmp.eq.s32.totalorder %s156, 0
    %s159 = sadd.s32 %s158, 1
    %s160 = scalar_select %p157, %s158, %s159
    %p163 = pneg %p157
    %p164 = scmp.eq.s32.totalorder %s12, 1
    %p165 = por %p163, %p164
    %p166 = scmp.ne.s32.totalorder %s158, %s161
    %p167 = scmp.eq.s32.totalorder %s12, 0
    %p168 = por %p166, %p167
    %p169 = scmp.ne.s32.totalorder %s158, %s161
    %p170 = scmp.eq.s32.totalorder %s17, 1
    %p171 = por %p169, %p170
    %p172 = scmp.ne.s32.totalorder %s161, %s162
    %p173 = scmp.eq.s32.totalorder %s17, 0
    %p174 = por %p172, %p173
    %p175 = scmp.ne.s32.totalorder %s161, %s162
    %p176 = scmp.eq.s32.totalorder %s18, 1
    %p177 = por %p175, %p176
    %p179 = scmp.ne.s32.totalorder %s162, %s178
    %p180 = scmp.eq.s32.totalorder %s18, 0
    %p181 = por %p179, %p180
    %p182 = scmp.le.s32.totalorder 1, %s12
    %p183 = scmp.lt.s32.totalorder %s12, 3
    %p184 = pnand %p182, %p183
    %p185 = pneg %p184
    // Predicated region
    $region9: #{two_stage_anchor_based_lane_detector.11} parent=5 // pred_check
      _
    $region10: #{two_stage_anchor_based_lane_detector.11} parent=5 // pred_check_branch
      %187 = sbr.rel (%p184) target = $region12
    $region11: #{two_stage_anchor_based_lane_detector.11} parent=5 // pred_region
      %s188 = ssub.s32 %s12, 1
      // Predicated region
      $region13: #{two_stage_anchor_based_lane_detector.11} parent=11 // pred_check
        %p189 = pneg %p85
      $region14: #{two_stage_anchor_based_lane_detector.11} parent=11 // pred_check_branch
        %191 = sbr.rel (%p189) target = $region16
      $region15: #{two_stage_anchor_based_lane_detector.11} parent=11 // pred_region
        _
      $region16: #{two_stage_anchor_based_lane_detector.11} parent=11 // pred_fallthru
        _
      // Predicated region
      $region17: #{two_stage_anchor_based_lane_detector.11} parent=11 // pred_check
        %p192 = pneg %p106
      $region18: #{two_stage_anchor_based_lane_detector.11} parent=11 // pred_check_branch
        %194 = sbr.rel (%p192) target = $region20
      $region19: #{two_stage_anchor_based_lane_detector.11} parent=11 // pred_region
        _
      $region20: #{two_stage_anchor_based_lane_detector.11} parent=11 // pred_fallthru
        _
      // Predicated region
      $region21: #{two_stage_anchor_based_lane_detector.11} parent=11 // pred_check
        %p195 = pneg %p127
      $region22: #{two_stage_anchor_based_lane_detector.11} parent=11 // pred_check_branch
        %197 = sbr.rel (%p195) target = $region24
      $region23: #{two_stage_anchor_based_lane_detector.11} parent=11 // pred_region
        _
      $region24: #{two_stage_anchor_based_lane_detector.11} parent=11 // pred_fallthru
        _
      // Predicated region
      $region25: #{two_stage_anchor_based_lane_detector.11} parent=11 // pred_check
        %p198 = pneg %p148
      $region26: #{two_stage_anchor_based_lane_detector.11} parent=11 // pred_check_branch
        %200 = sbr.rel (%p198) target = $region28
      $region27: #{two_stage_anchor_based_lane_detector.11} parent=11 // pred_region
        _
      $region28: #{two_stage_anchor_based_lane_detector.11} parent=11 // pred_fallthru
        _
    $region12: #{two_stage_anchor_based_lane_detector.11} parent=5 // pred_fallthru
      _
    %p201 = scmp.lt.s32.totalorder %s12, 2
    // Predicated region
    $region29: #{two_stage_anchor_based_lane_detector.11} parent=5 // pred_check
      %p202 = pneg %p201
    $region30: #{two_stage_anchor_based_lane_detector.11} parent=5 // pred_check_branch
      %204 = sbr.rel (%p202) target = $region32
    $region31: #{two_stage_anchor_based_lane_detector.11} parent=5 // pred_region
      // Predicated region
      $region33: #{two_stage_anchor_based_lane_detector.11} parent=31 // pred_check
        %p205 = pneg %p32
      $region34: #{two_stage_anchor_based_lane_detector.11} parent=31 // pred_check_branch
        %207 = sbr.rel (%p205) target = $region36
      $region35: #{two_stage_anchor_based_lane_detector.11} parent=31 // pred_region
        %p208 = scmp.lt.s32.totalorder %s12, 1
        %s209 = scalar_select %p208, %s12, 1
        %s210 = smul.addr %s209, 4
        %s211 = scalar_lea.vmem %s0, %s210
      $region36: #{two_stage_anchor_based_lane_detector.11} parent=31 // pred_fallthru
        _
      // Predicated region
      $region37: #{two_stage_anchor_based_lane_detector.11} parent=31 // pred_check
        %p212 = pneg %p58
      $region38: #{two_stage_anchor_based_lane_detector.11} parent=31 // pred_check_branch
        %214 = sbr.rel (%p212) target = $region40
      $region39: #{two_stage_anchor_based_lane_detector.11} parent=31 // pred_region
        %p215 = scmp.lt.s32.totalorder %s12, 1
        %s216 = scalar_select %p215, %s12, 1
        %s217 = smul.addr %s216, 8
        %s218 = smul.addr %s217, 4
        %s219 = scalar_lea.vmem %s1, %s218
      $region40: #{two_stage_anchor_based_lane_detector.11} parent=31 // pred_fallthru
        _
    $region32: #{two_stage_anchor_based_lane_detector.11} parent=5 // pred_fallthru
      _
    %p220 = scmp.le.s32.totalorder 1, %s12
    %p221 = scmp.lt.s32.totalorder %s12, 3
    %p222 = pnand %p220, %p221
    %p223 = pneg %p222
    // Predicated region
    $region41: #{two_stage_anchor_based_lane_detector.11} parent=5 // pred_check
      _
    $region42: #{two_stage_anchor_based_lane_detector.11} parent=5 // pred_check_branch
      %225 = sbr.rel (%p222) target = $region44
    $region43: #{two_stage_anchor_based_lane_detector.11} parent=5 // pred_region
      %s226 = ssub.s32 %s12, 1
      %p227 = scmp.lt.s32.totalorder %s17, 1
      %s228 = scalar_select %p227, %s17, 1
      %s229 = smul.addr %s228, 4
      %s230 = scalar_lea.vmem %s0, %s229
      %p231 = pneg %p38
      %p232 = pneg %p35
      %p233 = scmp.lt.s32.totalorder %s17, 1
      %s234 = scalar_select %p233, %s17, 1
      %s235 = smul.addr %s234, 8
      %s236 = smul.addr %s235, 4
      %s237 = scalar_lea.vmem %s1, %s236
      %p238 = pneg %p64
      %p239 = pneg %p61
      %p240 = pneg %p85
      %p241 = pneg %p82
      %p242 = pneg %p106
      %p243 = pneg %p103
      %p244 = pneg %p127
      %p245 = pneg %p124
      %p246 = pneg %p148
      %p247 = pneg %p145
      %p248 = pneg %p174
      %p249 = pneg %p171
      %p250 = scmp.lt.s32.totalorder %s17, 1
      %s251 = scalar_select %p250, %s17, 1
      %s252 = smul.addr %s251, 4
      %s253 = scalar_lea.vmem %s6, %s252
      %p254 = scmp.lt.s32.totalorder %s17, 1
      %s255 = scalar_select %p254, %s17, 1
      %s256 = smul.addr %s255, 4
      %s257 = scalar_lea.vmem %s0, %s256
      %p258 = scmp.lt.s32.totalorder %s17, 1
      %s259 = scalar_select %p258, %s17, 1
      %s260 = smul.addr %s259, 8
      %s261 = smul.addr %s260, 4
      %s262 = scalar_lea.vmem %s1, %s261
      %p263 = scmp.lt.s32.totalorder %s17, 1
      %s264 = scalar_select %p263, %s17, 1
      %s265 = smul.addr %s264, 4
      %s266 = scalar_lea.vmem %s6, %s265
      %v268 = vld [vmem:[%s257] sm:$0xf]
      %v269 = vxor.u32 %v268, 2147483648
      %v270 = vmul.f32 %v269, 1.442695
      %v271 = vpow.pop %v270
      %v272 = vadd.f32 %v271, 1.0
      %v273 = vrcp.pop %v272
      %v274 = vmul.f32 1.0, %v273
      %v275 = vpack.c.bf16 %v274, %v274
      %v276 = vld [vmem:[%s262] sm:$0xf]
      %v277 = vld [vmem:[%s262 + $0x4] sm:$0xf]
      %v278 = vld [vmem:[%s262 + $0x8] sm:$0xf]
      %v279 = vld [vmem:[%s262 + $0xc] sm:$0xf]
      %v280 = vld [vmem:[%s262 + $0x10] sm:$0xf]
      %v281 = vld [vmem:[%s262 + $0x14] sm:$0xf]
      %v282 = vld [vmem:[%s262 + $0x18] sm:$0xf]
      %v283 = vld [vmem:[%s262 + $0x1c] sm:$0xf]
      %v292 = vunpack.c.l.b16 %v276
      %v293 = vunpack.c.l.b16 %v277
      %v294 = vunpack.c.l.b16 %v278
      %v295 = vunpack.c.l.b16 %v279
      %v296 = vunpack.c.l.b16 %v280
      %v297 = vunpack.c.l.b16 %v281
      %v298 = vunpack.c.l.b16 %v282
      %v299 = vunpack.c.l.b16 %v283
      %v300 = vpack.c.b16 %v293, %v292
      %v301 = vpack.c.b16 %v295, %v294
      %v302 = vpack.c.b16 %v297, %v296
      %v303 = vpack.c.b16 %v299, %v298
      %vm308 = vcmask 523264
      %v310 = vsel %vm308, %v275, 0
      %312 = vmatprep.subr.bf16.mxu0 0
      %313 = vmatpush1.bf16.msra.mxu0 0
      %314 = vmatprep.subr.bf16.mxu0 0
      %315 = vmatpush1.bf16.msra.mxu0 0
      %316 = vmatprep.subr.bf16.mxu0 0
      %317 = vmatpush1.bf16.msra.mxu0 0
      %318 = vmatprep.subr.bf16.mxu0 0
      %319 = vmatpush1.bf16.msra.mxu0 0
      %320 = vmatprep.subr.bf16.mxu0 0
      %321 = vmatpush1.bf16.msra.mxu0 %v303
      %322 = vmatprep.subr.bf16.mxu0 0
      %323 = vmatpush1.bf16.msra.mxu0 %v302
      %324 = vmatprep.subr.bf16.mxu0 0
      %325 = vmatpush1.bf16.msra.mxu0 %v301
      %326 = vmatprep.subr.bf16.mxu0 0
      %327 = vmatpush1.bf16.msra.mxu0 %v300
      %328 = vmatprep.subr.bf16.mxu0 0
      %329 = vmatpush2.bf16.msra.mxu0 0
      %330 = vmatprep.subr.bf16.mxu0 0
      %331 = vmatpush2.bf16.msra.mxu0 0
      %332 = vmatprep.subr.bf16.mxu0 0
      %333 = vmatpush2.bf16.msra.mxu0 0
      %334 = vmatprep.subr.bf16.mxu0 0
      %335 = vmatpush2.bf16.msra.mxu0 0
      %336 = vmatprep.subr.bf16.mxu0 0
      %337 = vmatpush2.bf16.msra.mxu0 0
      %338 = vmatprep.subr.bf16.mxu0 0
      %339 = vmatpush2.bf16.msra.mxu0 0
      %340 = vmatprep.subr.bf16.mxu0 0
      %341 = vmatpush2.bf16.msra.mxu0 0
      %342 = vmatprep.subr.bf16.mxu0 0
      %343 = vmatpush2.bf16.msra.mxu0 0
      %344 = vmatprep.mubr.bf16.mxu0 0
      %345 = vmatmul.mubr.bf16.gmra.mxu0 %v310
      %v346 = vpop.f32.mrf.mxu0
      %v347 = vadd.f32 0.0, %v346
      %v348 = vpop.f32.mrf.mxu0
      %v349 = vpop.f32.mrf.mxu0
      %v350 = vpop.f32.mrf.mxu0
      %351 = vdwg.mxu0
      %v352 = vadd.f32 %v347, 1e-06
      %354 = vset.pattern.permute.xlu0 32
      %355 = vperm.xlu0 %354, %v352
      %v356 = vpop.permute.xlu0 %355
      %v358 = vrcp.pop %v356
      %v359 = vmul.f32 %v347, %v358
      %v360 = vpack.c.bf16 %v359, %v359
      %v361 = vld [vmem:[%s2] sm:$0xf]
      %v362 = vld [vmem:[%s2 + $0x4] sm:$0xf]
      %v363 = vld [vmem:[%s2 + $0x8] sm:$0xf]
      %v364 = vld [vmem:[%s2 + $0xc] sm:$0xf]
      %v365 = vld [vmem:[%s3] sm:$0x1]
      %v367 = vlaneseq
      %v368 = vshrl.u32 %v367, 7
      %v369 = vsub.s32 0, %v368
      %v370 = vrot.slane %v365, %v369
      %v376 = vunpack.c.l.b16 %v361
      %v377 = vunpack.c.l.b16 %v362
      %v378 = vunpack.c.l.b16 %v363
      %v379 = vunpack.c.l.b16 %v364
      %v380 = vpack.c.b16 %v377, %v376
      %v381 = vpack.c.b16 %v379, %v378
      %vm384 = vcmask 261120
      %v386 = vsel %vm384, %v360, 0
      %388 = vmatprep.subr.bf16.mxu0 0
      %389 = vmatpush1.bf16.msra.mxu0 0
      %390 = vmatprep.subr.bf16.mxu0 0
      %391 = vmatpush1.bf16.msra.mxu0 0
      %392 = vmatprep.subr.bf16.mxu0 0
      %393 = vmatpush1.bf16.msra.mxu0 0
      %394 = vmatprep.subr.bf16.mxu0 0
      %395 = vmatpush1.bf16.msra.mxu0 0
      %396 = vmatprep.subr.bf16.mxu0 0
      %397 = vmatpush1.bf16.msra.mxu0 0
      %398 = vmatprep.subr.bf16.mxu0 0
      %399 = vmatpush1.bf16.msra.mxu0 0
      %400 = vmatprep.subr.bf16.mxu0 0
      %401 = vmatpush1.bf16.msra.mxu0 %v381
      %402 = vmatprep.subr.bf16.mxu0 0
      %403 = vmatpush1.bf16.msra.mxu0 %v380
      %404 = vmatprep.subr.bf16.mxu0 0
      %405 = vmatpush2.bf16.msra.mxu0 0
      %406 = vmatprep.subr.bf16.mxu0 0
      %407 = vmatpush2.bf16.msra.mxu0 0
      %408 = vmatprep.subr.bf16.mxu0 0
      %409 = vmatpush2.bf16.msra.mxu0 0
      %410 = vmatprep.subr.bf16.mxu0 0
      %411 = vmatpush2.bf16.msra.mxu0 0
      %412 = vmatprep.subr.bf16.mxu0 0
      %413 = vmatpush2.bf16.msra.mxu0 0
      %414 = vmatprep.subr.bf16.mxu0 0
      %415 = vmatpush2.bf16.msra.mxu0 0
      %416 = vmatprep.subr.bf16.mxu0 0
      %417 = vmatpush2.bf16.msra.mxu0 0
      %418 = vmatprep.subr.bf16.mxu0 0
      %419 = vmatpush2.bf16.msra.mxu0 0
      %420 = vmatprep.mubr.bf16.mxu0 0
      %421 = vmatmul.mubr.bf16.gmra.mxu0 %v386
      %v422 = vpop.f32.mrf.mxu0
      %v423 = vadd.f32 %v370, %v422
      %v424 = vpop.f32.mrf.mxu0
      %v425 = vpop.f32.mrf.mxu0
      %v426 = vpop.f32.mrf.mxu0
      %427 = vdwg.mxu0
      %v428 = vmax.f32 %v423, 0.0
      %v429 = vpack.c.bf16 %v428, %v428
      %v430 = vld [vmem:[%s4] sm:$0xf]
      %v431 = vld [vmem:[%s4 + $0x4] sm:$0xf]
      %v432 = vld [vmem:[%s4 + $0x8] sm:$0xf]
      %v433 = vld [vmem:[%s4 + $0xc] sm:$0xf]
      %v434 = vld [vmem:[%s5] sm:$0x1]
      %v436 = vlaneseq
      %v437 = vshrl.u32 %v436, 7
      %v438 = vsub.s32 0, %v437
      %v439 = vrot.slane %v434, %v438
      %v445 = vunpack.c.l.b16 %v430
      %v446 = vunpack.c.l.b16 %v431
      %v447 = vunpack.c.l.b16 %v432
      %v448 = vunpack.c.l.b16 %v433
      %v449 = vpack.c.b16 %v446, %v445
      %v450 = vpack.c.b16 %v448, %v447
      %v454 = vsel %vm384, %v429, 0
      %456 = vmatprep.subr.bf16.mxu0 0
      %457 = vmatpush1.bf16.msra.mxu0 0
      %458 = vmatprep.subr.bf16.mxu0 0
      %459 = vmatpush1.bf16.msra.mxu0 0
      %460 = vmatprep.subr.bf16.mxu0 0
      %461 = vmatpush1.bf16.msra.mxu0 0
      %462 = vmatprep.subr.bf16.mxu0 0
      %463 = vmatpush1.bf16.msra.mxu0 0
      %464 = vmatprep.subr.bf16.mxu0 0
      %465 = vmatpush1.bf16.msra.mxu0 0
      %466 = vmatprep.subr.bf16.mxu0 0
      %467 = vmatpush1.bf16.msra.mxu0 0
      %468 = vmatprep.subr.bf16.mxu0 0
      %469 = vmatpush1.bf16.msra.mxu0 %v450
      %470 = vmatprep.subr.bf16.mxu0 0
      %471 = vmatpush1.bf16.msra.mxu0 %v449
      %472 = vmatprep.subr.bf16.mxu0 0
      %473 = vmatpush2.bf16.msra.mxu0 0
      %474 = vmatprep.subr.bf16.mxu0 0
      %475 = vmatpush2.bf16.msra.mxu0 0
      %476 = vmatprep.subr.bf16.mxu0 0
      %477 = vmatpush2.bf16.msra.mxu0 0
      %478 = vmatprep.subr.bf16.mxu0 0
      %479 = vmatpush2.bf16.msra.mxu0 0
      %480 = vmatprep.subr.bf16.mxu0 0
      %481 = vmatpush2.bf16.msra.mxu0 0
      %482 = vmatprep.subr.bf16.mxu0 0
      %483 = vmatpush2.bf16.msra.mxu0 0
      %484 = vmatprep.subr.bf16.mxu0 0
      %485 = vmatpush2.bf16.msra.mxu0 0
      %486 = vmatprep.subr.bf16.mxu0 0
      %487 = vmatpush2.bf16.msra.mxu0 0
      %488 = vmatprep.mubr.bf16.mxu0 0
      %489 = vmatmul.mubr.bf16.gmra.mxu0 %v454
      %v490 = vpop.f32.mrf.mxu0
      %v491 = vadd.f32 %v439, %v490
      %v492 = vpop.f32.mrf.mxu0
      %v493 = vpop.f32.mrf.mxu0
      %v494 = vpop.f32.mrf.mxu0
      %495 = vdwg.mxu0
      %vm496 = vcmask 76800
      %497 = vst.msk [vmem:[%s266] sm:$0xf] %vm496, %v491
      %p498 = scmp.lt.s32.totalorder %s17, 1
      %s499 = scalar_select %p498, %s17, 1
      %s500 = smul.addr %s499, 4
      %s501 = scalar_lea.vmem %s6, %s500
      // Predicated region
      $region45: #{two_stage_anchor_based_lane_detector.11} parent=43 // pred_check
        %p502 = pneg %p171
      $region46: #{two_stage_anchor_based_lane_detector.11} parent=43 // pred_check_branch
        %504 = sbr.rel (%p502) target = $region48
      $region47: #{two_stage_anchor_based_lane_detector.11} parent=43 // pred_region
        _
      $region48: #{two_stage_anchor_based_lane_detector.11} parent=43 // pred_fallthru
        _
    $region44: #{two_stage_anchor_based_lane_detector.11} parent=5 // pred_fallthru
      _
    %p505 = scmp.le.s32.totalorder 2, %s12
    // Predicated region
    $region49: #{two_stage_anchor_based_lane_detector.11} parent=5 // pred_check
      %p506 = pneg %p505
    $region50: #{two_stage_anchor_based_lane_detector.11} parent=5 // pred_check_branch
      %508 = sbr.rel (%p506) target = $region52
    $region51: #{two_stage_anchor_based_lane_detector.11} parent=5 // pred_region
      %s509 = ssub.s32 %s12, 2
      // Predicated region
      $region53: #{two_stage_anchor_based_lane_detector.11} parent=51 // pred_check
        %p510 = pneg %p177
      $region54: #{two_stage_anchor_based_lane_detector.11} parent=51 // pred_check_branch
        %512 = sbr.rel (%p510) target = $region56
      $region55: #{two_stage_anchor_based_lane_detector.11} parent=51 // pred_region
        %p513 = scmp.lt.s32.totalorder %s18, 1
        %s514 = scalar_select %p513, %s18, 1
        %s515 = smul.addr %s514, 4
        %s516 = scalar_lea.vmem %s6, %s515
      $region56: #{two_stage_anchor_based_lane_detector.11} parent=51 // pred_fallthru
        _
    $region52: #{two_stage_anchor_based_lane_detector.11} parent=5 // pred_fallthru
      _
  $region6: #{two_stage_anchor_based_lane_detector.11} parent=0 // loop_footer
    %s16 = sadd.s32 1, %s12
  $region7: #{two_stage_anchor_based_lane_detector.11} parent=0 // loop_footer_branch
    %11 = sbr.rel target = $region3
  $region8: #{two_stage_anchor_based_lane_detector.11} parent=0 // loop_exit
    _

// kernel: two_stage_anchor_based_lane_detector.10
$region0: #{two_stage_anchor_based_lane_detector.10}
  #allocation0 [shape = 'u32[]', space=smem, size = 0x4, offset = 0x4, fixed_abs, tag = 'smem constant byte address 0x4 - core index']
  #allocation1 [shape = 'u32[144,128]{1,0:T(1,128)}', space=vmem, size = 0x12000, scoped, tag = 'internal scratch']
  #allocation2 [shape = 'f32[1,10,10,32]{3,2,1,0:T(8,128)}', space=vmem, size = 0x14000, scoped, tag = 'scratch operand']
  %s0 = inlined_call_operand.vmem [shape: f32[2,8,8,80], index: 0, kind: input, shape index: {}]
  %s1 = inlined_call_operand.vmem [shape: bf16[80,32], index: 1, kind: input, shape index: {}]
  %s2 = inlined_call_operand.vmem [shape: f32[1,32], index: 2, kind: input, shape index: {}]
  %s3 = inlined_call_operand.vmem [shape: bf16[9,32,32], index: 3, kind: input, shape index: {}]
  %s4 = inlined_call_operand.vmem [shape: f32[1,32], index: 4, kind: input, shape index: {}]
  %s5 = inlined_call_operand.vmem [shape: bf16[32,20], index: 5, kind: input, shape index: {}]
  %s6 = inlined_call_operand.vmem [shape: f32[1,20], index: 6, kind: input, shape index: {}]
  %s7 = inlined_call_operand.vmem [shape: bf16[2,64,32], index: 7, kind: output, shape index: {0}]
  %s8 = inlined_call_operand.vmem [shape: f32[2,64,20], index: 8, kind: output, shape index: {1}]
  %9 = xla_tuple %s7, %s8
  %s10 = sld [smem:[#allocation0]]
  $region69: #{two_stage_anchor_based_lane_detector.10} parent=0
    _
  %s12 = ssub.s32 1, %s10
  %s13 = scalar_select 0, %s12, %s10
  loop: start=0, step=1, limit=4
  $region2: #{two_stage_anchor_based_lane_detector.10} parent=0 // loop_pre_header
    _
  $region3: #{two_stage_anchor_based_lane_detector.10} parent=0 // loop_header
    %s15 = sphi 0, %s19
    %p16 = scmp.ge.s32.totalorder %s15, 4
    %s25 = sphi 0, %s27
    %s28 = sphi 0, %s25
    %s29 = sphi 0, %s28
    %s45 = sphi 0, %s29
    %s49 = sphi 0, %s49
    %s51 = sphi 0, %s49
    %s52 = sphi 0, %s51
    %s66 = sphi 0, %s52
    %s70 = sphi 0, %s70
    %s72 = sphi 0, %s70
    %s73 = sphi 0, %s72
    %s87 = sphi 0, %s73
    %s91 = sphi 0, %s91
    %s93 = sphi 0, %s91
    %s94 = sphi 0, %s93
    %s108 = sphi 0, %s94
    %s112 = sphi 0, %s112
    %s114 = sphi 0, %s112
    %s115 = sphi 0, %s114
    %s129 = sphi 0, %s115
    %s133 = sphi 0, %s133
    %s135 = sphi 0, %s133
    %s136 = sphi 0, %s135
    %s150 = sphi 0, %s136
    %s154 = sphi 0, %s154
    %s156 = sphi 0, %s154
    %s157 = sphi 0, %s156
    %s171 = sphi 0, %s157
    %s177 = sphi 0, %s179
    %s180 = sphi 0, %s177
    %s181 = sphi 0, %s180
    %s197 = sphi 0, %s181
    %s203 = sphi 0, %s205
    %s206 = sphi 0, %s203
    %s207 = sphi 0, %s206
    %s223 = sphi 0, %s207
  $region4: #{two_stage_anchor_based_lane_detector.10} parent=0 // loop_header_branch
    %18 = sbr.rel (%p16) target = $region8
  $region5: #{two_stage_anchor_based_lane_detector.10} parent=0 // loop_body
    %s20 = ssub.s32 %s15, 1
    %s21 = ssub.s32 %s15, 2
    %s22 = sadd.s32 %s15, 1
    %s23 = ssub.s32 %s15, %s22
    %p24 = scmp.eq.s32.totalorder %s23, 0
    %s26 = sadd.s32 %s25, 1
    %s27 = scalar_select %p24, %s25, %s26
    %p30 = pneg %p24
    %p31 = scmp.eq.s32.totalorder %s15, 1
    %p32 = por %p30, %p31
    %p33 = scmp.ne.s32.totalorder %s25, %s28
    %p34 = scmp.eq.s32.totalorder %s15, 0
    %p35 = por %p33, %p34
    %p36 = scmp.ne.s32.totalorder %s25, %s28
    %p37 = scmp.eq.s32.totalorder %s20, 1
    %p38 = por %p36, %p37
    %p39 = scmp.ne.s32.totalorder %s28, %s29
    %p40 = scmp.eq.s32.totalorder %s20, 0
    %p41 = por %p39, %p40
    %p42 = scmp.ne.s32.totalorder %s28, %s29
    %p43 = scmp.eq.s32.totalorder %s21, 1
    %p44 = por %p42, %p43
    %p46 = scmp.ne.s32.totalorder %s29, %s45
    %p47 = scmp.eq.s32.totalorder %s21, 0
    %p48 = por %p46, %p47
    %s50 = sadd.s32 %s49, 1
    %p53 = scmp.eq.s32.totalorder %s15, 1
    %p54 = scmp.ne.s32.totalorder %s49, %s51
    %p55 = scmp.eq.s32.totalorder %s15, 0
    %p56 = por %p54, %p55
    %p57 = scmp.ne.s32.totalorder %s49, %s51
    %p58 = scmp.eq.s32.totalorder %s20, 1
    %p59 = por %p57, %p58
    %p60 = scmp.ne.s32.totalorder %s51, %s52
    %p61 = scmp.eq.s32.totalorder %s20, 0
    %p62 = por %p60, %p61
    %p63 = scmp.ne.s32.totalorder %s51, %s52
    %p64 = scmp.eq.s32.totalorder %s21, 1
    %p65 = por %p63, %p64
    %p67 = scmp.ne.s32.totalorder %s52, %s66
    %p68 = scmp.eq.s32.totalorder %s21, 0
    %p69 = por %p67, %p68
    %s71 = sadd.s32 %s70, 1
    %p74 = scmp.eq.s32.totalorder %s15, 1
    %p75 = scmp.ne.s32.totalorder %s70, %s72
    %p76 = scmp.eq.s32.totalorder %s15, 0
    %p77 = por %p75, %p76
    %p78 = scmp.ne.s32.totalorder %s70, %s72
    %p79 = scmp.eq.s32.totalorder %s20, 1
    %p80 = por %p78, %p79
    %p81 = scmp.ne.s32.totalorder %s72, %s73
    %p82 = scmp.eq.s32.totalorder %s20, 0
    %p83 = por %p81, %p82
    %p84 = scmp.ne.s32.totalorder %s72, %s73
    %p85 = scmp.eq.s32.totalorder %s21, 1
    %p86 = por %p84, %p85
    %p88 = scmp.ne.s32.totalorder %s73, %s87
    %p89 = scmp.eq.s32.totalorder %s21, 0
    %p90 = por %p88, %p89
    %s92 = sadd.s32 %s91, 1
    %p95 = scmp.eq.s32.totalorder %s15, 1
    %p96 = scmp.ne.s32.totalorder %s91, %s93
    %p97 = scmp.eq.s32.totalorder %s15, 0
    %p98 = por %p96, %p97
    %p99 = scmp.ne.s32.totalorder %s91, %s93
    %p100 = scmp.eq.s32.totalorder %s20, 1
    %p101 = por %p99, %p100
    %p102 = scmp.ne.s32.totalorder %s93, %s94
    %p103 = scmp.eq.s32.totalorder %s20, 0
    %p104 = por %p102, %p103
    %p105 = scmp.ne.s32.totalorder %s93, %s94
    %p106 = scmp.eq.s32.totalorder %s21, 1
    %p107 = por %p105, %p106
    %p109 = scmp.ne.s32.totalorder %s94, %s108
    %p110 = scmp.eq.s32.totalorder %s21, 0
    %p111 = por %p109, %p110
    %s113 = sadd.s32 %s112, 1
    %p116 = scmp.eq.s32.totalorder %s15, 1
    %p117 = scmp.ne.s32.totalorder %s112, %s114
    %p118 = scmp.eq.s32.totalorder %s15, 0
    %p119 = por %p117, %p118
    %p120 = scmp.ne.s32.totalorder %s112, %s114
    %p121 = scmp.eq.s32.totalorder %s20, 1
    %p122 = por %p120, %p121
    %p123 = scmp.ne.s32.totalorder %s114, %s115
    %p124 = scmp.eq.s32.totalorder %s20, 0
    %p125 = por %p123, %p124
    %p126 = scmp.ne.s32.totalorder %s114, %s115
    %p127 = scmp.eq.s32.totalorder %s21, 1
    %p128 = por %p126, %p127
    %p130 = scmp.ne.s32.totalorder %s115, %s129
    %p131 = scmp.eq.s32.totalorder %s21, 0
    %p132 = por %p130, %p131
    %s134 = sadd.s32 %s133, 1
    %p137 = scmp.eq.s32.totalorder %s15, 1
    %p138 = scmp.ne.s32.totalorder %s133, %s135
    %p139 = scmp.eq.s32.totalorder %s15, 0
    %p140 = por %p138, %p139
    %p141 = scmp.ne.s32.totalorder %s133, %s135
    %p142 = scmp.eq.s32.totalorder %s20, 1
    %p143 = por %p141, %p142
    %p144 = scmp.ne.s32.totalorder %s135, %s136
    %p145 = scmp.eq.s32.totalorder %s20, 0
    %p146 = por %p144, %p145
    %p147 = scmp.ne.s32.totalorder %s135, %s136
    %p148 = scmp.eq.s32.totalorder %s21, 1
    %p149 = por %p147, %p148
    %p151 = scmp.ne.s32.totalorder %s136, %s150
    %p152 = scmp.eq.s32.totalorder %s21, 0
    %p153 = por %p151, %p152
    %s155 = sadd.s32 %s154, 1
    %p158 = scmp.eq.s32.totalorder %s15, 1
    %p159 = scmp.ne.s32.totalorder %s154, %s156
    %p160 = scmp.eq.s32.totalorder %s15, 0
    %p161 = por %p159, %p160
    %p162 = scmp.ne.s32.totalorder %s154, %s156
    %p163 = scmp.eq.s32.totalorder %s20, 1
    %p164 = por %p162, %p163
    %p165 = scmp.ne.s32.totalorder %s156, %s157
    %p166 = scmp.eq.s32.totalorder %s20, 0
    %p167 = por %p165, %p166
    %p168 = scmp.ne.s32.totalorder %s156, %s157
    %p169 = scmp.eq.s32.totalorder %s21, 1
    %p170 = por %p168, %p169
    %p172 = scmp.ne.s32.totalorder %s157, %s171
    %p173 = scmp.eq.s32.totalorder %s21, 0
    %p174 = por %p172, %p173
    %s175 = ssub.s32 %s15, %s22
    %p176 = scmp.eq.s32.totalorder %s175, 0
    %s178 = sadd.s32 %s177, 1
    %s179 = scalar_select %p176, %s177, %s178
    %p182 = pneg %p176
    %p183 = scmp.eq.s32.totalorder %s15, 1
    %p184 = por %p182, %p183
    %p185 = scmp.ne.s32.totalorder %s177, %s180
    %p186 = scmp.eq.s32.totalorder %s15, 0
    %p187 = por %p185, %p186
    %p188 = scmp.ne.s32.totalorder %s177, %s180
    %p189 = scmp.eq.s32.totalorder %s20, 1
    %p190 = por %p188, %p189
    %p191 = scmp.ne.s32.totalorder %s180, %s181
    %p192 = scmp.eq.s32.totalorder %s20, 0
    %p193 = por %p191, %p192
    %p194 = scmp.ne.s32.totalorder %s180, %s181
    %p195 = scmp.eq.s32.totalorder %s21, 1
    %p196 = por %p194, %p195
    %p198 = scmp.ne.s32.totalorder %s181, %s197
    %p199 = scmp.eq.s32.totalorder %s21, 0
    %p200 = por %p198, %p199
    %s201 = ssub.s32 %s15, %s22
    %p202 = scmp.eq.s32.totalorder %s201, 0
    %s204 = sadd.s32 %s203, 1
    %s205 = scalar_select %p202, %s203, %s204
    %p208 = pneg %p202
    %p209 = scmp.eq.s32.totalorder %s15, 1
    %p210 = por %p208, %p209
    %p211 = scmp.ne.s32.totalorder %s203, %s206
    %p212 = scmp.eq.s32.totalorder %s15, 0
    %p213 = por %p211, %p212
    %p214 = scmp.ne.s32.totalorder %s203, %s206
    %p215 = scmp.eq.s32.totalorder %s20, 1
    %p216 = por %p214, %p215
    %p217 = scmp.ne.s32.totalorder %s206, %s207
    %p218 = scmp.eq.s32.totalorder %s20, 0
    %p219 = por %p217, %p218
    %p220 = scmp.ne.s32.totalorder %s206, %s207
    %p221 = scmp.eq.s32.totalorder %s21, 1
    %p222 = por %p220, %p221
    %p224 = scmp.ne.s32.totalorder %s207, %s223
    %p225 = scmp.eq.s32.totalorder %s21, 0
    %p226 = por %p224, %p225
    %p227 = scmp.le.s32.totalorder 1, %s15
    %p228 = scmp.lt.s32.totalorder %s15, 3
    %p229 = pnand %p227, %p228
    %p230 = pneg %p229
    // Predicated region
    $region9: #{two_stage_anchor_based_lane_detector.10} parent=5 // pred_check
      _
    $region10: #{two_stage_anchor_based_lane_detector.10} parent=5 // pred_check_branch
      %232 = sbr.rel (%p229) target = $region12
    $region11: #{two_stage_anchor_based_lane_detector.10} parent=5 // pred_region
      %s233 = ssub.s32 %s15, 1
      // Predicated region
      $region13: #{two_stage_anchor_based_lane_detector.10} parent=11 // pred_check
        %p234 = pneg %p62
      $region14: #{two_stage_anchor_based_lane_detector.10} parent=11 // pred_check_branch
        %236 = sbr.rel (%p234) target = $region16
      $region15: #{two_stage_anchor_based_lane_detector.10} parent=11 // pred_region
        _
      $region16: #{two_stage_anchor_based_lane_detector.10} parent=11 // pred_fallthru
        _
      // Predicated region
      $region17: #{two_stage_anchor_based_lane_detector.10} parent=11 // pred_check
        %p237 = pneg %p83
      $region18: #{two_stage_anchor_based_lane_detector.10} parent=11 // pred_check_branch
        %239 = sbr.rel (%p237) target = $region20
      $region19: #{two_stage_anchor_based_lane_detector.10} parent=11 // pred_region
        _
      $region20: #{two_stage_anchor_based_lane_detector.10} parent=11 // pred_fallthru
        _
      // Predicated region
      $region21: #{two_stage_anchor_based_lane_detector.10} parent=11 // pred_check
        %p240 = pneg %p104
      $region22: #{two_stage_anchor_based_lane_detector.10} parent=11 // pred_check_branch
        %242 = sbr.rel (%p240) target = $region24
      $region23: #{two_stage_anchor_based_lane_detector.10} parent=11 // pred_region
        _
      $region24: #{two_stage_anchor_based_lane_detector.10} parent=11 // pred_fallthru
        _
      // Predicated region
      $region25: #{two_stage_anchor_based_lane_detector.10} parent=11 // pred_check
        %p243 = pneg %p125
      $region26: #{two_stage_anchor_based_lane_detector.10} parent=11 // pred_check_branch
        %245 = sbr.rel (%p243) target = $region28
      $region27: #{two_stage_anchor_based_lane_detector.10} parent=11 // pred_region
        _
      $region28: #{two_stage_anchor_based_lane_detector.10} parent=11 // pred_fallthru
        _
      // Predicated region
      $region29: #{two_stage_anchor_based_lane_detector.10} parent=11 // pred_check
        %p246 = pneg %p146
      $region30: #{two_stage_anchor_based_lane_detector.10} parent=11 // pred_check_branch
        %248 = sbr.rel (%p246) target = $region32
      $region31: #{two_stage_anchor_based_lane_detector.10} parent=11 // pred_region
        _
      $region32: #{two_stage_anchor_based_lane_detector.10} parent=11 // pred_fallthru
        _
      // Predicated region
      $region33: #{two_stage_anchor_based_lane_detector.10} parent=11 // pred_check
        %p249 = pneg %p167
      $region34: #{two_stage_anchor_based_lane_detector.10} parent=11 // pred_check_branch
        %251 = sbr.rel (%p249) target = $region36
      $region35: #{two_stage_anchor_based_lane_detector.10} parent=11 // pred_region
        _
      $region36: #{two_stage_anchor_based_lane_detector.10} parent=11 // pred_fallthru
        _
    $region12: #{two_stage_anchor_based_lane_detector.10} parent=5 // pred_fallthru
      _
    %p252 = scmp.lt.s32.totalorder %s15, 2
    // Predicated region
    $region37: #{two_stage_anchor_based_lane_detector.10} parent=5 // pred_check
      %p253 = pneg %p252
    $region38: #{two_stage_anchor_based_lane_detector.10} parent=5 // pred_check_branch
      %255 = sbr.rel (%p253) target = $region40
    $region39: #{two_stage_anchor_based_lane_detector.10} parent=5 // pred_region
      // Predicated region
      $region41: #{two_stage_anchor_based_lane_detector.10} parent=39 // pred_check
        %p256 = pneg %p35
      $region42: #{two_stage_anchor_based_lane_detector.10} parent=39 // pred_check_branch
        %258 = sbr.rel (%p256) target = $region44
      $region43: #{two_stage_anchor_based_lane_detector.10} parent=39 // pred_region
        %p259 = scmp.lt.s32.totalorder %s15, 1
        %s260 = scalar_select %p259, %s15, 1
        %s261 = smul.addr %s260, 8
        %s262 = smul.addr %s261, 8
        %s263 = scalar_lea.vmem %s0, %s262
      $region44: #{two_stage_anchor_based_lane_detector.10} parent=39 // pred_fallthru
        _
    $region40: #{two_stage_anchor_based_lane_detector.10} parent=5 // pred_fallthru
      _
    %p264 = scmp.le.s32.totalorder 1, %s15
    %p265 = scmp.lt.s32.totalorder %s15, 3
    %p266 = pnand %p264, %p265
    %p267 = pneg %p266
    // Predicated region
    $region45: #{two_stage_anchor_based_lane_detector.10} parent=5 // pred_check
      _
    $region46: #{two_stage_anchor_based_lane_detector.10} parent=5 // pred_check_branch
      %269 = sbr.rel (%p266) target = $region48
    $region47: #{two_stage_anchor_based_lane_detector.10} parent=5 // pred_region
      %s270 = ssub.s32 %s15, 1
      %p271 = scmp.lt.s32.totalorder %s20, 1
      %s272 = scalar_select %p271, %s20, 1
      %s273 = smul.addr %s272, 8
      %s274 = smul.addr %s273, 8
      %s275 = scalar_lea.vmem %s0, %s274
      %p276 = pneg %p41
      %p277 = pneg %p38
      %p278 = pneg %p62
      %p279 = pneg %p59
      %p280 = pneg %p83
      %p281 = pneg %p80
      %p282 = pneg %p104
      %p283 = pneg %p101
      %p284 = pneg %p125
      %p285 = pneg %p122
      %p286 = pneg %p146
      %p287 = pneg %p143
      %p288 = pneg %p167
      %p289 = pneg %p164
      %p290 = pneg %p193
      %p291 = pneg %p190
      %p292 = scmp.lt.s32.totalorder %s20, 1
      %s293 = scalar_select %p292, %s20, 1
      %s294 = smul.addr %s293, 8
      %s295 = smul.addr %s294, 4
      %s296 = scalar_lea.vmem %s7, %s295
      %p297 = pneg %p219
      %p298 = pneg %p216
      %p299 = scmp.lt.s32.totalorder %s20, 1
      %s300 = scalar_select %p299, %s20, 1
      %s301 = smul.addr %s300, 8
      %s302 = smul.addr %s301, 8
      %s303 = scalar_lea.vmem %s8, %s302
      %p304 = scmp.lt.s32.totalorder %s20, 1
      %s305 = scalar_select %p304, %s20, 1
      %s306 = smul.addr %s305, 8
      %s307 = smul.addr %s306, 8
      %s308 = scalar_lea.vmem %s0, %s307
      %p309 = scmp.lt.s32.totalorder %s20, 1
      %s310 = scalar_select %p309, %s20, 1
      %s311 = smul.addr %s310, 8
      %s312 = smul.addr %s311, 4
      %s313 = scalar_lea.vmem %s7, %s312
      %p314 = scmp.lt.s32.totalorder %s20, 1
      %s315 = scalar_select %p314, %s20, 1
      %s316 = smul.addr %s315, 8
      %s317 = smul.addr %s316, 8
      %s318 = scalar_lea.vmem %s8, %s317
      %v320 = vld [vmem:[%s308] sm:$0xff]
      %v321 = vld [vmem:[%s308 + $0x8] sm:$0xff]
      %v322 = vld [vmem:[%s308 + $0x10] sm:$0xff]
      %v323 = vld [vmem:[%s308 + $0x18] sm:$0xff]
      %v324 = vld [vmem:[%s308 + $0x20] sm:$0xff]
      %v325 = vld [vmem:[%s308 + $0x28] sm:$0xff]
      %v326 = vld [vmem:[%s308 + $0x30] sm:$0xff]
      %v327 = vld [vmem:[%s308 + $0x38] sm:$0xff]
      %v328 = vpack.c.bf16 %v321, %v320
      %v329 = vpack.c.bf16 %v323, %v322
      %v330 = vpack.c.bf16 %v325, %v324
      %v331 = vpack.c.bf16 %v327, %v326
      %v332 = vld [vmem:[%s1] sm:$0xf]
      %v333 = vld [vmem:[%s1 + $0x4] sm:$0xf]
      %v334 = vld [vmem:[%s1 + $0x8] sm:$0xf]
      %v335 = vld [vmem:[%s1 + $0xc] sm:$0xf]
      %v336 = vld [vmem:[%s1 + $0x10] sm:$0xf]
      %v337 = vld [vmem:[%s1 + $0x14] sm:$0xf]
      %v338 = vld [vmem:[%s1 + $0x18] sm:$0xf]
      %v339 = vld [vmem:[%s1 + $0x1c] sm:$0xf]
      %v340 = vld [vmem:[%s1 + $0x20] sm:$0xf]
      %v341 = vld [vmem:[%s1 + $0x24] sm:$0xf]
      %v342 = vld [vmem:[%s2] sm:$0x1]
      %v344 = vlaneseq
      %v345 = vshrl.u32 %v344, 7
      %v346 = vsub.s32 0, %v345
      %v347 = vrot.slane %v342, %v346
      %v359 = vunpack.c.l.b16 %v332
      %v360 = vunpack.c.l.b16 %v333
      %v361 = vunpack.c.l.b16 %v334
      %v362 = vunpack.c.l.b16 %v335
      %v363 = vunpack.c.l.b16 %v336
      %v364 = vunpack.c.l.b16 %v337
      %v365 = vunpack.c.l.b16 %v338
      %v366 = vunpack.c.l.b16 %v339
      %v367 = vunpack.c.l.b16 %v340
      %v368 = vunpack.c.l.b16 %v341
      %v369 = vpack.c.b16 %v360, %v359
      %v370 = vpack.c.b16 %v362, %v361
      %v371 = vpack.c.b16 %v364, %v363
      %v372 = vpack.c.b16 %v366, %v365
      %v373 = vpack.c.b16 %v368, %v367
      %vm379 = vcmask 654336
      %v381 = vsel %vm379, %v328, 0
      %v384 = vsel %vm379, %v329, 0
      %v387 = vsel %vm379, %v330, 0
      %v390 = vsel %vm379, %v331, 0
      %392 = vmatprep.subr.bf16.mxu0 0
      %393 = vmatpush1.bf16.msra.mxu0 0
      %394 = vmatprep.subr.bf16.mxu0 0
      %395 = vmatpush1.bf16.msra.mxu0 0
      %396 = vmatprep.subr.bf16.mxu0 0
      %397 = vmatpush1.bf16.msra.mxu0 0
      %398 = vmatprep.subr.bf16.mxu0 0
      %399 = vmatpush1.bf16.msra.mxu0 %v373
      %400 = vmatprep.subr.bf16.mxu0 0
      %401 = vmatpush1.bf16.msra.mxu0 %v372
      %402 = vmatprep.subr.bf16.mxu0 0
      %403 = vmatpush1.bf16.msra.mxu0 %v371
      %404 = vmatprep.subr.bf16.mxu0 0
      %405 = vmatpush1.bf16.msra.mxu0 %v370
      %406 = vmatprep.subr.bf16.mxu0 0
      %407 = vmatpush1.bf16.msra.mxu0 %v369
      %408 = vmatprep.subr.bf16.mxu0 0
      %409 = vmatpush2.bf16.msra.mxu0 0
      %410 = vmatprep.subr.bf16.mxu0 0
      %411 = vmatpush2.bf16.msra.mxu0 0
      %412 = vmatprep.subr.bf16.mxu0 0
      %413 = vmatpush2.bf16.msra.mxu0 0
      %414 = vmatprep.subr.bf16.mxu0 0
      %415 = vmatpush2.bf16.msra.mxu0 0
      %416 = vmatprep.subr.bf16.mxu0 0
      %417 = vmatpush2.bf16.msra.mxu0 0
      %418 = vmatprep.subr.bf16.mxu0 0
      %419 = vmatpush2.bf16.msra.mxu0 0
      %420 = vmatprep.subr.bf16.mxu0 0
      %421 = vmatpush2.bf16.msra.mxu0 0
      %422 = vmatprep.subr.bf16.mxu0 0
      %423 = vmatpush2.bf16.msra.mxu0 0
      %424 = vmatprep.mubr.bf16.mxu0 0
      %425 = vmatmul.mubr.bf16.gmra.mxu0 %v381
      %v426 = vpop.f32.mrf.mxu0
      %v427 = vadd.f32 %v347, %v426
      %v428 = vpop.f32.mrf.mxu0
      %v429 = vpop.f32.mrf.mxu0
      %v430 = vadd.f32 %v347, %v429
      %v431 = vpop.f32.mrf.mxu0
      %432 = vmatprep.mubr.bf16.mxu0 0
      %433 = vmatmul.mubr.bf16.gmra.mxu0 %v384
      %v434 = vpop.f32.mrf.mxu0
      %v435 = vadd.f32 %v347, %v434
      %v436 = vpop.f32.mrf.mxu0
      %v437 = vpop.f32.mrf.mxu0
      %v438 = vadd.f32 %v347, %v437
      %v439 = vpop.f32.mrf.mxu0
      %440 = vmatprep.mubr.bf16.mxu0 0
      %441 = vmatmul.mubr.bf16.gmra.mxu0 %v387
      %v442 = vpop.f32.mrf.mxu0
      %v443 = vadd.f32 %v347, %v442
      %v444 = vpop.f32.mrf.mxu0
      %v445 = vpop.f32.mrf.mxu0
      %v446 = vadd.f32 %v347, %v445
      %v447 = vpop.f32.mrf.mxu0
      %448 = vmatprep.mubr.bf16.mxu0 0
      %449 = vmatmul.mubr.bf16.gmra.mxu0 %v390
      %v450 = vpop.f32.mrf.mxu0
      %v451 = vadd.f32 %v347, %v450
      %v452 = vpop.f32.mrf.mxu0
      %v453 = vpop.f32.mrf.mxu0
      %v454 = vadd.f32 %v347, %v453
      %v455 = vpop.f32.mrf.mxu0
      %456 = vdwg.mxu0
      %v457 = vpack.c.bf16 %v430, %v427
      %v458 = vpack.c.bf16 %v438, %v435
      %v459 = vpack.c.bf16 %v446, %v443
      %v460 = vpack.c.bf16 %v454, %v451
      %v465 = vunpack.c.l.b16 %v457
      %v466 = vunpack.c.h.b16 %v457
      %v467 = vunpack.c.l.b16 %v458
      %v468 = vunpack.c.h.b16 %v458
      %v469 = vunpack.c.l.b16 %v459
      %v470 = vunpack.c.h.b16 %v459
      %v471 = vunpack.c.l.b16 %v460
      %v472 = vunpack.c.h.b16 %v460
      %v473 = vpack.c.b16 %v465, %v465
      %v474 = vpack.c.b16 %v466, %v466
      %v475 = vpack.c.b16 %v467, %v467
      %v476 = vpack.c.b16 %v468, %v468
      %v477 = vpack.c.b16 %v469, %v469
      %v478 = vpack.c.b16 %v470, %v470
      %v479 = vpack.c.b16 %v471, %v471
      %v480 = vpack.c.b16 %v472, %v472
      %vm489 = vcmask 257024
      %490 = vst.msk [vmem:[%s313] sm:$0xf] %vm489, %v473
      %491 = vst.msk [vmem:[%s313 + $0x4] sm:$0xf] %vm489, %v474
      %492 = vst.msk [vmem:[%s313 + $0x8] sm:$0xf] %vm489, %v475
      %493 = vst.msk [vmem:[%s313 + $0xc] sm:$0xf] %vm489, %v476
      %494 = vst.msk [vmem:[%s313 + $0x10] sm:$0xf] %vm489, %v477
      %495 = vst.msk [vmem:[%s313 + $0x14] sm:$0xf] %vm489, %v478
      %496 = vst.msk [vmem:[%s313 + $0x18] sm:$0xf] %vm489, %v479
      %497 = vst.msk [vmem:[%s313 + $0x1c] sm:$0xf] %vm489, %v480
      %vm498 = vcmask 261120
      %499 = vst.msk [vmem:[#allocation2] sm:$0xff] %vm498, 0.0
      %vm500 = vcmask 254976
      %501 = vst.msk [vmem:[#allocation2 + $0x8] sm:$0x3] %vm500, 0.0
      %502 = vst.msk [vmem:[#allocation2 + $0x10] sm:$0xff] %vm498, 0.0
      %503 = vst.msk [vmem:[#allocation2 + $0x18] sm:$0x3] %vm500, 0.0
      %504 = vst.msk [vmem:[#allocation2 + $0x20] sm:$0xff] %vm498, 0.0
      %505 = vst.msk [vmem:[#allocation2 + $0x28] sm:$0x3] %vm500, 0.0
      %506 = vst.msk [vmem:[#allocation2 + $0x30] sm:$0xff] %vm498, 0.0
      %507 = vst.msk [vmem:[#allocation2 + $0x38] sm:$0x3] %vm500, 0.0
      %508 = vst.msk [vmem:[#allocation2 + $0x40] sm:$0xff] %vm498, 0.0
      %509 = vst.msk [vmem:[#allocation2 + $0x48] sm:$0x3] %vm500, 0.0
      %510 = vst.msk [vmem:[#allocation2 + $0x50] sm:$0xff] %vm498, 0.0
      %511 = vst.msk [vmem:[#allocation2 + $0x58] sm:$0x3] %vm500, 0.0
      %512 = vst.msk [vmem:[#allocation2 + $0x60] sm:$0xff] %vm498, 0.0
      %513 = vst.msk [vmem:[#allocation2 + $0x68] sm:$0x3] %vm500, 0.0
      %514 = vst.msk [vmem:[#allocation2 + $0x70] sm:$0xff] %vm498, 0.0
      %515 = vst.msk [vmem:[#allocation2 + $0x78] sm:$0x3] %vm500, 0.0
      %516 = vst.msk [vmem:[#allocation2 + $0x80] sm:$0xff] %vm498, 0.0
      %517 = vst.msk [vmem:[#allocation2 + $0x88] sm:$0x3] %vm500, 0.0
      %518 = vst.msk [vmem:[#allocation2 + $0x90] sm:$0xff] %vm498, 0.0
      %519 = vst.msk [vmem:[#allocation2 + $0x98] sm:$0x3] %vm500, 0.0
      %s520 = scalar_lea.vmem [#allocation2], 16
      %521 = vst.msk [vmem:[%s520 + $0x1] sm:$0xff] %vm498, %v427
      %522 = vst.msk [vmem:[%s520 + $0x11] sm:$0xff] %vm498, %v430
      %523 = vst.msk [vmem:[%s520 + $0x21] sm:$0xff] %vm498, %v435
      %524 = vst.msk [vmem:[%s520 + $0x31] sm:$0xff] %vm498, %v438
      %525 = vst.msk [vmem:[%s520 + $0x41] sm:$0xff] %vm498, %v443
      %526 = vst.msk [vmem:[%s520 + $0x51] sm:$0xff] %vm498, %v446
      %527 = vst.msk [vmem:[%s520 + $0x61] sm:$0xff] %vm498, %v451
      %528 = vst.msk [vmem:[%s520 + $0x71] sm:$0xff] %vm498, %v454
      %v529 = vld [vmem:[#allocation2] sm:$0xff]
      %v530 = vld [vmem:[#allocation2 + $0x10] sm:$0xff]
      %v531 = vld [vmem:[#allocation2 + $0x20] sm:$0xff]
      %v532 = vld [vmem:[#allocation2 + $0x30] sm:$0xff]
      %v533 = vld [vmem:[#allocation2 + $0x40] sm:$0xff]
      %v534 = vld [vmem:[#allocation2 + $0x50] sm:$0xff]
      %v535 = vld [vmem:[#allocation2 + $0x60] sm:$0xff]
      %v536 = vld [vmem:[#allocation2 + $0x70] sm:$0xff]
      %v537 = vpack.c.bf16 %v530, %v529
      %v538 = vpack.c.bf16 %v532, %v531
      %v539 = vpack.c.bf16 %v534, %v533
      %v540 = vpack.c.bf16 %v536, %v535
      %v541 = vld [vmem:[%s3] sm:$0xf]
      %v542 = vld [vmem:[%s3 + $0x4] sm:$0xf]
      %v543 = vld [vmem:[%s3 + $0x8] sm:$0xf]
      %v544 = vld [vmem:[%s3 + $0xc] sm:$0xf]
      %v545 = vld [vmem:[#allocation2 + $0x1] sm:$0xff]
      %v546 = vld [vmem:[#allocation2 + $0x11] sm:$0xff]
      %v547 = vld [vmem:[#allocation2 + $0x21] sm:$0xff]
      %v548 = vld [vmem:[#allocation2 + $0x31] sm:$0xff]
      %v549 = vld [vmem:[#allocation2 + $0x41] sm:$0xff]
      %v550 = vld [vmem:[#allocation2 + $0x51] sm:$0xff]
      %v551 = vld [vmem:[#allocation2 + $0x61] sm:$0xff]
      %v552 = vld [vmem:[#allocation2 + $0x71] sm:$0xff]
      %v553 = vpack.c.bf16 %v546, %v545
      %v554 = vpack.c.bf16 %v548, %v547
      %v555 = vpack.c.bf16 %v550, %v549
      %v556 = vpack.c.bf16 %v552, %v551
      %s557 = scalar_lea.vmem %s3, 16
      %v558 = vld [vmem:[%s557] sm:$0xf]
      %v559 = vld [vmem:[%s557 + $0x4] sm:$0xf]
      %v560 = vld [vmem:[%s557 + $0x8] sm:$0xf]
      %v561 = vld [vmem:[%s557 + $0xc] sm:$0xf]
      %v566 = vunpack.c.l.b16 %v558
      %v567 = vunpack.c.l.b16 %v559
      %v568 = vunpack.c.l.b16 %v560
      %v569 = vunpack.c.l.b16 %v561
      %v570 = vpack.c.b16 %v567, %v566
      %v571 = vpack.c.b16 %v569, %v568
      %v575 = vsel %vm498, %v553, 0
      %v578 = vsel %vm498, %v554, 0
      %v581 = vsel %vm498, %v555, 0
      %v584 = vsel %vm498, %v556, 0
      %586 = vmatprep.subr.bf16.mxu0 0
      %587 = vmatpush1.bf16.msra.mxu0 0
      %588 = vmatprep.subr.bf16.mxu0 0
      %589 = vmatpush1.bf16.msra.mxu0 0
      %590 = vmatprep.subr.bf16.mxu0 0
      %591 = vmatpush1.bf16.msra.mxu0 0
      %592 = vmatprep.subr.bf16.mxu0 0
      %593 = vmatpush1.bf16.msra.mxu0 0
      %594 = vmatprep.subr.bf16.mxu0 0
      %595 = vmatpush1.bf16.msra.mxu0 0
      %596 = vmatprep.subr.bf16.mxu0 0
      %597 = vmatpush1.bf16.msra.mxu0 0
      %598 = vmatprep.subr.bf16.mxu0 0
      %599 = vmatpush1.bf16.msra.mxu0 %v571
      %600 = vmatprep.subr.bf16.mxu0 0
      %601 = vmatpush1.bf16.msra.mxu0 %v570
      %602 = vmatprep.subr.bf16.mxu0 0
      %603 = vmatpush2.bf16.msra.mxu0 0
      %604 = vmatprep.subr.bf16.mxu0 0
      %605 = vmatpush2.bf16.msra.mxu0 0
      %606 = vmatprep.subr.bf16.mxu0 0
      %607 = vmatpush2.bf16.msra.mxu0 0
      %608 = vmatprep.subr.bf16.mxu0 0
      %609 = vmatpush2.bf16.msra.mxu0 0
      %610 = vmatprep.subr.bf16.mxu0 0
      %611 = vmatpush2.bf16.msra.mxu0 0
      %612 = vmatprep.subr.bf16.mxu0 0
      %613 = vmatpush2.bf16.msra.mxu0 0
      %614 = vmatprep.subr.bf16.mxu0 0
      %615 = vmatpush2.bf16.msra.mxu0 0
      %616 = vmatprep.subr.bf16.mxu0 0
      %617 = vmatpush2.bf16.msra.mxu0 0
      %618 = vmatprep.mubr.bf16.mxu0 0
      %619 = vmatmul.mubr.bf16.gmra.mxu0 %v575
      %v620 = vpop.f32.mrf.mxu0
      %v621 = vadd.f32 0.0, %v620
      %v622 = vpop.f32.mrf.mxu0
      %v623 = vpop.f32.mrf.mxu0
      %v624 = vadd.f32 0.0, %v623
      %v625 = vpop.f32.mrf.mxu0
      %626 = vmatprep.mubr.bf16.mxu0 0
      %627 = vmatmul.mubr.bf16.gmra.mxu0 %v578
      %v628 = vpop.f32.mrf.mxu0
      %v629 = vadd.f32 0.0, %v628
      %v630 = vpop.f32.mrf.mxu0
      %v631 = vpop.f32.mrf.mxu0
      %v632 = vadd.f32 0.0, %v631
      %v633 = vpop.f32.mrf.mxu0
      %634 = vmatprep.mubr.bf16.mxu0 0
      %635 = vmatmul.mubr.bf16.gmra.mxu0 %v581
      %v636 = vpop.f32.mrf.mxu0
      %v637 = vadd.f32 0.0, %v636
      %v638 = vpop.f32.mrf.mxu0
      %v639 = vpop.f32.mrf.mxu0
      %v640 = vadd.f32 0.0, %v639
      %v641 = vpop.f32.mrf.mxu0
      %642 = vmatprep.mubr.bf16.mxu0 0
      %643 = vmatmul.mubr.bf16.gmra.mxu0 %v584
      %v644 = vpop.f32.mrf.mxu0
      %v645 = vadd.f32 0.0, %v644
      %v646 = vpop.f32.mrf.mxu0
      %v647 = vpop.f32.mrf.mxu0
      %v648 = vadd.f32 0.0, %v647
      %v649 = vpop.f32.mrf.mxu0
      %650 = vdwg.mxu0
      %v655 = vunpack.c.l.b16 %v541
      %v656 = vunpack.c.l.b16 %v542
      %v657 = vunpack.c.l.b16 %v543
      %v658 = vunpack.c.l.b16 %v544
      %v659 = vpack.c.b16 %v656, %v655
      %v660 = vpack.c.b16 %v658, %v657
      %v664 = vsel %vm498, %v537, 0
      %v667 = vsel %vm498, %v538, 0
      %v670 = vsel %vm498, %v539, 0
      %v673 = vsel %vm498, %v540, 0
      %675 = vmatprep.subr.bf16.mxu0 0
      %676 = vmatpush1.bf16.msra.mxu0 0
      %677 = vmatprep.subr.bf16.mxu0 0
      %678 = vmatpush1.bf16.msra.mxu0 0
      %679 = vmatprep.subr.bf16.mxu0 0
      %680 = vmatpush1.bf16.msra.mxu0 0
      %681 = vmatprep.subr.bf16.mxu0 0
      %682 = vmatpush1.bf16.msra.mxu0 0
      %683 = vmatprep.subr.bf16.mxu0 0
      %684 = vmatpush1.bf16.msra.mxu0 0
      %685 = vmatprep.subr.bf16.mxu0 0
      %686 = vmatpush1.bf16.msra.mxu0 0
      %687 = vmatprep.subr.bf16.mxu0 0
      %688 = vmatpush1.bf16.msra.mxu0 %v660
      %689 = vmatprep.subr.bf16.mxu0 0
      %690 = vmatpush1.bf16.msra.mxu0 %v659
      %691 = vmatprep.subr.bf16.mxu0 0
      %692 = vmatpush2.bf16.msra.mxu0 0
      %693 = vmatprep.subr.bf16.mxu0 0
      %694 = vmatpush2.bf16.msra.mxu0 0
      %695 = vmatprep.subr.bf16.mxu0 0
      %696 = vmatpush2.bf16.msra.mxu0 0
      %697 = vmatprep.subr.bf16.mxu0 0
      %698 = vmatpush2.bf16.msra.mxu0 0
      %699 = vmatprep.subr.bf16.mxu0 0
      %700 = vmatpush2.bf16.msra.mxu0 0
      %701 = vmatprep.subr.bf16.mxu0 0
      %702 = vmatpush2.bf16.msra.mxu0 0
      %703 = vmatprep.subr.bf16.mxu0 0
      %704 = vmatpush2.bf16.msra.mxu0 0
      %705 = vmatprep.subr.bf16.mxu0 0
      %706 = vmatpush2.bf16.msra.mxu0 0
      %707 = vmatprep.mubr.bf16.mxu0 0
      %708 = vmatmul.mubr.bf16.gmra.mxu0 %v664
      %v709 = vpop.f32.mrf.mxu0
      %v710 = vadd.f32 %v621, %v709
      %v711 = vpop.f32.mrf.mxu0
      %v712 = vpop.f32.mrf.mxu0
      %v713 = vadd.f32 %v624, %v712
      %v714 = vpop.f32.mrf.mxu0
      %715 = vmatprep.mubr.bf16.mxu0 0
      %716 = vmatmul.mubr.bf16.gmra.mxu0 %v667
      %v717 = vpop.f32.mrf.mxu0
      %v718 = vadd.f32 %v629, %v717
      %v719 = vpop.f32.mrf.mxu0
      %v720 = vpop.f32.mrf.mxu0
      %v721 = vadd.f32 %v632, %v720
      %v722 = vpop.f32.mrf.mxu0
      %723 = vmatprep.mubr.bf16.mxu0 0
      %724 = vmatmul.mubr.bf16.gmra.mxu0 %v670
      %v725 = vpop.f32.mrf.mxu0
      %v726 = vadd.f32 %v637, %v725
      %v727 = vpop.f32.mrf.mxu0
      %v728 = vpop.f32.mrf.mxu0
      %v729 = vadd.f32 %v640, %v728
      %v730 = vpop.f32.mrf.mxu0
      %731 = vmatprep.mubr.bf16.mxu0 0
      %732 = vmatmul.mubr.bf16.gmra.mxu0 %v673
      %v733 = vpop.f32.mrf.mxu0
      %v734 = vadd.f32 %v645, %v733
      %v735 = vpop.f32.mrf.mxu0
      %v736 = vpop.f32.mrf.mxu0
      %v737 = vadd.f32 %v648, %v736
      %v738 = vpop.f32.mrf.mxu0
      %739 = vdwg.mxu0
      %v740 = vld [vmem:[#allocation2 + $0x2] sm:$0xff]
      %v741 = vld [vmem:[#allocation2 + $0x12] sm:$0xff]
      %v742 = vld [vmem:[#allocation2 + $0x22] sm:$0xff]
      %v743 = vld [vmem:[#allocation2 + $0x32] sm:$0xff]
      %v744 = vld [vmem:[#allocation2 + $0x42] sm:$0xff]
      %v745 = vld [vmem:[#allocation2 + $0x52] sm:$0xff]
      %v746 = vld [vmem:[#allocation2 + $0x62] sm:$0xff]
      %v747 = vld [vmem:[#allocation2 + $0x72] sm:$0xff]
      %v748 = vpack.c.bf16 %v741, %v740
      %v749 = vpack.c.bf16 %v743, %v742
      %v750 = vpack.c.bf16 %v745, %v744
      %v751 = vpack.c.bf16 %v747, %v746
      %s752 = scalar_lea.vmem %s3, 32
      %v753 = vld [vmem:[%s752] sm:$0xf]
      %v754 = vld [vmem:[%s752 + $0x4] sm:$0xf]
      %v755 = vld [vmem:[%s752 + $0x8] sm:$0xf]
      %v756 = vld [vmem:[%s752 + $0xc] sm:$0xf]
      %v761 = vunpack.c.l.b16 %v753
      %v762 = vunpack.c.l.b16 %v754
      %v763 = vunpack.c.l.b16 %v755
      %v764 = vunpack.c.l.b16 %v756
      %v765 = vpack.c.b16 %v762, %v761
      %v766 = vpack.c.b16 %v764, %v763
      %v770 = vsel %vm498, %v748, 0
      %v773 = vsel %vm498, %v749, 0
      %v776 = vsel %vm498, %v750, 0
      %v779 = vsel %vm498, %v751, 0
      %781 = vmatprep.subr.bf16.mxu0 0
      %782 = vmatpush1.bf16.msra.mxu0 0
      %783 = vmatprep.subr.bf16.mxu0 0
      %784 = vmatpush1.bf16.msra.mxu0 0
      %785 = vmatprep.subr.bf16.mxu0 0
      %786 = vmatpush1.bf16.msra.mxu0 0
      %787 = vmatprep.subr.bf16.mxu0 0
      %788 = vmatpush1.bf16.msra.mxu0 0
      %789 = vmatprep.subr.bf16.mxu0 0
      %790 = vmatpush1.bf16.msra.mxu0 0
      %791 = vmatprep.subr.bf16.mxu0 0
      %792 = vmatpush1.bf16.msra.mxu0 0
      %793 = vmatprep.subr.bf16.mxu0 0
      %794 = vmatpush1.bf16.msra.mxu0 %v766
      %795 = vmatprep.subr.bf16.mxu0 0
      %796 = vmatpush1.bf16.msra.mxu0 %v765
      %797 = vmatprep.subr.bf16.mxu0 0
      %798 = vmatpush2.bf16.msra.mxu0 0
      %799 = vmatprep.subr.bf16.mxu0 0
      %800 = vmatpush2.bf16.msra.mxu0 0
      %801 = vmatprep.subr.bf16.mxu0 0
      %802 = vmatpush2.bf16.msra.mxu0 0
      %803 = vmatprep.subr.bf16.mxu0 0
      %804 = vmatpush2.bf16.msra.mxu0 0
      %805 = vmatprep.subr.bf16.mxu0 0
      %806 = vmatpush2.bf16.msra.mxu0 0
      %807 = vmatprep.subr.bf16.mxu0 0
      %808 = vmatpush2.bf16.msra.mxu0 0
      %809 = vmatprep.subr.bf16.mxu0 0
      %810 = vmatpush2.bf16.msra.mxu0 0
      %811 = vmatprep.subr.bf16.mxu0 0
      %812 = vmatpush2.bf16.msra.mxu0 0
      %813 = vmatprep.mubr.bf16.mxu0 0
      %814 = vmatmul.mubr.bf16.gmra.mxu0 %v770
      %v815 = vpop.f32.mrf.mxu0
      %v816 = vadd.f32 0.0, %v815
      %v817 = vpop.f32.mrf.mxu0
      %v818 = vpop.f32.mrf.mxu0
      %v819 = vadd.f32 0.0, %v818
      %v820 = vpop.f32.mrf.mxu0
      %821 = vmatprep.mubr.bf16.mxu0 0
      %822 = vmatmul.mubr.bf16.gmra.mxu0 %v773
      %v823 = vpop.f32.mrf.mxu0
      %v824 = vadd.f32 0.0, %v823
      %v825 = vpop.f32.mrf.mxu0
      %v826 = vpop.f32.mrf.mxu0
      %v827 = vadd.f32 0.0, %v826
      %v828 = vpop.f32.mrf.mxu0
      %829 = vmatprep.mubr.bf16.mxu0 0
      %830 = vmatmul.mubr.bf16.gmra.mxu0 %v776
      %v831 = vpop.f32.mrf.mxu0
      %v832 = vadd.f32 0.0, %v831
      %v833 = vpop.f32.mrf.mxu0
      %v834 = vpop.f32.mrf.mxu0
      %v835 = vadd.f32 0.0, %v834
      %v836 = vpop.f32.mrf.mxu0
      %837 = vmatprep.mubr.bf16.mxu0 0
      %838 = vmatmul.mubr.bf16.gmra.mxu0 %v779
      %v839 = vpop.f32.mrf.mxu0
      %v840 = vadd.f32 0.0, %v839
      %v841 = vpop.f32.mrf.mxu0
      %v842 = vpop.f32.mrf.mxu0
      %v843 = vadd.f32 0.0, %v842
      %v844 = vpop.f32.mrf.mxu0
      %845 = vdwg.mxu0
      %v846 = vadd.f32 %v710, %v816
      %v847 = vadd.f32 %v713, %v819
      %v848 = vadd.f32 %v718, %v824
      %v849 = vadd.f32 %v721, %v827
      %v850 = vadd.f32 %v726, %v832
      %v851 = vadd.f32 %v729, %v835
      %v852 = vadd.f32 %v734, %v840
      %v853 = vadd.f32 %v737, %v843
      %v854 = vld [vmem:[%s520] sm:$0xff]
      %v855 = vld [vmem:[%s520 + $0x10] sm:$0xff]
      %v856 = vld [vmem:[%s520 + $0x20] sm:$0xff]
      %v857 = vld [vmem:[%s520 + $0x30] sm:$0xff]
      %v858 = vld [vmem:[%s520 + $0x40] sm:$0xff]
      %v859 = vld [vmem:[%s520 + $0x50] sm:$0xff]
      %v860 = vld [vmem:[%s520 + $0x60] sm:$0xff]
      %v861 = vld [vmem:[%s520 + $0x70] sm:$0xff]
      %v862 = vpack.c.bf16 %v855, %v854
      %v863 = vpack.c.bf16 %v857, %v856
      %v864 = vpack.c.bf16 %v859, %v858
      %v865 = vpack.c.bf16 %v861, %v860
      %s866 = scalar_lea.vmem %s3, 48
      %v867 = vld [vmem:[%s866] sm:$0xf]
      %v868 = vld [vmem:[%s866 + $0x4] sm:$0xf]
      %v869 = vld [vmem:[%s866 + $0x8] sm:$0xf]
      %v870 = vld [vmem:[%s866 + $0xc] sm:$0xf]
      %v875 = vunpack.c.l.b16 %v867
      %v876 = vunpack.c.l.b16 %v868
      %v877 = vunpack.c.l.b16 %v869
      %v878 = vunpack.c.l.b16 %v870
      %v879 = vpack.c.b16 %v876, %v875
      %v880 = vpack.c.b16 %v878, %v877
      %v884 = vsel %vm498, %v862, 0
      %v887 = vsel %vm498, %v863, 0
      %v890 = vsel %vm498, %v864, 0
      %v893 = vsel %vm498, %v865, 0
      %895 = vmatprep.subr.bf16.mxu0 0
      %896 = vmatpush1.bf16.msra.mxu0 0
      %897 = vmatprep.subr.bf16.mxu0 0
      %898 = vmatpush1.bf16.msra.mxu0 0
      %899 = vmatprep.subr.bf16.mxu0 0
      %900 = vmatpush1.bf16.msra.mxu0 0
      %901 = vmatprep.subr.bf16.mxu0 0
      %902 = vmatpush1.bf16.msra.mxu0 0
      %903 = vmatprep.subr.bf16.mxu0 0
      %904 = vmatpush1.bf16.msra.mxu0 0
      %905 = vmatprep.subr.bf16.mxu0 0
      %906 = vmatpush1.bf16.msra.mxu0 0
      %907 = vmatprep.subr.bf16.mxu0 0
      %908 = vmatpush1.bf16.msra.mxu0 %v880
      %909 = vmatprep.subr.bf16.mxu0 0
      %910 = vmatpush1.bf16.msra.mxu0 %v879
      %911 = vmatprep.subr.bf16.mxu0 0
      %912 = vmatpush2.bf16.msra.mxu0 0
      %913 = vmatprep.subr.bf16.mxu0 0
      %914 = vmatpush2.bf16.msra.mxu0 0
      %915 = vmatprep.subr.bf16.mxu0 0
      %916 = vmatpush2.bf16.msra.mxu0 0
      %917 = vmatprep.subr.bf16.mxu0 0
      %918 = vmatpush2.bf16.msra.mxu0 0
      %919 = vmatprep.subr.bf16.mxu0 0
      %920 = vmatpush2.bf16.msra.mxu0 0
      %921 = vmatprep.subr.bf16.mxu0 0
      %922 = vmatpush2.bf16.msra.mxu0 0
      %923 = vmatprep.subr.bf16.mxu0 0
      %924 = vmatpush2.bf16.msra.mxu0 0
      %925 = vmatprep.subr.bf16.mxu0 0
      %926 = vmatpush2.bf16.msra.mxu0 0
      %927 = vmatprep.mubr.bf16.mxu0 0
      %928 = vmatmul.mubr.bf16.gmra.mxu0 %v884
      %v929 = vpop.f32.mrf.mxu0
      %v930 = vadd.f32 0.0, %v929
      %v931 = vpop.f32.mrf.mxu0
      %v932 = vpop.f32.mrf.mxu0
      %v933 = vadd.f32 0.0, %v932
      %v934 = vpop.f32.mrf.mxu0
      %935 = vmatprep.mubr.bf16.mxu0 0
      %936 = vmatmul.mubr.bf16.gmra.mxu0 %v887
      %v937 = vpop.f32.mrf.mxu0
      %v938 = vadd.f32 0.0, %v937
      %v939 = vpop.f32.mrf.mxu0
      %v940 = vpop.f32.mrf.mxu0
      %v941 = vadd.f32 0.0, %v940
      %v942 = vpop.f32.mrf.mxu0
      %943 = vmatprep.mubr.bf16.mxu0 0
      %944 = vmatmul.mubr.bf16.gmra.mxu0 %v890
      %v945 = vpop.f32.mrf.mxu0
      %v946 = vadd.f32 0.0, %v945
      %v947 = vpop.f32.mrf.mxu0
      %v948 = vpop.f32.mrf.mxu0
      %v949 = vadd.f32 0.0, %v948
      %v950 = vpop.f32.mrf.mxu0
      %951 = vmatprep.mubr.bf16.mxu0 0
      %952 = vmatmul.mubr.bf16.gmra.mxu0 %v893
      %v953 = vpop.f32.mrf.mxu0
      %v954 = vadd.f32 0.0, %v953
      %v955 = vpop.f32.mrf.mxu0
      %v956 = vpop.f32.mrf.mxu0
      %v957 = vadd.f32 0.0, %v956
      %v958 = vpop.f32.mrf.mxu0
      %959 = vdwg.mxu0
      %v960 = vadd.f32 %v846, %v930
      %v961 = vadd.f32 %v847, %v933
      %v962 = vadd.f32 %v848, %v938
      %v963 = vadd.f32 %v849, %v941
      %v964 = vadd.f32 %v850, %v946
      %v965 = vadd.f32 %v851, %v949
      %v966 = vadd.f32 %v852, %v954
      %v967 = vadd.f32 %v853, %v957
      %v968 = vld [vmem:[%s520 + $0x1] sm:$0xff]
      %v969 = vld [vmem:[%s520 + $0x11] sm:$0xff]
      %v970 = vld [vmem:[%s520 + $0x21] sm:$0xff]
      %v971 = vld [vmem:[%s520 + $0x31] sm:$0xff]
      %v972 = vld [vmem:[%s520 + $0x41] sm:$0xff]
      %v973 = vld [vmem:[%s520 + $0x51] sm:$0xff]
      %v974 = vld [vmem:[%s520 + $0x61] sm:$0xff]
      %v975 = vld [vmem:[%s520 + $0x71] sm:$0xff]
      %v976 = vpack.c.bf16 %v969, %v968
      %v977 = vpack.c.bf16 %v971, %v970
      %v978 = vpack.c.bf16 %v973, %v972
      %v979 = vpack.c.bf16 %v975, %v974
      %s980 = scalar_lea.vmem %s3, 64
      %v981 = vld [vmem:[%s980] sm:$0xf]
      %v982 = vld [vmem:[%s980 + $0x4] sm:$0xf]
      %v983 = vld [vmem:[%s980 + $0x8] sm:$0xf]
      %v984 = vld [vmem:[%s980 + $0xc] sm:$0xf]
      %v989 = vunpack.c.l.b16 %v981
      %v990 = vunpack.c.l.b16 %v982
      %v991 = vunpack.c.l.b16 %v983
      %v992 = vunpack.c.l.b16 %v984
      %v993 = vpack.c.b16 %v990, %v989
      %v994 = vpack.c.b16 %v992, %v991
      %v998 = vsel %vm498, %v976, 0
      %v1001 = vsel %vm498, %v977, 0
      %v1004 = vsel %vm498, %v978, 0
      %v1007 = vsel %vm498, %v979, 0
      %1009 = vmatprep.subr.bf16.mxu0 0
      %1010 = vmatpush1.bf16.msra.mxu0 0
      %1011 = vmatprep.subr.bf16.mxu0 0
      %1012 = vmatpush1.bf16.msra.mxu0 0
      %1013 = vmatprep.subr.bf16.mxu0 0
      %1014 = vmatpush1.bf16.msra.mxu0 0
      %1015 = vmatprep.subr.bf16.mxu0 0
      %1016 = vmatpush1.bf16.msra.mxu0 0
      %1017 = vmatprep.subr.bf16.mxu0 0
      %1018 = vmatpush1.bf16.msra.mxu0 0
      %1019 = vmatprep.subr.bf16.mxu0 0
      %1020 = vmatpush1.bf16.msra.mxu0 0
      %1021 = vmatprep.subr.bf16.mxu0 0
      %1022 = vmatpush1.bf16.msra.mxu0 %v994
      %1023 = vmatprep.subr.bf16.mxu0 0
      %1024 = vmatpush1.bf16.msra.mxu0 %v993
      %1025 = vmatprep.subr.bf16.mxu0 0
      %1026 = vmatpush2.bf16.msra.mxu0 0
      %1027 = vmatprep.subr.bf16.mxu0 0
      %1028 = vmatpush2.bf16.msra.mxu0 0
      %1029 = vmatprep.subr.bf16.mxu0 0
      %1030 = vmatpush2.bf16.msra.mxu0 0
      %1031 = vmatprep.subr.bf16.mxu0 0
      %1032 = vmatpush2.bf16.msra.mxu0 0
      %1033 = vmatprep.subr.bf16.mxu0 0
      %1034 = vmatpush2.bf16.msra.mxu0 0
      %1035 = vmatprep.subr.bf16.mxu0 0
      %1036 = vmatpush2.bf16.msra.mxu0 0
      %1037 = vmatprep.subr.bf16.mxu0 0
      %1038 = vmatpush2.bf16.msra.mxu0 0
      %1039 = vmatprep.subr.bf16.mxu0 0
      %1040 = vmatpush2.bf16.msra.mxu0 0
      %1041 = vmatprep.mubr.bf16.mxu0 0
      %1042 = vmatmul.mubr.bf16.gmra.mxu0 %v998
      %v1043 = vpop.f32.mrf.mxu0
      %v1044 = vadd.f32 0.0, %v1043
      %v1045 = vpop.f32.mrf.mxu0
      %v1046 = vpop.f32.mrf.mxu0
      %v1047 = vadd.f32 0.0, %v1046
      %v1048 = vpop.f32.mrf.mxu0
      %1049 = vmatprep.mubr.bf16.mxu0 0
      %1050 = vmatmul.mubr.bf16.gmra.mxu0 %v1001
      %v1051 = vpop.f32.mrf.mxu0
      %v1052 = vadd.f32 0.0, %v1051
      %v1053 = vpop.f32.mrf.mxu0
      %v1054 = vpop.f32.mrf.mxu0
      %v1055 = vadd.f32 0.0, %v1054
      %v1056 = vpop.f32.mrf.mxu0
      %1057 = vmatprep.mubr.bf16.mxu0 0
      %1058 = vmatmul.mubr.bf16.gmra.mxu0 %v1004
      %v1059 = vpop.f32.mrf.mxu0
      %v1060 = vadd.f32 0.0, %v1059
      %v1061 = vpop.f32.mrf.mxu0
      %v1062 = vpop.f32.mrf.mxu0
      %v1063 = vadd.f32 0.0, %v1062
      %v1064 = vpop.f32.mrf.mxu0
      %1065 = vmatprep.mubr.bf16.mxu0 0
      %1066 = vmatmul.mubr.bf16.gmra.mxu0 %v1007
      %v1067 = vpop.f32.mrf.mxu0
      %v1068 = vadd.f32 0.0, %v1067
      %v1069 = vpop.f32.mrf.mxu0
      %v1070 = vpop.f32.mrf.mxu0
      %v1071 = vadd.f32 0.0, %v1070
      %v1072 = vpop.f32.mrf.mxu0
      %1073 = vdwg.mxu0
      %v1074 = vadd.f32 %v960, %v1044
      %v1075 = vadd.f32 %v961, %v1047
      %v1076 = vadd.f32 %v962, %v1052
      %v1077 = vadd.f32 %v963, %v1055
      %v1078 = vadd.f32 %v964, %v1060
      %v1079 = vadd.f32 %v965, %v1063
      %v1080 = vadd.f32 %v966, %v1068
      %v1081 = vadd.f32 %v967, %v1071
      %v1082 = vld [vmem:[%s520 + $0x2] sm:$0xff]
      %v1083 = vld [vmem:[%s520 + $0x12] sm:$0xff]
      %v1084 = vld [vmem:[%s520 + $0x22] sm:$0xff]
      %v1085 = vld [vmem:[%s520 + $0x32] sm:$0xff]
      %v1086 = vld [vmem:[%s520 + $0x42] sm:$0xff]
      %v1087 = vld [vmem:[%s520 + $0x52] sm:$0xff]
      %v1088 = vld [vmem:[%s520 + $0x62] sm:$0xff]
      %v1089 = vld [vmem:[%s520 + $0x72] sm:$0xff]
      %v1090 = vpack.c.bf16 %v1083, %v1082
      %v1091 = vpack.c.bf16 %v1085, %v1084
      %v1092 = vpack.c.bf16 %v1087, %v1086
      %v1093 = vpack.c.bf16 %v1089, %v1088
      %s1094 = scalar_lea.vmem %s3, 80
      %v1095 = vld [vmem:[%s1094] sm:$0xf]
      %v1096 = vld [vmem:[%s1094 + $0x4] sm:$0xf]
      %v1097 = vld [vmem:[%s1094 + $0x8] sm:$0xf]
      %v1098 = vld [vmem:[%s1094 + $0xc] sm:$0xf]
      %v1103 = vunpack.c.l.b16 %v1095
      %v1104 = vunpack.c.l.b16 %v1096
      %v1105 = vunpack.c.l.b16 %v1097
      %v1106 = vunpack.c.l.b16 %v1098
      %v1107 = vpack.c.b16 %v1104, %v1103
      %v1108 = vpack.c.b16 %v1106, %v1105
      %v1112 = vsel %vm498, %v1090, 0
      %v1115 = vsel %vm498, %v1091, 0
      %v1118 = vsel %vm498, %v1092, 0
      %v1121 = vsel %vm498, %v1093, 0
      %1123 = vmatprep.subr.bf16.mxu0 0
      %1124 = vmatpush1.bf16.msra.mxu0 0
      %1125 = vmatprep.subr.bf16.mxu0 0
      %1126 = vmatpush1.bf16.msra.mxu0 0
      %1127 = vmatprep.subr.bf16.mxu0 0
      %1128 = vmatpush1.bf16.msra.mxu0 0
      %1129 = vmatprep.subr.bf16.mxu0 0
      %1130 = vmatpush1.bf16.msra.mxu0 0
      %1131 = vmatprep.subr.bf16.mxu0 0
      %1132 = vmatpush1.bf16.msra.mxu0 0
      %1133 = vmatprep.subr.bf16.mxu0 0
      %1134 = vmatpush1.bf16.msra.mxu0 0
      %1135 = vmatprep.subr.bf16.mxu0 0
      %1136 = vmatpush1.bf16.msra.mxu0 %v1108
      %1137 = vmatprep.subr.bf16.mxu0 0
      %1138 = vmatpush1.bf16.msra.mxu0 %v1107
      %1139 = vmatprep.subr.bf16.mxu0 0
      %1140 = vmatpush2.bf16.msra.mxu0 0
      %1141 = vmatprep.subr.bf16.mxu0 0
      %1142 = vmatpush2.bf16.msra.mxu0 0
      %1143 = vmatprep.subr.bf16.mxu0 0
      %1144 = vmatpush2.bf16.msra.mxu0 0
      %1145 = vmatprep.subr.bf16.mxu0 0
      %1146 = vmatpush2.bf16.msra.mxu0 0
      %1147 = vmatprep.subr.bf16.mxu0 0
      %1148 = vmatpush2.bf16.msra.mxu0 0
      %1149 = vmatprep.subr.bf16.mxu0 0
      %1150 = vmatpush2.bf16.msra.mxu0 0
      %1151 = vmatprep.subr.bf16.mxu0 0
      %1152 = vmatpush2.bf16.msra.mxu0 0
      %1153 = vmatprep.subr.bf16.mxu0 0
      %1154 = vmatpush2.bf16.msra.mxu0 0
      %1155 = vmatprep.mubr.bf16.mxu0 0
      %1156 = vmatmul.mubr.bf16.gmra.mxu0 %v1112
      %v1157 = vpop.f32.mrf.mxu0
      %v1158 = vadd.f32 0.0, %v1157
      %v1159 = vpop.f32.mrf.mxu0
      %v1160 = vpop.f32.mrf.mxu0
      %v1161 = vadd.f32 0.0, %v1160
      %v1162 = vpop.f32.mrf.mxu0
      %1163 = vmatprep.mubr.bf16.mxu0 0
      %1164 = vmatmul.mubr.bf16.gmra.mxu0 %v1115
      %v1165 = vpop.f32.mrf.mxu0
      %v1166 = vadd.f32 0.0, %v1165
      %v1167 = vpop.f32.mrf.mxu0
      %v1168 = vpop.f32.mrf.mxu0
      %v1169 = vadd.f32 0.0, %v1168
      %v1170 = vpop.f32.mrf.mxu0
      %1171 = vmatprep.mubr.bf16.mxu0 0
      %1172 = vmatmul.mubr.bf16.gmra.mxu0 %v1118
      %v1173 = vpop.f32.mrf.mxu0
      %v1174 = vadd.f32 0.0, %v1173
      %v1175 = vpop.f32.mrf.mxu0
      %v1176 = vpop.f32.mrf.mxu0
      %v1177 = vadd.f32 0.0, %v1176
      %v1178 = vpop.f32.mrf.mxu0
      %1179 = vmatprep.mubr.bf16.mxu0 0
      %1180 = vmatmul.mubr.bf16.gmra.mxu0 %v1121
      %v1181 = vpop.f32.mrf.mxu0
      %v1182 = vadd.f32 0.0, %v1181
      %v1183 = vpop.f32.mrf.mxu0
      %v1184 = vpop.f32.mrf.mxu0
      %v1185 = vadd.f32 0.0, %v1184
      %v1186 = vpop.f32.mrf.mxu0
      %1187 = vdwg.mxu0
      %v1188 = vadd.f32 %v1074, %v1158
      %v1189 = vadd.f32 %v1075, %v1161
      %v1190 = vadd.f32 %v1076, %v1166
      %v1191 = vadd.f32 %v1077, %v1169
      %v1192 = vadd.f32 %v1078, %v1174
      %v1193 = vadd.f32 %v1079, %v1177
      %v1194 = vadd.f32 %v1080, %v1182
      %v1195 = vadd.f32 %v1081, %v1185
      %s1196 = scalar_lea.vmem [#allocation2], 32
      %v1197 = vld [vmem:[%s1196] sm:$0xff]
      %v1198 = vld [vmem:[%s1196 + $0x10] sm:$0xff]
      %v1199 = vld [vmem:[%s1196 + $0x20] sm:$0xff]
      %v1200 = vld [vmem:[%s1196 + $0x30] sm:$0xff]
      %v1201 = vld [vmem:[%s1196 + $0x40] sm:$0xff]
      %v1202 = vld [vmem:[%s1196 + $0x50] sm:$0xff]
      %v1203 = vld [vmem:[%s1196 + $0x60] sm:$0xff]
      %v1204 = vld [vmem:[%s1196 + $0x70] sm:$0xff]
      %v1205 = vpack.c.bf16 %v1198, %v1197
      %v1206 = vpack.c.bf16 %v1200, %v1199
      %v1207 = vpack.c.bf16 %v1202, %v1201
      %v1208 = vpack.c.bf16 %v1204, %v1203
      %s1209 = scalar_lea.vmem %s3, 96
      %v1210 = vld [vmem:[%s1209] sm:$0xf]
      %v1211 = vld [vmem:[%s1209 + $0x4] sm:$0xf]
      %v1212 = vld [vmem:[%s1209 + $0x8] sm:$0xf]
      %v1213 = vld [vmem:[%s1209 + $0xc] sm:$0xf]
      %v1218 = vunpack.c.l.b16 %v1210
      %v1219 = vunpack.c.l.b16 %v1211
      %v1220 = vunpack.c.l.b16 %v1212
      %v1221 = vunpack.c.l.b16 %v1213
      %v1222 = vpack.c.b16 %v1219, %v1218
      %v1223 = vpack.c.b16 %v1221, %v1220
      %v1227 = vsel %vm498, %v1205, 0
      %v1230 = vsel %vm498, %v1206, 0
      %v1233 = vsel %vm498, %v1207, 0
      %v1236 = vsel %vm498, %v1208, 0
      %1238 = vmatprep.subr.bf16.mxu0 0
      %1239 = vmatpush1.bf16.msra.mxu0 0
      %1240 = vmatprep.subr.bf16.mxu0 0
      %1241 = vmatpush1.bf16.msra.mxu0 0
      %1242 = vmatprep.subr.bf16.mxu0 0
      %1243 = vmatpush1.bf16.msra.mxu0 0
      %1244 = vmatprep.subr.bf16.mxu0 0
      %1245 = vmatpush1.bf16.msra.mxu0 0
      %1246 = vmatprep.subr.bf16.mxu0 0
      %1247 = vmatpush1.bf16.msra.mxu0 0
      %1248 = vmatprep.subr.bf16.mxu0 0
      %1249 = vmatpush1.bf16.msra.mxu0 0
      %1250 = vmatprep.subr.bf16.mxu0 0
      %1251 = vmatpush1.bf16.msra.mxu0 %v1223
      %1252 = vmatprep.subr.bf16.mxu0 0
      %1253 = vmatpush1.bf16.msra.mxu0 %v1222
      %1254 = vmatprep.subr.bf16.mxu0 0
      %1255 = vmatpush2.bf16.msra.mxu0 0
      %1256 = vmatprep.subr.bf16.mxu0 0
      %1257 = vmatpush2.bf16.msra.mxu0 0
      %1258 = vmatprep.subr.bf16.mxu0 0
      %1259 = vmatpush2.bf16.msra.mxu0 0
      %1260 = vmatprep.subr.bf16.mxu0 0
      %1261 = vmatpush2.bf16.msra.mxu0 0
      %1262 = vmatprep.subr.bf16.mxu0 0
      %1263 = vmatpush2.bf16.msra.mxu0 0
      %1264 = vmatprep.subr.bf16.mxu0 0
      %1265 = vmatpush2.bf16.msra.mxu0 0
      %1266 = vmatprep.subr.bf16.mxu0 0
      %1267 = vmatpush2.bf16.msra.mxu0 0
      %1268 = vmatprep.subr.bf16.mxu0 0
      %1269 = vmatpush2.bf16.msra.mxu0 0
      %1270 = vmatprep.mubr.bf16.mxu0 0
      %1271 = vmatmul.mubr.bf16.gmra.mxu0 %v1227
      %v1272 = vpop.f32.mrf.mxu0
      %v1273 = vadd.f32 0.0, %v1272
      %v1274 = vpop.f32.mrf.mxu0
      %v1275 = vpop.f32.mrf.mxu0
      %v1276 = vadd.f32 0.0, %v1275
      %v1277 = vpop.f32.mrf.mxu0
      %1278 = vmatprep.mubr.bf16.mxu0 0
      %1279 = vmatmul.mubr.bf16.gmra.mxu0 %v1230
      %v1280 = vpop.f32.mrf.mxu0
      %v1281 = vadd.f32 0.0, %v1280
      %v1282 = vpop.f32.mrf.mxu0
      %v1283 = vpop.f32.mrf.mxu0
      %v1284 = vadd.f32 0.0, %v1283
      %v1285 = vpop.f32.mrf.mxu0
      %1286 = vmatprep.mubr.bf16.mxu0 0
      %1287 = vmatmul.mubr.bf16.gmra.mxu0 %v1233
      %v1288 = vpop.f32.mrf.mxu0
      %v1289 = vadd.f32 0.0, %v1288
      %v1290 = vpop.f32.mrf.mxu0
      %v1291 = vpop.f32.mrf.mxu0
      %v1292 = vadd.f32 0.0, %v1291
      %v1293 = vpop.f32.mrf.mxu0
      %1294 = vmatprep.mubr.bf16.mxu0 0
      %1295 = vmatmul.mubr.bf16.gmra.mxu0 %v1236
      %v1296 = vpop.f32.mrf.mxu0
      %v1297 = vadd.f32 0.0, %v1296
      %v1298 = vpop.f32.mrf.mxu0
      %v1299 = vpop.f32.mrf.mxu0
      %v1300 = vadd.f32 0.0, %v1299
      %v1301 = vpop.f32.mrf.mxu0
      %1302 = vdwg.mxu0
      %v1303 = vadd.f32 %v1188, %v1273
      %v1304 = vadd.f32 %v1189, %v1276
      %v1305 = vadd.f32 %v1190, %v1281
      %v1306 = vadd.f32 %v1191, %v1284
      %v1307 = vadd.f32 %v1192, %v1289
      %v1308 = vadd.f32 %v1193, %v1292
      %v1309 = vadd.f32 %v1194, %v1297
      %v1310 = vadd.f32 %v1195, %v1300
      %v1311 = vld [vmem:[%s1196 + $0x1] sm:$0xff]
      %v1312 = vld [vmem:[%s1196 + $0x11] sm:$0xff]
      %v1313 = vld [vmem:[%s1196 + $0x21] sm:$0xff]
      %v1314 = vld [vmem:[%s1196 + $0x31] sm:$0xff]
      %v1315 = vld [vmem:[%s1196 + $0x41] sm:$0xff]
      %v1316 = vld [vmem:[%s1196 + $0x51] sm:$0xff]
      %v1317 = vld [vmem:[%s1196 + $0x61] sm:$0xff]
      %v1318 = vld [vmem:[%s1196 + $0x71] sm:$0xff]
      %v1319 = vpack.c.bf16 %v1312, %v1311
      %v1320 = vpack.c.bf16 %v1314, %v1313
      %v1321 = vpack.c.bf16 %v1316, %v1315
      %v1322 = vpack.c.bf16 %v1318, %v1317
      %s1323 = scalar_lea.vmem %s3, 112
      %v1324 = vld [vmem:[%s1323] sm:$0xf]
      %v1325 = vld [vmem:[%s1323 + $0x4] sm:$0xf]
      %v1326 = vld [vmem:[%s1323 + $0x8] sm:$0xf]
      %v1327 = vld [vmem:[%s1323 + $0xc] sm:$0xf]
      %v1332 = vunpack.c.l.b16 %v1324
      %v1333 = vunpack.c.l.b16 %v1325
      %v1334 = vunpack.c.l.b16 %v1326
      %v1335 = vunpack.c.l.b16 %v1327
      %v1336 = vpack.c.b16 %v1333, %v1332
      %v1337 = vpack.c.b16 %v1335, %v1334
      %v1341 = vsel %vm498, %v1319, 0
      %v1344 = vsel %vm498, %v1320, 0
      %v1347 = vsel %vm498, %v1321, 0
      %v1350 = vsel %vm498, %v1322, 0
      %1352 = vmatprep.subr.bf16.mxu0 0
      %1353 = vmatpush1.bf16.msra.mxu0 0
      %1354 = vmatprep.subr.bf16.mxu0 0
      %1355 = vmatpush1.bf16.msra.mxu0 0
      %1356 = vmatprep.subr.bf16.mxu0 0
      %1357 = vmatpush1.bf16.msra.mxu0 0
      %1358 = vmatprep.subr.bf16.mxu0 0
      %1359 = vmatpush1.bf16.msra.mxu0 0
      %1360 = vmatprep.subr.bf16.mxu0 0
      %1361 = vmatpush1.bf16.msra.mxu0 0
      %1362 = vmatprep.subr.bf16.mxu0 0
      %1363 = vmatpush1.bf16.msra.mxu0 0
      %1364 = vmatprep.subr.bf16.mxu0 0
      %1365 = vmatpush1.bf16.msra.mxu0 %v1337
      %1366 = vmatprep.subr.bf16.mxu0 0
      %1367 = vmatpush1.bf16.msra.mxu0 %v1336
      %1368 = vmatprep.subr.bf16.mxu0 0
      %1369 = vmatpush2.bf16.msra.mxu0 0
      %1370 = vmatprep.subr.bf16.mxu0 0
      %1371 = vmatpush2.bf16.msra.mxu0 0
      %1372 = vmatprep.subr.bf16.mxu0 0
      %1373 = vmatpush2.bf16.msra.mxu0 0
      %1374 = vmatprep.subr.bf16.mxu0 0
      %1375 = vmatpush2.bf16.msra.mxu0 0
      %1376 = vmatprep.subr.bf16.mxu0 0
      %1377 = vmatpush2.bf16.msra.mxu0 0
      %1378 = vmatprep.subr.bf16.mxu0 0
      %1379 = vmatpush2.bf16.msra.mxu0 0
      %1380 = vmatprep.subr.bf16.mxu0 0
      %1381 = vmatpush2.bf16.msra.mxu0 0
      %1382 = vmatprep.subr.bf16.mxu0 0
      %1383 = vmatpush2.bf16.msra.mxu0 0
      %1384 = vmatprep.mubr.bf16.mxu0 0
      %1385 = vmatmul.mubr.bf16.gmra.mxu0 %v1341
      %v1386 = vpop.f32.mrf.mxu0
      %v1387 = vadd.f32 0.0, %v1386
      %v1388 = vpop.f32.mrf.mxu0
      %v1389 = vpop.f32.mrf.mxu0
      %v1390 = vadd.f32 0.0, %v1389
      %v1391 = vpop.f32.mrf.mxu0
      %1392 = vmatprep.mubr.bf16.mxu0 0
      %1393 = vmatmul.mubr.bf16.gmra.mxu0 %v1344
      %v1394 = vpop.f32.mrf.mxu0
      %v1395 = vadd.f32 0.0, %v1394
      %v1396 = vpop.f32.mrf.mxu0
      %v1397 = vpop.f32.mrf.mxu0
      %v1398 = vadd.f32 0.0, %v1397
      %v1399 = vpop.f32.mrf.mxu0
      %1400 = vmatprep.mubr.bf16.mxu0 0
      %1401 = vmatmul.mubr.bf16.gmra.mxu0 %v1347
      %v1402 = vpop.f32.mrf.mxu0
      %v1403 = vadd.f32 0.0, %v1402
      %v1404 = vpop.f32.mrf.mxu0
      %v1405 = vpop.f32.mrf.mxu0
      %v1406 = vadd.f32 0.0, %v1405
      %v1407 = vpop.f32.mrf.mxu0
      %1408 = vmatprep.mubr.bf16.mxu0 0
      %1409 = vmatmul.mubr.bf16.gmra.mxu0 %v1350
      %v1410 = vpop.f32.mrf.mxu0
      %v1411 = vadd.f32 0.0, %v1410
      %v1412 = vpop.f32.mrf.mxu0
      %v1413 = vpop.f32.mrf.mxu0
      %v1414 = vadd.f32 0.0, %v1413
      %v1415 = vpop.f32.mrf.mxu0
      %1416 = vdwg.mxu0
      %v1417 = vadd.f32 %v1303, %v1387
      %v1418 = vadd.f32 %v1304, %v1390
      %v1419 = vadd.f32 %v1305, %v1395
      %v1420 = vadd.f32 %v1306, %v1398
      %v1421 = vadd.f32 %v1307, %v1403
      %v1422 = vadd.f32 %v1308, %v1406
      %v1423 = vadd.f32 %v1309, %v1411
      %v1424 = vadd.f32 %v1310, %v1414
      %v1425 = vld [vmem:[%s1196 + $0x2] sm:$0xff]
      %v1426 = vld [vmem:[%s1196 + $0x12] sm:$0xff]
      %v1427 = vld [vmem:[%s1196 + $0x22] sm:$0xff]
      %v1428 = vld [vmem:[%s1196 + $0x32] sm:$0xff]
      %v1429 = vld [vmem:[%s1196 + $0x42] sm:$0xff]
      %v1430 = vld [vmem:[%s1196 + $0x52] sm:$0xff]
      %v1431 = vld [vmem:[%s1196 + $0x62] sm:$0xff]
      %v1432 = vld [vmem:[%s1196 + $0x72] sm:$0xff]
      %v1433 = vpack.c.bf16 %v1426, %v1425
      %v1434 = vpack.c.bf16 %v1428, %v1427
      %v1435 = vpack.c.bf16 %v1430, %v1429
      %v1436 = vpack.c.bf16 %v1432, %v1431
      %s1437 = scalar_lea.vmem %s3, 128
      %v1438 = vld [vmem:[%s1437] sm:$0xf]
      %v1439 = vld [vmem:[%s1437 + $0x4] sm:$0xf]
      %v1440 = vld [vmem:[%s1437 + $0x8] sm:$0xf]
      %v1441 = vld [vmem:[%s1437 + $0xc] sm:$0xf]
      %v1446 = vunpack.c.l.b16 %v1438
      %v1447 = vunpack.c.l.b16 %v1439
      %v1448 = vunpack.c.l.b16 %v1440
      %v1449 = vunpack.c.l.b16 %v1441
      %v1450 = vpack.c.b16 %v1447, %v1446
      %v1451 = vpack.c.b16 %v1449, %v1448
      %v1455 = vsel %vm498, %v1433, 0
      %v1458 = vsel %vm498, %v1434, 0
      %v1461 = vsel %vm498, %v1435, 0
      %v1464 = vsel %vm498, %v1436, 0
      %1466 = vmatprep.subr.bf16.mxu0 0
      %1467 = vmatpush1.bf16.msra.mxu0 0
      %1468 = vmatprep.subr.bf16.mxu0 0
      %1469 = vmatpush1.bf16.msra.mxu0 0
      %1470 = vmatprep.subr.bf16.mxu0 0
      %1471 = vmatpush1.bf16.msra.mxu0 0
      %1472 = vmatprep.subr.bf16.mxu0 0
      %1473 = vmatpush1.bf16.msra.mxu0 0
      %1474 = vmatprep.subr.bf16.mxu0 0
      %1475 = vmatpush1.bf16.msra.mxu0 0
      %1476 = vmatprep.subr.bf16.mxu0 0
      %1477 = vmatpush1.bf16.msra.mxu0 0
      %1478 = vmatprep.subr.bf16.mxu0 0
      %1479 = vmatpush1.bf16.msra.mxu0 %v1451
      %1480 = vmatprep.subr.bf16.mxu0 0
      %1481 = vmatpush1.bf16.msra.mxu0 %v1450
      %1482 = vmatprep.subr.bf16.mxu0 0
      %1483 = vmatpush2.bf16.msra.mxu0 0
      %1484 = vmatprep.subr.bf16.mxu0 0
      %1485 = vmatpush2.bf16.msra.mxu0 0
      %1486 = vmatprep.subr.bf16.mxu0 0
      %1487 = vmatpush2.bf16.msra.mxu0 0
      %1488 = vmatprep.subr.bf16.mxu0 0
      %1489 = vmatpush2.bf16.msra.mxu0 0
      %1490 = vmatprep.subr.bf16.mxu0 0
      %1491 = vmatpush2.bf16.msra.mxu0 0
      %1492 = vmatprep.subr.bf16.mxu0 0
      %1493 = vmatpush2.bf16.msra.mxu0 0
      %1494 = vmatprep.subr.bf16.mxu0 0
      %1495 = vmatpush2.bf16.msra.mxu0 0
      %1496 = vmatprep.subr.bf16.mxu0 0
      %1497 = vmatpush2.bf16.msra.mxu0 0
      %1498 = vmatprep.mubr.bf16.mxu0 0
      %1499 = vmatmul.mubr.bf16.gmra.mxu0 %v1455
      %v1500 = vpop.f32.mrf.mxu0
      %v1501 = vadd.f32 0.0, %v1500
      %v1502 = vpop.f32.mrf.mxu0
      %v1503 = vpop.f32.mrf.mxu0
      %v1504 = vadd.f32 0.0, %v1503
      %v1505 = vpop.f32.mrf.mxu0
      %1506 = vmatprep.mubr.bf16.mxu0 0
      %1507 = vmatmul.mubr.bf16.gmra.mxu0 %v1458
      %v1508 = vpop.f32.mrf.mxu0
      %v1509 = vadd.f32 0.0, %v1508
      %v1510 = vpop.f32.mrf.mxu0
      %v1511 = vpop.f32.mrf.mxu0
      %v1512 = vadd.f32 0.0, %v1511
      %v1513 = vpop.f32.mrf.mxu0
      %1514 = vmatprep.mubr.bf16.mxu0 0
      %1515 = vmatmul.mubr.bf16.gmra.mxu0 %v1461
      %v1516 = vpop.f32.mrf.mxu0
      %v1517 = vadd.f32 0.0, %v1516
      %v1518 = vpop.f32.mrf.mxu0
      %v1519 = vpop.f32.mrf.mxu0
      %v1520 = vadd.f32 0.0, %v1519
      %v1521 = vpop.f32.mrf.mxu0
      %1522 = vmatprep.mubr.bf16.mxu0 0
      %1523 = vmatmul.mubr.bf16.gmra.mxu0 %v1464
      %v1524 = vpop.f32.mrf.mxu0
      %v1525 = vadd.f32 0.0, %v1524
      %v1526 = vpop.f32.mrf.mxu0
      %v1527 = vpop.f32.mrf.mxu0
      %v1528 = vadd.f32 0.0, %v1527
      %v1529 = vpop.f32.mrf.mxu0
      %1530 = vdwg.mxu0
      %v1531 = vadd.f32 %v1417, %v1501
      %v1532 = vadd.f32 %v1418, %v1504
      %v1533 = vadd.f32 %v1419, %v1509
      %v1534 = vadd.f32 %v1420, %v1512
      %v1535 = vadd.f32 %v1421, %v1517
      %v1536 = vadd.f32 %v1422, %v1520
      %v1537 = vadd.f32 %v1423, %v1525
      %v1538 = vadd.f32 %v1424, %v1528
      %v1539 = vld [vmem:[%s4] sm:$0x1]
      %v1541 = vlaneseq
      %v1542 = vshrl.u32 %v1541, 7
      %v1543 = vsub.s32 0, %v1542
      %v1544 = vrot.slane %v1539, %v1543
      %v1546 = vadd.f32 %v1531, %v1544
      %v1547 = vadd.f32 %v1532, %v1544
      %v1548 = vadd.f32 %v1533, %v1544
      %v1549 = vadd.f32 %v1534, %v1544
      %v1550 = vadd.f32 %v1535, %v1544
      %v1551 = vadd.f32 %v1536, %v1544
      %v1552 = vadd.f32 %v1537, %v1544
      %v1553 = vadd.f32 %v1538, %v1544
      %v1554 = vmax.f32 %v1546, 0.0
      %v1555 = vmax.f32 %v1547, 0.0
      %v1556 = vmax.f32 %v1548, 0.0
      %v1557 = vmax.f32 %v1549, 0.0
      %v1558 = vmax.f32 %v1550, 0.0
      %v1559 = vmax.f32 %v1551, 0.0
      %v1560 = vmax.f32 %v1552, 0.0
      %v1561 = vmax.f32 %v1553, 0.0
      %v1562 = vpack.c.bf16 %v1555, %v1554
      %v1563 = vpack.c.bf16 %v1557, %v1556
      %v1564 = vpack.c.bf16 %v1559, %v1558
      %v1565 = vpack.c.bf16 %v1561, %v1560
      %v1566 = vld [vmem:[%s5] sm:$0xf]
      %v1567 = vld [vmem:[%s5 + $0x4] sm:$0xf]
      %v1568 = vld [vmem:[%s5 + $0x8] sm:$0xf]
      %v1569 = vld [vmem:[%s5 + $0xc] sm:$0xf]
      %v1570 = vld [vmem:[%s6] sm:$0x1]
      %v1572 = vlaneseq
      %v1573 = vshrl.u32 %v1572, 7
      %v1574 = vsub.s32 0, %v1573
      %v1575 = vrot.slane %v1570, %v1574
      %v1581 = vunpack.c.l.b16 %v1566
      %v1582 = vunpack.c.l.b16 %v1567
      %v1583 = vunpack.c.l.b16 %v1568
      %v1584 = vunpack.c.l.b16 %v1569
      %v1585 = vpack.c.b16 %v1582, %v1581
      %v1586 = vpack.c.b16 %v1584, %v1583
      %v1590 = vsel %vm498, %v1562, 0
      %v1593 = vsel %vm498, %v1563, 0
      %v1596 = vsel %vm498, %v1564, 0
      %v1599 = vsel %vm498, %v1565, 0
      %1601 = vmatprep.subr.bf16.mxu0 0
      %1602 = vmatpush1.bf16.msra.mxu0 0
      %1603 = vmatprep.subr.bf16.mxu0 0
      %1604 = vmatpush1.bf16.msra.mxu0 0
      %1605 = vmatprep.subr.bf16.mxu0 0
      %1606 = vmatpush1.bf16.msra.mxu0 0
      %1607 = vmatprep.subr.bf16.mxu0 0
      %1608 = vmatpush1.bf16.msra.mxu0 0
      %1609 = vmatprep.subr.bf16.mxu0 0
      %1610 = vmatpush1.bf16.msra.mxu0 0
      %1611 = vmatprep.subr.bf16.mxu0 0
      %1612 = vmatpush1.bf16.msra.mxu0 0
      %1613 = vmatprep.subr.bf16.mxu0 0
      %1614 = vmatpush1.bf16.msra.mxu0 %v1586
      %1615 = vmatprep.subr.bf16.mxu0 0
      %1616 = vmatpush1.bf16.msra.mxu0 %v1585
      %1617 = vmatprep.subr.bf16.mxu0 0
      %1618 = vmatpush2.bf16.msra.mxu0 0
      %1619 = vmatprep.subr.bf16.mxu0 0
      %1620 = vmatpush2.bf16.msra.mxu0 0
      %1621 = vmatprep.subr.bf16.mxu0 0
      %1622 = vmatpush2.bf16.msra.mxu0 0
      %1623 = vmatprep.subr.bf16.mxu0 0
      %1624 = vmatpush2.bf16.msra.mxu0 0
      %1625 = vmatprep.subr.bf16.mxu0 0
      %1626 = vmatpush2.bf16.msra.mxu0 0
      %1627 = vmatprep.subr.bf16.mxu0 0
      %1628 = vmatpush2.bf16.msra.mxu0 0
      %1629 = vmatprep.subr.bf16.mxu0 0
      %1630 = vmatpush2.bf16.msra.mxu0 0
      %1631 = vmatprep.subr.bf16.mxu0 0
      %1632 = vmatpush2.bf16.msra.mxu0 0
      %1633 = vmatprep.mubr.bf16.mxu0 0
      %1634 = vmatmul.mubr.bf16.gmra.mxu0 %v1590
      %v1635 = vpop.f32.mrf.mxu0
      %v1636 = vadd.f32 %v1575, %v1635
      %v1637 = vpop.f32.mrf.mxu0
      %v1638 = vpop.f32.mrf.mxu0
      %v1639 = vadd.f32 %v1575, %v1638
      %v1640 = vpop.f32.mrf.mxu0
      %1641 = vmatprep.mubr.bf16.mxu0 0
      %1642 = vmatmul.mubr.bf16.gmra.mxu0 %v1593
      %v1643 = vpop.f32.mrf.mxu0
      %v1644 = vadd.f32 %v1575, %v1643
      %v1645 = vpop.f32.mrf.mxu0
      %v1646 = vpop.f32.mrf.mxu0
      %v1647 = vadd.f32 %v1575, %v1646
      %v1648 = vpop.f32.mrf.mxu0
      %1649 = vmatprep.mubr.bf16.mxu0 0
      %1650 = vmatmul.mubr.bf16.gmra.mxu0 %v1596
      %v1651 = vpop.f32.mrf.mxu0
      %v1652 = vadd.f32 %v1575, %v1651
      %v1653 = vpop.f32.mrf.mxu0
      %v1654 = vpop.f32.mrf.mxu0
      %v1655 = vadd.f32 %v1575, %v1654
      %v1656 = vpop.f32.mrf.mxu0
      %1657 = vmatprep.mubr.bf16.mxu0 0
      %1658 = vmatmul.mubr.bf16.gmra.mxu0 %v1599
      %v1659 = vpop.f32.mrf.mxu0
      %v1660 = vadd.f32 %v1575, %v1659
      %v1661 = vpop.f32.mrf.mxu0
      %v1662 = vpop.f32.mrf.mxu0
      %v1663 = vadd.f32 %v1575, %v1662
      %v1664 = vpop.f32.mrf.mxu0
      %1665 = vdwg.mxu0
      %vm1666 = vcmask 162816
      %1667 = vst.msk [vmem:[%s318] sm:$0xff] %vm1666, %v1636
      %1668 = vst.msk [vmem:[%s318 + $0x8] sm:$0xff] %vm1666, %v1639
      %1669 = vst.msk [vmem:[%s318 + $0x10] sm:$0xff] %vm1666, %v1644
      %1670 = vst.msk [vmem:[%s318 + $0x18] sm:$0xff] %vm1666, %v1647
      %1671 = vst.msk [vmem:[%s318 + $0x20] sm:$0xff] %vm1666, %v1652
      %1672 = vst.msk [vmem:[%s318 + $0x28] sm:$0xff] %vm1666, %v1655
      %1673 = vst.msk [vmem:[%s318 + $0x30] sm:$0xff] %vm1666, %v1660
      %1674 = vst.msk [vmem:[%s318 + $0x38] sm:$0xff] %vm1666, %v1663
      %p1675 = scmp.lt.s32.totalorder %s20, 1
      %s1676 = scalar_select %p1675, %s20, 1
      %s1677 = smul.addr %s1676, 8
      %s1678 = smul.addr %s1677, 4
      %s1679 = scalar_lea.vmem %s7, %s1678
      %p1680 = scmp.lt.s32.totalorder %s20, 1
      %s1681 = scalar_select %p1680, %s20, 1
      %s1682 = smul.addr %s1681, 8
      %s1683 = smul.addr %s1682, 8
      %s1684 = scalar_lea.vmem %s8, %s1683
      // Predicated region
      $region49: #{two_stage_anchor_based_lane_detector.10} parent=47 // pred_check
        %p1685 = pneg %p190
      $region50: #{two_stage_anchor_based_lane_detector.10} parent=47 // pred_check_branch
        %1687 = sbr.rel (%p1685) target = $region52
      $region51: #{two_stage_anchor_based_lane_detector.10} parent=47 // pred_region
        _
      $region52: #{two_stage_anchor_based_lane_detector.10} parent=47 // pred_fallthru
        _
      // Predicated region
      $region53: #{two_stage_anchor_based_lane_detector.10} parent=47 // pred_check
        %p1688 = pneg %p216
      $region54: #{two_stage_anchor_based_lane_detector.10} parent=47 // pred_check_branch
        %1690 = sbr.rel (%p1688) target = $region56
      $region55: #{two_stage_anchor_based_lane_detector.10} parent=47 // pred_region
        _
      $region56: #{two_stage_anchor_based_lane_detector.10} parent=47 // pred_fallthru
        _
    $region48: #{two_stage_anchor_based_lane_detector.10} parent=5 // pred_fallthru
      _
    %p1691 = scmp.le.s32.totalorder 2, %s15
    // Predicated region
    $region57: #{two_stage_anchor_based_lane_detector.10} parent=5 // pred_check
      %p1692 = pneg %p1691
    $region58: #{two_stage_anchor_based_lane_detector.10} parent=5 // pred_check_branch
      %1694 = sbr.rel (%p1692) target = $region60
    $region59: #{two_stage_anchor_based_lane_detector.10} parent=5 // pred_region
      %s1695 = ssub.s32 %s15, 2
      // Predicated region
      $region61: #{two_stage_anchor_based_lane_detector.10} parent=59 // pred_check
        %p1696 = pneg %p196
      $region62: #{two_stage_anchor_based_lane_detector.10} parent=59 // pred_check_branch
        %1698 = sbr.rel (%p1696) target = $region64
      $region63: #{two_stage_anchor_based_lane_detector.10} parent=59 // pred_region
        %p1699 = scmp.lt.s32.totalorder %s21, 1
        %s1700 = scalar_select %p1699, %s21, 1
        %s1701 = smul.addr %s1700, 8
        %s1702 = smul.addr %s1701, 4
        %s1703 = scalar_lea.vmem %s7, %s1702
      $region64: #{two_stage_anchor_based_lane_detector.10} parent=59 // pred_fallthru
        _
      // Predicated region
      $region65: #{two_stage_anchor_based_lane_detector.10} parent=59 // pred_check
        %p1704 = pneg %p222
      $region66: #{two_stage_anchor_based_lane_detector.10} parent=59 // pred_check_branch
        %1706 = sbr.rel (%p1704) target = $region68
      $region67: #{two_stage_anchor_based_lane_detector.10} parent=59 // pred_region
        %p1707 = scmp.lt.s32.totalorder %s21, 1
        %s1708 = scalar_select %p1707, %s21, 1
        %s1709 = smul.addr %s1708, 8
        %s1710 = smul.addr %s1709, 8
        %s1711 = scalar_lea.vmem %s8, %s1710
      $region68: #{two_stage_anchor_based_lane_detector.10} parent=59 // pred_fallthru
        _
    $region60: #{two_stage_anchor_based_lane_detector.10} parent=5 // pred_fallthru
      _
  $region6: #{two_stage_anchor_based_lane_detector.10} parent=0 // loop_footer
    %s19 = sadd.s32 1, %s15
  $region7: #{two_stage_anchor_based_lane_detector.10} parent=0 // loop_footer_branch
    %14 = sbr.rel target = $region3
  $region8: #{two_stage_anchor_based_lane_detector.10} parent=0 // loop_exit
    _

</llo_original>
